<compile_context>
chip_gen: v7x
topology: tpu7x:2x2x1
jax: 0.10.0
libtpu: 0.0.40
codegen_flags: <defaults>
</compile_context>

<pallas_src>
import functools

import numpy as np
import jax
import jax.numpy as jnp
from jax.experimental import pallas as pl
from jax.experimental.pallas import tpu as pltpu


# ------------------------------------------------------------------ helpers --
def _flat_stride(meta):
    """Common flat row stride W2 shared by every padded scratch / accumulator."""
    channels = meta["channels"]
    K = meta["kernel_size"]
    n_layers = len(channels) - 1
    fm_w = meta["fm_shape"][1]
    return fm_w + (n_layers + 1) * (K - 1)          # = W_img + pad


# ------------------------------------------------------------- fused kernel --
def _fused_decoder_kernel(zv_ref, lw_ref, lb_ref, *rest,
                          n_layers, K, W2, channels, fm_shapes):
    """One grid step == one batch element: linear + every transposed conv.

    zv_ref : VMEM (B, F)                      (full block, resident)
    lw_ref : VMEM (F, C0*fm_h*W2)             linear weight, pre-scattered into
                                              the padded flat row layout
    lb_ref : VMEM (1, C0*fm_h*W2)             linear bias, same layout
    rest   : [w_taps_l (K*K, cout, cin), bias_l (cout, 1)] * L,
             [colmask_l (1, h_out_l*W2)] * (L-1),
             o_ref (1, C_img, H_img*W2),
             flat padded VMEM scratch (C_l, (Hp_l+1)*W2), one per layer input.
    """
    conv_w = [rest[2 * l] for l in range(n_layers)]
    conv_b = [rest[2 * l + 1] for l in range(n_layers)]
    masks = [rest[2 * n_layers + l] for l in range(n_layers - 1)]
    o_ref = rest[3 * n_layers - 1]
    bufs = list(rest[3 * n_layers:])

    b = pl.program_id(0)
    pad = K - 1
    c0 = channels[0]
    fm_h, _ = fm_shapes[0]
    seg = fm_h * W2

    # Per-step zero of the flat scratches (core-safe under "parallel"); the
    # flat layout makes this only a handful of full vregs.
    for buf in bufs:
        buf[...] = jnp.zeros_like(buf)

    # ---- Linear on the MXU ---------------------------------------------------
    zv_row = zv_ref[pl.ds(b, 1), :]                                  # (1, F)
    lin = jnp.dot(zv_row, lw_ref[...], preferred_element_type=jnp.float32)
    lin = lin + lb_ref[...]                                          # (1, c0*seg)
    # Per-channel contiguous row-band stores straight into the padded layer-0
    # scratch (weight columns were pre-scattered, so borders are already zero).
    for c in range(c0):
        bufs[0][c:c + 1, pad * W2: pad * W2 + seg] = lin[:, c * seg:(c + 1) * seg]

    # ---- Transposed-conv stack: 25 per-tap MXU contractions per layer --------
    for l in range(n_layers):
        cin, cout = channels[l], channels[l + 1]
        h_out, _ = fm_shapes[l + 1]
        nlane = h_out * W2
        # Single lane-dense accumulator, initialised from the broadcast bias.
        acc = jnp.broadcast_to(conv_b[l][...], (cout, nlane))
        for ky in range(K):
            for kx in range(K):
                start = ky * W2 + kx
                slab = bufs[l][:, start:start + nlane]               # (cin, nlane)
                acc = acc + jnp.dot(conv_w[l][ky * K + kx], slab,
                                    preferred_element_type=jnp.float32)
        if l == n_layers - 1:
            o_ref[0] = acc                          # no final activation; junk
        else:                                       # columns stripped in wrapper
            # Zero the junk columns, then ONE contiguous band store lands the
            # ReLU'd activation exactly on the next layer's interior (+ borders).
            act = jnp.maximum(acc, 0.0) * masks[l][...]
            bufs[l + 1][:, pad * W2 + pad: pad * W2 + pad + nlane] = act


# ---------------------------------------------------------------- builder ----
def make_fused_decoder(meta, in_size, n_cond, batch):
    channels = meta["channels"]
    K = meta["kernel_size"]
    pad = K - 1
    fm_h, fm_w = meta["fm_shape"]
    n_layers = len(channels) - 1
    fm_shapes = tuple((fm_h + l * pad, fm_w + l * pad) for l in range(n_layers + 1))
    c_img = channels[-1]
    h_img, w_img = fm_shapes[-1]
    W2 = _flat_stride(meta)
    assert W2 >= w_img + pad
    F = in_size + n_cond
    nseg = channels[0] * fm_h * W2
    out_lanes = h_img * W2

    kernel = functools.partial(
        _fused_decoder_kernel, n_layers=n_layers, K=K, W2=W2,
        channels=tuple(channels), fm_shapes=fm_shapes)

    def const_spec(shape):
        nd = len(shape)
        return pl.BlockSpec(shape, lambda i: (0,) * nd)   # resident across grid

    in_specs = [const_spec((batch, F)),                    # zv
                const_spec((F, nseg)),                     # linear weight (padded)
                const_spec((1, nseg))]                     # linear bias (padded)
    for l in range(n_layers):
        in_specs += [const_spec((K * K, channels[l + 1], channels[l])),   # taps
                     const_spec((channels[l + 1], 1))]                    # bias
    for l in range(n_layers - 1):
        in_specs += [const_spec((1, fm_shapes[l + 1][0] * W2))]           # colmask

    out_specs = pl.BlockSpec((1, c_img, out_lanes), lambda i: (i, 0, 0))
    scratch_shapes = [
        pltpu.VMEM((channels[l], (fm_shapes[l][0] + 2 * pad + 1) * W2), jnp.float32)
        for l in range(n_layers)]

    call = pl.pallas_call(
        kernel,
        out_shape=jax.ShapeDtypeStruct((batch, c_img, out_lanes), jnp.float32),
        grid=(batch,),
        in_specs=in_specs,
        out_specs=out_specs,
        scratch_shapes=scratch_shapes,
        compiler_params=pltpu.CompilerParams(
            dimension_semantics=("parallel",)),
    )

    def fwd(kparams, z, v):
        zv = jnp.concatenate([z, v], axis=-1)
        args = [zv, kparams["lin_w"], kparams["lin_b"]]
        for l in range(n_layers):
            args += [kparams["conv_w"][l], kparams["conv_b"][l]]
        args += list(kparams["colmask"])
        out = call(*args)
        # Strip the W2 -> W_img junk columns (lane-dense in-kernel, plumbing here).
        return out.reshape(batch, c_img, h_img, W2)[..., :w_img]

    return jax.jit(fwd)


# ------------------------------------------------------------------ params ---
def init_conditional_decoder(key, in_size, n_cond, conv_channels, image_shape,
                             kernel_size=5):
    c_img, h_img, w_img = image_shape
    channels = list(conv_channels) + [c_img]            # self.conv_channels
    n_layers = len(channels) - 1
    fm_h = h_img - n_layers * (kernel_size - 1)
    fm_w = w_img - n_layers * (kernel_size - 1)
    assert fm_h > 0 and fm_w > 0
    n_conv_in = channels[0] * fm_h * fm_w                # transcnn._n_conv_in
    keys = jax.random.split(key, 2 + 2 * n_layers)
    params = {
        "lin_w": 0.1 * jax.random.normal(keys[0], (n_conv_in, in_size + n_cond),
                                         jnp.float32),
        "lin_b": 0.1 * jax.random.normal(keys[1], (n_conv_in,), jnp.float32),
        "conv_w": [],
        "conv_b": [],
    }
    for l in range(n_layers):
        params["conv_w"].append(0.1 * jax.random.normal(
            keys[2 + 2 * l],
            (channels[l], channels[l + 1], kernel_size, kernel_size), jnp.float32))
        params["conv_b"].append(0.1 * jax.random.normal(
            keys[3 + 2 * l], (channels[l + 1],), jnp.float32))
    meta = dict(channels=channels, fm_shape=(fm_h, fm_w),
                n_conv_in=n_conv_in, kernel_size=kernel_size)
    return params, meta


def prepare_kernel_params(params, meta, in_size, n_cond):
    """One-time re-layout of PyTorch-style params for the fused kernel.
    Keeps every flip/transpose/scatter out of the per-forward hot path."""
    channels = meta["channels"]
    K = meta["kernel_size"]
    pad = K - 1
    fm_h, fm_w = meta["fm_shape"]
    c0 = channels[0]
    n_layers = len(channels) - 1
    W2 = _flat_stride(meta)
    F = in_size + n_cond

    # Linear weight/bias scattered into the padded flat row layout so the MXU
    # result can be stored contiguously into the layer-0 scratch.
    w4 = params["lin_w"].T.reshape(F, c0, fm_h, fm_w)
    w_pad = jnp.zeros((F, c0, fm_h, W2), jnp.float32).at[..., pad:pad + fm_w].set(w4)
    b_pad = jnp.zeros((c0, fm_h, W2), jnp.float32).at[..., pad:pad + fm_w].set(
        params["lin_b"].reshape(c0, fm_h, fm_w))

    kp = {
        "lin_w": w_pad.reshape(F, c0 * fm_h * W2),
        "lin_b": b_pad.reshape(1, c0 * fm_h * W2),
        "conv_w": [],
        "conv_b": [],
        "colmask": [],
    }
    for l in range(n_layers):
        w = params["conv_w"][l]                          # (cin, cout, K, K)
        cout = channels[l + 1]
        # Spatially flipped, per-tap (cout, cin) tiles: w_taps[ky*K+kx, co, ci].
        kp["conv_w"].append(
            jnp.flip(w, axis=(2, 3)).transpose(2, 3, 1, 0).reshape(K * K, cout,
                                                                   channels[l]))
        kp["conv_b"].append(params["conv_b"][l].reshape(cout, 1))
        if l < n_layers - 1:
            h_out = fm_h + (l + 1) * pad
            w_out = fm_w + (l + 1) * pad
            cols = jnp.arange(h_out * W2) % W2
            kp["colmask"].append(
                (cols < w_out).astype(jnp.float32).reshape(1, h_out * W2))
    return kp


# --------------------------------------------------- pure-JAX reference -----
def _convt_ref(x, w, b):
    B, Cin, H, W = x.shape
    _, Cout, K, _ = w.shape
    out = jnp.zeros((B, Cout, H + K - 1, W + K - 1), jnp.float32)
    for ky in range(K):
        for kx in range(K):
            contrib = jnp.einsum('bchw,cd->bdhw', x, w[:, :, ky, kx])
            out = out.at[:, :, ky:ky + H, kx:kx + W].add(contrib)
    return out + b[None, :, None, None]


def reference_fwd(params, meta, z, v):
    zv = jnp.concatenate([z, v], axis=-1)
    out = zv @ params["lin_w"].T + params["lin_b"]
    c0 = meta["channels"][0]
    fm_h, fm_w = meta["fm_shape"]
    out = out.reshape(-1, c0, fm_h, fm_w)
    n_layers = len(params["conv_w"])
    for l in range(n_layers):
        out = _convt_ref(out, params["conv_w"][l], params["conv_b"][l])
        if l < n_layers - 1:
            out = jnp.maximum(out, 0.0)
    return out


# -------------------------------------------------------------------- main --
if __name__ == "__main__":
    key = jax.random.PRNGKey(0)
    k_p, k_z, k_v = jax.random.split(key, 3)

    B = 2
    in_size, n_cond = 8, 4
    conv_channels = [8, 4]          # + image channels -> [8, 4, 1]
    image_shape = (1, 16, 16)

    params, meta = init_conditional_decoder(k_p, in_size, n_cond,
                                            conv_channels, image_shape)
    kparams = prepare_kernel_params(params, meta, in_size, n_cond)
    fwd = make_fused_decoder(meta, in_size, n_cond, B)

    z = jax.random.normal(k_z, (B, in_size), jnp.float32)
    v = jax.random.normal(k_v, (B, n_cond), jnp.float32)

    out = jax.block_until_ready(fwd(kparams, z, v))
    ref = reference_fwd(params, meta, z, v)

    assert out.shape == (B,) + image_shape
    # Slightly relaxed tolerance: MXU f32 accumulation order differs from the
    # XLA reference; real layout/padding bugs would show up at O(0.1-1).
    np.testing.assert_allclose(np.asarray(out), np.asarray(ref),
                               atol=1e-3, rtol=1e-3)
    print("KERNEL_OK")
</pallas_src>

<mosaic_0001>
module attributes {stable_mosaic.version = 11 : i64} {
  func.func @_fused_decoder_kernel(%arg0: i32, %arg1: memref<2x12xf32, #tpu.memory_space<vmem>>, %arg2: memref<12x1280xf32, #tpu.memory_space<vmem>>, %arg3: memref<1x1280xf32, #tpu.memory_space<vmem>>, %arg4: memref<25x4x8xf32, #tpu.memory_space<vmem>>, %arg5: memref<4x1xf32, #tpu.memory_space<vmem>>, %arg6: memref<25x1x4xf32, #tpu.memory_space<vmem>>, %arg7: memref<1x1xf32, #tpu.memory_space<vmem>>, %arg8: memref<1x240xf32, #tpu.memory_space<vmem>>, %arg9: memref<1x1x320xf32, #tpu.memory_space<vmem>>, %arg10: memref<8x340xf32, #tpu.memory_space<vmem>>, %arg11: memref<4x420xf32, #tpu.memory_space<vmem>>) attributes {dimension_semantics = [#tpu.dimension_semantics<parallel>], iteration_bounds = array<i64: 2>, scalar_prefetch = 0 : i64, scratch_operands = 2 : i64, tpu.core_type = #tpu.core_type<tc>, window_params = [{pipeline_mode = #tpu.pipeline_mode<synchronous>, transform_indices = @transform_0, window_bounds = array<i64: 2, 12>}, {pipeline_mode = #tpu.pipeline_mode<synchronous>, transform_indices = @transform_1, window_bounds = array<i64: 12, 1280>}, {pipeline_mode = #tpu.pipeline_mode<synchronous>, transform_indices = @transform_2, window_bounds = array<i64: 1, 1280>}, {pipeline_mode = #tpu.pipeline_mode<synchronous>, transform_indices = @transform_3, window_bounds = array<i64: 25, 4, 8>}, {pipeline_mode = #tpu.pipeline_mode<synchronous>, transform_indices = @transform_4, window_bounds = array<i64: 4, 1>}, {pipeline_mode = #tpu.pipeline_mode<synchronous>, transform_indices = @transform_5, window_bounds = array<i64: 25, 1, 4>}, {pipeline_mode = #tpu.pipeline_mode<synchronous>, transform_indices = @transform_6, window_bounds = array<i64: 1, 1>}, {pipeline_mode = #tpu.pipeline_mode<synchronous>, transform_indices = @transform_7, window_bounds = array<i64: 1, 240>}, {transform_indices = @transform_8, window_bounds = array<i64: 1, 1, 320>}]} {
    %cst = arith.constant 0.000000e+00 : f32
    %0 = vector.broadcast %cst : f32 to vector<8x340xf32>
    %c0 = arith.constant 0 : index
    %c0_0 = arith.constant 0 : index
    %1 = vector.load %arg10[%c0, %c0_0] : memref<8x340xf32, #tpu.memory_space<vmem>>, vector<8x340xf32>
    tpu.vector_store %arg10[%c0, %c0_0], %0 {strides = array<i32>} : memref<8x340xf32, #tpu.memory_space<vmem>>, vector<8x340xf32>,
    %cst_1 = arith.constant 0.000000e+00 : f32
    %2 = vector.broadcast %cst_1 : f32 to vector<4x420xf32>
    %c0_2 = arith.constant 0 : index
    %c0_3 = arith.constant 0 : index
    %3 = vector.load %arg11[%c0_2, %c0_3] : memref<4x420xf32, #tpu.memory_space<vmem>>, vector<4x420xf32>
    tpu.vector_store %arg11[%c0_2, %c0_3], %2 {strides = array<i32>} : memref<4x420xf32, #tpu.memory_space<vmem>>, vector<4x420xf32>,
    %4 = arith.index_cast %arg0 : i32 to index
    %c0_4 = arith.constant 0 : index
    %5 = vector.load %arg1[%4, %c0_4] : memref<2x12xf32, #tpu.memory_space<vmem>>, vector<1x12xf32>
    %c0_5 = arith.constant 0 : index
    %c0_6 = arith.constant 0 : index
    %6 = vector.load %arg2[%c0_5, %c0_6] : memref<12x1280xf32, #tpu.memory_space<vmem>>, vector<12x1280xf32>
    %cst_7 = arith.constant dense<0.000000e+00> : vector<1x1280xf32>
    %7 = tpu.matmul %5, %6, %cst_7 {dimension_numbers = #tpu.dot_dimension_numbers<[1], [0], [0], [1], [0, 0, 1, 1], [], []>} : vector<1x12xf32>, vector<12x1280xf32>, vector<1x1280xf32> -> vector<1x1280xf32>
    %c0_8 = arith.constant 0 : index
    %c0_9 = arith.constant 0 : index
    %8 = vector.load %arg3[%c0_8, %c0_9] : memref<1x1280xf32, #tpu.memory_space<vmem>>, vector<1x1280xf32>
    %9 = arith.addf %7, %8 : vector<1x1280xf32>
    %10 = vector.extract_strided_slice %9 {offsets = [0, 0], sizes = [1, 160], strides = [1, 1]} : vector<1x1280xf32> to vector<1x160xf32>
    %c0_10 = arith.constant 0 : index
    %c80 = arith.constant 80 : index
    %11 = vector.load %arg10[%c0_10, %c80] : memref<8x340xf32, #tpu.memory_space<vmem>>, vector<1x160xf32>
    tpu.vector_store %arg10[%c0_10, %c80], %10 {strides = array<i32>} : memref<8x340xf32, #tpu.memory_space<vmem>>, vector<1x160xf32>,
    %12 = vector.extract_strided_slice %9 {offsets = [0, 160], sizes = [1, 160], strides = [1, 1]} : vector<1x1280xf32> to vector<1x160xf32>
    %c1 = arith.constant 1 : index
    %c80_11 = arith.constant 80 : index
    %13 = vector.load %arg10[%c1, %c80_11] : memref<8x340xf32, #tpu.memory_space<vmem>>, vector<1x160xf32>
    tpu.vector_store %arg10[%c1, %c80_11], %12 {strides = array<i32>} : memref<8x340xf32, #tpu.memory_space<vmem>>, vector<1x160xf32>,
    %14 = vector.extract_strided_slice %9 {offsets = [0, 320], sizes = [1, 160], strides = [1, 1]} : vector<1x1280xf32> to vector<1x160xf32>
    %c2 = arith.constant 2 : index
    %c80_12 = arith.constant 80 : index
    %15 = vector.load %arg10[%c2, %c80_12] : memref<8x340xf32, #tpu.memory_space<vmem>>, vector<1x160xf32>
    tpu.vector_store %arg10[%c2, %c80_12], %14 {strides = array<i32>} : memref<8x340xf32, #tpu.memory_space<vmem>>, vector<1x160xf32>,
    %16 = vector.extract_strided_slice %9 {offsets = [0, 480], sizes = [1, 160], strides = [1, 1]} : vector<1x1280xf32> to vector<1x160xf32>
    %c3 = arith.constant 3 : index
    %c80_13 = arith.constant 80 : index
    %17 = vector.load %arg10[%c3, %c80_13] : memref<8x340xf32, #tpu.memory_space<vmem>>, vector<1x160xf32>
    tpu.vector_store %arg10[%c3, %c80_13], %16 {strides = array<i32>} : memref<8x340xf32, #tpu.memory_space<vmem>>, vector<1x160xf32>,
    %18 = vector.extract_strided_slice %9 {offsets = [0, 640], sizes = [1, 160], strides = [1, 1]} : vector<1x1280xf32> to vector<1x160xf32>
    %c4 = arith.constant 4 : index
    %c80_14 = arith.constant 80 : index
    %19 = vector.load %arg10[%c4, %c80_14] : memref<8x340xf32, #tpu.memory_space<vmem>>, vector<1x160xf32>
    tpu.vector_store %arg10[%c4, %c80_14], %18 {strides = array<i32>} : memref<8x340xf32, #tpu.memory_space<vmem>>, vector<1x160xf32>,
    %20 = vector.extract_strided_slice %9 {offsets = [0, 800], sizes = [1, 160], strides = [1, 1]} : vector<1x1280xf32> to vector<1x160xf32>
    %c5 = arith.constant 5 : index
    %c80_15 = arith.constant 80 : index
    %21 = vector.load %arg10[%c5, %c80_15] : memref<8x340xf32, #tpu.memory_space<vmem>>, vector<1x160xf32>
    tpu.vector_store %arg10[%c5, %c80_15], %20 {strides = array<i32>} : memref<8x340xf32, #tpu.memory_space<vmem>>, vector<1x160xf32>,
    %22 = vector.extract_strided_slice %9 {offsets = [0, 960], sizes = [1, 160], strides = [1, 1]} : vector<1x1280xf32> to vector<1x160xf32>
    %c6 = arith.constant 6 : index
    %c80_16 = arith.constant 80 : index
    %23 = vector.load %arg10[%c6, %c80_16] : memref<8x340xf32, #tpu.memory_space<vmem>>, vector<1x160xf32>
    tpu.vector_store %arg10[%c6, %c80_16], %22 {strides = array<i32>} : memref<8x340xf32, #tpu.memory_space<vmem>>, vector<1x160xf32>,
    %24 = vector.extract_strided_slice %9 {offsets = [0, 1120], sizes = [1, 160], strides = [1, 1]} : vector<1x1280xf32> to vector<1x160xf32>
    %c7 = arith.constant 7 : index
    %c80_17 = arith.constant 80 : index
    %25 = vector.load %arg10[%c7, %c80_17] : memref<8x340xf32, #tpu.memory_space<vmem>>, vector<1x160xf32>
    tpu.vector_store %arg10[%c7, %c80_17], %24 {strides = array<i32>} : memref<8x340xf32, #tpu.memory_space<vmem>>, vector<1x160xf32>,
    %c0_18 = arith.constant 0 : index
    %c0_19 = arith.constant 0 : index
    %26 = vector.load %arg5[%c0_18, %c0_19] : memref<4x1xf32, #tpu.memory_space<vmem>>, vector<4x1xf32>
    %27 = vector.shape_cast %26 : vector<4x1xf32> to vector<4x1xf32>
    %28 = vector.broadcast %27 : vector<4x1xf32> to vector<4x240xf32>
    %c0_20 = arith.constant 0 : index
    %c0_21 = arith.constant 0 : index
    %29 = vector.load %arg10[%c0_20, %c0_21] : memref<8x340xf32, #tpu.memory_space<vmem>>, vector<8x240xf32>
    %c0_22 = arith.constant 0 : index
    %c0_23 = arith.constant 0 : index
    %c0_24 = arith.constant 0 : index
    %30 = vector.load %arg4[%c0_22, %c0_23, %c0_24] : memref<25x4x8xf32, #tpu.memory_space<vmem>>, vector<1x4x8xf32>
    %31 = vector.shape_cast %30 : vector<1x4x8xf32> to vector<4x8xf32>
    %cst_25 = arith.constant dense<0.000000e+00> : vector<4x240xf32>
    %32 = tpu.matmul %31, %29, %cst_25 {dimension_numbers = #tpu.dot_dimension_numbers<[1], [0], [0], [1], [0, 0, 1, 1], [], []>} : vector<4x8xf32>, vector<8x240xf32>, vector<4x240xf32> -> vector<4x240xf32>
    %33 = arith.addf %28, %32 : vector<4x240xf32>
    %c0_26 = arith.constant 0 : index
    %c1_27 = arith.constant 1 : index
    %34 = vector.load %arg10[%c0_26, %c1_27] : memref<8x340xf32, #tpu.memory_space<vmem>>, vector<8x240xf32>
    %c1_28 = arith.constant 1 : index
    %c0_29 = arith.constant 0 : index
    %c0_30 = arith.constant 0 : index
    %35 = vector.load %arg4[%c1_28, %c0_29, %c0_30] : memref<25x4x8xf32, #tpu.memory_space<vmem>>, vector<1x4x8xf32>
    %36 = vector.shape_cast %35 : vector<1x4x8xf32> to vector<4x8xf32>
    %cst_31 = arith.constant dense<0.000000e+00> : vector<4x240xf32>
    %37 = tpu.matmul %36, %34, %cst_31 {dimension_numbers = #tpu.dot_dimension_numbers<[1], [0], [0], [1], [0, 0, 1, 1], [], []>} : vector<4x8xf32>, vector<8x240xf32>, vector<4x240xf32> -> vector<4x240xf32>
    %38 = arith.addf %33, %37 : vector<4x240xf32>
    %c0_32 = arith.constant 0 : index
    %c2_33 = arith.constant 2 : index
    %39 = vector.load %arg10[%c0_32, %c2_33] : memref<8x340xf32, #tpu.memory_space<vmem>>, vector<8x240xf32>
    %c2_34 = arith.constant 2 : index
    %c0_35 = arith.constant 0 : index
    %c0_36 = arith.constant 0 : index
    %40 = vector.load %arg4[%c2_34, %c0_35, %c0_36] : memref<25x4x8xf32, #tpu.memory_space<vmem>>, vector<1x4x8xf32>
    %41 = vector.shape_cast %40 : vector<1x4x8xf32> to vector<4x8xf32>
    %cst_37 = arith.constant dense<0.000000e+00> : vector<4x240xf32>
    %42 = tpu.matmul %41, %39, %cst_37 {dimension_numbers = #tpu.dot_dimension_numbers<[1], [0], [0], [1], [0, 0, 1, 1], [], []>} : vector<4x8xf32>, vector<8x240xf32>, vector<4x240xf32> -> vector<4x240xf32>
    %43 = arith.addf %38, %42 : vector<4x240xf32>
    %c0_38 = arith.constant 0 : index
    %c3_39 = arith.constant 3 : index
    %44 = vector.load %arg10[%c0_38, %c3_39] : memref<8x340xf32, #tpu.memory_space<vmem>>, vector<8x240xf32>
    %c3_40 = arith.constant 3 : index
    %c0_41 = arith.constant 0 : index
    %c0_42 = arith.constant 0 : index
    %45 = vector.load %arg4[%c3_40, %c0_41, %c0_42] : memref<25x4x8xf32, #tpu.memory_space<vmem>>, vector<1x4x8xf32>
    %46 = vector.shape_cast %45 : vector<1x4x8xf32> to vector<4x8xf32>
    %cst_43 = arith.constant dense<0.000000e+00> : vector<4x240xf32>
    %47 = tpu.matmul %46, %44, %cst_43 {dimension_numbers = #tpu.dot_dimension_numbers<[1], [0], [0], [1], [0, 0, 1, 1], [], []>} : vector<4x8xf32>, vector<8x240xf32>, vector<4x240xf32> -> vector<4x240xf32>
    %48 = arith.addf %43, %47 : vector<4x240xf32>
    %c0_44 = arith.constant 0 : index
    %c4_45 = arith.constant 4 : index
    %49 = vector.load %arg10[%c0_44, %c4_45] : memref<8x340xf32, #tpu.memory_space<vmem>>, vector<8x240xf32>
    %c4_46 = arith.constant 4 : index
    %c0_47 = arith.constant 0 : index
    %c0_48 = arith.constant 0 : index
    %50 = vector.load %arg4[%c4_46, %c0_47, %c0_48] : memref<25x4x8xf32, #tpu.memory_space<vmem>>, vector<1x4x8xf32>
    %51 = vector.shape_cast %50 : vector<1x4x8xf32> to vector<4x8xf32>
    %cst_49 = arith.constant dense<0.000000e+00> : vector<4x240xf32>
    %52 = tpu.matmul %51, %49, %cst_49 {dimension_numbers = #tpu.dot_dimension_numbers<[1], [0], [0], [1], [0, 0, 1, 1], [], []>} : vector<4x8xf32>, vector<8x240xf32>, vector<4x240xf32> -> vector<4x240xf32>
    %53 = arith.addf %48, %52 : vector<4x240xf32>
    %c0_50 = arith.constant 0 : index
    %c20 = arith.constant 20 : index
    %54 = vector.load %arg10[%c0_50, %c20] : memref<8x340xf32, #tpu.memory_space<vmem>>, vector<8x240xf32>
    %c5_51 = arith.constant 5 : index
    %c0_52 = arith.constant 0 : index
    %c0_53 = arith.constant 0 : index
    %55 = vector.load %arg4[%c5_51, %c0_52, %c0_53] : memref<25x4x8xf32, #tpu.memory_space<vmem>>, vector<1x4x8xf32>
    %56 = vector.shape_cast %55 : vector<1x4x8xf32> to vector<4x8xf32>
    %cst_54 = arith.constant dense<0.000000e+00> : vector<4x240xf32>
    %57 = tpu.matmul %56, %54, %cst_54 {dimension_numbers = #tpu.dot_dimension_numbers<[1], [0], [0], [1], [0, 0, 1, 1], [], []>} : vector<4x8xf32>, vector<8x240xf32>, vector<4x240xf32> -> vector<4x240xf32>
    %58 = arith.addf %53, %57 : vector<4x240xf32>
    %c0_55 = arith.constant 0 : index
    %c21 = arith.constant 21 : index
    %59 = vector.load %arg10[%c0_55, %c21] : memref<8x340xf32, #tpu.memory_space<vmem>>, vector<8x240xf32>
    %c6_56 = arith.constant 6 : index
    %c0_57 = arith.constant 0 : index
    %c0_58 = arith.constant 0 : index
    %60 = vector.load %arg4[%c6_56, %c0_57, %c0_58] : memref<25x4x8xf32, #tpu.memory_space<vmem>>, vector<1x4x8xf32>
    %61 = vector.shape_cast %60 : vector<1x4x8xf32> to vector<4x8xf32>
    %cst_59 = arith.constant dense<0.000000e+00> : vector<4x240xf32>
    %62 = tpu.matmul %61, %59, %cst_59 {dimension_numbers = #tpu.dot_dimension_numbers<[1], [0], [0], [1], [0, 0, 1, 1], [], []>} : vector<4x8xf32>, vector<8x240xf32>, vector<4x240xf32> -> vector<4x240xf32>
    %63 = arith.addf %58, %62 : vector<4x240xf32>
    %c0_60 = arith.constant 0 : index
    %c22 = arith.constant 22 : index
    %64 = vector.load %arg10[%c0_60, %c22] : memref<8x340xf32, #tpu.memory_space<vmem>>, vector<8x240xf32>
    %c7_61 = arith.constant 7 : index
    %c0_62 = arith.constant 0 : index
    %c0_63 = arith.constant 0 : index
    %65 = vector.load %arg4[%c7_61, %c0_62, %c0_63] : memref<25x4x8xf32, #tpu.memory_space<vmem>>, vector<1x4x8xf32>
    %66 = vector.shape_cast %65 : vector<1x4x8xf32> to vector<4x8xf32>
    %cst_64 = arith.constant dense<0.000000e+00> : vector<4x240xf32>
    %67 = tpu.matmul %66, %64, %cst_64 {dimension_numbers = #tpu.dot_dimension_numbers<[1], [0], [0], [1], [0, 0, 1, 1], [], []>} : vector<4x8xf32>, vector<8x240xf32>, vector<4x240xf32> -> vector<4x240xf32>
    %68 = arith.addf %63, %67 : vector<4x240xf32>
    %c0_65 = arith.constant 0 : index
    %c23 = arith.constant 23 : index
    %69 = vector.load %arg10[%c0_65, %c23] : memref<8x340xf32, #tpu.memory_space<vmem>>, vector<8x240xf32>
    %c8 = arith.constant 8 : index
    %c0_66 = arith.constant 0 : index
    %c0_67 = arith.constant 0 : index
    %70 = vector.load %arg4[%c8, %c0_66, %c0_67] : memref<25x4x8xf32, #tpu.memory_space<vmem>>, vector<1x4x8xf32>
    %71 = vector.shape_cast %70 : vector<1x4x8xf32> to vector<4x8xf32>
    %cst_68 = arith.constant dense<0.000000e+00> : vector<4x240xf32>
    %72 = tpu.matmul %71, %69, %cst_68 {dimension_numbers = #tpu.dot_dimension_numbers<[1], [0], [0], [1], [0, 0, 1, 1], [], []>} : vector<4x8xf32>, vector<8x240xf32>, vector<4x240xf32> -> vector<4x240xf32>
    %73 = arith.addf %68, %72 : vector<4x240xf32>
    %c0_69 = arith.constant 0 : index
    %c24 = arith.constant 24 : index
    %74 = vector.load %arg10[%c0_69, %c24] : memref<8x340xf32, #tpu.memory_space<vmem>>, vector<8x240xf32>
    %c9 = arith.constant 9 : index
    %c0_70 = arith.constant 0 : index
    %c0_71 = arith.constant 0 : index
    %75 = vector.load %arg4[%c9, %c0_70, %c0_71] : memref<25x4x8xf32, #tpu.memory_space<vmem>>, vector<1x4x8xf32>
    %76 = vector.shape_cast %75 : vector<1x4x8xf32> to vector<4x8xf32>
    %cst_72 = arith.constant dense<0.000000e+00> : vector<4x240xf32>
    %77 = tpu.matmul %76, %74, %cst_72 {dimension_numbers = #tpu.dot_dimension_numbers<[1], [0], [0], [1], [0, 0, 1, 1], [], []>} : vector<4x8xf32>, vector<8x240xf32>, vector<4x240xf32> -> vector<4x240xf32>
    %78 = arith.addf %73, %77 : vector<4x240xf32>
    %c0_73 = arith.constant 0 : index
    %c40 = arith.constant 40 : index
    %79 = vector.load %arg10[%c0_73, %c40] : memref<8x340xf32, #tpu.memory_space<vmem>>, vector<8x240xf32>
    %c10 = arith.constant 10 : index
    %c0_74 = arith.constant 0 : index
    %c0_75 = arith.constant 0 : index
    %80 = vector.load %arg4[%c10, %c0_74, %c0_75] : memref<25x4x8xf32, #tpu.memory_space<vmem>>, vector<1x4x8xf32>
    %81 = vector.shape_cast %80 : vector<1x4x8xf32> to vector<4x8xf32>
    %cst_76 = arith.constant dense<0.000000e+00> : vector<4x240xf32>
    %82 = tpu.matmul %81, %79, %cst_76 {dimension_numbers = #tpu.dot_dimension_numbers<[1], [0], [0], [1], [0, 0, 1, 1], [], []>} : vector<4x8xf32>, vector<8x240xf32>, vector<4x240xf32> -> vector<4x240xf32>
    %83 = arith.addf %78, %82 : vector<4x240xf32>
    %c0_77 = arith.constant 0 : index
    %c41 = arith.constant 41 : index
    %84 = vector.load %arg10[%c0_77, %c41] : memref<8x340xf32, #tpu.memory_space<vmem>>, vector<8x240xf32>
    %c11 = arith.constant 11 : index
    %c0_78 = arith.constant 0 : index
    %c0_79 = arith.constant 0 : index
    %85 = vector.load %arg4[%c11, %c0_78, %c0_79] : memref<25x4x8xf32, #tpu.memory_space<vmem>>, vector<1x4x8xf32>
    %86 = vector.shape_cast %85 : vector<1x4x8xf32> to vector<4x8xf32>
    %cst_80 = arith.constant dense<0.000000e+00> : vector<4x240xf32>
    %87 = tpu.matmul %86, %84, %cst_80 {dimension_numbers = #tpu.dot_dimension_numbers<[1], [0], [0], [1], [0, 0, 1, 1], [], []>} : vector<4x8xf32>, vector<8x240xf32>, vector<4x240xf32> -> vector<4x240xf32>
    %88 = arith.addf %83, %87 : vector<4x240xf32>
    %c0_81 = arith.constant 0 : index
    %c42 = arith.constant 42 : index
    %89 = vector.load %arg10[%c0_81, %c42] : memref<8x340xf32, #tpu.memory_space<vmem>>, vector<8x240xf32>
    %c12 = arith.constant 12 : index
    %c0_82 = arith.constant 0 : index
    %c0_83 = arith.constant 0 : index
    %90 = vector.load %arg4[%c12, %c0_82, %c0_83] : memref<25x4x8xf32, #tpu.memory_space<vmem>>, vector<1x4x8xf32>
    %91 = vector.shape_cast %90 : vector<1x4x8xf32> to vector<4x8xf32>
    %cst_84 = arith.constant dense<0.000000e+00> : vector<4x240xf32>
    %92 = tpu.matmul %91, %89, %cst_84 {dimension_numbers = #tpu.dot_dimension_numbers<[1], [0], [0], [1], [0, 0, 1, 1], [], []>} : vector<4x8xf32>, vector<8x240xf32>, vector<4x240xf32> -> vector<4x240xf32>
    %93 = arith.addf %88, %92 : vector<4x240xf32>
    %c0_85 = arith.constant 0 : index
    %c43 = arith.constant 43 : index
    %94 = vector.load %arg10[%c0_85, %c43] : memref<8x340xf32, #tpu.memory_space<vmem>>, vector<8x240xf32>
    %c13 = arith.constant 13 : index
    %c0_86 = arith.constant 0 : index
    %c0_87 = arith.constant 0 : index
    %95 = vector.load %arg4[%c13, %c0_86, %c0_87] : memref<25x4x8xf32, #tpu.memory_space<vmem>>, vector<1x4x8xf32>
    %96 = vector.shape_cast %95 : vector<1x4x8xf32> to vector<4x8xf32>
    %cst_88 = arith.constant dense<0.000000e+00> : vector<4x240xf32>
    %97 = tpu.matmul %96, %94, %cst_88 {dimension_numbers = #tpu.dot_dimension_numbers<[1], [0], [0], [1], [0, 0, 1, 1], [], []>} : vector<4x8xf32>, vector<8x240xf32>, vector<4x240xf32> -> vector<4x240xf32>
    %98 = arith.addf %93, %97 : vector<4x240xf32>
    %c0_89 = arith.constant 0 : index
    %c44 = arith.constant 44 : index
    %99 = vector.load %arg10[%c0_89, %c44] : memref<8x340xf32, #tpu.memory_space<vmem>>, vector<8x240xf32>
    %c14 = arith.constant 14 : index
    %c0_90 = arith.constant 0 : index
    %c0_91 = arith.constant 0 : index
    %100 = vector.load %arg4[%c14, %c0_90, %c0_91] : memref<25x4x8xf32, #tpu.memory_space<vmem>>, vector<1x4x8xf32>
    %101 = vector.shape_cast %100 : vector<1x4x8xf32> to vector<4x8xf32>
    %cst_92 = arith.constant dense<0.000000e+00> : vector<4x240xf32>
    %102 = tpu.matmul %101, %99, %cst_92 {dimension_numbers = #tpu.dot_dimension_numbers<[1], [0], [0], [1], [0, 0, 1, 1], [], []>} : vector<4x8xf32>, vector<8x240xf32>, vector<4x240xf32> -> vector<4x240xf32>
    %103 = arith.addf %98, %102 : vector<4x240xf32>
    %c0_93 = arith.constant 0 : index
    %c60 = arith.constant 60 : index
    %104 = vector.load %arg10[%c0_93, %c60] : memref<8x340xf32, #tpu.memory_space<vmem>>, vector<8x240xf32>
    %c15 = arith.constant 15 : index
    %c0_94 = arith.constant 0 : index
    %c0_95 = arith.constant 0 : index
    %105 = vector.load %arg4[%c15, %c0_94, %c0_95] : memref<25x4x8xf32, #tpu.memory_space<vmem>>, vector<1x4x8xf32>
    %106 = vector.shape_cast %105 : vector<1x4x8xf32> to vector<4x8xf32>
    %cst_96 = arith.constant dense<0.000000e+00> : vector<4x240xf32>
    %107 = tpu.matmul %106, %104, %cst_96 {dimension_numbers = #tpu.dot_dimension_numbers<[1], [0], [0], [1], [0, 0, 1, 1], [], []>} : vector<4x8xf32>, vector<8x240xf32>, vector<4x240xf32> -> vector<4x240xf32>
    %108 = arith.addf %103, %107 : vector<4x240xf32>
    %c0_97 = arith.constant 0 : index
    %c61 = arith.constant 61 : index
    %109 = vector.load %arg10[%c0_97, %c61] : memref<8x340xf32, #tpu.memory_space<vmem>>, vector<8x240xf32>
    %c16 = arith.constant 16 : index
    %c0_98 = arith.constant 0 : index
    %c0_99 = arith.constant 0 : index
    %110 = vector.load %arg4[%c16, %c0_98, %c0_99] : memref<25x4x8xf32, #tpu.memory_space<vmem>>, vector<1x4x8xf32>
    %111 = vector.shape_cast %110 : vector<1x4x8xf32> to vector<4x8xf32>
    %cst_100 = arith.constant dense<0.000000e+00> : vector<4x240xf32>
    %112 = tpu.matmul %111, %109, %cst_100 {dimension_numbers = #tpu.dot_dimension_numbers<[1], [0], [0], [1], [0, 0, 1, 1], [], []>} : vector<4x8xf32>, vector<8x240xf32>, vector<4x240xf32> -> vector<4x240xf32>
    %113 = arith.addf %108, %112 : vector<4x240xf32>
    %c0_101 = arith.constant 0 : index
    %c62 = arith.constant 62 : index
    %114 = vector.load %arg10[%c0_101, %c62] : memref<8x340xf32, #tpu.memory_space<vmem>>, vector<8x240xf32>
    %c17 = arith.constant 17 : index
    %c0_102 = arith.constant 0 : index
    %c0_103 = arith.constant 0 : index
    %115 = vector.load %arg4[%c17, %c0_102, %c0_103] : memref<25x4x8xf32, #tpu.memory_space<vmem>>, vector<1x4x8xf32>
    %116 = vector.shape_cast %115 : vector<1x4x8xf32> to vector<4x8xf32>
    %cst_104 = arith.constant dense<0.000000e+00> : vector<4x240xf32>
    %117 = tpu.matmul %116, %114, %cst_104 {dimension_numbers = #tpu.dot_dimension_numbers<[1], [0], [0], [1], [0, 0, 1, 1], [], []>} : vector<4x8xf32>, vector<8x240xf32>, vector<4x240xf32> -> vector<4x240xf32>
    %118 = arith.addf %113, %117 : vector<4x240xf32>
    %c0_105 = arith.constant 0 : index
    %c63 = arith.constant 63 : index
    %119 = vector.load %arg10[%c0_105, %c63] : memref<8x340xf32, #tpu.memory_space<vmem>>, vector<8x240xf32>
    %c18 = arith.constant 18 : index
    %c0_106 = arith.constant 0 : index
    %c0_107 = arith.constant 0 : index
    %120 = vector.load %arg4[%c18, %c0_106, %c0_107] : memref<25x4x8xf32, #tpu.memory_space<vmem>>, vector<1x4x8xf32>
    %121 = vector.shape_cast %120 : vector<1x4x8xf32> to vector<4x8xf32>
    %cst_108 = arith.constant dense<0.000000e+00> : vector<4x240xf32>
    %122 = tpu.matmul %121, %119, %cst_108 {dimension_numbers = #tpu.dot_dimension_numbers<[1], [0], [0], [1], [0, 0, 1, 1], [], []>} : vector<4x8xf32>, vector<8x240xf32>, vector<4x240xf32> -> vector<4x240xf32>
    %123 = arith.addf %118, %122 : vector<4x240xf32>
    %c0_109 = arith.constant 0 : index
    %c64 = arith.constant 64 : index
    %124 = vector.load %arg10[%c0_109, %c64] : memref<8x340xf32, #tpu.memory_space<vmem>>, vector<8x240xf32>
    %c19 = arith.constant 19 : index
    %c0_110 = arith.constant 0 : index
    %c0_111 = arith.constant 0 : index
    %125 = vector.load %arg4[%c19, %c0_110, %c0_111] : memref<25x4x8xf32, #tpu.memory_space<vmem>>, vector<1x4x8xf32>
    %126 = vector.shape_cast %125 : vector<1x4x8xf32> to vector<4x8xf32>
    %cst_112 = arith.constant dense<0.000000e+00> : vector<4x240xf32>
    %127 = tpu.matmul %126, %124, %cst_112 {dimension_numbers = #tpu.dot_dimension_numbers<[1], [0], [0], [1], [0, 0, 1, 1], [], []>} : vector<4x8xf32>, vector<8x240xf32>, vector<4x240xf32> -> vector<4x240xf32>
    %128 = arith.addf %123, %127 : vector<4x240xf32>
    %c0_113 = arith.constant 0 : index
    %c80_114 = arith.constant 80 : index
    %129 = vector.load %arg10[%c0_113, %c80_114] : memref<8x340xf32, #tpu.memory_space<vmem>>, vector<8x240xf32>
    %c20_115 = arith.constant 20 : index
    %c0_116 = arith.constant 0 : index
    %c0_117 = arith.constant 0 : index
    %130 = vector.load %arg4[%c20_115, %c0_116, %c0_117] : memref<25x4x8xf32, #tpu.memory_space<vmem>>, vector<1x4x8xf32>
    %131 = vector.shape_cast %130 : vector<1x4x8xf32> to vector<4x8xf32>
    %cst_118 = arith.constant dense<0.000000e+00> : vector<4x240xf32>
    %132 = tpu.matmul %131, %129, %cst_118 {dimension_numbers = #tpu.dot_dimension_numbers<[1], [0], [0], [1], [0, 0, 1, 1], [], []>} : vector<4x8xf32>, vector<8x240xf32>, vector<4x240xf32> -> vector<4x240xf32>
    %133 = arith.addf %128, %132 : vector<4x240xf32>
    %c0_119 = arith.constant 0 : index
    %c81 = arith.constant 81 : index
    %134 = vector.load %arg10[%c0_119, %c81] : memref<8x340xf32, #tpu.memory_space<vmem>>, vector<8x240xf32>
    %c21_120 = arith.constant 21 : index
    %c0_121 = arith.constant 0 : index
    %c0_122 = arith.constant 0 : index
    %135 = vector.load %arg4[%c21_120, %c0_121, %c0_122] : memref<25x4x8xf32, #tpu.memory_space<vmem>>, vector<1x4x8xf32>
    %136 = vector.shape_cast %135 : vector<1x4x8xf32> to vector<4x8xf32>
    %cst_123 = arith.constant dense<0.000000e+00> : vector<4x240xf32>
    %137 = tpu.matmul %136, %134, %cst_123 {dimension_numbers = #tpu.dot_dimension_numbers<[1], [0], [0], [1], [0, 0, 1, 1], [], []>} : vector<4x8xf32>, vector<8x240xf32>, vector<4x240xf32> -> vector<4x240xf32>
    %138 = arith.addf %133, %137 : vector<4x240xf32>
    %c0_124 = arith.constant 0 : index
    %c82 = arith.constant 82 : index
    %139 = vector.load %arg10[%c0_124, %c82] : memref<8x340xf32, #tpu.memory_space<vmem>>, vector<8x240xf32>
    %c22_125 = arith.constant 22 : index
    %c0_126 = arith.constant 0 : index
    %c0_127 = arith.constant 0 : index
    %140 = vector.load %arg4[%c22_125, %c0_126, %c0_127] : memref<25x4x8xf32, #tpu.memory_space<vmem>>, vector<1x4x8xf32>
    %141 = vector.shape_cast %140 : vector<1x4x8xf32> to vector<4x8xf32>
    %cst_128 = arith.constant dense<0.000000e+00> : vector<4x240xf32>
    %142 = tpu.matmul %141, %139, %cst_128 {dimension_numbers = #tpu.dot_dimension_numbers<[1], [0], [0], [1], [0, 0, 1, 1], [], []>} : vector<4x8xf32>, vector<8x240xf32>, vector<4x240xf32> -> vector<4x240xf32>
    %143 = arith.addf %138, %142 : vector<4x240xf32>
    %c0_129 = arith.constant 0 : index
    %c83 = arith.constant 83 : index
    %144 = vector.load %arg10[%c0_129, %c83] : memref<8x340xf32, #tpu.memory_space<vmem>>, vector<8x240xf32>
    %c23_130 = arith.constant 23 : index
    %c0_131 = arith.constant 0 : index
    %c0_132 = arith.constant 0 : index
    %145 = vector.load %arg4[%c23_130, %c0_131, %c0_132] : memref<25x4x8xf32, #tpu.memory_space<vmem>>, vector<1x4x8xf32>
    %146 = vector.shape_cast %145 : vector<1x4x8xf32> to vector<4x8xf32>
    %cst_133 = arith.constant dense<0.000000e+00> : vector<4x240xf32>
    %147 = tpu.matmul %146, %144, %cst_133 {dimension_numbers = #tpu.dot_dimension_numbers<[1], [0], [0], [1], [0, 0, 1, 1], [], []>} : vector<4x8xf32>, vector<8x240xf32>, vector<4x240xf32> -> vector<4x240xf32>
    %148 = arith.addf %143, %147 : vector<4x240xf32>
    %c0_134 = arith.constant 0 : index
    %c84 = arith.constant 84 : index
    %149 = vector.load %arg10[%c0_134, %c84] : memref<8x340xf32, #tpu.memory_space<vmem>>, vector<8x240xf32>
    %c24_135 = arith.constant 24 : index
    %c0_136 = arith.constant 0 : index
    %c0_137 = arith.constant 0 : index
    %150 = vector.load %arg4[%c24_135, %c0_136, %c0_137] : memref<25x4x8xf32, #tpu.memory_space<vmem>>, vector<1x4x8xf32>
    %151 = vector.shape_cast %150 : vector<1x4x8xf32> to vector<4x8xf32>
    %cst_138 = arith.constant dense<0.000000e+00> : vector<4x240xf32>
    %152 = tpu.matmul %151, %149, %cst_138 {dimension_numbers = #tpu.dot_dimension_numbers<[1], [0], [0], [1], [0, 0, 1, 1], [], []>} : vector<4x8xf32>, vector<8x240xf32>, vector<4x240xf32> -> vector<4x240xf32>
    %153 = arith.addf %148, %152 : vector<4x240xf32>
    %cst_139 = arith.constant 0.000000e+00 : f32
    %154 = vector.broadcast %cst_139 : f32 to vector<4x240xf32>
    %155 = arith.maximumf %153, %154 : vector<4x240xf32>
    %c0_140 = arith.constant 0 : index
    %c0_141 = arith.constant 0 : index
    %156 = vector.load %arg8[%c0_140, %c0_141] : memref<1x240xf32, #tpu.memory_space<vmem>>, vector<1x240xf32>
    %157 = vector.broadcast %156 : vector<1x240xf32> to vector<4x240xf32>
    %158 = arith.mulf %155, %157 : vector<4x240xf32>
    %c0_142 = arith.constant 0 : index
    %c84_143 = arith.constant 84 : index
    %159 = vector.load %arg11[%c0_142, %c84_143] : memref<4x420xf32, #tpu.memory_space<vmem>>, vector<4x240xf32>
    tpu.vector_store %arg11[%c0_142, %c84_143], %158 {strides = array<i32>} : memref<4x420xf32, #tpu.memory_space<vmem>>, vector<4x240xf32>,
    %c0_144 = arith.constant 0 : index
    %c0_145 = arith.constant 0 : index
    %160 = vector.load %arg7[%c0_144, %c0_145] : memref<1x1xf32, #tpu.memory_space<vmem>>, vector<1x1xf32>
    %161 = vector.shape_cast %160 : vector<1x1xf32> to vector<1x1xf32>
    %162 = vector.broadcast %161 : vector<1x1xf32> to vector<1x320xf32>
    %c0_146 = arith.constant 0 : index
    %c0_147 = arith.constant 0 : index
    %163 = vector.load %arg11[%c0_146, %c0_147] : memref<4x420xf32, #tpu.memory_space<vmem>>, vector<4x320xf32>
    %c0_148 = arith.constant 0 : index
    %c0_149 = arith.constant 0 : index
    %c0_150 = arith.constant 0 : index
    %164 = vector.load %arg6[%c0_148, %c0_149, %c0_150] : memref<25x1x4xf32, #tpu.memory_space<vmem>>, vector<1x1x4xf32>
    %165 = vector.shape_cast %164 : vector<1x1x4xf32> to vector<1x4xf32>
    %cst_151 = arith.constant dense<0.000000e+00> : vector<1x320xf32>
    %166 = tpu.matmul %165, %163, %cst_151 {dimension_numbers = #tpu.dot_dimension_numbers<[1], [0], [0], [1], [0, 0, 1, 1], [], []>} : vector<1x4xf32>, vector<4x320xf32>, vector<1x320xf32> -> vector<1x320xf32>
    %167 = arith.addf %162, %166 : vector<1x320xf32>
    %c0_152 = arith.constant 0 : index
    %c1_153 = arith.constant 1 : index
    %168 = vector.load %arg11[%c0_152, %c1_153] : memref<4x420xf32, #tpu.memory_space<vmem>>, vector<4x320xf32>
    %c1_154 = arith.constant 1 : index
    %c0_155 = arith.constant 0 : index
    %c0_156 = arith.constant 0 : index
    %169 = vector.load %arg6[%c1_154, %c0_155, %c0_156] : memref<25x1x4xf32, #tpu.memory_space<vmem>>, vector<1x1x4xf32>
    %170 = vector.shape_cast %169 : vector<1x1x4xf32> to vector<1x4xf32>
    %cst_157 = arith.constant dense<0.000000e+00> : vector<1x320xf32>
    %171 = tpu.matmul %170, %168, %cst_157 {dimension_numbers = #tpu.dot_dimension_numbers<[1], [0], [0], [1], [0, 0, 1, 1], [], []>} : vector<1x4xf32>, vector<4x320xf32>, vector<1x320xf32> -> vector<1x320xf32>
    %172 = arith.addf %167, %171 : vector<1x320xf32>
    %c0_158 = arith.constant 0 : index
    %c2_159 = arith.constant 2 : index
    %173 = vector.load %arg11[%c0_158, %c2_159] : memref<4x420xf32, #tpu.memory_space<vmem>>, vector<4x320xf32>
    %c2_160 = arith.constant 2 : index
    %c0_161 = arith.constant 0 : index
    %c0_162 = arith.constant 0 : index
    %174 = vector.load %arg6[%c2_160, %c0_161, %c0_162] : memref<25x1x4xf32, #tpu.memory_space<vmem>>, vector<1x1x4xf32>
    %175 = vector.shape_cast %174 : vector<1x1x4xf32> to vector<1x4xf32>
    %cst_163 = arith.constant dense<0.000000e+00> : vector<1x320xf32>
    %176 = tpu.matmul %175, %173, %cst_163 {dimension_numbers = #tpu.dot_dimension_numbers<[1], [0], [0], [1], [0, 0, 1, 1], [], []>} : vector<1x4xf32>, vector<4x320xf32>, vector<1x320xf32> -> vector<1x320xf32>
    %177 = arith.addf %172, %176 : vector<1x320xf32>
    %c0_164 = arith.constant 0 : index
    %c3_165 = arith.constant 3 : index
    %178 = vector.load %arg11[%c0_164, %c3_165] : memref<4x420xf32, #tpu.memory_space<vmem>>, vector<4x320xf32>
    %c3_166 = arith.constant 3 : index
    %c0_167 = arith.constant 0 : index
    %c0_168 = arith.constant 0 : index
    %179 = vector.load %arg6[%c3_166, %c0_167, %c0_168] : memref<25x1x4xf32, #tpu.memory_space<vmem>>, vector<1x1x4xf32>
    %180 = vector.shape_cast %179 : vector<1x1x4xf32> to vector<1x4xf32>
    %cst_169 = arith.constant dense<0.000000e+00> : vector<1x320xf32>
    %181 = tpu.matmul %180, %178, %cst_169 {dimension_numbers = #tpu.dot_dimension_numbers<[1], [0], [0], [1], [0, 0, 1, 1], [], []>} : vector<1x4xf32>, vector<4x320xf32>, vector<1x320xf32> -> vector<1x320xf32>
    %182 = arith.addf %177, %181 : vector<1x320xf32>
    %c0_170 = arith.constant 0 : index
    %c4_171 = arith.constant 4 : index
    %183 = vector.load %arg11[%c0_170, %c4_171] : memref<4x420xf32, #tpu.memory_space<vmem>>, vector<4x320xf32>
    %c4_172 = arith.constant 4 : index
    %c0_173 = arith.constant 0 : index
    %c0_174 = arith.constant 0 : index
    %184 = vector.load %arg6[%c4_172, %c0_173, %c0_174] : memref<25x1x4xf32, #tpu.memory_space<vmem>>, vector<1x1x4xf32>
    %185 = vector.shape_cast %184 : vector<1x1x4xf32> to vector<1x4xf32>
    %cst_175 = arith.constant dense<0.000000e+00> : vector<1x320xf32>
    %186 = tpu.matmul %185, %183, %cst_175 {dimension_numbers = #tpu.dot_dimension_numbers<[1], [0], [0], [1], [0, 0, 1, 1], [], []>} : vector<1x4xf32>, vector<4x320xf32>, vector<1x320xf32> -> vector<1x320xf32>
    %187 = arith.addf %182, %186 : vector<1x320xf32>
    %c0_176 = arith.constant 0 : index
    %c20_177 = arith.constant 20 : index
    %188 = vector.load %arg11[%c0_176, %c20_177] : memref<4x420xf32, #tpu.memory_space<vmem>>, vector<4x320xf32>
    %c5_178 = arith.constant 5 : index
    %c0_179 = arith.constant 0 : index
    %c0_180 = arith.constant 0 : index
    %189 = vector.load %arg6[%c5_178, %c0_179, %c0_180] : memref<25x1x4xf32, #tpu.memory_space<vmem>>, vector<1x1x4xf32>
    %190 = vector.shape_cast %189 : vector<1x1x4xf32> to vector<1x4xf32>
    %cst_181 = arith.constant dense<0.000000e+00> : vector<1x320xf32>
    %191 = tpu.matmul %190, %188, %cst_181 {dimension_numbers = #tpu.dot_dimension_numbers<[1], [0], [0], [1], [0, 0, 1, 1], [], []>} : vector<1x4xf32>, vector<4x320xf32>, vector<1x320xf32> -> vector<1x320xf32>
    %192 = arith.addf %187, %191 : vector<1x320xf32>
    %c0_182 = arith.constant 0 : index
    %c21_183 = arith.constant 21 : index
    %193 = vector.load %arg11[%c0_182, %c21_183] : memref<4x420xf32, #tpu.memory_space<vmem>>, vector<4x320xf32>
    %c6_184 = arith.constant 6 : index
    %c0_185 = arith.constant 0 : index
    %c0_186 = arith.constant 0 : index
    %194 = vector.load %arg6[%c6_184, %c0_185, %c0_186] : memref<25x1x4xf32, #tpu.memory_space<vmem>>, vector<1x1x4xf32>
    %195 = vector.shape_cast %194 : vector<1x1x4xf32> to vector<1x4xf32>
    %cst_187 = arith.constant dense<0.000000e+00> : vector<1x320xf32>
    %196 = tpu.matmul %195, %193, %cst_187 {dimension_numbers = #tpu.dot_dimension_numbers<[1], [0], [0], [1], [0, 0, 1, 1], [], []>} : vector<1x4xf32>, vector<4x320xf32>, vector<1x320xf32> -> vector<1x320xf32>
    %197 = arith.addf %192, %196 : vector<1x320xf32>
    %c0_188 = arith.constant 0 : index
    %c22_189 = arith.constant 22 : index
    %198 = vector.load %arg11[%c0_188, %c22_189] : memref<4x420xf32, #tpu.memory_space<vmem>>, vector<4x320xf32>
    %c7_190 = arith.constant 7 : index
    %c0_191 = arith.constant 0 : index
    %c0_192 = arith.constant 0 : index
    %199 = vector.load %arg6[%c7_190, %c0_191, %c0_192] : memref<25x1x4xf32, #tpu.memory_space<vmem>>, vector<1x1x4xf32>
    %200 = vector.shape_cast %199 : vector<1x1x4xf32> to vector<1x4xf32>
    %cst_193 = arith.constant dense<0.000000e+00> : vector<1x320xf32>
    %201 = tpu.matmul %200, %198, %cst_193 {dimension_numbers = #tpu.dot_dimension_numbers<[1], [0], [0], [1], [0, 0, 1, 1], [], []>} : vector<1x4xf32>, vector<4x320xf32>, vector<1x320xf32> -> vector<1x320xf32>
    %202 = arith.addf %197, %201 : vector<1x320xf32>
    %c0_194 = arith.constant 0 : index
    %c23_195 = arith.constant 23 : index
    %203 = vector.load %arg11[%c0_194, %c23_195] : memref<4x420xf32, #tpu.memory_space<vmem>>, vector<4x320xf32>
    %c8_196 = arith.constant 8 : index
    %c0_197 = arith.constant 0 : index
    %c0_198 = arith.constant 0 : index
    %204 = vector.load %arg6[%c8_196, %c0_197, %c0_198] : memref<25x1x4xf32, #tpu.memory_space<vmem>>, vector<1x1x4xf32>
    %205 = vector.shape_cast %204 : vector<1x1x4xf32> to vector<1x4xf32>
    %cst_199 = arith.constant dense<0.000000e+00> : vector<1x320xf32>
    %206 = tpu.matmul %205, %203, %cst_199 {dimension_numbers = #tpu.dot_dimension_numbers<[1], [0], [0], [1], [0, 0, 1, 1], [], []>} : vector<1x4xf32>, vector<4x320xf32>, vector<1x320xf32> -> vector<1x320xf32>
    %207 = arith.addf %202, %206 : vector<1x320xf32>
    %c0_200 = arith.constant 0 : index
    %c24_201 = arith.constant 24 : index
    %208 = vector.load %arg11[%c0_200, %c24_201] : memref<4x420xf32, #tpu.memory_space<vmem>>, vector<4x320xf32>
    %c9_202 = arith.constant 9 : index
    %c0_203 = arith.constant 0 : index
    %c0_204 = arith.constant 0 : index
    %209 = vector.load %arg6[%c9_202, %c0_203, %c0_204] : memref<25x1x4xf32, #tpu.memory_space<vmem>>, vector<1x1x4xf32>
    %210 = vector.shape_cast %209 : vector<1x1x4xf32> to vector<1x4xf32>
    %cst_205 = arith.constant dense<0.000000e+00> : vector<1x320xf32>
    %211 = tpu.matmul %210, %208, %cst_205 {dimension_numbers = #tpu.dot_dimension_numbers<[1], [0], [0], [1], [0, 0, 1, 1], [], []>} : vector<1x4xf32>, vector<4x320xf32>, vector<1x320xf32> -> vector<1x320xf32>
    %212 = arith.addf %207, %211 : vector<1x320xf32>
    %c0_206 = arith.constant 0 : index
    %c40_207 = arith.constant 40 : index
    %213 = vector.load %arg11[%c0_206, %c40_207] : memref<4x420xf32, #tpu.memory_space<vmem>>, vector<4x320xf32>
    %c10_208 = arith.constant 10 : index
    %c0_209 = arith.constant 0 : index
    %c0_210 = arith.constant 0 : index
    %214 = vector.load %arg6[%c10_208, %c0_209, %c0_210] : memref<25x1x4xf32, #tpu.memory_space<vmem>>, vector<1x1x4xf32>
    %215 = vector.shape_cast %214 : vector<1x1x4xf32> to vector<1x4xf32>
    %cst_211 = arith.constant dense<0.000000e+00> : vector<1x320xf32>
    %216 = tpu.matmul %215, %213, %cst_211 {dimension_numbers = #tpu.dot_dimension_numbers<[1], [0], [0], [1], [0, 0, 1, 1], [], []>} : vector<1x4xf32>, vector<4x320xf32>, vector<1x320xf32> -> vector<1x320xf32>
    %217 = arith.addf %212, %216 : vector<1x320xf32>
    %c0_212 = arith.constant 0 : index
    %c41_213 = arith.constant 41 : index
    %218 = vector.load %arg11[%c0_212, %c41_213] : memref<4x420xf32, #tpu.memory_space<vmem>>, vector<4x320xf32>
    %c11_214 = arith.constant 11 : index
    %c0_215 = arith.constant 0 : index
    %c0_216 = arith.constant 0 : index
    %219 = vector.load %arg6[%c11_214, %c0_215, %c0_216] : memref<25x1x4xf32, #tpu.memory_space<vmem>>, vector<1x1x4xf32>
    %220 = vector.shape_cast %219 : vector<1x1x4xf32> to vector<1x4xf32>
    %cst_217 = arith.constant dense<0.000000e+00> : vector<1x320xf32>
    %221 = tpu.matmul %220, %218, %cst_217 {dimension_numbers = #tpu.dot_dimension_numbers<[1], [0], [0], [1], [0, 0, 1, 1], [], []>} : vector<1x4xf32>, vector<4x320xf32>, vector<1x320xf32> -> vector<1x320xf32>
    %222 = arith.addf %217, %221 : vector<1x320xf32>
    %c0_218 = arith.constant 0 : index
    %c42_219 = arith.constant 42 : index
    %223 = vector.load %arg11[%c0_218, %c42_219] : memref<4x420xf32, #tpu.memory_space<vmem>>, vector<4x320xf32>
    %c12_220 = arith.constant 12 : index
    %c0_221 = arith.constant 0 : index
    %c0_222 = arith.constant 0 : index
    %224 = vector.load %arg6[%c12_220, %c0_221, %c0_222] : memref<25x1x4xf32, #tpu.memory_space<vmem>>, vector<1x1x4xf32>
    %225 = vector.shape_cast %224 : vector<1x1x4xf32> to vector<1x4xf32>
    %cst_223 = arith.constant dense<0.000000e+00> : vector<1x320xf32>
    %226 = tpu.matmul %225, %223, %cst_223 {dimension_numbers = #tpu.dot_dimension_numbers<[1], [0], [0], [1], [0, 0, 1, 1], [], []>} : vector<1x4xf32>, vector<4x320xf32>, vector<1x320xf32> -> vector<1x320xf32>
    %227 = arith.addf %222, %226 : vector<1x320xf32>
    %c0_224 = arith.constant 0 : index
    %c43_225 = arith.constant 43 : index
    %228 = vector.load %arg11[%c0_224, %c43_225] : memref<4x420xf32, #tpu.memory_space<vmem>>, vector<4x320xf32>
    %c13_226 = arith.constant 13 : index
    %c0_227 = arith.constant 0 : index
    %c0_228 = arith.constant 0 : index
    %229 = vector.load %arg6[%c13_226, %c0_227, %c0_228] : memref<25x1x4xf32, #tpu.memory_space<vmem>>, vector<1x1x4xf32>
    %230 = vector.shape_cast %229 : vector<1x1x4xf32> to vector<1x4xf32>
    %cst_229 = arith.constant dense<0.000000e+00> : vector<1x320xf32>
    %231 = tpu.matmul %230, %228, %cst_229 {dimension_numbers = #tpu.dot_dimension_numbers<[1], [0], [0], [1], [0, 0, 1, 1], [], []>} : vector<1x4xf32>, vector<4x320xf32>, vector<1x320xf32> -> vector<1x320xf32>
    %232 = arith.addf %227, %231 : vector<1x320xf32>
    %c0_230 = arith.constant 0 : index
    %c44_231 = arith.constant 44 : index
    %233 = vector.load %arg11[%c0_230, %c44_231] : memref<4x420xf32, #tpu.memory_space<vmem>>, vector<4x320xf32>
    %c14_232 = arith.constant 14 : index
    %c0_233 = arith.constant 0 : index
    %c0_234 = arith.constant 0 : index
    %234 = vector.load %arg6[%c14_232, %c0_233, %c0_234] : memref<25x1x4xf32, #tpu.memory_space<vmem>>, vector<1x1x4xf32>
    %235 = vector.shape_cast %234 : vector<1x1x4xf32> to vector<1x4xf32>
    %cst_235 = arith.constant dense<0.000000e+00> : vector<1x320xf32>
    %236 = tpu.matmul %235, %233, %cst_235 {dimension_numbers = #tpu.dot_dimension_numbers<[1], [0], [0], [1], [0, 0, 1, 1], [], []>} : vector<1x4xf32>, vector<4x320xf32>, vector<1x320xf32> -> vector<1x320xf32>
    %237 = arith.addf %232, %236 : vector<1x320xf32>
    %c0_236 = arith.constant 0 : index
    %c60_237 = arith.constant 60 : index
    %238 = vector.load %arg11[%c0_236, %c60_237] : memref<4x420xf32, #tpu.memory_space<vmem>>, vector<4x320xf32>
    %c15_238 = arith.constant 15 : index
    %c0_239 = arith.constant 0 : index
    %c0_240 = arith.constant 0 : index
    %239 = vector.load %arg6[%c15_238, %c0_239, %c0_240] : memref<25x1x4xf32, #tpu.memory_space<vmem>>, vector<1x1x4xf32>
    %240 = vector.shape_cast %239 : vector<1x1x4xf32> to vector<1x4xf32>
    %cst_241 = arith.constant dense<0.000000e+00> : vector<1x320xf32>
    %241 = tpu.matmul %240, %238, %cst_241 {dimension_numbers = #tpu.dot_dimension_numbers<[1], [0], [0], [1], [0, 0, 1, 1], [], []>} : vector<1x4xf32>, vector<4x320xf32>, vector<1x320xf32> -> vector<1x320xf32>
    %242 = arith.addf %237, %241 : vector<1x320xf32>
    %c0_242 = arith.constant 0 : index
    %c61_243 = arith.constant 61 : index
    %243 = vector.load %arg11[%c0_242, %c61_243] : memref<4x420xf32, #tpu.memory_space<vmem>>, vector<4x320xf32>
    %c16_244 = arith.constant 16 : index
    %c0_245 = arith.constant 0 : index
    %c0_246 = arith.constant 0 : index
    %244 = vector.load %arg6[%c16_244, %c0_245, %c0_246] : memref<25x1x4xf32, #tpu.memory_space<vmem>>, vector<1x1x4xf32>
    %245 = vector.shape_cast %244 : vector<1x1x4xf32> to vector<1x4xf32>
    %cst_247 = arith.constant dense<0.000000e+00> : vector<1x320xf32>
    %246 = tpu.matmul %245, %243, %cst_247 {dimension_numbers = #tpu.dot_dimension_numbers<[1], [0], [0], [1], [0, 0, 1, 1], [], []>} : vector<1x4xf32>, vector<4x320xf32>, vector<1x320xf32> -> vector<1x320xf32>
    %247 = arith.addf %242, %246 : vector<1x320xf32>
    %c0_248 = arith.constant 0 : index
    %c62_249 = arith.constant 62 : index
    %248 = vector.load %arg11[%c0_248, %c62_249] : memref<4x420xf32, #tpu.memory_space<vmem>>, vector<4x320xf32>
    %c17_250 = arith.constant 17 : index
    %c0_251 = arith.constant 0 : index
    %c0_252 = arith.constant 0 : index
    %249 = vector.load %arg6[%c17_250, %c0_251, %c0_252] : memref<25x1x4xf32, #tpu.memory_space<vmem>>, vector<1x1x4xf32>
    %250 = vector.shape_cast %249 : vector<1x1x4xf32> to vector<1x4xf32>
    %cst_253 = arith.constant dense<0.000000e+00> : vector<1x320xf32>
    %251 = tpu.matmul %250, %248, %cst_253 {dimension_numbers = #tpu.dot_dimension_numbers<[1], [0], [0], [1], [0, 0, 1, 1], [], []>} : vector<1x4xf32>, vector<4x320xf32>, vector<1x320xf32> -> vector<1x320xf32>
    %252 = arith.addf %247, %251 : vector<1x320xf32>
    %c0_254 = arith.constant 0 : index
    %c63_255 = arith.constant 63 : index
    %253 = vector.load %arg11[%c0_254, %c63_255] : memref<4x420xf32, #tpu.memory_space<vmem>>, vector<4x320xf32>
    %c18_256 = arith.constant 18 : index
    %c0_257 = arith.constant 0 : index
    %c0_258 = arith.constant 0 : index
    %254 = vector.load %arg6[%c18_256, %c0_257, %c0_258] : memref<25x1x4xf32, #tpu.memory_space<vmem>>, vector<1x1x4xf32>
    %255 = vector.shape_cast %254 : vector<1x1x4xf32> to vector<1x4xf32>
    %cst_259 = arith.constant dense<0.000000e+00> : vector<1x320xf32>
    %256 = tpu.matmul %255, %253, %cst_259 {dimension_numbers = #tpu.dot_dimension_numbers<[1], [0], [0], [1], [0, 0, 1, 1], [], []>} : vector<1x4xf32>, vector<4x320xf32>, vector<1x320xf32> -> vector<1x320xf32>
    %257 = arith.addf %252, %256 : vector<1x320xf32>
    %c0_260 = arith.constant 0 : index
    %c64_261 = arith.constant 64 : index
    %258 = vector.load %arg11[%c0_260, %c64_261] : memref<4x420xf32, #tpu.memory_space<vmem>>, vector<4x320xf32>
    %c19_262 = arith.constant 19 : index
    %c0_263 = arith.constant 0 : index
    %c0_264 = arith.constant 0 : index
    %259 = vector.load %arg6[%c19_262, %c0_263, %c0_264] : memref<25x1x4xf32, #tpu.memory_space<vmem>>, vector<1x1x4xf32>
    %260 = vector.shape_cast %259 : vector<1x1x4xf32> to vector<1x4xf32>
    %cst_265 = arith.constant dense<0.000000e+00> : vector<1x320xf32>
    %261 = tpu.matmul %260, %258, %cst_265 {dimension_numbers = #tpu.dot_dimension_numbers<[1], [0], [0], [1], [0, 0, 1, 1], [], []>} : vector<1x4xf32>, vector<4x320xf32>, vector<1x320xf32> -> vector<1x320xf32>
    %262 = arith.addf %257, %261 : vector<1x320xf32>
    %c0_266 = arith.constant 0 : index
    %c80_267 = arith.constant 80 : index
    %263 = vector.load %arg11[%c0_266, %c80_267] : memref<4x420xf32, #tpu.memory_space<vmem>>, vector<4x320xf32>
    %c20_268 = arith.constant 20 : index
    %c0_269 = arith.constant 0 : index
    %c0_270 = arith.constant 0 : index
    %264 = vector.load %arg6[%c20_268, %c0_269, %c0_270] : memref<25x1x4xf32, #tpu.memory_space<vmem>>, vector<1x1x4xf32>
    %265 = vector.shape_cast %264 : vector<1x1x4xf32> to vector<1x4xf32>
    %cst_271 = arith.constant dense<0.000000e+00> : vector<1x320xf32>
    %266 = tpu.matmul %265, %263, %cst_271 {dimension_numbers = #tpu.dot_dimension_numbers<[1], [0], [0], [1], [0, 0, 1, 1], [], []>} : vector<1x4xf32>, vector<4x320xf32>, vector<1x320xf32> -> vector<1x320xf32>
    %267 = arith.addf %262, %266 : vector<1x320xf32>
    %c0_272 = arith.constant 0 : index
    %c81_273 = arith.constant 81 : index
    %268 = vector.load %arg11[%c0_272, %c81_273] : memref<4x420xf32, #tpu.memory_space<vmem>>, vector<4x320xf32>
    %c21_274 = arith.constant 21 : index
    %c0_275 = arith.constant 0 : index
    %c0_276 = arith.constant 0 : index
    %269 = vector.load %arg6[%c21_274, %c0_275, %c0_276] : memref<25x1x4xf32, #tpu.memory_space<vmem>>, vector<1x1x4xf32>
    %270 = vector.shape_cast %269 : vector<1x1x4xf32> to vector<1x4xf32>
    %cst_277 = arith.constant dense<0.000000e+00> : vector<1x320xf32>
    %271 = tpu.matmul %270, %268, %cst_277 {dimension_numbers = #tpu.dot_dimension_numbers<[1], [0], [0], [1], [0, 0, 1, 1], [], []>} : vector<1x4xf32>, vector<4x320xf32>, vector<1x320xf32> -> vector<1x320xf32>
    %272 = arith.addf %267, %271 : vector<1x320xf32>
    %c0_278 = arith.constant 0 : index
    %c82_279 = arith.constant 82 : index
    %273 = vector.load %arg11[%c0_278, %c82_279] : memref<4x420xf32, #tpu.memory_space<vmem>>, vector<4x320xf32>
    %c22_280 = arith.constant 22 : index
    %c0_281 = arith.constant 0 : index
    %c0_282 = arith.constant 0 : index
    %274 = vector.load %arg6[%c22_280, %c0_281, %c0_282] : memref<25x1x4xf32, #tpu.memory_space<vmem>>, vector<1x1x4xf32>
    %275 = vector.shape_cast %274 : vector<1x1x4xf32> to vector<1x4xf32>
    %cst_283 = arith.constant dense<0.000000e+00> : vector<1x320xf32>
    %276 = tpu.matmul %275, %273, %cst_283 {dimension_numbers = #tpu.dot_dimension_numbers<[1], [0], [0], [1], [0, 0, 1, 1], [], []>} : vector<1x4xf32>, vector<4x320xf32>, vector<1x320xf32> -> vector<1x320xf32>
    %277 = arith.addf %272, %276 : vector<1x320xf32>
    %c0_284 = arith.constant 0 : index
    %c83_285 = arith.constant 83 : index
    %278 = vector.load %arg11[%c0_284, %c83_285] : memref<4x420xf32, #tpu.memory_space<vmem>>, vector<4x320xf32>
    %c23_286 = arith.constant 23 : index
    %c0_287 = arith.constant 0 : index
    %c0_288 = arith.constant 0 : index
    %279 = vector.load %arg6[%c23_286, %c0_287, %c0_288] : memref<25x1x4xf32, #tpu.memory_space<vmem>>, vector<1x1x4xf32>
    %280 = vector.shape_cast %279 : vector<1x1x4xf32> to vector<1x4xf32>
    %cst_289 = arith.constant dense<0.000000e+00> : vector<1x320xf32>
    %281 = tpu.matmul %280, %278, %cst_289 {dimension_numbers = #tpu.dot_dimension_numbers<[1], [0], [0], [1], [0, 0, 1, 1], [], []>} : vector<1x4xf32>, vector<4x320xf32>, vector<1x320xf32> -> vector<1x320xf32>
    %282 = arith.addf %277, %281 : vector<1x320xf32>
    %c0_290 = arith.constant 0 : index
    %c84_291 = arith.constant 84 : index
    %283 = vector.load %arg11[%c0_290, %c84_291] : memref<4x420xf32, #tpu.memory_space<vmem>>, vector<4x320xf32>
    %c24_292 = arith.constant 24 : index
    %c0_293 = arith.constant 0 : index
    %c0_294 = arith.constant 0 : index
    %284 = vector.load %arg6[%c24_292, %c0_293, %c0_294] : memref<25x1x4xf32, #tpu.memory_space<vmem>>, vector<1x1x4xf32>
    %285 = vector.shape_cast %284 : vector<1x1x4xf32> to vector<1x4xf32>
    %cst_295 = arith.constant dense<0.000000e+00> : vector<1x320xf32>
    %286 = tpu.matmul %285, %283, %cst_295 {dimension_numbers = #tpu.dot_dimension_numbers<[1], [0], [0], [1], [0, 0, 1, 1], [], []>} : vector<1x4xf32>, vector<4x320xf32>, vector<1x320xf32> -> vector<1x320xf32>
    %287 = arith.addf %282, %286 : vector<1x320xf32>
    %c0_296 = arith.constant 0 : index
    %c0_297 = arith.constant 0 : index
    %c0_298 = arith.constant 0 : index
    %288 = vector.load %arg9[%c0_296, %c0_297, %c0_298] : memref<1x1x320xf32, #tpu.memory_space<vmem>>, vector<1x1x320xf32>
    %289 = vector.shape_cast %288 : vector<1x1x320xf32> to vector<1x320xf32>
    %290 = vector.shape_cast %287 : vector<1x320xf32> to vector<1x1x320xf32>
    tpu.vector_store %arg9[%c0_296, %c0_297, %c0_298], %290 {strides = array<i32>} : memref<1x1x320xf32, #tpu.memory_space<vmem>>, vector<1x1x320xf32>,
    return
  }
  func.func @transform_0(%arg0: i32) -> (i32, i32) {
    %c0_i32 = arith.constant 0 : i32
    %c0_i32_0 = arith.constant 0 : i32
    %c0_i32_1 = arith.constant 0 : i32
    return %c0_i32, %c0_i32_0 : i32, i32
  }
  func.func @transform_1(%arg0: i32) -> (i32, i32) {
    %c0_i32 = arith.constant 0 : i32
    %c0_i32_0 = arith.constant 0 : i32
    %c0_i32_1 = arith.constant 0 : i32
    return %c0_i32, %c0_i32_0 : i32, i32
  }
  func.func @transform_2(%arg0: i32) -> (i32, i32) {
    %c0_i32 = arith.constant 0 : i32
    %c0_i32_0 = arith.constant 0 : i32
    %c0_i32_1 = arith.constant 0 : i32
    return %c0_i32, %c0_i32_0 : i32, i32
  }
  func.func @transform_3(%arg0: i32) -> (i32, i32, i32) {
    %c0_i32 = arith.constant 0 : i32
    %c0_i32_0 = arith.constant 0 : i32
    %c0_i32_1 = arith.constant 0 : i32
    %c0_i32_2 = arith.constant 0 : i32
    return %c0_i32, %c0_i32_0, %c0_i32_1 : i32, i32, i32
  }
  func.func @transform_4(%arg0: i32) -> (i32, i32) {
    %c0_i32 = arith.constant 0 : i32
    %c0_i32_0 = arith.constant 0 : i32
    %c0_i32_1 = arith.constant 0 : i32
    return %c0_i32, %c0_i32_0 : i32, i32
  }
  func.func @transform_5(%arg0: i32) -> (i32, i32, i32) {
    %c0_i32 = arith.constant 0 : i32
    %c0_i32_0 = arith.constant 0 : i32
    %c0_i32_1 = arith.constant 0 : i32
    %c0_i32_2 = arith.constant 0 : i32
    return %c0_i32, %c0_i32_0, %c0_i32_1 : i32, i32, i32
  }
  func.func @transform_6(%arg0: i32) -> (i32, i32) {
    %c0_i32 = arith.constant 0 : i32
    %c0_i32_0 = arith.constant 0 : i32
    %c0_i32_1 = arith.constant 0 : i32
    return %c0_i32, %c0_i32_0 : i32, i32
  }
  func.func @transform_7(%arg0: i32) -> (i32, i32) {
    %c0_i32 = arith.constant 0 : i32
    %c0_i32_0 = arith.constant 0 : i32
    %c0_i32_1 = arith.constant 0 : i32
    return %c0_i32, %c0_i32_0 : i32, i32
  }
  func.func @transform_8(%arg0: i32) -> (i32, i32, i32) {
    %c0_i32 = arith.constant 0 : i32
    %c0_i32_0 = arith.constant 0 : i32
    %c0_i32_1 = arith.constant 0 : i32
    return %arg0, %c0_i32, %c0_i32_0 : i32, i32, i32
  }
}

</mosaic_0001>

<llo_original>
// kernel: fwd.1
$region0: #{fwd.1}
  #allocation0 [shape = 'u32[]', space=smem, size = 0x4, offset = 0x4, fixed_abs, tag = 'smem constant byte address 0x4 - core index']
  #allocation1 [shape = 'u32[144,128]{1,0:T(1,128)}', space=vmem, size = 0x12000, scoped, tag = 'internal scratch']
  #allocation2 [shape = 'f32[8,340]{1,0:T(8,128)}', space=vmem, size = 0x3000, scoped, tag = 'scratch operand']
  #allocation3 [shape = 'f32[4,420]{1,0:T(4,128)}', space=vmem, size = 0x2000, scoped, tag = 'scratch operand']
  #allocation4 [shape = 'f32[1,1]{1,0:T(1,128)S(1)}', space=vmem, size = 0x200, scoped, tag = 'scoped memory for fwd.1']
  %s0 = inlined_call_operand.vmem [shape: f32[2,12], index: 0, kind: input, shape index: {}]
  %s1 = inlined_call_operand.vmem [shape: f32[12,1280], index: 1, kind: input, shape index: {}]
  %s2 = inlined_call_operand.vmem [shape: f32[1,1280], index: 2, kind: input, shape index: {}]
  %s3 = inlined_call_operand.vmem [shape: f32[25,4,8], index: 3, kind: input, shape index: {}]
  %s4 = inlined_call_operand.vmem [shape: f32[4,1], index: 4, kind: input, shape index: {}]
  %s5 = inlined_call_operand.vmem [shape: f32[25,1,4], index: 5, kind: input, shape index: {}]
  %s6 = inlined_call_operand.<no memory space> [shape: f32[1,1], index: 6, kind: input, shape index: {}]
  %s7 = inlined_call_operand.vmem [shape: f32[1,240], index: 7, kind: input, shape index: {}]
  %s8 = inlined_call_operand.vmem [shape: f32[2,1,320], index: 8, kind: output, shape index: {}]
  %s9 = sld [smem:[#allocation0]]
  $region65: #{fwd.1} parent=0
    _
  %s11 = ssub.s32 1, %s9
  %s12 = scalar_select 0, %s11, %s9
  %v13 = vstv %s6
  %14 = vst [vmem:[#allocation4] sm:$0x1] %v13
  loop: start=0, step=1, limit=4
  $region2: #{fwd.1} parent=0 // loop_pre_header
    _
  $region3: #{fwd.1} parent=0 // loop_header
    %s16 = sphi 0, %s20
    %p17 = scmp.ge.s32.totalorder %s16, 4
    %s24 = sphi 0, %s24
    %s26 = sphi 0, %s24
    %s27 = sphi 0, %s26
    %s41 = sphi 0, %s27
    %s45 = sphi 0, %s45
    %s47 = sphi 0, %s45
    %s48 = sphi 0, %s47
    %s62 = sphi 0, %s48
    %s66 = sphi 0, %s66
    %s68 = sphi 0, %s66
    %s69 = sphi 0, %s68
    %s83 = sphi 0, %s69
    %s87 = sphi 0, %s87
    %s89 = sphi 0, %s87
    %s90 = sphi 0, %s89
    %s104 = sphi 0, %s90
    %s108 = sphi 0, %s108
    %s110 = sphi 0, %s108
    %s111 = sphi 0, %s110
    %s125 = sphi 0, %s111
    %s129 = sphi 0, %s129
    %s131 = sphi 0, %s129
    %s132 = sphi 0, %s131
    %s146 = sphi 0, %s132
    %s150 = sphi 0, %s150
    %s152 = sphi 0, %s150
    %s153 = sphi 0, %s152
    %s167 = sphi 0, %s153
    %s171 = sphi 0, %s171
    %s173 = sphi 0, %s171
    %s174 = sphi 0, %s173
    %s188 = sphi 0, %s174
    %s194 = sphi 0, %s196
    %s197 = sphi 0, %s194
    %s198 = sphi 0, %s197
    %s214 = sphi 0, %s198
  $region4: #{fwd.1} parent=0 // loop_header_branch
    %19 = sbr.rel (%p17) target = $region8
  $region5: #{fwd.1} parent=0 // loop_body
    %s21 = ssub.s32 %s16, 1
    %s22 = ssub.s32 %s16, 2
    %s23 = sadd.s32 %s16, 1
    %s25 = sadd.s32 %s24, 1
    %p28 = scmp.eq.s32.totalorder %s16, 1
    %p29 = scmp.ne.s32.totalorder %s24, %s26
    %p30 = scmp.eq.s32.totalorder %s16, 0
    %p31 = por %p29, %p30
    %p32 = scmp.ne.s32.totalorder %s24, %s26
    %p33 = scmp.eq.s32.totalorder %s21, 1
    %p34 = por %p32, %p33
    %p35 = scmp.ne.s32.totalorder %s26, %s27
    %p36 = scmp.eq.s32.totalorder %s21, 0
    %p37 = por %p35, %p36
    %p38 = scmp.ne.s32.totalorder %s26, %s27
    %p39 = scmp.eq.s32.totalorder %s22, 1
    %p40 = por %p38, %p39
    %p42 = scmp.ne.s32.totalorder %s27, %s41
    %p43 = scmp.eq.s32.totalorder %s22, 0
    %p44 = por %p42, %p43
    %s46 = sadd.s32 %s45, 1
    %p49 = scmp.eq.s32.totalorder %s16, 1
    %p50 = scmp.ne.s32.totalorder %s45, %s47
    %p51 = scmp.eq.s32.totalorder %s16, 0
    %p52 = por %p50, %p51
    %p53 = scmp.ne.s32.totalorder %s45, %s47
    %p54 = scmp.eq.s32.totalorder %s21, 1
    %p55 = por %p53, %p54
    %p56 = scmp.ne.s32.totalorder %s47, %s48
    %p57 = scmp.eq.s32.totalorder %s21, 0
    %p58 = por %p56, %p57
    %p59 = scmp.ne.s32.totalorder %s47, %s48
    %p60 = scmp.eq.s32.totalorder %s22, 1
    %p61 = por %p59, %p60
    %p63 = scmp.ne.s32.totalorder %s48, %s62
    %p64 = scmp.eq.s32.totalorder %s22, 0
    %p65 = por %p63, %p64
    %s67 = sadd.s32 %s66, 1
    %p70 = scmp.eq.s32.totalorder %s16, 1
    %p71 = scmp.ne.s32.totalorder %s66, %s68
    %p72 = scmp.eq.s32.totalorder %s16, 0
    %p73 = por %p71, %p72
    %p74 = scmp.ne.s32.totalorder %s66, %s68
    %p75 = scmp.eq.s32.totalorder %s21, 1
    %p76 = por %p74, %p75
    %p77 = scmp.ne.s32.totalorder %s68, %s69
    %p78 = scmp.eq.s32.totalorder %s21, 0
    %p79 = por %p77, %p78
    %p80 = scmp.ne.s32.totalorder %s68, %s69
    %p81 = scmp.eq.s32.totalorder %s22, 1
    %p82 = por %p80, %p81
    %p84 = scmp.ne.s32.totalorder %s69, %s83
    %p85 = scmp.eq.s32.totalorder %s22, 0
    %p86 = por %p84, %p85
    %s88 = sadd.s32 %s87, 1
    %p91 = scmp.eq.s32.totalorder %s16, 1
    %p92 = scmp.ne.s32.totalorder %s87, %s89
    %p93 = scmp.eq.s32.totalorder %s16, 0
    %p94 = por %p92, %p93
    %p95 = scmp.ne.s32.totalorder %s87, %s89
    %p96 = scmp.eq.s32.totalorder %s21, 1
    %p97 = por %p95, %p96
    %p98 = scmp.ne.s32.totalorder %s89, %s90
    %p99 = scmp.eq.s32.totalorder %s21, 0
    %p100 = por %p98, %p99
    %p101 = scmp.ne.s32.totalorder %s89, %s90
    %p102 = scmp.eq.s32.totalorder %s22, 1
    %p103 = por %p101, %p102
    %p105 = scmp.ne.s32.totalorder %s90, %s104
    %p106 = scmp.eq.s32.totalorder %s22, 0
    %p107 = por %p105, %p106
    %s109 = sadd.s32 %s108, 1
    %p112 = scmp.eq.s32.totalorder %s16, 1
    %p113 = scmp.ne.s32.totalorder %s108, %s110
    %p114 = scmp.eq.s32.totalorder %s16, 0
    %p115 = por %p113, %p114
    %p116 = scmp.ne.s32.totalorder %s108, %s110
    %p117 = scmp.eq.s32.totalorder %s21, 1
    %p118 = por %p116, %p117
    %p119 = scmp.ne.s32.totalorder %s110, %s111
    %p120 = scmp.eq.s32.totalorder %s21, 0
    %p121 = por %p119, %p120
    %p122 = scmp.ne.s32.totalorder %s110, %s111
    %p123 = scmp.eq.s32.totalorder %s22, 1
    %p124 = por %p122, %p123
    %p126 = scmp.ne.s32.totalorder %s111, %s125
    %p127 = scmp.eq.s32.totalorder %s22, 0
    %p128 = por %p126, %p127
    %s130 = sadd.s32 %s129, 1
    %p133 = scmp.eq.s32.totalorder %s16, 1
    %p134 = scmp.ne.s32.totalorder %s129, %s131
    %p135 = scmp.eq.s32.totalorder %s16, 0
    %p136 = por %p134, %p135
    %p137 = scmp.ne.s32.totalorder %s129, %s131
    %p138 = scmp.eq.s32.totalorder %s21, 1
    %p139 = por %p137, %p138
    %p140 = scmp.ne.s32.totalorder %s131, %s132
    %p141 = scmp.eq.s32.totalorder %s21, 0
    %p142 = por %p140, %p141
    %p143 = scmp.ne.s32.totalorder %s131, %s132
    %p144 = scmp.eq.s32.totalorder %s22, 1
    %p145 = por %p143, %p144
    %p147 = scmp.ne.s32.totalorder %s132, %s146
    %p148 = scmp.eq.s32.totalorder %s22, 0
    %p149 = por %p147, %p148
    %s151 = sadd.s32 %s150, 1
    %p154 = scmp.eq.s32.totalorder %s16, 1
    %p155 = scmp.ne.s32.totalorder %s150, %s152
    %p156 = scmp.eq.s32.totalorder %s16, 0
    %p157 = por %p155, %p156
    %p158 = scmp.ne.s32.totalorder %s150, %s152
    %p159 = scmp.eq.s32.totalorder %s21, 1
    %p160 = por %p158, %p159
    %p161 = scmp.ne.s32.totalorder %s152, %s153
    %p162 = scmp.eq.s32.totalorder %s21, 0
    %p163 = por %p161, %p162
    %p164 = scmp.ne.s32.totalorder %s152, %s153
    %p165 = scmp.eq.s32.totalorder %s22, 1
    %p166 = por %p164, %p165
    %p168 = scmp.ne.s32.totalorder %s153, %s167
    %p169 = scmp.eq.s32.totalorder %s22, 0
    %p170 = por %p168, %p169
    %s172 = sadd.s32 %s171, 1
    %p175 = scmp.eq.s32.totalorder %s16, 1
    %p176 = scmp.ne.s32.totalorder %s171, %s173
    %p177 = scmp.eq.s32.totalorder %s16, 0
    %p178 = por %p176, %p177
    %p179 = scmp.ne.s32.totalorder %s171, %s173
    %p180 = scmp.eq.s32.totalorder %s21, 1
    %p181 = por %p179, %p180
    %p182 = scmp.ne.s32.totalorder %s173, %s174
    %p183 = scmp.eq.s32.totalorder %s21, 0
    %p184 = por %p182, %p183
    %p185 = scmp.ne.s32.totalorder %s173, %s174
    %p186 = scmp.eq.s32.totalorder %s22, 1
    %p187 = por %p185, %p186
    %p189 = scmp.ne.s32.totalorder %s174, %s188
    %p190 = scmp.eq.s32.totalorder %s22, 0
    %p191 = por %p189, %p190
    %s192 = ssub.s32 %s16, %s23
    %p193 = scmp.eq.s32.totalorder %s192, 0
    %s195 = sadd.s32 %s194, 1
    %s196 = scalar_select %p193, %s194, %s195
    %p199 = pneg %p193
    %p200 = scmp.eq.s32.totalorder %s16, 1
    %p201 = por %p199, %p200
    %p202 = scmp.ne.s32.totalorder %s194, %s197
    %p203 = scmp.eq.s32.totalorder %s16, 0
    %p204 = por %p202, %p203
    %p205 = scmp.ne.s32.totalorder %s194, %s197
    %p206 = scmp.eq.s32.totalorder %s21, 1
    %p207 = por %p205, %p206
    %p208 = scmp.ne.s32.totalorder %s197, %s198
    %p209 = scmp.eq.s32.totalorder %s21, 0
    %p210 = por %p208, %p209
    %p211 = scmp.ne.s32.totalorder %s197, %s198
    %p212 = scmp.eq.s32.totalorder %s22, 1
    %p213 = por %p211, %p212
    %p215 = scmp.ne.s32.totalorder %s198, %s214
    %p216 = scmp.eq.s32.totalorder %s22, 0
    %p217 = por %p215, %p216
    %p218 = scmp.le.s32.totalorder 1, %s16
    %p219 = scmp.lt.s32.totalorder %s16, 3
    %p220 = pnand %p218, %p219
    %p221 = pneg %p220
    // Predicated region
    $region9: #{fwd.1} parent=5 // pred_check
      _
    $region10: #{fwd.1} parent=5 // pred_check_branch
      %223 = sbr.rel (%p220) target = $region12
    $region11: #{fwd.1} parent=5 // pred_region
      %s224 = ssub.s32 %s16, 1
      // Predicated region
      $region13: #{fwd.1} parent=11 // pred_check
        %p225 = pneg %p37
      $region14: #{fwd.1} parent=11 // pred_check_branch
        %227 = sbr.rel (%p225) target = $region16
      $region15: #{fwd.1} parent=11 // pred_region
        _
      $region16: #{fwd.1} parent=11 // pred_fallthru
        _
      // Predicated region
      $region17: #{fwd.1} parent=11 // pred_check
        %p228 = pneg %p58
      $region18: #{fwd.1} parent=11 // pred_check_branch
        %230 = sbr.rel (%p228) target = $region20
      $region19: #{fwd.1} parent=11 // pred_region
        _
      $region20: #{fwd.1} parent=11 // pred_fallthru
        _
      // Predicated region
      $region21: #{fwd.1} parent=11 // pred_check
        %p231 = pneg %p79
      $region22: #{fwd.1} parent=11 // pred_check_branch
        %233 = sbr.rel (%p231) target = $region24
      $region23: #{fwd.1} parent=11 // pred_region
        _
      $region24: #{fwd.1} parent=11 // pred_fallthru
        _
      // Predicated region
      $region25: #{fwd.1} parent=11 // pred_check
        %p234 = pneg %p100
      $region26: #{fwd.1} parent=11 // pred_check_branch
        %236 = sbr.rel (%p234) target = $region28
      $region27: #{fwd.1} parent=11 // pred_region
        _
      $region28: #{fwd.1} parent=11 // pred_fallthru
        _
      // Predicated region
      $region29: #{fwd.1} parent=11 // pred_check
        %p237 = pneg %p121
      $region30: #{fwd.1} parent=11 // pred_check_branch
        %239 = sbr.rel (%p237) target = $region32
      $region31: #{fwd.1} parent=11 // pred_region
        _
      $region32: #{fwd.1} parent=11 // pred_fallthru
        _
      // Predicated region
      $region33: #{fwd.1} parent=11 // pred_check
        %p240 = pneg %p142
      $region34: #{fwd.1} parent=11 // pred_check_branch
        %242 = sbr.rel (%p240) target = $region36
      $region35: #{fwd.1} parent=11 // pred_region
        _
      $region36: #{fwd.1} parent=11 // pred_fallthru
        _
      // Predicated region
      $region37: #{fwd.1} parent=11 // pred_check
        %p243 = pneg %p163
      $region38: #{fwd.1} parent=11 // pred_check_branch
        %245 = sbr.rel (%p243) target = $region40
      $region39: #{fwd.1} parent=11 // pred_region
        _
      $region40: #{fwd.1} parent=11 // pred_fallthru
        _
      // Predicated region
      $region41: #{fwd.1} parent=11 // pred_check
        %p246 = pneg %p184
      $region42: #{fwd.1} parent=11 // pred_check_branch
        %248 = sbr.rel (%p246) target = $region44
      $region43: #{fwd.1} parent=11 // pred_region
        _
      $region44: #{fwd.1} parent=11 // pred_fallthru
        _
    $region12: #{fwd.1} parent=5 // pred_fallthru
      _
    %p249 = scmp.lt.s32.totalorder %s16, 2
    // Predicated region
    $region45: #{fwd.1} parent=5 // pred_check
      %p250 = pneg %p249
    $region46: #{fwd.1} parent=5 // pred_check_branch
      %252 = sbr.rel (%p250) target = $region48
    $region47: #{fwd.1} parent=5 // pred_region
      _
    $region48: #{fwd.1} parent=5 // pred_fallthru
      _
    %p253 = scmp.le.s32.totalorder 1, %s16
    %p254 = scmp.lt.s32.totalorder %s16, 3
    %p255 = pnand %p253, %p254
    %p256 = pneg %p255
    // Predicated region
    $region49: #{fwd.1} parent=5 // pred_check
      _
    $region50: #{fwd.1} parent=5 // pred_check_branch
      %258 = sbr.rel (%p255) target = $region52
    $region51: #{fwd.1} parent=5 // pred_region
      %s259 = ssub.s32 %s16, 1
      %p260 = pneg %p37
      %p261 = pneg %p34
      %p262 = pneg %p58
      %p263 = pneg %p55
      %p264 = pneg %p79
      %p265 = pneg %p76
      %p266 = pneg %p100
      %p267 = pneg %p97
      %p268 = pneg %p121
      %p269 = pneg %p118
      %p270 = pneg %p142
      %p271 = pneg %p139
      %p272 = pneg %p163
      %p273 = pneg %p160
      %p274 = pneg %p184
      %p275 = pneg %p181
      %p276 = pneg %p210
      %p277 = pneg %p207
      %p278 = scmp.lt.s32.totalorder %s21, 1
      %s279 = scalar_select %p278, %s21, 1
      %s280 = smul.addr %s279, 3
      %s281 = scalar_lea.vmem %s8, %s280
      %p282 = scmp.lt.s32.totalorder %s21, 1
      %s283 = scalar_select %p282, %s21, 1
      %s284 = smul.addr %s283, 3
      %s285 = scalar_lea.vmem %s8, %s284
      %286 = vst [vmem:[#allocation2] sm:$0xff] 0.0
      %287 = vst [vmem:[#allocation2 + $0x8] sm:$0xff] 0.0
      %vm288 = vcmask 687104
      %289 = vst.msk [vmem:[#allocation2 + $0x10] sm:$0xff] %vm288, 0.0
      %290 = vst [vmem:[#allocation3] sm:$0xff] 0.0
      %vm291 = vcmask 1043456
      %vm292 = vcmask 293892
      %vm293 = vmor %vm292, %vm291
      %294 = vst.msk [vmem:[#allocation3 + $0x8] sm:$0xff] %vm293, 0.0
      %s295 = scalar_lea.vmem %s0, %s21
      %v296 = vld [vmem:[%s295] sm:$0x1]
      %v297 = vld [vmem:[%s1] sm:$0xff]
      %v298 = vld [vmem:[%s1 + $0x8] sm:$0xff]
      %v299 = vld [vmem:[%s1 + $0x10] sm:$0xff]
      %v300 = vld [vmem:[%s1 + $0x18] sm:$0xff]
      %v301 = vld [vmem:[%s1 + $0x20] sm:$0xff]
      %v302 = vld [vmem:[%s1 + $0x28] sm:$0xff]
      %v303 = vld [vmem:[%s1 + $0x30] sm:$0xff]
      %v304 = vld [vmem:[%s1 + $0x38] sm:$0xff]
      %v305 = vld [vmem:[%s1 + $0x40] sm:$0xff]
      %v306 = vld [vmem:[%s1 + $0x48] sm:$0xff]
      %v307 = vld [vmem:[%s1 + $0x50] sm:$0xf]
      %v308 = vld [vmem:[%s1 + $0x58] sm:$0xf]
      %v309 = vld [vmem:[%s1 + $0x60] sm:$0xf]
      %v310 = vld [vmem:[%s1 + $0x68] sm:$0xf]
      %v311 = vld [vmem:[%s1 + $0x70] sm:$0xf]
      %v312 = vld [vmem:[%s1 + $0x78] sm:$0xf]
      %v313 = vld [vmem:[%s1 + $0x80] sm:$0xf]
      %v314 = vld [vmem:[%s1 + $0x88] sm:$0xf]
      %v315 = vld [vmem:[%s1 + $0x90] sm:$0xf]
      %v316 = vld [vmem:[%s1 + $0x98] sm:$0xf]
      %v317 = vld [vmem:[%s2] sm:$0xff]
      %v318 = vld [vmem:[%s2 + $0x8] sm:$0x3]
      %v321 = vlaneseq
      %v322 = vshrl.u32 %v321, 7
      %v323 = vsub.s32 0, %v322
      %v324 = vrot.slane %v317, %v323
      %v325 = vlaneseq
      %v326 = vshrl.u32 %v325, 7
      %v327 = vsub.s32 1, %v326
      %v328 = vrot.slane %v317, %v327
      %v329 = vlaneseq
      %v330 = vshrl.u32 %v329, 7
      %v331 = vsub.s32 2, %v330
      %v332 = vrot.slane %v317, %v331
      %v333 = vlaneseq
      %v334 = vshrl.u32 %v333, 7
      %v335 = vsub.s32 3, %v334
      %v336 = vrot.slane %v317, %v335
      %v337 = vlaneseq
      %v338 = vshrl.u32 %v337, 7
      %v339 = vsub.s32 4, %v338
      %v340 = vrot.slane %v317, %v339
      %v341 = vlaneseq
      %v342 = vshrl.u32 %v341, 7
      %v343 = vsub.s32 5, %v342
      %v344 = vrot.slane %v317, %v343
      %v345 = vlaneseq
      %v346 = vshrl.u32 %v345, 7
      %v347 = vsub.s32 6, %v346
      %v348 = vrot.slane %v317, %v347
      %v349 = vlaneseq
      %v350 = vshrl.u32 %v349, 7
      %v351 = vsub.s32 7, %v350
      %v352 = vrot.slane %v317, %v351
      %v353 = vlaneseq
      %v354 = vshrl.u32 %v353, 7
      %v355 = vsub.s32 0, %v354
      %v356 = vrot.slane %v318, %v355
      %v357 = vlaneseq
      %v358 = vshrl.u32 %v357, 7
      %v359 = vsub.s32 1, %v358
      %v360 = vrot.slane %v318, %v359
      %vm371 = vcmask 97280
      %v373 = vsel %vm371, %v296, 0
      %v376 = vsel %vm291, %v307, 0
      %v379 = vsel %vm291, %v308, 0
      %v382 = vsel %vm291, %v309, 0
      %v385 = vsel %vm291, %v310, 0
      %v388 = vsel %vm291, %v311, 0
      %v391 = vsel %vm291, %v312, 0
      %v394 = vsel %vm291, %v313, 0
      %v397 = vsel %vm291, %v314, 0
      %v400 = vsel %vm291, %v315, 0
      %v403 = vsel %vm291, %v316, 0
      %405 = vmatprep.subr.mxu0 %v298
      %406 = vmatpush1.msra.mxu0 %v297
      %407 = vmatprep.subr.mxu0 %v379
      %408 = vmatpush1.msra.mxu0 %v376
      %409 = vmatprep.subr.mxu0 0.0
      %410 = vmatpush1.msra.mxu0 0.0
      %411 = vmatprep.subr.mxu0 0.0
      %412 = vmatpush1.msra.mxu0 0.0
      %413 = vmatprep.subr.mxu0 0.0
      %414 = vmatpush1.msra.mxu0 0.0
      %415 = vmatprep.subr.mxu0 0.0
      %416 = vmatpush1.msra.mxu0 0.0
      %417 = vmatprep.subr.mxu0 0.0
      %418 = vmatpush1.msra.mxu0 0.0
      %419 = vmatprep.subr.mxu0 0.0
      %420 = vmatpush1.msra.mxu0 0.0
      %421 = vmatprep.subr.mxu0 0.0
      %422 = vmatpush1.msra.mxu0 0.0
      %423 = vmatprep.subr.mxu0 0.0
      %424 = vmatpush1.msra.mxu0 0.0
      %425 = vmatprep.subr.mxu0 0.0
      %426 = vmatpush1.msra.mxu0 0.0
      %427 = vmatprep.subr.mxu0 0.0
      %428 = vmatpush1.msra.mxu0 0.0
      %429 = vmatprep.subr.mxu0 0.0
      %430 = vmatpush1.msra.mxu0 0.0
      %431 = vmatprep.subr.mxu0 0.0
      %432 = vmatpush1.msra.mxu0 0.0
      %433 = vmatprep.subr.mxu0 0.0
      %434 = vmatpush1.msra.mxu0 0.0
      %435 = vmatprep.subr.mxu0 0.0
      %436 = vmatpush1.msra.mxu0 0.0
      %437 = vmatprep.subr.mxu0 0.0
      %438 = vmatpush1.msra.mxu0 0.0
      %439 = vmatprep.subr.mxu0 0.0
      %440 = vmatpush1.msra.mxu0 0.0
      %441 = vmatprep.subr.mxu0 0.0
      %442 = vmatpush1.msra.mxu0 0.0
      %443 = vmatprep.subr.mxu0 0.0
      %444 = vmatpush1.msra.mxu0 0.0
      %445 = vmatprep.subr.mxu0 0.0
      %446 = vmatpush1.msra.mxu0 0.0
      %447 = vmatprep.subr.mxu0 0.0
      %448 = vmatpush1.msra.mxu0 0.0
      %449 = vmatprep.subr.mxu0 0.0
      %450 = vmatpush1.msra.mxu0 0.0
      %451 = vmatprep.subr.mxu0 0.0
      %452 = vmatpush1.msra.mxu0 0.0
      %453 = vmatprep.subr.mxu0 0.0
      %454 = vmatpush1.msra.mxu0 0.0
      %455 = vmatprep.subr.mxu0 0.0
      %456 = vmatpush1.msra.mxu0 0.0
      %457 = vmatprep.subr.mxu0 0.0
      %458 = vmatpush1.msra.mxu0 0.0
      %459 = vmatprep.subr.mxu0 0.0
      %460 = vmatpush1.msra.mxu0 0.0
      %461 = vmatprep.subr.mxu0 0.0
      %462 = vmatpush1.msra.mxu0 0.0
      %463 = vmatprep.subr.mxu0 0.0
      %464 = vmatpush1.msra.mxu0 0.0
      %465 = vmatprep.subr.mxu0 0.0
      %466 = vmatpush1.msra.mxu0 0.0
      %467 = vmatprep.subr.mxu0 0.0
      %468 = vmatpush1.msra.mxu0 0.0
      %469 = vmatprep.mubr.f32.mxu0 0.0
      %470 = vmatmul.mubr.f32.gmra.mrb[0].mxu0 %v373
      %v471 = vpop.f32.mrb[0].mxu0
      %v472 = vadd.f32 %v324, %v471
      %v473 = vpop.f32.mrb[0].mxu0
      %v474 = vadd.f32 %v328, %v473
      %475 = vdwg.mxu0
      %476 = vmatprep.subr.mxu0 %v300
      %477 = vmatpush1.msra.mxu0 %v299
      %478 = vmatprep.subr.mxu0 %v385
      %479 = vmatpush1.msra.mxu0 %v382
      %480 = vmatprep.subr.mxu0 0.0
      %481 = vmatpush1.msra.mxu0 0.0
      %482 = vmatprep.subr.mxu0 0.0
      %483 = vmatpush1.msra.mxu0 0.0
      %484 = vmatprep.subr.mxu0 0.0
      %485 = vmatpush1.msra.mxu0 0.0
      %486 = vmatprep.subr.mxu0 0.0
      %487 = vmatpush1.msra.mxu0 0.0
      %488 = vmatprep.subr.mxu0 0.0
      %489 = vmatpush1.msra.mxu0 0.0
      %490 = vmatprep.subr.mxu0 0.0
      %491 = vmatpush1.msra.mxu0 0.0
      %492 = vmatprep.subr.mxu0 0.0
      %493 = vmatpush1.msra.mxu0 0.0
      %494 = vmatprep.subr.mxu0 0.0
      %495 = vmatpush1.msra.mxu0 0.0
      %496 = vmatprep.subr.mxu0 0.0
      %497 = vmatpush1.msra.mxu0 0.0
      %498 = vmatprep.subr.mxu0 0.0
      %499 = vmatpush1.msra.mxu0 0.0
      %500 = vmatprep.subr.mxu0 0.0
      %501 = vmatpush1.msra.mxu0 0.0
      %502 = vmatprep.subr.mxu0 0.0
      %503 = vmatpush1.msra.mxu0 0.0
      %504 = vmatprep.subr.mxu0 0.0
      %505 = vmatpush1.msra.mxu0 0.0
      %506 = vmatprep.subr.mxu0 0.0
      %507 = vmatpush1.msra.mxu0 0.0
      %508 = vmatprep.subr.mxu0 0.0
      %509 = vmatpush1.msra.mxu0 0.0
      %510 = vmatprep.subr.mxu0 0.0
      %511 = vmatpush1.msra.mxu0 0.0
      %512 = vmatprep.subr.mxu0 0.0
      %513 = vmatpush1.msra.mxu0 0.0
      %514 = vmatprep.subr.mxu0 0.0
      %515 = vmatpush1.msra.mxu0 0.0
      %516 = vmatprep.subr.mxu0 0.0
      %517 = vmatpush1.msra.mxu0 0.0
      %518 = vmatprep.subr.mxu0 0.0
      %519 = vmatpush1.msra.mxu0 0.0
      %520 = vmatprep.subr.mxu0 0.0
      %521 = vmatpush1.msra.mxu0 0.0
      %522 = vmatprep.subr.mxu0 0.0
      %523 = vmatpush1.msra.mxu0 0.0
      %524 = vmatprep.subr.mxu0 0.0
      %525 = vmatpush1.msra.mxu0 0.0
      %526 = vmatprep.subr.mxu0 0.0
      %527 = vmatpush1.msra.mxu0 0.0
      %528 = vmatprep.subr.mxu0 0.0
      %529 = vmatpush1.msra.mxu0 0.0
      %530 = vmatprep.subr.mxu0 0.0
      %531 = vmatpush1.msra.mxu0 0.0
      %532 = vmatprep.subr.mxu0 0.0
      %533 = vmatpush1.msra.mxu0 0.0
      %534 = vmatprep.subr.mxu0 0.0
      %535 = vmatpush1.msra.mxu0 0.0
      %536 = vmatprep.subr.mxu0 0.0
      %537 = vmatpush1.msra.mxu0 0.0
      %538 = vmatprep.subr.mxu0 0.0
      %539 = vmatpush1.msra.mxu0 0.0
      %540 = vmatprep.mubr.f32.mxu0 0.0
      %541 = vmatmul.mubr.f32.gmra.mrb[0].mxu0 %v373
      %v542 = vpop.f32.mrb[0].mxu0
      %v543 = vadd.f32 %v332, %v542
      %v544 = vpop.f32.mrb[0].mxu0
      %v545 = vadd.f32 %v336, %v544
      %546 = vdwg.mxu0
      %547 = vmatprep.subr.mxu0 %v302
      %548 = vmatpush1.msra.mxu0 %v301
      %549 = vmatprep.subr.mxu0 %v391
      %550 = vmatpush1.msra.mxu0 %v388
      %551 = vmatprep.subr.mxu0 0.0
      %552 = vmatpush1.msra.mxu0 0.0
      %553 = vmatprep.subr.mxu0 0.0
      %554 = vmatpush1.msra.mxu0 0.0
      %555 = vmatprep.subr.mxu0 0.0
      %556 = vmatpush1.msra.mxu0 0.0
      %557 = vmatprep.subr.mxu0 0.0
      %558 = vmatpush1.msra.mxu0 0.0
      %559 = vmatprep.subr.mxu0 0.0
      %560 = vmatpush1.msra.mxu0 0.0
      %561 = vmatprep.subr.mxu0 0.0
      %562 = vmatpush1.msra.mxu0 0.0
      %563 = vmatprep.subr.mxu0 0.0
      %564 = vmatpush1.msra.mxu0 0.0
      %565 = vmatprep.subr.mxu0 0.0
      %566 = vmatpush1.msra.mxu0 0.0
      %567 = vmatprep.subr.mxu0 0.0
      %568 = vmatpush1.msra.mxu0 0.0
      %569 = vmatprep.subr.mxu0 0.0
      %570 = vmatpush1.msra.mxu0 0.0
      %571 = vmatprep.subr.mxu0 0.0
      %572 = vmatpush1.msra.mxu0 0.0
      %573 = vmatprep.subr.mxu0 0.0
      %574 = vmatpush1.msra.mxu0 0.0
      %575 = vmatprep.subr.mxu0 0.0
      %576 = vmatpush1.msra.mxu0 0.0
      %577 = vmatprep.subr.mxu0 0.0
      %578 = vmatpush1.msra.mxu0 0.0
      %579 = vmatprep.subr.mxu0 0.0
      %580 = vmatpush1.msra.mxu0 0.0
      %581 = vmatprep.subr.mxu0 0.0
      %582 = vmatpush1.msra.mxu0 0.0
      %583 = vmatprep.subr.mxu0 0.0
      %584 = vmatpush1.msra.mxu0 0.0
      %585 = vmatprep.subr.mxu0 0.0
      %586 = vmatpush1.msra.mxu0 0.0
      %587 = vmatprep.subr.mxu0 0.0
      %588 = vmatpush1.msra.mxu0 0.0
      %589 = vmatprep.subr.mxu0 0.0
      %590 = vmatpush1.msra.mxu0 0.0
      %591 = vmatprep.subr.mxu0 0.0
      %592 = vmatpush1.msra.mxu0 0.0
      %593 = vmatprep.subr.mxu0 0.0
      %594 = vmatpush1.msra.mxu0 0.0
      %595 = vmatprep.subr.mxu0 0.0
      %596 = vmatpush1.msra.mxu0 0.0
      %597 = vmatprep.subr.mxu0 0.0
      %598 = vmatpush1.msra.mxu0 0.0
      %599 = vmatprep.subr.mxu0 0.0
      %600 = vmatpush1.msra.mxu0 0.0
      %601 = vmatprep.subr.mxu0 0.0
      %602 = vmatpush1.msra.mxu0 0.0
      %603 = vmatprep.subr.mxu0 0.0
      %604 = vmatpush1.msra.mxu0 0.0
      %605 = vmatprep.subr.mxu0 0.0
      %606 = vmatpush1.msra.mxu0 0.0
      %607 = vmatprep.subr.mxu0 0.0
      %608 = vmatpush1.msra.mxu0 0.0
      %609 = vmatprep.subr.mxu0 0.0
      %610 = vmatpush1.msra.mxu0 0.0
      %611 = vmatprep.mubr.f32.mxu0 0.0
      %612 = vmatmul.mubr.f32.gmra.mrb[0].mxu0 %v373
      %v613 = vpop.f32.mrb[0].mxu0
      %v614 = vadd.f32 %v340, %v613
      %v615 = vpop.f32.mrb[0].mxu0
      %v616 = vadd.f32 %v344, %v615
      %617 = vdwg.mxu0
      %618 = vmatprep.subr.mxu0 %v304
      %619 = vmatpush1.msra.mxu0 %v303
      %620 = vmatprep.subr.mxu0 %v397
      %621 = vmatpush1.msra.mxu0 %v394
      %622 = vmatprep.subr.mxu0 0.0
      %623 = vmatpush1.msra.mxu0 0.0
      %624 = vmatprep.subr.mxu0 0.0
      %625 = vmatpush1.msra.mxu0 0.0
      %626 = vmatprep.subr.mxu0 0.0
      %627 = vmatpush1.msra.mxu0 0.0
      %628 = vmatprep.subr.mxu0 0.0
      %629 = vmatpush1.msra.mxu0 0.0
      %630 = vmatprep.subr.mxu0 0.0
      %631 = vmatpush1.msra.mxu0 0.0
      %632 = vmatprep.subr.mxu0 0.0
      %633 = vmatpush1.msra.mxu0 0.0
      %634 = vmatprep.subr.mxu0 0.0
      %635 = vmatpush1.msra.mxu0 0.0
      %636 = vmatprep.subr.mxu0 0.0
      %637 = vmatpush1.msra.mxu0 0.0
      %638 = vmatprep.subr.mxu0 0.0
      %639 = vmatpush1.msra.mxu0 0.0
      %640 = vmatprep.subr.mxu0 0.0
      %641 = vmatpush1.msra.mxu0 0.0
      %642 = vmatprep.subr.mxu0 0.0
      %643 = vmatpush1.msra.mxu0 0.0
      %644 = vmatprep.subr.mxu0 0.0
      %645 = vmatpush1.msra.mxu0 0.0
      %646 = vmatprep.subr.mxu0 0.0
      %647 = vmatpush1.msra.mxu0 0.0
      %648 = vmatprep.subr.mxu0 0.0
      %649 = vmatpush1.msra.mxu0 0.0
      %650 = vmatprep.subr.mxu0 0.0
      %651 = vmatpush1.msra.mxu0 0.0
      %652 = vmatprep.subr.mxu0 0.0
      %653 = vmatpush1.msra.mxu0 0.0
      %654 = vmatprep.subr.mxu0 0.0
      %655 = vmatpush1.msra.mxu0 0.0
      %656 = vmatprep.subr.mxu0 0.0
      %657 = vmatpush1.msra.mxu0 0.0
      %658 = vmatprep.subr.mxu0 0.0
      %659 = vmatpush1.msra.mxu0 0.0
      %660 = vmatprep.subr.mxu0 0.0
      %661 = vmatpush1.msra.mxu0 0.0
      %662 = vmatprep.subr.mxu0 0.0
      %663 = vmatpush1.msra.mxu0 0.0
      %664 = vmatprep.subr.mxu0 0.0
      %665 = vmatpush1.msra.mxu0 0.0
      %666 = vmatprep.subr.mxu0 0.0
      %667 = vmatpush1.msra.mxu0 0.0
      %668 = vmatprep.subr.mxu0 0.0
      %669 = vmatpush1.msra.mxu0 0.0
      %670 = vmatprep.subr.mxu0 0.0
      %671 = vmatpush1.msra.mxu0 0.0
      %672 = vmatprep.subr.mxu0 0.0
      %673 = vmatpush1.msra.mxu0 0.0
      %674 = vmatprep.subr.mxu0 0.0
      %675 = vmatpush1.msra.mxu0 0.0
      %676 = vmatprep.subr.mxu0 0.0
      %677 = vmatpush1.msra.mxu0 0.0
      %678 = vmatprep.subr.mxu0 0.0
      %679 = vmatpush1.msra.mxu0 0.0
      %680 = vmatprep.subr.mxu0 0.0
      %681 = vmatpush1.msra.mxu0 0.0
      %682 = vmatprep.mubr.f32.mxu0 0.0
      %683 = vmatmul.mubr.f32.gmra.mrb[0].mxu0 %v373
      %v684 = vpop.f32.mrb[0].mxu0
      %v685 = vadd.f32 %v348, %v684
      %v686 = vpop.f32.mrb[0].mxu0
      %v687 = vadd.f32 %v352, %v686
      %688 = vdwg.mxu0
      %689 = vmatprep.subr.mxu0 %v306
      %690 = vmatpush1.msra.mxu0 %v305
      %691 = vmatprep.subr.mxu0 %v403
      %692 = vmatpush1.msra.mxu0 %v400
      %693 = vmatprep.subr.mxu0 0.0
      %694 = vmatpush1.msra.mxu0 0.0
      %695 = vmatprep.subr.mxu0 0.0
      %696 = vmatpush1.msra.mxu0 0.0
      %697 = vmatprep.subr.mxu0 0.0
      %698 = vmatpush1.msra.mxu0 0.0
      %699 = vmatprep.subr.mxu0 0.0
      %700 = vmatpush1.msra.mxu0 0.0
      %701 = vmatprep.subr.mxu0 0.0
      %702 = vmatpush1.msra.mxu0 0.0
      %703 = vmatprep.subr.mxu0 0.0
      %704 = vmatpush1.msra.mxu0 0.0
      %705 = vmatprep.subr.mxu0 0.0
      %706 = vmatpush1.msra.mxu0 0.0
      %707 = vmatprep.subr.mxu0 0.0
      %708 = vmatpush1.msra.mxu0 0.0
      %709 = vmatprep.subr.mxu0 0.0
      %710 = vmatpush1.msra.mxu0 0.0
      %711 = vmatprep.subr.mxu0 0.0
      %712 = vmatpush1.msra.mxu0 0.0
      %713 = vmatprep.subr.mxu0 0.0
      %714 = vmatpush1.msra.mxu0 0.0
      %715 = vmatprep.subr.mxu0 0.0
      %716 = vmatpush1.msra.mxu0 0.0
      %717 = vmatprep.subr.mxu0 0.0
      %718 = vmatpush1.msra.mxu0 0.0
      %719 = vmatprep.subr.mxu0 0.0
      %720 = vmatpush1.msra.mxu0 0.0
      %721 = vmatprep.subr.mxu0 0.0
      %722 = vmatpush1.msra.mxu0 0.0
      %723 = vmatprep.subr.mxu0 0.0
      %724 = vmatpush1.msra.mxu0 0.0
      %725 = vmatprep.subr.mxu0 0.0
      %726 = vmatpush1.msra.mxu0 0.0
      %727 = vmatprep.subr.mxu0 0.0
      %728 = vmatpush1.msra.mxu0 0.0
      %729 = vmatprep.subr.mxu0 0.0
      %730 = vmatpush1.msra.mxu0 0.0
      %731 = vmatprep.subr.mxu0 0.0
      %732 = vmatpush1.msra.mxu0 0.0
      %733 = vmatprep.subr.mxu0 0.0
      %734 = vmatpush1.msra.mxu0 0.0
      %735 = vmatprep.subr.mxu0 0.0
      %736 = vmatpush1.msra.mxu0 0.0
      %737 = vmatprep.subr.mxu0 0.0
      %738 = vmatpush1.msra.mxu0 0.0
      %739 = vmatprep.subr.mxu0 0.0
      %740 = vmatpush1.msra.mxu0 0.0
      %741 = vmatprep.subr.mxu0 0.0
      %742 = vmatpush1.msra.mxu0 0.0
      %743 = vmatprep.subr.mxu0 0.0
      %744 = vmatpush1.msra.mxu0 0.0
      %745 = vmatprep.subr.mxu0 0.0
      %746 = vmatpush1.msra.mxu0 0.0
      %747 = vmatprep.subr.mxu0 0.0
      %748 = vmatpush1.msra.mxu0 0.0
      %749 = vmatprep.subr.mxu0 0.0
      %750 = vmatpush1.msra.mxu0 0.0
      %751 = vmatprep.subr.mxu0 0.0
      %752 = vmatpush1.msra.mxu0 0.0
      %753 = vmatprep.mubr.f32.mxu0 0.0
      %754 = vmatmul.mubr.f32.gmra.mrb[0].mxu0 %v373
      %v755 = vpop.f32.mrb[0].mxu0
      %v756 = vadd.f32 %v356, %v755
      %v757 = vpop.f32.mrb[0].mxu0
      %v758 = vadd.f32 %v360, %v757
      %759 = vdwg.mxu0
      %v762 = vcombine.low %v472, %v474
      %v764 = vunpack.c.l.s4 1966171168
      %v765 = vunpack.c.0.s8 %v764
      %v766 = vlaneseq
      %v767 = vshrl.u32 %v766, 7
      %v768 = vsub.s32 %v765, %v767
      %v769 = vrot.slane %v762, %v768
      %v771 = vunpack.c.l.s4 1966171168
      %v772 = vunpack.c.0.s8 %v771
      %v773 = vlaneseq
      %v774 = vshrl.u32 %v773, 7
      %v775 = vsub.s32 %v772, %v774
      %v776 = vrot.slane %v769, %v775
      %777 = vrot.lane.b32.xlu0 %v776, 80
      %v778 = vpop.permute.xlu0 %777
      %v779 = vrot.slane %v778, 7
      %vm780 = vcmask 654336
      %v781 = vsel %vm780, %v779, %v778
      %v783 = vlaneseq
      %vm784 = vcmp.ge.s32.totalorder %v783, 80
      %vm785 = vcmp.lt.s32.totalorder %v783, 240
      %vm786 = vmand %vm784, %vm785
      %787 = vst.msk [vmem:[#allocation2] ss:$8 sm:$0x3] %vm786, %v781
      %788 = vst.msk [vmem:[#allocation2] ss:$8 sm:$0x0] %vm786, %v781
      %v790 = vcombine.low %v474, %v543
      %v792 = vunpack.c.l.s4 1966171168
      %v793 = vunpack.c.0.s8 %v792
      %v794 = vlaneseq
      %v795 = vshrl.u32 %v794, 7
      %v796 = vsub.s32 %v793, %v795
      %v797 = vrot.slane %v790, %v796
      %v799 = vunpack.c.l.s4 1966171168
      %v800 = vunpack.c.0.s8 %v799
      %v801 = vlaneseq
      %v802 = vshrl.u32 %v801, 7
      %v803 = vsub.s32 %v800, %v802
      %v804 = vrot.slane %v797, %v803
      %805 = vrot.lane.b32.xlu0 %v804, 48
      %v806 = vpop.permute.xlu0 %805
      %v807 = vrot.slane %v806, 7
      %vm808 = vcmask 392192
      %v809 = vsel %vm808, %v807, %v806
      %s811 = scalar_lea.vmem [#allocation2], 1
      %812 = vst.msk [vmem:[%s811] ss:$8 sm:$0x3] %vm786, %v809
      %813 = vst.msk [vmem:[%s811] ss:$8 sm:$0x0] %vm786, %v809
      %v815 = vcombine.low %v543, %v545
      %v817 = vunpack.c.l.s4 1966171168
      %v818 = vunpack.c.0.s8 %v817
      %v819 = vlaneseq
      %v820 = vshrl.u32 %v819, 7
      %v821 = vsub.s32 %v818, %v820
      %v822 = vrot.slane %v815, %v821
      %v824 = vunpack.c.l.s4 1966171168
      %v825 = vunpack.c.0.s8 %v824
      %v826 = vlaneseq
      %v827 = vshrl.u32 %v826, 7
      %v828 = vsub.s32 %v825, %v827
      %v829 = vrot.slane %v822, %v828
      %830 = vrot.lane.b32.xlu0 %v829, 16
      %v831 = vpop.permute.xlu0 %830
      %v832 = vrot.slane %v831, 7
      %vm833 = vcmask 130048
      %v834 = vsel %vm833, %v832, %v831
      %s836 = scalar_lea.vmem [#allocation2], 2
      %837 = vst.msk [vmem:[%s836] ss:$8 sm:$0x3] %vm786, %v834
      %838 = vst.msk [vmem:[%s836] ss:$8 sm:$0x0] %vm786, %v834
      %v840 = vcombine.low %v545, %v614
      %v842 = vunpack.c.l.s4 1966171168
      %v843 = vunpack.c.0.s8 %v842
      %v844 = vlaneseq
      %v845 = vshrl.u32 %v844, 7
      %v846 = vsub.s32 %v843, %v845
      %v847 = vrot.slane %v840, %v846
      %v849 = vunpack.c.l.s4 1966171168
      %v850 = vunpack.c.0.s8 %v849
      %v851 = vlaneseq
      %v852 = vshrl.u32 %v851, 7
      %v853 = vsub.s32 %v850, %v852
      %v854 = vrot.slane %v847, %v853
      %855 = vrot.lane.b32.xlu0 %v854, 112
      %v856 = vpop.permute.xlu0 %855
      %v857 = vrot.slane %v856, 1
      %vm858 = vcmask 916480
      %v859 = vsel %vm858, %v856, %v857
      %s861 = scalar_lea.vmem [#allocation2], 3
      %862 = vst.msk [vmem:[%s861] ss:$8 sm:$0x3] %vm786, %v859
      %863 = vst.msk [vmem:[%s861] ss:$8 sm:$0x0] %vm786, %v859
      %v866 = vcombine.low %v616, %v685
      %v868 = vunpack.c.l.s4 1966171168
      %v869 = vunpack.c.0.s8 %v868
      %v870 = vlaneseq
      %v871 = vshrl.u32 %v870, 7
      %v872 = vsub.s32 %v869, %v871
      %v873 = vrot.slane %v866, %v872
      %v875 = vunpack.c.l.s4 1966171168
      %v876 = vunpack.c.0.s8 %v875
      %v877 = vlaneseq
      %v878 = vshrl.u32 %v877, 7
      %v879 = vsub.s32 %v876, %v878
      %v880 = vrot.slane %v873, %v879
      %881 = vrot.lane.b32.xlu0 %v880, 80
      %v882 = vpop.permute.xlu0 %881
      %v883 = vrot.slane %v882, 7
      %v884 = vsel %vm780, %v883, %v882
      %s886 = scalar_lea.vmem [#allocation2], 4
      %887 = vst.msk [vmem:[%s886] ss:$8 sm:$0x3] %vm786, %v884
      %888 = vst.msk [vmem:[%s886] ss:$8 sm:$0x0] %vm786, %v884
      %v890 = vcombine.low %v685, %v687
      %v892 = vunpack.c.l.s4 1966171168
      %v893 = vunpack.c.0.s8 %v892
      %v894 = vlaneseq
      %v895 = vshrl.u32 %v894, 7
      %v896 = vsub.s32 %v893, %v895
      %v897 = vrot.slane %v890, %v896
      %v899 = vunpack.c.l.s4 1966171168
      %v900 = vunpack.c.0.s8 %v899
      %v901 = vlaneseq
      %v902 = vshrl.u32 %v901, 7
      %v903 = vsub.s32 %v900, %v902
      %v904 = vrot.slane %v897, %v903
      %905 = vrot.lane.b32.xlu0 %v904, 48
      %v906 = vpop.permute.xlu0 %905
      %v907 = vrot.slane %v906, 7
      %v908 = vsel %vm808, %v907, %v906
      %s910 = scalar_lea.vmem [#allocation2], 5
      %911 = vst.msk [vmem:[%s910] ss:$8 sm:$0x3] %vm786, %v908
      %912 = vst.msk [vmem:[%s910] ss:$8 sm:$0x0] %vm786, %v908
      %v914 = vcombine.low %v687, %v756
      %v916 = vunpack.c.l.s4 1966171168
      %v917 = vunpack.c.0.s8 %v916
      %v918 = vlaneseq
      %v919 = vshrl.u32 %v918, 7
      %v920 = vsub.s32 %v917, %v919
      %v921 = vrot.slane %v914, %v920
      %v923 = vunpack.c.l.s4 1966171168
      %v924 = vunpack.c.0.s8 %v923
      %v925 = vlaneseq
      %v926 = vshrl.u32 %v925, 7
      %v927 = vsub.s32 %v924, %v926
      %v928 = vrot.slane %v921, %v927
      %929 = vrot.lane.b32.xlu0 %v928, 16
      %v930 = vpop.permute.xlu0 %929
      %v931 = vrot.slane %v930, 7
      %v932 = vsel %vm833, %v931, %v930
      %s934 = scalar_lea.vmem [#allocation2], 6
      %935 = vst.msk [vmem:[%s934] ss:$8 sm:$0x3] %vm786, %v932
      %936 = vst.msk [vmem:[%s934] ss:$8 sm:$0x0] %vm786, %v932
      %v938 = vcombine.low %v756, %v758
      %v940 = vunpack.c.l.s4 1966171168
      %v941 = vunpack.c.0.s8 %v940
      %v942 = vlaneseq
      %v943 = vshrl.u32 %v942, 7
      %v944 = vsub.s32 %v941, %v943
      %v945 = vrot.slane %v938, %v944
      %v947 = vunpack.c.l.s4 1966171168
      %v948 = vunpack.c.0.s8 %v947
      %v949 = vlaneseq
      %v950 = vshrl.u32 %v949, 7
      %v951 = vsub.s32 %v948, %v950
      %v952 = vrot.slane %v945, %v951
      %953 = vrot.lane.b32.xlu0 %v952, 112
      %v954 = vpop.permute.xlu0 %953
      %v955 = vrot.slane %v954, 1
      %v956 = vsel %vm858, %v954, %v955
      %s958 = scalar_lea.vmem [#allocation2], 7
      %959 = vst.msk [vmem:[%s958] ss:$8 sm:$0x3] %vm786, %v956
      %960 = vst.msk [vmem:[%s958] ss:$8 sm:$0x0] %vm786, %v956
      %v961 = vld [vmem:[%s4] sm:$0xf]
      %963 = vset.pattern.permute.xlu0 0
      %964 = vperm.xlu0 %963, %v961
      %v965 = vpop.permute.xlu0 %964
      %v967 = vld [vmem:[#allocation2] sm:$0xff]
      %v968 = vld [vmem:[#allocation2 + $0x8] sm:$0xff]
      %v969 = vld [vmem:[%s3] sm:$0xf]
      %vm970 = vcmask 64512
      %v972 = vsel %vm970, %v969, 0
      %974 = vmatprep.subr.mxu0 %v968
      %975 = vmatpush1.msra.mxu0 %v967
      %976 = vmatprep.subr.mxu0 0.0
      %977 = vmatpush1.msra.mxu0 0.0
      %978 = vmatprep.subr.mxu0 0.0
      %979 = vmatpush1.msra.mxu0 0.0
      %980 = vmatprep.subr.mxu0 0.0
      %981 = vmatpush1.msra.mxu0 0.0
      %982 = vmatprep.subr.mxu0 0.0
      %983 = vmatpush1.msra.mxu0 0.0
      %984 = vmatprep.subr.mxu0 0.0
      %985 = vmatpush1.msra.mxu0 0.0
      %986 = vmatprep.subr.mxu0 0.0
      %987 = vmatpush1.msra.mxu0 0.0
      %988 = vmatprep.subr.mxu0 0.0
      %989 = vmatpush1.msra.mxu0 0.0
      %990 = vmatprep.subr.mxu0 0.0
      %991 = vmatpush1.msra.mxu0 0.0
      %992 = vmatprep.subr.mxu0 0.0
      %993 = vmatpush1.msra.mxu0 0.0
      %994 = vmatprep.subr.mxu0 0.0
      %995 = vmatpush1.msra.mxu0 0.0
      %996 = vmatprep.subr.mxu0 0.0
      %997 = vmatpush1.msra.mxu0 0.0
      %998 = vmatprep.subr.mxu0 0.0
      %999 = vmatpush1.msra.mxu0 0.0
      %1000 = vmatprep.subr.mxu0 0.0
      %1001 = vmatpush1.msra.mxu0 0.0
      %1002 = vmatprep.subr.mxu0 0.0
      %1003 = vmatpush1.msra.mxu0 0.0
      %1004 = vmatprep.subr.mxu0 0.0
      %1005 = vmatpush1.msra.mxu0 0.0
      %1006 = vmatprep.subr.mxu0 0.0
      %1007 = vmatpush1.msra.mxu0 0.0
      %1008 = vmatprep.subr.mxu0 0.0
      %1009 = vmatpush1.msra.mxu0 0.0
      %1010 = vmatprep.subr.mxu0 0.0
      %1011 = vmatpush1.msra.mxu0 0.0
      %1012 = vmatprep.subr.mxu0 0.0
      %1013 = vmatpush1.msra.mxu0 0.0
      %1014 = vmatprep.subr.mxu0 0.0
      %1015 = vmatpush1.msra.mxu0 0.0
      %1016 = vmatprep.subr.mxu0 0.0
      %1017 = vmatpush1.msra.mxu0 0.0
      %1018 = vmatprep.subr.mxu0 0.0
      %1019 = vmatpush1.msra.mxu0 0.0
      %1020 = vmatprep.subr.mxu0 0.0
      %1021 = vmatpush1.msra.mxu0 0.0
      %1022 = vmatprep.subr.mxu0 0.0
      %1023 = vmatpush1.msra.mxu0 0.0
      %1024 = vmatprep.subr.mxu0 0.0
      %1025 = vmatpush1.msra.mxu0 0.0
      %1026 = vmatprep.subr.mxu0 0.0
      %1027 = vmatpush1.msra.mxu0 0.0
      %1028 = vmatprep.subr.mxu0 0.0
      %1029 = vmatpush1.msra.mxu0 0.0
      %1030 = vmatprep.subr.mxu0 0.0
      %1031 = vmatpush1.msra.mxu0 0.0
      %1032 = vmatprep.subr.mxu0 0.0
      %1033 = vmatpush1.msra.mxu0 0.0
      %1034 = vmatprep.subr.mxu0 0.0
      %1035 = vmatpush1.msra.mxu0 0.0
      %1036 = vmatprep.subr.mxu0 0.0
      %1037 = vmatpush1.msra.mxu0 0.0
      %1038 = vmatprep.mubr.f32.mxu0 0.0
      %1039 = vmatmul.mubr.f32.gmra.mrb[0].mxu0 %v972
      %v1040 = vpop.f32.mrb[0].mxu0
      %v1041 = vadd.f32 0.0, %v1040
      %v1042 = vpop.f32.mrb[0].mxu0
      %v1043 = vadd.f32 0.0, %v1042
      %1044 = vdwg.mxu0
      %v1045 = vadd.f32 %v965, %v1041
      %v1046 = vadd.f32 %v965, %v1043
      %s1047 = scalar_lea.vmem %s3, 4
      %v1048 = vld [vmem:[%s1047] sm:$0xf]
      %1051 = vrot.lane.b32.xlu0 %v967, 127
      %v1052 = vpop.permute.xlu0 %1051
      %1053 = vrot.lane.b32.xlu0 %v968, 127
      %v1054 = vpop.permute.xlu0 %1053
      %vm1055 = vcmask 1039360
      %v1056 = vsel %vm1055, %v1052, %v1054
      %v1060 = vsel %vm970, %v1048, 0
      %1062 = vmatprep.subr.mxu0 %v1054
      %1063 = vmatpush1.msra.mxu0 %v1056
      %1064 = vmatprep.subr.mxu0 0.0
      %1065 = vmatpush1.msra.mxu0 0.0
      %1066 = vmatprep.subr.mxu0 0.0
      %1067 = vmatpush1.msra.mxu0 0.0
      %1068 = vmatprep.subr.mxu0 0.0
      %1069 = vmatpush1.msra.mxu0 0.0
      %1070 = vmatprep.subr.mxu0 0.0
      %1071 = vmatpush1.msra.mxu0 0.0
      %1072 = vmatprep.subr.mxu0 0.0
      %1073 = vmatpush1.msra.mxu0 0.0
      %1074 = vmatprep.subr.mxu0 0.0
      %1075 = vmatpush1.msra.mxu0 0.0
      %1076 = vmatprep.subr.mxu0 0.0
      %1077 = vmatpush1.msra.mxu0 0.0
      %1078 = vmatprep.subr.mxu0 0.0
      %1079 = vmatpush1.msra.mxu0 0.0
      %1080 = vmatprep.subr.mxu0 0.0
      %1081 = vmatpush1.msra.mxu0 0.0
      %1082 = vmatprep.subr.mxu0 0.0
      %1083 = vmatpush1.msra.mxu0 0.0
      %1084 = vmatprep.subr.mxu0 0.0
      %1085 = vmatpush1.msra.mxu0 0.0
      %1086 = vmatprep.subr.mxu0 0.0
      %1087 = vmatpush1.msra.mxu0 0.0
      %1088 = vmatprep.subr.mxu0 0.0
      %1089 = vmatpush1.msra.mxu0 0.0
      %1090 = vmatprep.subr.mxu0 0.0
      %1091 = vmatpush1.msra.mxu0 0.0
      %1092 = vmatprep.subr.mxu0 0.0
      %1093 = vmatpush1.msra.mxu0 0.0
      %1094 = vmatprep.subr.mxu0 0.0
      %1095 = vmatpush1.msra.mxu0 0.0
      %1096 = vmatprep.subr.mxu0 0.0
      %1097 = vmatpush1.msra.mxu0 0.0
      %1098 = vmatprep.subr.mxu0 0.0
      %1099 = vmatpush1.msra.mxu0 0.0
      %1100 = vmatprep.subr.mxu0 0.0
      %1101 = vmatpush1.msra.mxu0 0.0
      %1102 = vmatprep.subr.mxu0 0.0
      %1103 = vmatpush1.msra.mxu0 0.0
      %1104 = vmatprep.subr.mxu0 0.0
      %1105 = vmatpush1.msra.mxu0 0.0
      %1106 = vmatprep.subr.mxu0 0.0
      %1107 = vmatpush1.msra.mxu0 0.0
      %1108 = vmatprep.subr.mxu0 0.0
      %1109 = vmatpush1.msra.mxu0 0.0
      %1110 = vmatprep.subr.mxu0 0.0
      %1111 = vmatpush1.msra.mxu0 0.0
      %1112 = vmatprep.subr.mxu0 0.0
      %1113 = vmatpush1.msra.mxu0 0.0
      %1114 = vmatprep.subr.mxu0 0.0
      %1115 = vmatpush1.msra.mxu0 0.0
      %1116 = vmatprep.subr.mxu0 0.0
      %1117 = vmatpush1.msra.mxu0 0.0
      %1118 = vmatprep.subr.mxu0 0.0
      %1119 = vmatpush1.msra.mxu0 0.0
      %1120 = vmatprep.subr.mxu0 0.0
      %1121 = vmatpush1.msra.mxu0 0.0
      %1122 = vmatprep.subr.mxu0 0.0
      %1123 = vmatpush1.msra.mxu0 0.0
      %1124 = vmatprep.subr.mxu0 0.0
      %1125 = vmatpush1.msra.mxu0 0.0
      %1126 = vmatprep.mubr.f32.mxu0 0.0
      %1127 = vmatmul.mubr.f32.gmra.mrb[0].mxu0 %v1060
      %v1128 = vpop.f32.mrb[0].mxu0
      %v1129 = vadd.f32 0.0, %v1128
      %v1130 = vpop.f32.mrb[0].mxu0
      %v1131 = vadd.f32 0.0, %v1130
      %1132 = vdwg.mxu0
      %v1133 = vadd.f32 %v1045, %v1129
      %v1134 = vadd.f32 %v1046, %v1131
      %s1135 = scalar_lea.vmem %s3, 8
      %v1136 = vld [vmem:[%s1135] sm:$0xf]
      %1137 = vrot.lane.b32.xlu0 %v967, 126
      %v1138 = vpop.permute.xlu0 %1137
      %1139 = vrot.lane.b32.xlu0 %v968, 126
      %v1140 = vpop.permute.xlu0 %1139
      %vm1141 = vcmask 1031168
      %v1142 = vsel %vm1141, %v1138, %v1140
      %v1146 = vsel %vm970, %v1136, 0
      %1148 = vmatprep.subr.mxu0 %v1140
      %1149 = vmatpush1.msra.mxu0 %v1142
      %1150 = vmatprep.subr.mxu0 0.0
      %1151 = vmatpush1.msra.mxu0 0.0
      %1152 = vmatprep.subr.mxu0 0.0
      %1153 = vmatpush1.msra.mxu0 0.0
      %1154 = vmatprep.subr.mxu0 0.0
      %1155 = vmatpush1.msra.mxu0 0.0
      %1156 = vmatprep.subr.mxu0 0.0
      %1157 = vmatpush1.msra.mxu0 0.0
      %1158 = vmatprep.subr.mxu0 0.0
      %1159 = vmatpush1.msra.mxu0 0.0
      %1160 = vmatprep.subr.mxu0 0.0
      %1161 = vmatpush1.msra.mxu0 0.0
      %1162 = vmatprep.subr.mxu0 0.0
      %1163 = vmatpush1.msra.mxu0 0.0
      %1164 = vmatprep.subr.mxu0 0.0
      %1165 = vmatpush1.msra.mxu0 0.0
      %1166 = vmatprep.subr.mxu0 0.0
      %1167 = vmatpush1.msra.mxu0 0.0
      %1168 = vmatprep.subr.mxu0 0.0
      %1169 = vmatpush1.msra.mxu0 0.0
      %1170 = vmatprep.subr.mxu0 0.0
      %1171 = vmatpush1.msra.mxu0 0.0
      %1172 = vmatprep.subr.mxu0 0.0
      %1173 = vmatpush1.msra.mxu0 0.0
      %1174 = vmatprep.subr.mxu0 0.0
      %1175 = vmatpush1.msra.mxu0 0.0
      %1176 = vmatprep.subr.mxu0 0.0
      %1177 = vmatpush1.msra.mxu0 0.0
      %1178 = vmatprep.subr.mxu0 0.0
      %1179 = vmatpush1.msra.mxu0 0.0
      %1180 = vmatprep.subr.mxu0 0.0
      %1181 = vmatpush1.msra.mxu0 0.0
      %1182 = vmatprep.subr.mxu0 0.0
      %1183 = vmatpush1.msra.mxu0 0.0
      %1184 = vmatprep.subr.mxu0 0.0
      %1185 = vmatpush1.msra.mxu0 0.0
      %1186 = vmatprep.subr.mxu0 0.0
      %1187 = vmatpush1.msra.mxu0 0.0
      %1188 = vmatprep.subr.mxu0 0.0
      %1189 = vmatpush1.msra.mxu0 0.0
      %1190 = vmatprep.subr.mxu0 0.0
      %1191 = vmatpush1.msra.mxu0 0.0
      %1192 = vmatprep.subr.mxu0 0.0
      %1193 = vmatpush1.msra.mxu0 0.0
      %1194 = vmatprep.subr.mxu0 0.0
      %1195 = vmatpush1.msra.mxu0 0.0
      %1196 = vmatprep.subr.mxu0 0.0
      %1197 = vmatpush1.msra.mxu0 0.0
      %1198 = vmatprep.subr.mxu0 0.0
      %1199 = vmatpush1.msra.mxu0 0.0
      %1200 = vmatprep.subr.mxu0 0.0
      %1201 = vmatpush1.msra.mxu0 0.0
      %1202 = vmatprep.subr.mxu0 0.0
      %1203 = vmatpush1.msra.mxu0 0.0
      %1204 = vmatprep.subr.mxu0 0.0
      %1205 = vmatpush1.msra.mxu0 0.0
      %1206 = vmatprep.subr.mxu0 0.0
      %1207 = vmatpush1.msra.mxu0 0.0
      %1208 = vmatprep.subr.mxu0 0.0
      %1209 = vmatpush1.msra.mxu0 0.0
      %1210 = vmatprep.subr.mxu0 0.0
      %1211 = vmatpush1.msra.mxu0 0.0
      %1212 = vmatprep.mubr.f32.mxu0 0.0
      %1213 = vmatmul.mubr.f32.gmra.mrb[0].mxu0 %v1146
      %v1214 = vpop.f32.mrb[0].mxu0
      %v1215 = vadd.f32 0.0, %v1214
      %v1216 = vpop.f32.mrb[0].mxu0
      %v1217 = vadd.f32 0.0, %v1216
      %1218 = vdwg.mxu0
      %v1219 = vadd.f32 %v1133, %v1215
      %v1220 = vadd.f32 %v1134, %v1217
      %s1221 = scalar_lea.vmem %s3, 12
      %v1222 = vld [vmem:[%s1221] sm:$0xf]
      %1223 = vrot.lane.b32.xlu0 %v967, 125
      %v1224 = vpop.permute.xlu0 %1223
      %1225 = vrot.lane.b32.xlu0 %v968, 125
      %v1226 = vpop.permute.xlu0 %1225
      %vm1227 = vcmask 1022976
      %v1228 = vsel %vm1227, %v1224, %v1226
      %v1232 = vsel %vm970, %v1222, 0
      %1234 = vmatprep.subr.mxu0 %v1226
      %1235 = vmatpush1.msra.mxu0 %v1228
      %1236 = vmatprep.subr.mxu0 0.0
      %1237 = vmatpush1.msra.mxu0 0.0
      %1238 = vmatprep.subr.mxu0 0.0
      %1239 = vmatpush1.msra.mxu0 0.0
      %1240 = vmatprep.subr.mxu0 0.0
      %1241 = vmatpush1.msra.mxu0 0.0
      %1242 = vmatprep.subr.mxu0 0.0
      %1243 = vmatpush1.msra.mxu0 0.0
      %1244 = vmatprep.subr.mxu0 0.0
      %1245 = vmatpush1.msra.mxu0 0.0
      %1246 = vmatprep.subr.mxu0 0.0
      %1247 = vmatpush1.msra.mxu0 0.0
      %1248 = vmatprep.subr.mxu0 0.0
      %1249 = vmatpush1.msra.mxu0 0.0
      %1250 = vmatprep.subr.mxu0 0.0
      %1251 = vmatpush1.msra.mxu0 0.0
      %1252 = vmatprep.subr.mxu0 0.0
      %1253 = vmatpush1.msra.mxu0 0.0
      %1254 = vmatprep.subr.mxu0 0.0
      %1255 = vmatpush1.msra.mxu0 0.0
      %1256 = vmatprep.subr.mxu0 0.0
      %1257 = vmatpush1.msra.mxu0 0.0
      %1258 = vmatprep.subr.mxu0 0.0
      %1259 = vmatpush1.msra.mxu0 0.0
      %1260 = vmatprep.subr.mxu0 0.0
      %1261 = vmatpush1.msra.mxu0 0.0
      %1262 = vmatprep.subr.mxu0 0.0
      %1263 = vmatpush1.msra.mxu0 0.0
      %1264 = vmatprep.subr.mxu0 0.0
      %1265 = vmatpush1.msra.mxu0 0.0
      %1266 = vmatprep.subr.mxu0 0.0
      %1267 = vmatpush1.msra.mxu0 0.0
      %1268 = vmatprep.subr.mxu0 0.0
      %1269 = vmatpush1.msra.mxu0 0.0
      %1270 = vmatprep.subr.mxu0 0.0
      %1271 = vmatpush1.msra.mxu0 0.0
      %1272 = vmatprep.subr.mxu0 0.0
      %1273 = vmatpush1.msra.mxu0 0.0
      %1274 = vmatprep.subr.mxu0 0.0
      %1275 = vmatpush1.msra.mxu0 0.0
      %1276 = vmatprep.subr.mxu0 0.0
      %1277 = vmatpush1.msra.mxu0 0.0
      %1278 = vmatprep.subr.mxu0 0.0
      %1279 = vmatpush1.msra.mxu0 0.0
      %1280 = vmatprep.subr.mxu0 0.0
      %1281 = vmatpush1.msra.mxu0 0.0
      %1282 = vmatprep.subr.mxu0 0.0
      %1283 = vmatpush1.msra.mxu0 0.0
      %1284 = vmatprep.subr.mxu0 0.0
      %1285 = vmatpush1.msra.mxu0 0.0
      %1286 = vmatprep.subr.mxu0 0.0
      %1287 = vmatpush1.msra.mxu0 0.0
      %1288 = vmatprep.subr.mxu0 0.0
      %1289 = vmatpush1.msra.mxu0 0.0
      %1290 = vmatprep.subr.mxu0 0.0
      %1291 = vmatpush1.msra.mxu0 0.0
      %1292 = vmatprep.subr.mxu0 0.0
      %1293 = vmatpush1.msra.mxu0 0.0
      %1294 = vmatprep.subr.mxu0 0.0
      %1295 = vmatpush1.msra.mxu0 0.0
      %1296 = vmatprep.subr.mxu0 0.0
      %1297 = vmatpush1.msra.mxu0 0.0
      %1298 = vmatprep.mubr.f32.mxu0 0.0
      %1299 = vmatmul.mubr.f32.gmra.mrb[0].mxu0 %v1232
      %v1300 = vpop.f32.mrb[0].mxu0
      %v1301 = vadd.f32 0.0, %v1300
      %v1302 = vpop.f32.mrb[0].mxu0
      %v1303 = vadd.f32 0.0, %v1302
      %1304 = vdwg.mxu0
      %v1305 = vadd.f32 %v1219, %v1301
      %v1306 = vadd.f32 %v1220, %v1303
      %s1307 = scalar_lea.vmem %s3, 16
      %v1308 = vld [vmem:[%s1307] sm:$0xf]
      %1309 = vrot.lane.b32.xlu0 %v967, 124
      %v1310 = vpop.permute.xlu0 %1309
      %1311 = vrot.lane.b32.xlu0 %v968, 124
      %v1312 = vpop.permute.xlu0 %1311
      %vm1313 = vcmask 1014784
      %v1314 = vsel %vm1313, %v1310, %v1312
      %v1318 = vsel %vm970, %v1308, 0
      %1320 = vmatprep.subr.mxu0 %v1312
      %1321 = vmatpush1.msra.mxu0 %v1314
      %1322 = vmatprep.subr.mxu0 0.0
      %1323 = vmatpush1.msra.mxu0 0.0
      %1324 = vmatprep.subr.mxu0 0.0
      %1325 = vmatpush1.msra.mxu0 0.0
      %1326 = vmatprep.subr.mxu0 0.0
      %1327 = vmatpush1.msra.mxu0 0.0
      %1328 = vmatprep.subr.mxu0 0.0
      %1329 = vmatpush1.msra.mxu0 0.0
      %1330 = vmatprep.subr.mxu0 0.0
      %1331 = vmatpush1.msra.mxu0 0.0
      %1332 = vmatprep.subr.mxu0 0.0
      %1333 = vmatpush1.msra.mxu0 0.0
      %1334 = vmatprep.subr.mxu0 0.0
      %1335 = vmatpush1.msra.mxu0 0.0
      %1336 = vmatprep.subr.mxu0 0.0
      %1337 = vmatpush1.msra.mxu0 0.0
      %1338 = vmatprep.subr.mxu0 0.0
      %1339 = vmatpush1.msra.mxu0 0.0
      %1340 = vmatprep.subr.mxu0 0.0
      %1341 = vmatpush1.msra.mxu0 0.0
      %1342 = vmatprep.subr.mxu0 0.0
      %1343 = vmatpush1.msra.mxu0 0.0
      %1344 = vmatprep.subr.mxu0 0.0
      %1345 = vmatpush1.msra.mxu0 0.0
      %1346 = vmatprep.subr.mxu0 0.0
      %1347 = vmatpush1.msra.mxu0 0.0
      %1348 = vmatprep.subr.mxu0 0.0
      %1349 = vmatpush1.msra.mxu0 0.0
      %1350 = vmatprep.subr.mxu0 0.0
      %1351 = vmatpush1.msra.mxu0 0.0
      %1352 = vmatprep.subr.mxu0 0.0
      %1353 = vmatpush1.msra.mxu0 0.0
      %1354 = vmatprep.subr.mxu0 0.0
      %1355 = vmatpush1.msra.mxu0 0.0
      %1356 = vmatprep.subr.mxu0 0.0
      %1357 = vmatpush1.msra.mxu0 0.0
      %1358 = vmatprep.subr.mxu0 0.0
      %1359 = vmatpush1.msra.mxu0 0.0
      %1360 = vmatprep.subr.mxu0 0.0
      %1361 = vmatpush1.msra.mxu0 0.0
      %1362 = vmatprep.subr.mxu0 0.0
      %1363 = vmatpush1.msra.mxu0 0.0
      %1364 = vmatprep.subr.mxu0 0.0
      %1365 = vmatpush1.msra.mxu0 0.0
      %1366 = vmatprep.subr.mxu0 0.0
      %1367 = vmatpush1.msra.mxu0 0.0
      %1368 = vmatprep.subr.mxu0 0.0
      %1369 = vmatpush1.msra.mxu0 0.0
      %1370 = vmatprep.subr.mxu0 0.0
      %1371 = vmatpush1.msra.mxu0 0.0
      %1372 = vmatprep.subr.mxu0 0.0
      %1373 = vmatpush1.msra.mxu0 0.0
      %1374 = vmatprep.subr.mxu0 0.0
      %1375 = vmatpush1.msra.mxu0 0.0
      %1376 = vmatprep.subr.mxu0 0.0
      %1377 = vmatpush1.msra.mxu0 0.0
      %1378 = vmatprep.subr.mxu0 0.0
      %1379 = vmatpush1.msra.mxu0 0.0
      %1380 = vmatprep.subr.mxu0 0.0
      %1381 = vmatpush1.msra.mxu0 0.0
      %1382 = vmatprep.subr.mxu0 0.0
      %1383 = vmatpush1.msra.mxu0 0.0
      %1384 = vmatprep.mubr.f32.mxu0 0.0
      %1385 = vmatmul.mubr.f32.gmra.mrb[0].mxu0 %v1318
      %v1386 = vpop.f32.mrb[0].mxu0
      %v1387 = vadd.f32 0.0, %v1386
      %v1388 = vpop.f32.mrb[0].mxu0
      %v1389 = vadd.f32 0.0, %v1388
      %1390 = vdwg.mxu0
      %v1391 = vadd.f32 %v1305, %v1387
      %v1392 = vadd.f32 %v1306, %v1389
      %v1393 = vld [vmem:[#allocation2] sm:$0xff]
      %v1394 = vld [vmem:[#allocation2 + $0x8] sm:$0xff]
      %v1395 = vld [vmem:[#allocation2 + $0x10] sm:$0xff]
      %s1396 = scalar_lea.vmem %s3, 20
      %v1397 = vld [vmem:[%s1396] sm:$0xf]
      %1401 = vrot.lane.b32.xlu0 %v1393, 108
      %v1402 = vpop.permute.xlu0 %1401
      %1403 = vrot.lane.b32.xlu0 %v1394, 108
      %v1404 = vpop.permute.xlu0 %1403
      %1405 = vrot.lane.b32.xlu0 %v1395, 108
      %v1406 = vpop.permute.xlu0 %1405
      %vm1407 = vcmask 883712
      %v1408 = vsel %vm1407, %v1402, %v1404
      %v1409 = vsel %vm1407, %v1404, %v1406
      %v1413 = vsel %vm970, %v1397, 0
      %1415 = vmatprep.subr.mxu0 %v1409
      %1416 = vmatpush1.msra.mxu0 %v1408
      %1417 = vmatprep.subr.mxu0 0.0
      %1418 = vmatpush1.msra.mxu0 0.0
      %1419 = vmatprep.subr.mxu0 0.0
      %1420 = vmatpush1.msra.mxu0 0.0
      %1421 = vmatprep.subr.mxu0 0.0
      %1422 = vmatpush1.msra.mxu0 0.0
      %1423 = vmatprep.subr.mxu0 0.0
      %1424 = vmatpush1.msra.mxu0 0.0
      %1425 = vmatprep.subr.mxu0 0.0
      %1426 = vmatpush1.msra.mxu0 0.0
      %1427 = vmatprep.subr.mxu0 0.0
      %1428 = vmatpush1.msra.mxu0 0.0
      %1429 = vmatprep.subr.mxu0 0.0
      %1430 = vmatpush1.msra.mxu0 0.0
      %1431 = vmatprep.subr.mxu0 0.0
      %1432 = vmatpush1.msra.mxu0 0.0
      %1433 = vmatprep.subr.mxu0 0.0
      %1434 = vmatpush1.msra.mxu0 0.0
      %1435 = vmatprep.subr.mxu0 0.0
      %1436 = vmatpush1.msra.mxu0 0.0
      %1437 = vmatprep.subr.mxu0 0.0
      %1438 = vmatpush1.msra.mxu0 0.0
      %1439 = vmatprep.subr.mxu0 0.0
      %1440 = vmatpush1.msra.mxu0 0.0
      %1441 = vmatprep.subr.mxu0 0.0
      %1442 = vmatpush1.msra.mxu0 0.0
      %1443 = vmatprep.subr.mxu0 0.0
      %1444 = vmatpush1.msra.mxu0 0.0
      %1445 = vmatprep.subr.mxu0 0.0
      %1446 = vmatpush1.msra.mxu0 0.0
      %1447 = vmatprep.subr.mxu0 0.0
      %1448 = vmatpush1.msra.mxu0 0.0
      %1449 = vmatprep.subr.mxu0 0.0
      %1450 = vmatpush1.msra.mxu0 0.0
      %1451 = vmatprep.subr.mxu0 0.0
      %1452 = vmatpush1.msra.mxu0 0.0
      %1453 = vmatprep.subr.mxu0 0.0
      %1454 = vmatpush1.msra.mxu0 0.0
      %1455 = vmatprep.subr.mxu0 0.0
      %1456 = vmatpush1.msra.mxu0 0.0
      %1457 = vmatprep.subr.mxu0 0.0
      %1458 = vmatpush1.msra.mxu0 0.0
      %1459 = vmatprep.subr.mxu0 0.0
      %1460 = vmatpush1.msra.mxu0 0.0
      %1461 = vmatprep.subr.mxu0 0.0
      %1462 = vmatpush1.msra.mxu0 0.0
      %1463 = vmatprep.subr.mxu0 0.0
      %1464 = vmatpush1.msra.mxu0 0.0
      %1465 = vmatprep.subr.mxu0 0.0
      %1466 = vmatpush1.msra.mxu0 0.0
      %1467 = vmatprep.subr.mxu0 0.0
      %1468 = vmatpush1.msra.mxu0 0.0
      %1469 = vmatprep.subr.mxu0 0.0
      %1470 = vmatpush1.msra.mxu0 0.0
      %1471 = vmatprep.subr.mxu0 0.0
      %1472 = vmatpush1.msra.mxu0 0.0
      %1473 = vmatprep.subr.mxu0 0.0
      %1474 = vmatpush1.msra.mxu0 0.0
      %1475 = vmatprep.subr.mxu0 0.0
      %1476 = vmatpush1.msra.mxu0 0.0
      %1477 = vmatprep.subr.mxu0 0.0
      %1478 = vmatpush1.msra.mxu0 0.0
      %1479 = vmatprep.mubr.f32.mxu0 0.0
      %1480 = vmatmul.mubr.f32.gmra.mrb[0].mxu0 %v1413
      %v1481 = vpop.f32.mrb[0].mxu0
      %v1482 = vadd.f32 0.0, %v1481
      %v1483 = vpop.f32.mrb[0].mxu0
      %v1484 = vadd.f32 0.0, %v1483
      %1485 = vdwg.mxu0
      %v1486 = vadd.f32 %v1391, %v1482
      %v1487 = vadd.f32 %v1392, %v1484
      %s1488 = scalar_lea.vmem %s3, 24
      %v1489 = vld [vmem:[%s1488] sm:$0xf]
      %1490 = vrot.lane.b32.xlu0 %v1393, 107
      %v1491 = vpop.permute.xlu0 %1490
      %1492 = vrot.lane.b32.xlu0 %v1394, 107
      %v1493 = vpop.permute.xlu0 %1492
      %1494 = vrot.lane.b32.xlu0 %v1395, 107
      %v1495 = vpop.permute.xlu0 %1494
      %vm1496 = vcmask 875520
      %v1497 = vsel %vm1496, %v1491, %v1493
      %v1498 = vsel %vm1496, %v1493, %v1495
      %v1502 = vsel %vm970, %v1489, 0
      %1504 = vmatprep.subr.mxu0 %v1498
      %1505 = vmatpush1.msra.mxu0 %v1497
      %1506 = vmatprep.subr.mxu0 0.0
      %1507 = vmatpush1.msra.mxu0 0.0
      %1508 = vmatprep.subr.mxu0 0.0
      %1509 = vmatpush1.msra.mxu0 0.0
      %1510 = vmatprep.subr.mxu0 0.0
      %1511 = vmatpush1.msra.mxu0 0.0
      %1512 = vmatprep.subr.mxu0 0.0
      %1513 = vmatpush1.msra.mxu0 0.0
      %1514 = vmatprep.subr.mxu0 0.0
      %1515 = vmatpush1.msra.mxu0 0.0
      %1516 = vmatprep.subr.mxu0 0.0
      %1517 = vmatpush1.msra.mxu0 0.0
      %1518 = vmatprep.subr.mxu0 0.0
      %1519 = vmatpush1.msra.mxu0 0.0
      %1520 = vmatprep.subr.mxu0 0.0
      %1521 = vmatpush1.msra.mxu0 0.0
      %1522 = vmatprep.subr.mxu0 0.0
      %1523 = vmatpush1.msra.mxu0 0.0
      %1524 = vmatprep.subr.mxu0 0.0
      %1525 = vmatpush1.msra.mxu0 0.0
      %1526 = vmatprep.subr.mxu0 0.0
      %1527 = vmatpush1.msra.mxu0 0.0
      %1528 = vmatprep.subr.mxu0 0.0
      %1529 = vmatpush1.msra.mxu0 0.0
      %1530 = vmatprep.subr.mxu0 0.0
      %1531 = vmatpush1.msra.mxu0 0.0
      %1532 = vmatprep.subr.mxu0 0.0
      %1533 = vmatpush1.msra.mxu0 0.0
      %1534 = vmatprep.subr.mxu0 0.0
      %1535 = vmatpush1.msra.mxu0 0.0
      %1536 = vmatprep.subr.mxu0 0.0
      %1537 = vmatpush1.msra.mxu0 0.0
      %1538 = vmatprep.subr.mxu0 0.0
      %1539 = vmatpush1.msra.mxu0 0.0
      %1540 = vmatprep.subr.mxu0 0.0
      %1541 = vmatpush1.msra.mxu0 0.0
      %1542 = vmatprep.subr.mxu0 0.0
      %1543 = vmatpush1.msra.mxu0 0.0
      %1544 = vmatprep.subr.mxu0 0.0
      %1545 = vmatpush1.msra.mxu0 0.0
      %1546 = vmatprep.subr.mxu0 0.0
      %1547 = vmatpush1.msra.mxu0 0.0
      %1548 = vmatprep.subr.mxu0 0.0
      %1549 = vmatpush1.msra.mxu0 0.0
      %1550 = vmatprep.subr.mxu0 0.0
      %1551 = vmatpush1.msra.mxu0 0.0
      %1552 = vmatprep.subr.mxu0 0.0
      %1553 = vmatpush1.msra.mxu0 0.0
      %1554 = vmatprep.subr.mxu0 0.0
      %1555 = vmatpush1.msra.mxu0 0.0
      %1556 = vmatprep.subr.mxu0 0.0
      %1557 = vmatpush1.msra.mxu0 0.0
      %1558 = vmatprep.subr.mxu0 0.0
      %1559 = vmatpush1.msra.mxu0 0.0
      %1560 = vmatprep.subr.mxu0 0.0
      %1561 = vmatpush1.msra.mxu0 0.0
      %1562 = vmatprep.subr.mxu0 0.0
      %1563 = vmatpush1.msra.mxu0 0.0
      %1564 = vmatprep.subr.mxu0 0.0
      %1565 = vmatpush1.msra.mxu0 0.0
      %1566 = vmatprep.subr.mxu0 0.0
      %1567 = vmatpush1.msra.mxu0 0.0
      %1568 = vmatprep.mubr.f32.mxu0 0.0
      %1569 = vmatmul.mubr.f32.gmra.mrb[0].mxu0 %v1502
      %v1570 = vpop.f32.mrb[0].mxu0
      %v1571 = vadd.f32 0.0, %v1570
      %v1572 = vpop.f32.mrb[0].mxu0
      %v1573 = vadd.f32 0.0, %v1572
      %1574 = vdwg.mxu0
      %v1575 = vadd.f32 %v1486, %v1571
      %v1576 = vadd.f32 %v1487, %v1573
      %s1577 = scalar_lea.vmem %s3, 28
      %v1578 = vld [vmem:[%s1577] sm:$0xf]
      %1579 = vrot.lane.b32.xlu0 %v1393, 106
      %v1580 = vpop.permute.xlu0 %1579
      %1581 = vrot.lane.b32.xlu0 %v1394, 106
      %v1582 = vpop.permute.xlu0 %1581
      %1583 = vrot.lane.b32.xlu0 %v1395, 106
      %v1584 = vpop.permute.xlu0 %1583
      %vm1585 = vcmask 867328
      %v1586 = vsel %vm1585, %v1580, %v1582
      %v1587 = vsel %vm1585, %v1582, %v1584
      %v1591 = vsel %vm970, %v1578, 0
      %1593 = vmatprep.subr.mxu0 %v1587
      %1594 = vmatpush1.msra.mxu0 %v1586
      %1595 = vmatprep.subr.mxu0 0.0
      %1596 = vmatpush1.msra.mxu0 0.0
      %1597 = vmatprep.subr.mxu0 0.0
      %1598 = vmatpush1.msra.mxu0 0.0
      %1599 = vmatprep.subr.mxu0 0.0
      %1600 = vmatpush1.msra.mxu0 0.0
      %1601 = vmatprep.subr.mxu0 0.0
      %1602 = vmatpush1.msra.mxu0 0.0
      %1603 = vmatprep.subr.mxu0 0.0
      %1604 = vmatpush1.msra.mxu0 0.0
      %1605 = vmatprep.subr.mxu0 0.0
      %1606 = vmatpush1.msra.mxu0 0.0
      %1607 = vmatprep.subr.mxu0 0.0
      %1608 = vmatpush1.msra.mxu0 0.0
      %1609 = vmatprep.subr.mxu0 0.0
      %1610 = vmatpush1.msra.mxu0 0.0
      %1611 = vmatprep.subr.mxu0 0.0
      %1612 = vmatpush1.msra.mxu0 0.0
      %1613 = vmatprep.subr.mxu0 0.0
      %1614 = vmatpush1.msra.mxu0 0.0
      %1615 = vmatprep.subr.mxu0 0.0
      %1616 = vmatpush1.msra.mxu0 0.0
      %1617 = vmatprep.subr.mxu0 0.0
      %1618 = vmatpush1.msra.mxu0 0.0
      %1619 = vmatprep.subr.mxu0 0.0
      %1620 = vmatpush1.msra.mxu0 0.0
      %1621 = vmatprep.subr.mxu0 0.0
      %1622 = vmatpush1.msra.mxu0 0.0
      %1623 = vmatprep.subr.mxu0 0.0
      %1624 = vmatpush1.msra.mxu0 0.0
      %1625 = vmatprep.subr.mxu0 0.0
      %1626 = vmatpush1.msra.mxu0 0.0
      %1627 = vmatprep.subr.mxu0 0.0
      %1628 = vmatpush1.msra.mxu0 0.0
      %1629 = vmatprep.subr.mxu0 0.0
      %1630 = vmatpush1.msra.mxu0 0.0
      %1631 = vmatprep.subr.mxu0 0.0
      %1632 = vmatpush1.msra.mxu0 0.0
      %1633 = vmatprep.subr.mxu0 0.0
      %1634 = vmatpush1.msra.mxu0 0.0
      %1635 = vmatprep.subr.mxu0 0.0
      %1636 = vmatpush1.msra.mxu0 0.0
      %1637 = vmatprep.subr.mxu0 0.0
      %1638 = vmatpush1.msra.mxu0 0.0
      %1639 = vmatprep.subr.mxu0 0.0
      %1640 = vmatpush1.msra.mxu0 0.0
      %1641 = vmatprep.subr.mxu0 0.0
      %1642 = vmatpush1.msra.mxu0 0.0
      %1643 = vmatprep.subr.mxu0 0.0
      %1644 = vmatpush1.msra.mxu0 0.0
      %1645 = vmatprep.subr.mxu0 0.0
      %1646 = vmatpush1.msra.mxu0 0.0
      %1647 = vmatprep.subr.mxu0 0.0
      %1648 = vmatpush1.msra.mxu0 0.0
      %1649 = vmatprep.subr.mxu0 0.0
      %1650 = vmatpush1.msra.mxu0 0.0
      %1651 = vmatprep.subr.mxu0 0.0
      %1652 = vmatpush1.msra.mxu0 0.0
      %1653 = vmatprep.subr.mxu0 0.0
      %1654 = vmatpush1.msra.mxu0 0.0
      %1655 = vmatprep.subr.mxu0 0.0
      %1656 = vmatpush1.msra.mxu0 0.0
      %1657 = vmatprep.mubr.f32.mxu0 0.0
      %1658 = vmatmul.mubr.f32.gmra.mrb[0].mxu0 %v1591
      %v1659 = vpop.f32.mrb[0].mxu0
      %v1660 = vadd.f32 0.0, %v1659
      %v1661 = vpop.f32.mrb[0].mxu0
      %v1662 = vadd.f32 0.0, %v1661
      %1663 = vdwg.mxu0
      %v1664 = vadd.f32 %v1575, %v1660
      %v1665 = vadd.f32 %v1576, %v1662
      %s1666 = scalar_lea.vmem %s3, 32
      %v1667 = vld [vmem:[%s1666] sm:$0xf]
      %1668 = vrot.lane.b32.xlu0 %v1393, 105
      %v1669 = vpop.permute.xlu0 %1668
      %1670 = vrot.lane.b32.xlu0 %v1394, 105
      %v1671 = vpop.permute.xlu0 %1670
      %1672 = vrot.lane.b32.xlu0 %v1395, 105
      %v1673 = vpop.permute.xlu0 %1672
      %vm1674 = vcmask 859136
      %v1675 = vsel %vm1674, %v1669, %v1671
      %v1676 = vsel %vm1674, %v1671, %v1673
      %v1680 = vsel %vm970, %v1667, 0
      %1682 = vmatprep.subr.mxu0 %v1676
      %1683 = vmatpush1.msra.mxu0 %v1675
      %1684 = vmatprep.subr.mxu0 0.0
      %1685 = vmatpush1.msra.mxu0 0.0
      %1686 = vmatprep.subr.mxu0 0.0
      %1687 = vmatpush1.msra.mxu0 0.0
      %1688 = vmatprep.subr.mxu0 0.0
      %1689 = vmatpush1.msra.mxu0 0.0
      %1690 = vmatprep.subr.mxu0 0.0
      %1691 = vmatpush1.msra.mxu0 0.0
      %1692 = vmatprep.subr.mxu0 0.0
      %1693 = vmatpush1.msra.mxu0 0.0
      %1694 = vmatprep.subr.mxu0 0.0
      %1695 = vmatpush1.msra.mxu0 0.0
      %1696 = vmatprep.subr.mxu0 0.0
      %1697 = vmatpush1.msra.mxu0 0.0
      %1698 = vmatprep.subr.mxu0 0.0
      %1699 = vmatpush1.msra.mxu0 0.0
      %1700 = vmatprep.subr.mxu0 0.0
      %1701 = vmatpush1.msra.mxu0 0.0
      %1702 = vmatprep.subr.mxu0 0.0
      %1703 = vmatpush1.msra.mxu0 0.0
      %1704 = vmatprep.subr.mxu0 0.0
      %1705 = vmatpush1.msra.mxu0 0.0
      %1706 = vmatprep.subr.mxu0 0.0
      %1707 = vmatpush1.msra.mxu0 0.0
      %1708 = vmatprep.subr.mxu0 0.0
      %1709 = vmatpush1.msra.mxu0 0.0
      %1710 = vmatprep.subr.mxu0 0.0
      %1711 = vmatpush1.msra.mxu0 0.0
      %1712 = vmatprep.subr.mxu0 0.0
      %1713 = vmatpush1.msra.mxu0 0.0
      %1714 = vmatprep.subr.mxu0 0.0
      %1715 = vmatpush1.msra.mxu0 0.0
      %1716 = vmatprep.subr.mxu0 0.0
      %1717 = vmatpush1.msra.mxu0 0.0
      %1718 = vmatprep.subr.mxu0 0.0
      %1719 = vmatpush1.msra.mxu0 0.0
      %1720 = vmatprep.subr.mxu0 0.0
      %1721 = vmatpush1.msra.mxu0 0.0
      %1722 = vmatprep.subr.mxu0 0.0
      %1723 = vmatpush1.msra.mxu0 0.0
      %1724 = vmatprep.subr.mxu0 0.0
      %1725 = vmatpush1.msra.mxu0 0.0
      %1726 = vmatprep.subr.mxu0 0.0
      %1727 = vmatpush1.msra.mxu0 0.0
      %1728 = vmatprep.subr.mxu0 0.0
      %1729 = vmatpush1.msra.mxu0 0.0
      %1730 = vmatprep.subr.mxu0 0.0
      %1731 = vmatpush1.msra.mxu0 0.0
      %1732 = vmatprep.subr.mxu0 0.0
      %1733 = vmatpush1.msra.mxu0 0.0
      %1734 = vmatprep.subr.mxu0 0.0
      %1735 = vmatpush1.msra.mxu0 0.0
      %1736 = vmatprep.subr.mxu0 0.0
      %1737 = vmatpush1.msra.mxu0 0.0
      %1738 = vmatprep.subr.mxu0 0.0
      %1739 = vmatpush1.msra.mxu0 0.0
      %1740 = vmatprep.subr.mxu0 0.0
      %1741 = vmatpush1.msra.mxu0 0.0
      %1742 = vmatprep.subr.mxu0 0.0
      %1743 = vmatpush1.msra.mxu0 0.0
      %1744 = vmatprep.subr.mxu0 0.0
      %1745 = vmatpush1.msra.mxu0 0.0
      %1746 = vmatprep.mubr.f32.mxu0 0.0
      %1747 = vmatmul.mubr.f32.gmra.mrb[0].mxu0 %v1680
      %v1748 = vpop.f32.mrb[0].mxu0
      %v1749 = vadd.f32 0.0, %v1748
      %v1750 = vpop.f32.mrb[0].mxu0
      %v1751 = vadd.f32 0.0, %v1750
      %1752 = vdwg.mxu0
      %v1753 = vadd.f32 %v1664, %v1749
      %v1754 = vadd.f32 %v1665, %v1751
      %s1755 = scalar_lea.vmem %s3, 36
      %v1756 = vld [vmem:[%s1755] sm:$0xf]
      %1757 = vrot.lane.b32.xlu0 %v1393, 104
      %v1758 = vpop.permute.xlu0 %1757
      %1759 = vrot.lane.b32.xlu0 %v1394, 104
      %v1760 = vpop.permute.xlu0 %1759
      %1761 = vrot.lane.b32.xlu0 %v1395, 104
      %v1762 = vpop.permute.xlu0 %1761
      %vm1763 = vcmask 850944
      %v1764 = vsel %vm1763, %v1758, %v1760
      %v1765 = vsel %vm1763, %v1760, %v1762
      %v1769 = vsel %vm970, %v1756, 0
      %1771 = vmatprep.subr.mxu0 %v1765
      %1772 = vmatpush1.msra.mxu0 %v1764
      %1773 = vmatprep.subr.mxu0 0.0
      %1774 = vmatpush1.msra.mxu0 0.0
      %1775 = vmatprep.subr.mxu0 0.0
      %1776 = vmatpush1.msra.mxu0 0.0
      %1777 = vmatprep.subr.mxu0 0.0
      %1778 = vmatpush1.msra.mxu0 0.0
      %1779 = vmatprep.subr.mxu0 0.0
      %1780 = vmatpush1.msra.mxu0 0.0
      %1781 = vmatprep.subr.mxu0 0.0
      %1782 = vmatpush1.msra.mxu0 0.0
      %1783 = vmatprep.subr.mxu0 0.0
      %1784 = vmatpush1.msra.mxu0 0.0
      %1785 = vmatprep.subr.mxu0 0.0
      %1786 = vmatpush1.msra.mxu0 0.0
      %1787 = vmatprep.subr.mxu0 0.0
      %1788 = vmatpush1.msra.mxu0 0.0
      %1789 = vmatprep.subr.mxu0 0.0
      %1790 = vmatpush1.msra.mxu0 0.0
      %1791 = vmatprep.subr.mxu0 0.0
      %1792 = vmatpush1.msra.mxu0 0.0
      %1793 = vmatprep.subr.mxu0 0.0
      %1794 = vmatpush1.msra.mxu0 0.0
      %1795 = vmatprep.subr.mxu0 0.0
      %1796 = vmatpush1.msra.mxu0 0.0
      %1797 = vmatprep.subr.mxu0 0.0
      %1798 = vmatpush1.msra.mxu0 0.0
      %1799 = vmatprep.subr.mxu0 0.0
      %1800 = vmatpush1.msra.mxu0 0.0
      %1801 = vmatprep.subr.mxu0 0.0
      %1802 = vmatpush1.msra.mxu0 0.0
      %1803 = vmatprep.subr.mxu0 0.0
      %1804 = vmatpush1.msra.mxu0 0.0
      %1805 = vmatprep.subr.mxu0 0.0
      %1806 = vmatpush1.msra.mxu0 0.0
      %1807 = vmatprep.subr.mxu0 0.0
      %1808 = vmatpush1.msra.mxu0 0.0
      %1809 = vmatprep.subr.mxu0 0.0
      %1810 = vmatpush1.msra.mxu0 0.0
      %1811 = vmatprep.subr.mxu0 0.0
      %1812 = vmatpush1.msra.mxu0 0.0
      %1813 = vmatprep.subr.mxu0 0.0
      %1814 = vmatpush1.msra.mxu0 0.0
      %1815 = vmatprep.subr.mxu0 0.0
      %1816 = vmatpush1.msra.mxu0 0.0
      %1817 = vmatprep.subr.mxu0 0.0
      %1818 = vmatpush1.msra.mxu0 0.0
      %1819 = vmatprep.subr.mxu0 0.0
      %1820 = vmatpush1.msra.mxu0 0.0
      %1821 = vmatprep.subr.mxu0 0.0
      %1822 = vmatpush1.msra.mxu0 0.0
      %1823 = vmatprep.subr.mxu0 0.0
      %1824 = vmatpush1.msra.mxu0 0.0
      %1825 = vmatprep.subr.mxu0 0.0
      %1826 = vmatpush1.msra.mxu0 0.0
      %1827 = vmatprep.subr.mxu0 0.0
      %1828 = vmatpush1.msra.mxu0 0.0
      %1829 = vmatprep.subr.mxu0 0.0
      %1830 = vmatpush1.msra.mxu0 0.0
      %1831 = vmatprep.subr.mxu0 0.0
      %1832 = vmatpush1.msra.mxu0 0.0
      %1833 = vmatprep.subr.mxu0 0.0
      %1834 = vmatpush1.msra.mxu0 0.0
      %1835 = vmatprep.mubr.f32.mxu0 0.0
      %1836 = vmatmul.mubr.f32.gmra.mrb[0].mxu0 %v1769
      %v1837 = vpop.f32.mrb[0].mxu0
      %v1838 = vadd.f32 0.0, %v1837
      %v1839 = vpop.f32.mrb[0].mxu0
      %v1840 = vadd.f32 0.0, %v1839
      %1841 = vdwg.mxu0
      %v1842 = vadd.f32 %v1753, %v1838
      %v1843 = vadd.f32 %v1754, %v1840
      %s1844 = scalar_lea.vmem %s3, 40
      %v1845 = vld [vmem:[%s1844] sm:$0xf]
      %1846 = vrot.lane.b32.xlu0 %v1393, 88
      %v1847 = vpop.permute.xlu0 %1846
      %1848 = vrot.lane.b32.xlu0 %v1394, 88
      %v1849 = vpop.permute.xlu0 %1848
      %1850 = vrot.lane.b32.xlu0 %v1395, 88
      %v1851 = vpop.permute.xlu0 %1850
      %vm1852 = vcmask 719872
      %v1853 = vsel %vm1852, %v1847, %v1849
      %v1854 = vsel %vm1852, %v1849, %v1851
      %v1858 = vsel %vm970, %v1845, 0
      %1860 = vmatprep.subr.mxu0 %v1854
      %1861 = vmatpush1.msra.mxu0 %v1853
      %1862 = vmatprep.subr.mxu0 0.0
      %1863 = vmatpush1.msra.mxu0 0.0
      %1864 = vmatprep.subr.mxu0 0.0
      %1865 = vmatpush1.msra.mxu0 0.0
      %1866 = vmatprep.subr.mxu0 0.0
      %1867 = vmatpush1.msra.mxu0 0.0
      %1868 = vmatprep.subr.mxu0 0.0
      %1869 = vmatpush1.msra.mxu0 0.0
      %1870 = vmatprep.subr.mxu0 0.0
      %1871 = vmatpush1.msra.mxu0 0.0
      %1872 = vmatprep.subr.mxu0 0.0
      %1873 = vmatpush1.msra.mxu0 0.0
      %1874 = vmatprep.subr.mxu0 0.0
      %1875 = vmatpush1.msra.mxu0 0.0
      %1876 = vmatprep.subr.mxu0 0.0
      %1877 = vmatpush1.msra.mxu0 0.0
      %1878 = vmatprep.subr.mxu0 0.0
      %1879 = vmatpush1.msra.mxu0 0.0
      %1880 = vmatprep.subr.mxu0 0.0
      %1881 = vmatpush1.msra.mxu0 0.0
      %1882 = vmatprep.subr.mxu0 0.0
      %1883 = vmatpush1.msra.mxu0 0.0
      %1884 = vmatprep.subr.mxu0 0.0
      %1885 = vmatpush1.msra.mxu0 0.0
      %1886 = vmatprep.subr.mxu0 0.0
      %1887 = vmatpush1.msra.mxu0 0.0
      %1888 = vmatprep.subr.mxu0 0.0
      %1889 = vmatpush1.msra.mxu0 0.0
      %1890 = vmatprep.subr.mxu0 0.0
      %1891 = vmatpush1.msra.mxu0 0.0
      %1892 = vmatprep.subr.mxu0 0.0
      %1893 = vmatpush1.msra.mxu0 0.0
      %1894 = vmatprep.subr.mxu0 0.0
      %1895 = vmatpush1.msra.mxu0 0.0
      %1896 = vmatprep.subr.mxu0 0.0
      %1897 = vmatpush1.msra.mxu0 0.0
      %1898 = vmatprep.subr.mxu0 0.0
      %1899 = vmatpush1.msra.mxu0 0.0
      %1900 = vmatprep.subr.mxu0 0.0
      %1901 = vmatpush1.msra.mxu0 0.0
      %1902 = vmatprep.subr.mxu0 0.0
      %1903 = vmatpush1.msra.mxu0 0.0
      %1904 = vmatprep.subr.mxu0 0.0
      %1905 = vmatpush1.msra.mxu0 0.0
      %1906 = vmatprep.subr.mxu0 0.0
      %1907 = vmatpush1.msra.mxu0 0.0
      %1908 = vmatprep.subr.mxu0 0.0
      %1909 = vmatpush1.msra.mxu0 0.0
      %1910 = vmatprep.subr.mxu0 0.0
      %1911 = vmatpush1.msra.mxu0 0.0
      %1912 = vmatprep.subr.mxu0 0.0
      %1913 = vmatpush1.msra.mxu0 0.0
      %1914 = vmatprep.subr.mxu0 0.0
      %1915 = vmatpush1.msra.mxu0 0.0
      %1916 = vmatprep.subr.mxu0 0.0
      %1917 = vmatpush1.msra.mxu0 0.0
      %1918 = vmatprep.subr.mxu0 0.0
      %1919 = vmatpush1.msra.mxu0 0.0
      %1920 = vmatprep.subr.mxu0 0.0
      %1921 = vmatpush1.msra.mxu0 0.0
      %1922 = vmatprep.subr.mxu0 0.0
      %1923 = vmatpush1.msra.mxu0 0.0
      %1924 = vmatprep.mubr.f32.mxu0 0.0
      %1925 = vmatmul.mubr.f32.gmra.mrb[0].mxu0 %v1858
      %v1926 = vpop.f32.mrb[0].mxu0
      %v1927 = vadd.f32 0.0, %v1926
      %v1928 = vpop.f32.mrb[0].mxu0
      %v1929 = vadd.f32 0.0, %v1928
      %1930 = vdwg.mxu0
      %v1931 = vadd.f32 %v1842, %v1927
      %v1932 = vadd.f32 %v1843, %v1929
      %s1933 = scalar_lea.vmem %s3, 44
      %v1934 = vld [vmem:[%s1933] sm:$0xf]
      %1935 = vrot.lane.b32.xlu0 %v1393, 87
      %v1936 = vpop.permute.xlu0 %1935
      %1937 = vrot.lane.b32.xlu0 %v1394, 87
      %v1938 = vpop.permute.xlu0 %1937
      %1939 = vrot.lane.b32.xlu0 %v1395, 87
      %v1940 = vpop.permute.xlu0 %1939
      %vm1941 = vcmask 711680
      %v1942 = vsel %vm1941, %v1936, %v1938
      %v1943 = vsel %vm1941, %v1938, %v1940
      %v1947 = vsel %vm970, %v1934, 0
      %1949 = vmatprep.subr.mxu0 %v1943
      %1950 = vmatpush1.msra.mxu0 %v1942
      %1951 = vmatprep.subr.mxu0 0.0
      %1952 = vmatpush1.msra.mxu0 0.0
      %1953 = vmatprep.subr.mxu0 0.0
      %1954 = vmatpush1.msra.mxu0 0.0
      %1955 = vmatprep.subr.mxu0 0.0
      %1956 = vmatpush1.msra.mxu0 0.0
      %1957 = vmatprep.subr.mxu0 0.0
      %1958 = vmatpush1.msra.mxu0 0.0
      %1959 = vmatprep.subr.mxu0 0.0
      %1960 = vmatpush1.msra.mxu0 0.0
      %1961 = vmatprep.subr.mxu0 0.0
      %1962 = vmatpush1.msra.mxu0 0.0
      %1963 = vmatprep.subr.mxu0 0.0
      %1964 = vmatpush1.msra.mxu0 0.0
      %1965 = vmatprep.subr.mxu0 0.0
      %1966 = vmatpush1.msra.mxu0 0.0
      %1967 = vmatprep.subr.mxu0 0.0
      %1968 = vmatpush1.msra.mxu0 0.0
      %1969 = vmatprep.subr.mxu0 0.0
      %1970 = vmatpush1.msra.mxu0 0.0
      %1971 = vmatprep.subr.mxu0 0.0
      %1972 = vmatpush1.msra.mxu0 0.0
      %1973 = vmatprep.subr.mxu0 0.0
      %1974 = vmatpush1.msra.mxu0 0.0
      %1975 = vmatprep.subr.mxu0 0.0
      %1976 = vmatpush1.msra.mxu0 0.0
      %1977 = vmatprep.subr.mxu0 0.0
      %1978 = vmatpush1.msra.mxu0 0.0
      %1979 = vmatprep.subr.mxu0 0.0
      %1980 = vmatpush1.msra.mxu0 0.0
      %1981 = vmatprep.subr.mxu0 0.0
      %1982 = vmatpush1.msra.mxu0 0.0
      %1983 = vmatprep.subr.mxu0 0.0
      %1984 = vmatpush1.msra.mxu0 0.0
      %1985 = vmatprep.subr.mxu0 0.0
      %1986 = vmatpush1.msra.mxu0 0.0
      %1987 = vmatprep.subr.mxu0 0.0
      %1988 = vmatpush1.msra.mxu0 0.0
      %1989 = vmatprep.subr.mxu0 0.0
      %1990 = vmatpush1.msra.mxu0 0.0
      %1991 = vmatprep.subr.mxu0 0.0
      %1992 = vmatpush1.msra.mxu0 0.0
      %1993 = vmatprep.subr.mxu0 0.0
      %1994 = vmatpush1.msra.mxu0 0.0
      %1995 = vmatprep.subr.mxu0 0.0
      %1996 = vmatpush1.msra.mxu0 0.0
      %1997 = vmatprep.subr.mxu0 0.0
      %1998 = vmatpush1.msra.mxu0 0.0
      %1999 = vmatprep.subr.mxu0 0.0
      %2000 = vmatpush1.msra.mxu0 0.0
      %2001 = vmatprep.subr.mxu0 0.0
      %2002 = vmatpush1.msra.mxu0 0.0
      %2003 = vmatprep.subr.mxu0 0.0
      %2004 = vmatpush1.msra.mxu0 0.0
      %2005 = vmatprep.subr.mxu0 0.0
      %2006 = vmatpush1.msra.mxu0 0.0
      %2007 = vmatprep.subr.mxu0 0.0
      %2008 = vmatpush1.msra.mxu0 0.0
      %2009 = vmatprep.subr.mxu0 0.0
      %2010 = vmatpush1.msra.mxu0 0.0
      %2011 = vmatprep.subr.mxu0 0.0
      %2012 = vmatpush1.msra.mxu0 0.0
      %2013 = vmatprep.mubr.f32.mxu0 0.0
      %2014 = vmatmul.mubr.f32.gmra.mrb[0].mxu0 %v1947
      %v2015 = vpop.f32.mrb[0].mxu0
      %v2016 = vadd.f32 0.0, %v2015
      %v2017 = vpop.f32.mrb[0].mxu0
      %v2018 = vadd.f32 0.0, %v2017
      %2019 = vdwg.mxu0
      %v2020 = vadd.f32 %v1931, %v2016
      %v2021 = vadd.f32 %v1932, %v2018
      %s2022 = scalar_lea.vmem %s3, 48
      %v2023 = vld [vmem:[%s2022] sm:$0xf]
      %2024 = vrot.lane.b32.xlu0 %v1393, 86
      %v2025 = vpop.permute.xlu0 %2024
      %2026 = vrot.lane.b32.xlu0 %v1394, 86
      %v2027 = vpop.permute.xlu0 %2026
      %2028 = vrot.lane.b32.xlu0 %v1395, 86
      %v2029 = vpop.permute.xlu0 %2028
      %vm2030 = vcmask 703488
      %v2031 = vsel %vm2030, %v2025, %v2027
      %v2032 = vsel %vm2030, %v2027, %v2029
      %v2036 = vsel %vm970, %v2023, 0
      %2038 = vmatprep.subr.mxu0 %v2032
      %2039 = vmatpush1.msra.mxu0 %v2031
      %2040 = vmatprep.subr.mxu0 0.0
      %2041 = vmatpush1.msra.mxu0 0.0
      %2042 = vmatprep.subr.mxu0 0.0
      %2043 = vmatpush1.msra.mxu0 0.0
      %2044 = vmatprep.subr.mxu0 0.0
      %2045 = vmatpush1.msra.mxu0 0.0
      %2046 = vmatprep.subr.mxu0 0.0
      %2047 = vmatpush1.msra.mxu0 0.0
      %2048 = vmatprep.subr.mxu0 0.0
      %2049 = vmatpush1.msra.mxu0 0.0
      %2050 = vmatprep.subr.mxu0 0.0
      %2051 = vmatpush1.msra.mxu0 0.0
      %2052 = vmatprep.subr.mxu0 0.0
      %2053 = vmatpush1.msra.mxu0 0.0
      %2054 = vmatprep.subr.mxu0 0.0
      %2055 = vmatpush1.msra.mxu0 0.0
      %2056 = vmatprep.subr.mxu0 0.0
      %2057 = vmatpush1.msra.mxu0 0.0
      %2058 = vmatprep.subr.mxu0 0.0
      %2059 = vmatpush1.msra.mxu0 0.0
      %2060 = vmatprep.subr.mxu0 0.0
      %2061 = vmatpush1.msra.mxu0 0.0
      %2062 = vmatprep.subr.mxu0 0.0
      %2063 = vmatpush1.msra.mxu0 0.0
      %2064 = vmatprep.subr.mxu0 0.0
      %2065 = vmatpush1.msra.mxu0 0.0
      %2066 = vmatprep.subr.mxu0 0.0
      %2067 = vmatpush1.msra.mxu0 0.0
      %2068 = vmatprep.subr.mxu0 0.0
      %2069 = vmatpush1.msra.mxu0 0.0
      %2070 = vmatprep.subr.mxu0 0.0
      %2071 = vmatpush1.msra.mxu0 0.0
      %2072 = vmatprep.subr.mxu0 0.0
      %2073 = vmatpush1.msra.mxu0 0.0
      %2074 = vmatprep.subr.mxu0 0.0
      %2075 = vmatpush1.msra.mxu0 0.0
      %2076 = vmatprep.subr.mxu0 0.0
      %2077 = vmatpush1.msra.mxu0 0.0
      %2078 = vmatprep.subr.mxu0 0.0
      %2079 = vmatpush1.msra.mxu0 0.0
      %2080 = vmatprep.subr.mxu0 0.0
      %2081 = vmatpush1.msra.mxu0 0.0
      %2082 = vmatprep.subr.mxu0 0.0
      %2083 = vmatpush1.msra.mxu0 0.0
      %2084 = vmatprep.subr.mxu0 0.0
      %2085 = vmatpush1.msra.mxu0 0.0
      %2086 = vmatprep.subr.mxu0 0.0
      %2087 = vmatpush1.msra.mxu0 0.0
      %2088 = vmatprep.subr.mxu0 0.0
      %2089 = vmatpush1.msra.mxu0 0.0
      %2090 = vmatprep.subr.mxu0 0.0
      %2091 = vmatpush1.msra.mxu0 0.0
      %2092 = vmatprep.subr.mxu0 0.0
      %2093 = vmatpush1.msra.mxu0 0.0
      %2094 = vmatprep.subr.mxu0 0.0
      %2095 = vmatpush1.msra.mxu0 0.0
      %2096 = vmatprep.subr.mxu0 0.0
      %2097 = vmatpush1.msra.mxu0 0.0
      %2098 = vmatprep.subr.mxu0 0.0
      %2099 = vmatpush1.msra.mxu0 0.0
      %2100 = vmatprep.subr.mxu0 0.0
      %2101 = vmatpush1.msra.mxu0 0.0
      %2102 = vmatprep.mubr.f32.mxu0 0.0
      %2103 = vmatmul.mubr.f32.gmra.mrb[0].mxu0 %v2036
      %v2104 = vpop.f32.mrb[0].mxu0
      %v2105 = vadd.f32 0.0, %v2104
      %v2106 = vpop.f32.mrb[0].mxu0
      %v2107 = vadd.f32 0.0, %v2106
      %2108 = vdwg.mxu0
      %v2109 = vadd.f32 %v2020, %v2105
      %v2110 = vadd.f32 %v2021, %v2107
      %s2111 = scalar_lea.vmem %s3, 52
      %v2112 = vld [vmem:[%s2111] sm:$0xf]
      %2113 = vrot.lane.b32.xlu0 %v1393, 85
      %v2114 = vpop.permute.xlu0 %2113
      %2115 = vrot.lane.b32.xlu0 %v1394, 85
      %v2116 = vpop.permute.xlu0 %2115
      %2117 = vrot.lane.b32.xlu0 %v1395, 85
      %v2118 = vpop.permute.xlu0 %2117
      %vm2119 = vcmask 695296
      %v2120 = vsel %vm2119, %v2114, %v2116
      %v2121 = vsel %vm2119, %v2116, %v2118
      %v2125 = vsel %vm970, %v2112, 0
      %2127 = vmatprep.subr.mxu0 %v2121
      %2128 = vmatpush1.msra.mxu0 %v2120
      %2129 = vmatprep.subr.mxu0 0.0
      %2130 = vmatpush1.msra.mxu0 0.0
      %2131 = vmatprep.subr.mxu0 0.0
      %2132 = vmatpush1.msra.mxu0 0.0
      %2133 = vmatprep.subr.mxu0 0.0
      %2134 = vmatpush1.msra.mxu0 0.0
      %2135 = vmatprep.subr.mxu0 0.0
      %2136 = vmatpush1.msra.mxu0 0.0
      %2137 = vmatprep.subr.mxu0 0.0
      %2138 = vmatpush1.msra.mxu0 0.0
      %2139 = vmatprep.subr.mxu0 0.0
      %2140 = vmatpush1.msra.mxu0 0.0
      %2141 = vmatprep.subr.mxu0 0.0
      %2142 = vmatpush1.msra.mxu0 0.0
      %2143 = vmatprep.subr.mxu0 0.0
      %2144 = vmatpush1.msra.mxu0 0.0
      %2145 = vmatprep.subr.mxu0 0.0
      %2146 = vmatpush1.msra.mxu0 0.0
      %2147 = vmatprep.subr.mxu0 0.0
      %2148 = vmatpush1.msra.mxu0 0.0
      %2149 = vmatprep.subr.mxu0 0.0
      %2150 = vmatpush1.msra.mxu0 0.0
      %2151 = vmatprep.subr.mxu0 0.0
      %2152 = vmatpush1.msra.mxu0 0.0
      %2153 = vmatprep.subr.mxu0 0.0
      %2154 = vmatpush1.msra.mxu0 0.0
      %2155 = vmatprep.subr.mxu0 0.0
      %2156 = vmatpush1.msra.mxu0 0.0
      %2157 = vmatprep.subr.mxu0 0.0
      %2158 = vmatpush1.msra.mxu0 0.0
      %2159 = vmatprep.subr.mxu0 0.0
      %2160 = vmatpush1.msra.mxu0 0.0
      %2161 = vmatprep.subr.mxu0 0.0
      %2162 = vmatpush1.msra.mxu0 0.0
      %2163 = vmatprep.subr.mxu0 0.0
      %2164 = vmatpush1.msra.mxu0 0.0
      %2165 = vmatprep.subr.mxu0 0.0
      %2166 = vmatpush1.msra.mxu0 0.0
      %2167 = vmatprep.subr.mxu0 0.0
      %2168 = vmatpush1.msra.mxu0 0.0
      %2169 = vmatprep.subr.mxu0 0.0
      %2170 = vmatpush1.msra.mxu0 0.0
      %2171 = vmatprep.subr.mxu0 0.0
      %2172 = vmatpush1.msra.mxu0 0.0
      %2173 = vmatprep.subr.mxu0 0.0
      %2174 = vmatpush1.msra.mxu0 0.0
      %2175 = vmatprep.subr.mxu0 0.0
      %2176 = vmatpush1.msra.mxu0 0.0
      %2177 = vmatprep.subr.mxu0 0.0
      %2178 = vmatpush1.msra.mxu0 0.0
      %2179 = vmatprep.subr.mxu0 0.0
      %2180 = vmatpush1.msra.mxu0 0.0
      %2181 = vmatprep.subr.mxu0 0.0
      %2182 = vmatpush1.msra.mxu0 0.0
      %2183 = vmatprep.subr.mxu0 0.0
      %2184 = vmatpush1.msra.mxu0 0.0
      %2185 = vmatprep.subr.mxu0 0.0
      %2186 = vmatpush1.msra.mxu0 0.0
      %2187 = vmatprep.subr.mxu0 0.0
      %2188 = vmatpush1.msra.mxu0 0.0
      %2189 = vmatprep.subr.mxu0 0.0
      %2190 = vmatpush1.msra.mxu0 0.0
      %2191 = vmatprep.mubr.f32.mxu0 0.0
      %2192 = vmatmul.mubr.f32.gmra.mrb[0].mxu0 %v2125
      %v2193 = vpop.f32.mrb[0].mxu0
      %v2194 = vadd.f32 0.0, %v2193
      %v2195 = vpop.f32.mrb[0].mxu0
      %v2196 = vadd.f32 0.0, %v2195
      %2197 = vdwg.mxu0
      %v2198 = vadd.f32 %v2109, %v2194
      %v2199 = vadd.f32 %v2110, %v2196
      %s2200 = scalar_lea.vmem %s3, 56
      %v2201 = vld [vmem:[%s2200] sm:$0xf]
      %2202 = vrot.lane.b32.xlu0 %v1393, 84
      %v2203 = vpop.permute.xlu0 %2202
      %2204 = vrot.lane.b32.xlu0 %v1394, 84
      %v2205 = vpop.permute.xlu0 %2204
      %2206 = vrot.lane.b32.xlu0 %v1395, 84
      %v2207 = vpop.permute.xlu0 %2206
      %v2208 = vsel %vm288, %v2203, %v2205
      %v2209 = vsel %vm288, %v2205, %v2207
      %v2213 = vsel %vm970, %v2201, 0
      %2215 = vmatprep.subr.mxu0 %v2209
      %2216 = vmatpush1.msra.mxu0 %v2208
      %2217 = vmatprep.subr.mxu0 0.0
      %2218 = vmatpush1.msra.mxu0 0.0
      %2219 = vmatprep.subr.mxu0 0.0
      %2220 = vmatpush1.msra.mxu0 0.0
      %2221 = vmatprep.subr.mxu0 0.0
      %2222 = vmatpush1.msra.mxu0 0.0
      %2223 = vmatprep.subr.mxu0 0.0
      %2224 = vmatpush1.msra.mxu0 0.0
      %2225 = vmatprep.subr.mxu0 0.0
      %2226 = vmatpush1.msra.mxu0 0.0
      %2227 = vmatprep.subr.mxu0 0.0
      %2228 = vmatpush1.msra.mxu0 0.0
      %2229 = vmatprep.subr.mxu0 0.0
      %2230 = vmatpush1.msra.mxu0 0.0
      %2231 = vmatprep.subr.mxu0 0.0
      %2232 = vmatpush1.msra.mxu0 0.0
      %2233 = vmatprep.subr.mxu0 0.0
      %2234 = vmatpush1.msra.mxu0 0.0
      %2235 = vmatprep.subr.mxu0 0.0
      %2236 = vmatpush1.msra.mxu0 0.0
      %2237 = vmatprep.subr.mxu0 0.0
      %2238 = vmatpush1.msra.mxu0 0.0
      %2239 = vmatprep.subr.mxu0 0.0
      %2240 = vmatpush1.msra.mxu0 0.0
      %2241 = vmatprep.subr.mxu0 0.0
      %2242 = vmatpush1.msra.mxu0 0.0
      %2243 = vmatprep.subr.mxu0 0.0
      %2244 = vmatpush1.msra.mxu0 0.0
      %2245 = vmatprep.subr.mxu0 0.0
      %2246 = vmatpush1.msra.mxu0 0.0
      %2247 = vmatprep.subr.mxu0 0.0
      %2248 = vmatpush1.msra.mxu0 0.0
      %2249 = vmatprep.subr.mxu0 0.0
      %2250 = vmatpush1.msra.mxu0 0.0
      %2251 = vmatprep.subr.mxu0 0.0
      %2252 = vmatpush1.msra.mxu0 0.0
      %2253 = vmatprep.subr.mxu0 0.0
      %2254 = vmatpush1.msra.mxu0 0.0
      %2255 = vmatprep.subr.mxu0 0.0
      %2256 = vmatpush1.msra.mxu0 0.0
      %2257 = vmatprep.subr.mxu0 0.0
      %2258 = vmatpush1.msra.mxu0 0.0
      %2259 = vmatprep.subr.mxu0 0.0
      %2260 = vmatpush1.msra.mxu0 0.0
      %2261 = vmatprep.subr.mxu0 0.0
      %2262 = vmatpush1.msra.mxu0 0.0
      %2263 = vmatprep.subr.mxu0 0.0
      %2264 = vmatpush1.msra.mxu0 0.0
      %2265 = vmatprep.subr.mxu0 0.0
      %2266 = vmatpush1.msra.mxu0 0.0
      %2267 = vmatprep.subr.mxu0 0.0
      %2268 = vmatpush1.msra.mxu0 0.0
      %2269 = vmatprep.subr.mxu0 0.0
      %2270 = vmatpush1.msra.mxu0 0.0
      %2271 = vmatprep.subr.mxu0 0.0
      %2272 = vmatpush1.msra.mxu0 0.0
      %2273 = vmatprep.subr.mxu0 0.0
      %2274 = vmatpush1.msra.mxu0 0.0
      %2275 = vmatprep.subr.mxu0 0.0
      %2276 = vmatpush1.msra.mxu0 0.0
      %2277 = vmatprep.subr.mxu0 0.0
      %2278 = vmatpush1.msra.mxu0 0.0
      %2279 = vmatprep.mubr.f32.mxu0 0.0
      %2280 = vmatmul.mubr.f32.gmra.mrb[0].mxu0 %v2213
      %v2281 = vpop.f32.mrb[0].mxu0
      %v2282 = vadd.f32 0.0, %v2281
      %v2283 = vpop.f32.mrb[0].mxu0
      %v2284 = vadd.f32 0.0, %v2283
      %2285 = vdwg.mxu0
      %v2286 = vadd.f32 %v2198, %v2282
      %v2287 = vadd.f32 %v2199, %v2284
      %s2288 = scalar_lea.vmem %s3, 60
      %v2289 = vld [vmem:[%s2288] sm:$0xf]
      %2290 = vrot.lane.b32.xlu0 %v1393, 68
      %v2291 = vpop.permute.xlu0 %2290
      %2292 = vrot.lane.b32.xlu0 %v1394, 68
      %v2293 = vpop.permute.xlu0 %2292
      %2294 = vrot.lane.b32.xlu0 %v1395, 68
      %v2295 = vpop.permute.xlu0 %2294
      %vm2296 = vcmask 556032
      %v2297 = vsel %vm2296, %v2291, %v2293
      %v2298 = vsel %vm2296, %v2293, %v2295
      %v2302 = vsel %vm970, %v2289, 0
      %2304 = vmatprep.subr.mxu0 %v2298
      %2305 = vmatpush1.msra.mxu0 %v2297
      %2306 = vmatprep.subr.mxu0 0.0
      %2307 = vmatpush1.msra.mxu0 0.0
      %2308 = vmatprep.subr.mxu0 0.0
      %2309 = vmatpush1.msra.mxu0 0.0
      %2310 = vmatprep.subr.mxu0 0.0
      %2311 = vmatpush1.msra.mxu0 0.0
      %2312 = vmatprep.subr.mxu0 0.0
      %2313 = vmatpush1.msra.mxu0 0.0
      %2314 = vmatprep.subr.mxu0 0.0
      %2315 = vmatpush1.msra.mxu0 0.0
      %2316 = vmatprep.subr.mxu0 0.0
      %2317 = vmatpush1.msra.mxu0 0.0
      %2318 = vmatprep.subr.mxu0 0.0
      %2319 = vmatpush1.msra.mxu0 0.0
      %2320 = vmatprep.subr.mxu0 0.0
      %2321 = vmatpush1.msra.mxu0 0.0
      %2322 = vmatprep.subr.mxu0 0.0
      %2323 = vmatpush1.msra.mxu0 0.0
      %2324 = vmatprep.subr.mxu0 0.0
      %2325 = vmatpush1.msra.mxu0 0.0
      %2326 = vmatprep.subr.mxu0 0.0
      %2327 = vmatpush1.msra.mxu0 0.0
      %2328 = vmatprep.subr.mxu0 0.0
      %2329 = vmatpush1.msra.mxu0 0.0
      %2330 = vmatprep.subr.mxu0 0.0
      %2331 = vmatpush1.msra.mxu0 0.0
      %2332 = vmatprep.subr.mxu0 0.0
      %2333 = vmatpush1.msra.mxu0 0.0
      %2334 = vmatprep.subr.mxu0 0.0
      %2335 = vmatpush1.msra.mxu0 0.0
      %2336 = vmatprep.subr.mxu0 0.0
      %2337 = vmatpush1.msra.mxu0 0.0
      %2338 = vmatprep.subr.mxu0 0.0
      %2339 = vmatpush1.msra.mxu0 0.0
      %2340 = vmatprep.subr.mxu0 0.0
      %2341 = vmatpush1.msra.mxu0 0.0
      %2342 = vmatprep.subr.mxu0 0.0
      %2343 = vmatpush1.msra.mxu0 0.0
      %2344 = vmatprep.subr.mxu0 0.0
      %2345 = vmatpush1.msra.mxu0 0.0
      %2346 = vmatprep.subr.mxu0 0.0
      %2347 = vmatpush1.msra.mxu0 0.0
      %2348 = vmatprep.subr.mxu0 0.0
      %2349 = vmatpush1.msra.mxu0 0.0
      %2350 = vmatprep.subr.mxu0 0.0
      %2351 = vmatpush1.msra.mxu0 0.0
      %2352 = vmatprep.subr.mxu0 0.0
      %2353 = vmatpush1.msra.mxu0 0.0
      %2354 = vmatprep.subr.mxu0 0.0
      %2355 = vmatpush1.msra.mxu0 0.0
      %2356 = vmatprep.subr.mxu0 0.0
      %2357 = vmatpush1.msra.mxu0 0.0
      %2358 = vmatprep.subr.mxu0 0.0
      %2359 = vmatpush1.msra.mxu0 0.0
      %2360 = vmatprep.subr.mxu0 0.0
      %2361 = vmatpush1.msra.mxu0 0.0
      %2362 = vmatprep.subr.mxu0 0.0
      %2363 = vmatpush1.msra.mxu0 0.0
      %2364 = vmatprep.subr.mxu0 0.0
      %2365 = vmatpush1.msra.mxu0 0.0
      %2366 = vmatprep.subr.mxu0 0.0
      %2367 = vmatpush1.msra.mxu0 0.0
      %2368 = vmatprep.mubr.f32.mxu0 0.0
      %2369 = vmatmul.mubr.f32.gmra.mrb[0].mxu0 %v2302
      %v2370 = vpop.f32.mrb[0].mxu0
      %v2371 = vadd.f32 0.0, %v2370
      %v2372 = vpop.f32.mrb[0].mxu0
      %v2373 = vadd.f32 0.0, %v2372
      %2374 = vdwg.mxu0
      %v2375 = vadd.f32 %v2286, %v2371
      %v2376 = vadd.f32 %v2287, %v2373
      %s2377 = scalar_lea.vmem %s3, 64
      %v2378 = vld [vmem:[%s2377] sm:$0xf]
      %2379 = vrot.lane.b32.xlu0 %v1393, 67
      %v2380 = vpop.permute.xlu0 %2379
      %2381 = vrot.lane.b32.xlu0 %v1394, 67
      %v2382 = vpop.permute.xlu0 %2381
      %2383 = vrot.lane.b32.xlu0 %v1395, 67
      %v2384 = vpop.permute.xlu0 %2383
      %vm2385 = vcmask 547840
      %v2386 = vsel %vm2385, %v2380, %v2382
      %v2387 = vsel %vm2385, %v2382, %v2384
      %v2391 = vsel %vm970, %v2378, 0
      %2393 = vmatprep.subr.mxu0 %v2387
      %2394 = vmatpush1.msra.mxu0 %v2386
      %2395 = vmatprep.subr.mxu0 0.0
      %2396 = vmatpush1.msra.mxu0 0.0
      %2397 = vmatprep.subr.mxu0 0.0
      %2398 = vmatpush1.msra.mxu0 0.0
      %2399 = vmatprep.subr.mxu0 0.0
      %2400 = vmatpush1.msra.mxu0 0.0
      %2401 = vmatprep.subr.mxu0 0.0
      %2402 = vmatpush1.msra.mxu0 0.0
      %2403 = vmatprep.subr.mxu0 0.0
      %2404 = vmatpush1.msra.mxu0 0.0
      %2405 = vmatprep.subr.mxu0 0.0
      %2406 = vmatpush1.msra.mxu0 0.0
      %2407 = vmatprep.subr.mxu0 0.0
      %2408 = vmatpush1.msra.mxu0 0.0
      %2409 = vmatprep.subr.mxu0 0.0
      %2410 = vmatpush1.msra.mxu0 0.0
      %2411 = vmatprep.subr.mxu0 0.0
      %2412 = vmatpush1.msra.mxu0 0.0
      %2413 = vmatprep.subr.mxu0 0.0
      %2414 = vmatpush1.msra.mxu0 0.0
      %2415 = vmatprep.subr.mxu0 0.0
      %2416 = vmatpush1.msra.mxu0 0.0
      %2417 = vmatprep.subr.mxu0 0.0
      %2418 = vmatpush1.msra.mxu0 0.0
      %2419 = vmatprep.subr.mxu0 0.0
      %2420 = vmatpush1.msra.mxu0 0.0
      %2421 = vmatprep.subr.mxu0 0.0
      %2422 = vmatpush1.msra.mxu0 0.0
      %2423 = vmatprep.subr.mxu0 0.0
      %2424 = vmatpush1.msra.mxu0 0.0
      %2425 = vmatprep.subr.mxu0 0.0
      %2426 = vmatpush1.msra.mxu0 0.0
      %2427 = vmatprep.subr.mxu0 0.0
      %2428 = vmatpush1.msra.mxu0 0.0
      %2429 = vmatprep.subr.mxu0 0.0
      %2430 = vmatpush1.msra.mxu0 0.0
      %2431 = vmatprep.subr.mxu0 0.0
      %2432 = vmatpush1.msra.mxu0 0.0
      %2433 = vmatprep.subr.mxu0 0.0
      %2434 = vmatpush1.msra.mxu0 0.0
      %2435 = vmatprep.subr.mxu0 0.0
      %2436 = vmatpush1.msra.mxu0 0.0
      %2437 = vmatprep.subr.mxu0 0.0
      %2438 = vmatpush1.msra.mxu0 0.0
      %2439 = vmatprep.subr.mxu0 0.0
      %2440 = vmatpush1.msra.mxu0 0.0
      %2441 = vmatprep.subr.mxu0 0.0
      %2442 = vmatpush1.msra.mxu0 0.0
      %2443 = vmatprep.subr.mxu0 0.0
      %2444 = vmatpush1.msra.mxu0 0.0
      %2445 = vmatprep.subr.mxu0 0.0
      %2446 = vmatpush1.msra.mxu0 0.0
      %2447 = vmatprep.subr.mxu0 0.0
      %2448 = vmatpush1.msra.mxu0 0.0
      %2449 = vmatprep.subr.mxu0 0.0
      %2450 = vmatpush1.msra.mxu0 0.0
      %2451 = vmatprep.subr.mxu0 0.0
      %2452 = vmatpush1.msra.mxu0 0.0
      %2453 = vmatprep.subr.mxu0 0.0
      %2454 = vmatpush1.msra.mxu0 0.0
      %2455 = vmatprep.subr.mxu0 0.0
      %2456 = vmatpush1.msra.mxu0 0.0
      %2457 = vmatprep.mubr.f32.mxu0 0.0
      %2458 = vmatmul.mubr.f32.gmra.mrb[0].mxu0 %v2391
      %v2459 = vpop.f32.mrb[0].mxu0
      %v2460 = vadd.f32 0.0, %v2459
      %v2461 = vpop.f32.mrb[0].mxu0
      %v2462 = vadd.f32 0.0, %v2461
      %2463 = vdwg.mxu0
      %v2464 = vadd.f32 %v2375, %v2460
      %v2465 = vadd.f32 %v2376, %v2462
      %s2466 = scalar_lea.vmem %s3, 68
      %v2467 = vld [vmem:[%s2466] sm:$0xf]
      %2468 = vrot.lane.b32.xlu0 %v1393, 66
      %v2469 = vpop.permute.xlu0 %2468
      %2470 = vrot.lane.b32.xlu0 %v1394, 66
      %v2471 = vpop.permute.xlu0 %2470
      %2472 = vrot.lane.b32.xlu0 %v1395, 66
      %v2473 = vpop.permute.xlu0 %2472
      %vm2474 = vcmask 539648
      %v2475 = vsel %vm2474, %v2469, %v2471
      %v2476 = vsel %vm2474, %v2471, %v2473
      %v2480 = vsel %vm970, %v2467, 0
      %2482 = vmatprep.subr.mxu0 %v2476
      %2483 = vmatpush1.msra.mxu0 %v2475
      %2484 = vmatprep.subr.mxu0 0.0
      %2485 = vmatpush1.msra.mxu0 0.0
      %2486 = vmatprep.subr.mxu0 0.0
      %2487 = vmatpush1.msra.mxu0 0.0
      %2488 = vmatprep.subr.mxu0 0.0
      %2489 = vmatpush1.msra.mxu0 0.0
      %2490 = vmatprep.subr.mxu0 0.0
      %2491 = vmatpush1.msra.mxu0 0.0
      %2492 = vmatprep.subr.mxu0 0.0
      %2493 = vmatpush1.msra.mxu0 0.0
      %2494 = vmatprep.subr.mxu0 0.0
      %2495 = vmatpush1.msra.mxu0 0.0
      %2496 = vmatprep.subr.mxu0 0.0
      %2497 = vmatpush1.msra.mxu0 0.0
      %2498 = vmatprep.subr.mxu0 0.0
      %2499 = vmatpush1.msra.mxu0 0.0
      %2500 = vmatprep.subr.mxu0 0.0
      %2501 = vmatpush1.msra.mxu0 0.0
      %2502 = vmatprep.subr.mxu0 0.0
      %2503 = vmatpush1.msra.mxu0 0.0
      %2504 = vmatprep.subr.mxu0 0.0
      %2505 = vmatpush1.msra.mxu0 0.0
      %2506 = vmatprep.subr.mxu0 0.0
      %2507 = vmatpush1.msra.mxu0 0.0
      %2508 = vmatprep.subr.mxu0 0.0
      %2509 = vmatpush1.msra.mxu0 0.0
      %2510 = vmatprep.subr.mxu0 0.0
      %2511 = vmatpush1.msra.mxu0 0.0
      %2512 = vmatprep.subr.mxu0 0.0
      %2513 = vmatpush1.msra.mxu0 0.0
      %2514 = vmatprep.subr.mxu0 0.0
      %2515 = vmatpush1.msra.mxu0 0.0
      %2516 = vmatprep.subr.mxu0 0.0
      %2517 = vmatpush1.msra.mxu0 0.0
      %2518 = vmatprep.subr.mxu0 0.0
      %2519 = vmatpush1.msra.mxu0 0.0
      %2520 = vmatprep.subr.mxu0 0.0
      %2521 = vmatpush1.msra.mxu0 0.0
      %2522 = vmatprep.subr.mxu0 0.0
      %2523 = vmatpush1.msra.mxu0 0.0
      %2524 = vmatprep.subr.mxu0 0.0
      %2525 = vmatpush1.msra.mxu0 0.0
      %2526 = vmatprep.subr.mxu0 0.0
      %2527 = vmatpush1.msra.mxu0 0.0
      %2528 = vmatprep.subr.mxu0 0.0
      %2529 = vmatpush1.msra.mxu0 0.0
      %2530 = vmatprep.subr.mxu0 0.0
      %2531 = vmatpush1.msra.mxu0 0.0
      %2532 = vmatprep.subr.mxu0 0.0
      %2533 = vmatpush1.msra.mxu0 0.0
      %2534 = vmatprep.subr.mxu0 0.0
      %2535 = vmatpush1.msra.mxu0 0.0
      %2536 = vmatprep.subr.mxu0 0.0
      %2537 = vmatpush1.msra.mxu0 0.0
      %2538 = vmatprep.subr.mxu0 0.0
      %2539 = vmatpush1.msra.mxu0 0.0
      %2540 = vmatprep.subr.mxu0 0.0
      %2541 = vmatpush1.msra.mxu0 0.0
      %2542 = vmatprep.subr.mxu0 0.0
      %2543 = vmatpush1.msra.mxu0 0.0
      %2544 = vmatprep.subr.mxu0 0.0
      %2545 = vmatpush1.msra.mxu0 0.0
      %2546 = vmatprep.mubr.f32.mxu0 0.0
      %2547 = vmatmul.mubr.f32.gmra.mrb[0].mxu0 %v2480
      %v2548 = vpop.f32.mrb[0].mxu0
      %v2549 = vadd.f32 0.0, %v2548
      %v2550 = vpop.f32.mrb[0].mxu0
      %v2551 = vadd.f32 0.0, %v2550
      %2552 = vdwg.mxu0
      %v2553 = vadd.f32 %v2464, %v2549
      %v2554 = vadd.f32 %v2465, %v2551
      %s2555 = scalar_lea.vmem %s3, 72
      %v2556 = vld [vmem:[%s2555] sm:$0xf]
      %2557 = vrot.lane.b32.xlu0 %v1393, 65
      %v2558 = vpop.permute.xlu0 %2557
      %2559 = vrot.lane.b32.xlu0 %v1394, 65
      %v2560 = vpop.permute.xlu0 %2559
      %2561 = vrot.lane.b32.xlu0 %v1395, 65
      %v2562 = vpop.permute.xlu0 %2561
      %vm2563 = vcmask 531456
      %v2564 = vsel %vm2563, %v2558, %v2560
      %v2565 = vsel %vm2563, %v2560, %v2562
      %v2569 = vsel %vm970, %v2556, 0
      %2571 = vmatprep.subr.mxu0 %v2565
      %2572 = vmatpush1.msra.mxu0 %v2564
      %2573 = vmatprep.subr.mxu0 0.0
      %2574 = vmatpush1.msra.mxu0 0.0
      %2575 = vmatprep.subr.mxu0 0.0
      %2576 = vmatpush1.msra.mxu0 0.0
      %2577 = vmatprep.subr.mxu0 0.0
      %2578 = vmatpush1.msra.mxu0 0.0
      %2579 = vmatprep.subr.mxu0 0.0
      %2580 = vmatpush1.msra.mxu0 0.0
      %2581 = vmatprep.subr.mxu0 0.0
      %2582 = vmatpush1.msra.mxu0 0.0
      %2583 = vmatprep.subr.mxu0 0.0
      %2584 = vmatpush1.msra.mxu0 0.0
      %2585 = vmatprep.subr.mxu0 0.0
      %2586 = vmatpush1.msra.mxu0 0.0
      %2587 = vmatprep.subr.mxu0 0.0
      %2588 = vmatpush1.msra.mxu0 0.0
      %2589 = vmatprep.subr.mxu0 0.0
      %2590 = vmatpush1.msra.mxu0 0.0
      %2591 = vmatprep.subr.mxu0 0.0
      %2592 = vmatpush1.msra.mxu0 0.0
      %2593 = vmatprep.subr.mxu0 0.0
      %2594 = vmatpush1.msra.mxu0 0.0
      %2595 = vmatprep.subr.mxu0 0.0
      %2596 = vmatpush1.msra.mxu0 0.0
      %2597 = vmatprep.subr.mxu0 0.0
      %2598 = vmatpush1.msra.mxu0 0.0
      %2599 = vmatprep.subr.mxu0 0.0
      %2600 = vmatpush1.msra.mxu0 0.0
      %2601 = vmatprep.subr.mxu0 0.0
      %2602 = vmatpush1.msra.mxu0 0.0
      %2603 = vmatprep.subr.mxu0 0.0
      %2604 = vmatpush1.msra.mxu0 0.0
      %2605 = vmatprep.subr.mxu0 0.0
      %2606 = vmatpush1.msra.mxu0 0.0
      %2607 = vmatprep.subr.mxu0 0.0
      %2608 = vmatpush1.msra.mxu0 0.0
      %2609 = vmatprep.subr.mxu0 0.0
      %2610 = vmatpush1.msra.mxu0 0.0
      %2611 = vmatprep.subr.mxu0 0.0
      %2612 = vmatpush1.msra.mxu0 0.0
      %2613 = vmatprep.subr.mxu0 0.0
      %2614 = vmatpush1.msra.mxu0 0.0
      %2615 = vmatprep.subr.mxu0 0.0
      %2616 = vmatpush1.msra.mxu0 0.0
      %2617 = vmatprep.subr.mxu0 0.0
      %2618 = vmatpush1.msra.mxu0 0.0
      %2619 = vmatprep.subr.mxu0 0.0
      %2620 = vmatpush1.msra.mxu0 0.0
      %2621 = vmatprep.subr.mxu0 0.0
      %2622 = vmatpush1.msra.mxu0 0.0
      %2623 = vmatprep.subr.mxu0 0.0
      %2624 = vmatpush1.msra.mxu0 0.0
      %2625 = vmatprep.subr.mxu0 0.0
      %2626 = vmatpush1.msra.mxu0 0.0
      %2627 = vmatprep.subr.mxu0 0.0
      %2628 = vmatpush1.msra.mxu0 0.0
      %2629 = vmatprep.subr.mxu0 0.0
      %2630 = vmatpush1.msra.mxu0 0.0
      %2631 = vmatprep.subr.mxu0 0.0
      %2632 = vmatpush1.msra.mxu0 0.0
      %2633 = vmatprep.subr.mxu0 0.0
      %2634 = vmatpush1.msra.mxu0 0.0
      %2635 = vmatprep.mubr.f32.mxu0 0.0
      %2636 = vmatmul.mubr.f32.gmra.mrb[0].mxu0 %v2569
      %v2637 = vpop.f32.mrb[0].mxu0
      %v2638 = vadd.f32 0.0, %v2637
      %v2639 = vpop.f32.mrb[0].mxu0
      %v2640 = vadd.f32 0.0, %v2639
      %2641 = vdwg.mxu0
      %v2642 = vadd.f32 %v2553, %v2638
      %v2643 = vadd.f32 %v2554, %v2640
      %s2644 = scalar_lea.vmem %s3, 76
      %v2645 = vld [vmem:[%s2644] sm:$0xf]
      %2646 = vrot.lane.b32.xlu0 %v1393, 64
      %v2647 = vpop.permute.xlu0 %2646
      %2648 = vrot.lane.b32.xlu0 %v1394, 64
      %v2649 = vpop.permute.xlu0 %2648
      %2650 = vrot.lane.b32.xlu0 %v1395, 64
      %v2651 = vpop.permute.xlu0 %2650
      %vm2652 = vcmask 523264
      %v2653 = vsel %vm2652, %v2647, %v2649
      %v2654 = vsel %vm2652, %v2649, %v2651
      %v2658 = vsel %vm970, %v2645, 0
      %2660 = vmatprep.subr.mxu0 %v2654
      %2661 = vmatpush1.msra.mxu0 %v2653
      %2662 = vmatprep.subr.mxu0 0.0
      %2663 = vmatpush1.msra.mxu0 0.0
      %2664 = vmatprep.subr.mxu0 0.0
      %2665 = vmatpush1.msra.mxu0 0.0
      %2666 = vmatprep.subr.mxu0 0.0
      %2667 = vmatpush1.msra.mxu0 0.0
      %2668 = vmatprep.subr.mxu0 0.0
      %2669 = vmatpush1.msra.mxu0 0.0
      %2670 = vmatprep.subr.mxu0 0.0
      %2671 = vmatpush1.msra.mxu0 0.0
      %2672 = vmatprep.subr.mxu0 0.0
      %2673 = vmatpush1.msra.mxu0 0.0
      %2674 = vmatprep.subr.mxu0 0.0
      %2675 = vmatpush1.msra.mxu0 0.0
      %2676 = vmatprep.subr.mxu0 0.0
      %2677 = vmatpush1.msra.mxu0 0.0
      %2678 = vmatprep.subr.mxu0 0.0
      %2679 = vmatpush1.msra.mxu0 0.0
      %2680 = vmatprep.subr.mxu0 0.0
      %2681 = vmatpush1.msra.mxu0 0.0
      %2682 = vmatprep.subr.mxu0 0.0
      %2683 = vmatpush1.msra.mxu0 0.0
      %2684 = vmatprep.subr.mxu0 0.0
      %2685 = vmatpush1.msra.mxu0 0.0
      %2686 = vmatprep.subr.mxu0 0.0
      %2687 = vmatpush1.msra.mxu0 0.0
      %2688 = vmatprep.subr.mxu0 0.0
      %2689 = vmatpush1.msra.mxu0 0.0
      %2690 = vmatprep.subr.mxu0 0.0
      %2691 = vmatpush1.msra.mxu0 0.0
      %2692 = vmatprep.subr.mxu0 0.0
      %2693 = vmatpush1.msra.mxu0 0.0
      %2694 = vmatprep.subr.mxu0 0.0
      %2695 = vmatpush1.msra.mxu0 0.0
      %2696 = vmatprep.subr.mxu0 0.0
      %2697 = vmatpush1.msra.mxu0 0.0
      %2698 = vmatprep.subr.mxu0 0.0
      %2699 = vmatpush1.msra.mxu0 0.0
      %2700 = vmatprep.subr.mxu0 0.0
      %2701 = vmatpush1.msra.mxu0 0.0
      %2702 = vmatprep.subr.mxu0 0.0
      %2703 = vmatpush1.msra.mxu0 0.0
      %2704 = vmatprep.subr.mxu0 0.0
      %2705 = vmatpush1.msra.mxu0 0.0
      %2706 = vmatprep.subr.mxu0 0.0
      %2707 = vmatpush1.msra.mxu0 0.0
      %2708 = vmatprep.subr.mxu0 0.0
      %2709 = vmatpush1.msra.mxu0 0.0
      %2710 = vmatprep.subr.mxu0 0.0
      %2711 = vmatpush1.msra.mxu0 0.0
      %2712 = vmatprep.subr.mxu0 0.0
      %2713 = vmatpush1.msra.mxu0 0.0
      %2714 = vmatprep.subr.mxu0 0.0
      %2715 = vmatpush1.msra.mxu0 0.0
      %2716 = vmatprep.subr.mxu0 0.0
      %2717 = vmatpush1.msra.mxu0 0.0
      %2718 = vmatprep.subr.mxu0 0.0
      %2719 = vmatpush1.msra.mxu0 0.0
      %2720 = vmatprep.subr.mxu0 0.0
      %2721 = vmatpush1.msra.mxu0 0.0
      %2722 = vmatprep.subr.mxu0 0.0
      %2723 = vmatpush1.msra.mxu0 0.0
      %2724 = vmatprep.mubr.f32.mxu0 0.0
      %2725 = vmatmul.mubr.f32.gmra.mrb[0].mxu0 %v2658
      %v2726 = vpop.f32.mrb[0].mxu0
      %v2727 = vadd.f32 0.0, %v2726
      %v2728 = vpop.f32.mrb[0].mxu0
      %v2729 = vadd.f32 0.0, %v2728
      %2730 = vdwg.mxu0
      %v2731 = vadd.f32 %v2642, %v2727
      %v2732 = vadd.f32 %v2643, %v2729
      %s2733 = scalar_lea.vmem %s3, 80
      %v2734 = vld [vmem:[%s2733] sm:$0xf]
      %2735 = vrot.lane.b32.xlu0 %v1393, 48
      %v2736 = vpop.permute.xlu0 %2735
      %2737 = vrot.lane.b32.xlu0 %v1394, 48
      %v2738 = vpop.permute.xlu0 %2737
      %2739 = vrot.lane.b32.xlu0 %v1395, 48
      %v2740 = vpop.permute.xlu0 %2739
      %v2741 = vsel %vm808, %v2736, %v2738
      %v2742 = vsel %vm808, %v2738, %v2740
      %v2746 = vsel %vm970, %v2734, 0
      %2748 = vmatprep.subr.mxu0 %v2742
      %2749 = vmatpush1.msra.mxu0 %v2741
      %2750 = vmatprep.subr.mxu0 0.0
      %2751 = vmatpush1.msra.mxu0 0.0
      %2752 = vmatprep.subr.mxu0 0.0
      %2753 = vmatpush1.msra.mxu0 0.0
      %2754 = vmatprep.subr.mxu0 0.0
      %2755 = vmatpush1.msra.mxu0 0.0
      %2756 = vmatprep.subr.mxu0 0.0
      %2757 = vmatpush1.msra.mxu0 0.0
      %2758 = vmatprep.subr.mxu0 0.0
      %2759 = vmatpush1.msra.mxu0 0.0
      %2760 = vmatprep.subr.mxu0 0.0
      %2761 = vmatpush1.msra.mxu0 0.0
      %2762 = vmatprep.subr.mxu0 0.0
      %2763 = vmatpush1.msra.mxu0 0.0
      %2764 = vmatprep.subr.mxu0 0.0
      %2765 = vmatpush1.msra.mxu0 0.0
      %2766 = vmatprep.subr.mxu0 0.0
      %2767 = vmatpush1.msra.mxu0 0.0
      %2768 = vmatprep.subr.mxu0 0.0
      %2769 = vmatpush1.msra.mxu0 0.0
      %2770 = vmatprep.subr.mxu0 0.0
      %2771 = vmatpush1.msra.mxu0 0.0
      %2772 = vmatprep.subr.mxu0 0.0
      %2773 = vmatpush1.msra.mxu0 0.0
      %2774 = vmatprep.subr.mxu0 0.0
      %2775 = vmatpush1.msra.mxu0 0.0
      %2776 = vmatprep.subr.mxu0 0.0
      %2777 = vmatpush1.msra.mxu0 0.0
      %2778 = vmatprep.subr.mxu0 0.0
      %2779 = vmatpush1.msra.mxu0 0.0
      %2780 = vmatprep.subr.mxu0 0.0
      %2781 = vmatpush1.msra.mxu0 0.0
      %2782 = vmatprep.subr.mxu0 0.0
      %2783 = vmatpush1.msra.mxu0 0.0
      %2784 = vmatprep.subr.mxu0 0.0
      %2785 = vmatpush1.msra.mxu0 0.0
      %2786 = vmatprep.subr.mxu0 0.0
      %2787 = vmatpush1.msra.mxu0 0.0
      %2788 = vmatprep.subr.mxu0 0.0
      %2789 = vmatpush1.msra.mxu0 0.0
      %2790 = vmatprep.subr.mxu0 0.0
      %2791 = vmatpush1.msra.mxu0 0.0
      %2792 = vmatprep.subr.mxu0 0.0
      %2793 = vmatpush1.msra.mxu0 0.0
      %2794 = vmatprep.subr.mxu0 0.0
      %2795 = vmatpush1.msra.mxu0 0.0
      %2796 = vmatprep.subr.mxu0 0.0
      %2797 = vmatpush1.msra.mxu0 0.0
      %2798 = vmatprep.subr.mxu0 0.0
      %2799 = vmatpush1.msra.mxu0 0.0
      %2800 = vmatprep.subr.mxu0 0.0
      %2801 = vmatpush1.msra.mxu0 0.0
      %2802 = vmatprep.subr.mxu0 0.0
      %2803 = vmatpush1.msra.mxu0 0.0
      %2804 = vmatprep.subr.mxu0 0.0
      %2805 = vmatpush1.msra.mxu0 0.0
      %2806 = vmatprep.subr.mxu0 0.0
      %2807 = vmatpush1.msra.mxu0 0.0
      %2808 = vmatprep.subr.mxu0 0.0
      %2809 = vmatpush1.msra.mxu0 0.0
      %2810 = vmatprep.subr.mxu0 0.0
      %2811 = vmatpush1.msra.mxu0 0.0
      %2812 = vmatprep.mubr.f32.mxu0 0.0
      %2813 = vmatmul.mubr.f32.gmra.mrb[0].mxu0 %v2746
      %v2814 = vpop.f32.mrb[0].mxu0
      %v2815 = vadd.f32 0.0, %v2814
      %v2816 = vpop.f32.mrb[0].mxu0
      %v2817 = vadd.f32 0.0, %v2816
      %2818 = vdwg.mxu0
      %v2819 = vadd.f32 %v2731, %v2815
      %v2820 = vadd.f32 %v2732, %v2817
      %s2821 = scalar_lea.vmem %s3, 84
      %v2822 = vld [vmem:[%s2821] sm:$0xf]
      %2823 = vrot.lane.b32.xlu0 %v1393, 47
      %v2824 = vpop.permute.xlu0 %2823
      %2825 = vrot.lane.b32.xlu0 %v1394, 47
      %v2826 = vpop.permute.xlu0 %2825
      %2827 = vrot.lane.b32.xlu0 %v1395, 47
      %v2828 = vpop.permute.xlu0 %2827
      %vm2829 = vcmask 384000
      %v2830 = vsel %vm2829, %v2824, %v2826
      %v2831 = vsel %vm2829, %v2826, %v2828
      %v2835 = vsel %vm970, %v2822, 0
      %2837 = vmatprep.subr.mxu0 %v2831
      %2838 = vmatpush1.msra.mxu0 %v2830
      %2839 = vmatprep.subr.mxu0 0.0
      %2840 = vmatpush1.msra.mxu0 0.0
      %2841 = vmatprep.subr.mxu0 0.0
      %2842 = vmatpush1.msra.mxu0 0.0
      %2843 = vmatprep.subr.mxu0 0.0
      %2844 = vmatpush1.msra.mxu0 0.0
      %2845 = vmatprep.subr.mxu0 0.0
      %2846 = vmatpush1.msra.mxu0 0.0
      %2847 = vmatprep.subr.mxu0 0.0
      %2848 = vmatpush1.msra.mxu0 0.0
      %2849 = vmatprep.subr.mxu0 0.0
      %2850 = vmatpush1.msra.mxu0 0.0
      %2851 = vmatprep.subr.mxu0 0.0
      %2852 = vmatpush1.msra.mxu0 0.0
      %2853 = vmatprep.subr.mxu0 0.0
      %2854 = vmatpush1.msra.mxu0 0.0
      %2855 = vmatprep.subr.mxu0 0.0
      %2856 = vmatpush1.msra.mxu0 0.0
      %2857 = vmatprep.subr.mxu0 0.0
      %2858 = vmatpush1.msra.mxu0 0.0
      %2859 = vmatprep.subr.mxu0 0.0
      %2860 = vmatpush1.msra.mxu0 0.0
      %2861 = vmatprep.subr.mxu0 0.0
      %2862 = vmatpush1.msra.mxu0 0.0
      %2863 = vmatprep.subr.mxu0 0.0
      %2864 = vmatpush1.msra.mxu0 0.0
      %2865 = vmatprep.subr.mxu0 0.0
      %2866 = vmatpush1.msra.mxu0 0.0
      %2867 = vmatprep.subr.mxu0 0.0
      %2868 = vmatpush1.msra.mxu0 0.0
      %2869 = vmatprep.subr.mxu0 0.0
      %2870 = vmatpush1.msra.mxu0 0.0
      %2871 = vmatprep.subr.mxu0 0.0
      %2872 = vmatpush1.msra.mxu0 0.0
      %2873 = vmatprep.subr.mxu0 0.0
      %2874 = vmatpush1.msra.mxu0 0.0
      %2875 = vmatprep.subr.mxu0 0.0
      %2876 = vmatpush1.msra.mxu0 0.0
      %2877 = vmatprep.subr.mxu0 0.0
      %2878 = vmatpush1.msra.mxu0 0.0
      %2879 = vmatprep.subr.mxu0 0.0
      %2880 = vmatpush1.msra.mxu0 0.0
      %2881 = vmatprep.subr.mxu0 0.0
      %2882 = vmatpush1.msra.mxu0 0.0
      %2883 = vmatprep.subr.mxu0 0.0
      %2884 = vmatpush1.msra.mxu0 0.0
      %2885 = vmatprep.subr.mxu0 0.0
      %2886 = vmatpush1.msra.mxu0 0.0
      %2887 = vmatprep.subr.mxu0 0.0
      %2888 = vmatpush1.msra.mxu0 0.0
      %2889 = vmatprep.subr.mxu0 0.0
      %2890 = vmatpush1.msra.mxu0 0.0
      %2891 = vmatprep.subr.mxu0 0.0
      %2892 = vmatpush1.msra.mxu0 0.0
      %2893 = vmatprep.subr.mxu0 0.0
      %2894 = vmatpush1.msra.mxu0 0.0
      %2895 = vmatprep.subr.mxu0 0.0
      %2896 = vmatpush1.msra.mxu0 0.0
      %2897 = vmatprep.subr.mxu0 0.0
      %2898 = vmatpush1.msra.mxu0 0.0
      %2899 = vmatprep.subr.mxu0 0.0
      %2900 = vmatpush1.msra.mxu0 0.0
      %2901 = vmatprep.mubr.f32.mxu0 0.0
      %2902 = vmatmul.mubr.f32.gmra.mrb[0].mxu0 %v2835
      %v2903 = vpop.f32.mrb[0].mxu0
      %v2904 = vadd.f32 0.0, %v2903
      %v2905 = vpop.f32.mrb[0].mxu0
      %v2906 = vadd.f32 0.0, %v2905
      %2907 = vdwg.mxu0
      %v2908 = vadd.f32 %v2819, %v2904
      %v2909 = vadd.f32 %v2820, %v2906
      %s2910 = scalar_lea.vmem %s3, 88
      %v2911 = vld [vmem:[%s2910] sm:$0xf]
      %2912 = vrot.lane.b32.xlu0 %v1393, 46
      %v2913 = vpop.permute.xlu0 %2912
      %2914 = vrot.lane.b32.xlu0 %v1394, 46
      %v2915 = vpop.permute.xlu0 %2914
      %2916 = vrot.lane.b32.xlu0 %v1395, 46
      %v2917 = vpop.permute.xlu0 %2916
      %vm2918 = vcmask 375808
      %v2919 = vsel %vm2918, %v2913, %v2915
      %v2920 = vsel %vm2918, %v2915, %v2917
      %v2924 = vsel %vm970, %v2911, 0
      %2926 = vmatprep.subr.mxu0 %v2920
      %2927 = vmatpush1.msra.mxu0 %v2919
      %2928 = vmatprep.subr.mxu0 0.0
      %2929 = vmatpush1.msra.mxu0 0.0
      %2930 = vmatprep.subr.mxu0 0.0
      %2931 = vmatpush1.msra.mxu0 0.0
      %2932 = vmatprep.subr.mxu0 0.0
      %2933 = vmatpush1.msra.mxu0 0.0
      %2934 = vmatprep.subr.mxu0 0.0
      %2935 = vmatpush1.msra.mxu0 0.0
      %2936 = vmatprep.subr.mxu0 0.0
      %2937 = vmatpush1.msra.mxu0 0.0
      %2938 = vmatprep.subr.mxu0 0.0
      %2939 = vmatpush1.msra.mxu0 0.0
      %2940 = vmatprep.subr.mxu0 0.0
      %2941 = vmatpush1.msra.mxu0 0.0
      %2942 = vmatprep.subr.mxu0 0.0
      %2943 = vmatpush1.msra.mxu0 0.0
      %2944 = vmatprep.subr.mxu0 0.0
      %2945 = vmatpush1.msra.mxu0 0.0
      %2946 = vmatprep.subr.mxu0 0.0
      %2947 = vmatpush1.msra.mxu0 0.0
      %2948 = vmatprep.subr.mxu0 0.0
      %2949 = vmatpush1.msra.mxu0 0.0
      %2950 = vmatprep.subr.mxu0 0.0
      %2951 = vmatpush1.msra.mxu0 0.0
      %2952 = vmatprep.subr.mxu0 0.0
      %2953 = vmatpush1.msra.mxu0 0.0
      %2954 = vmatprep.subr.mxu0 0.0
      %2955 = vmatpush1.msra.mxu0 0.0
      %2956 = vmatprep.subr.mxu0 0.0
      %2957 = vmatpush1.msra.mxu0 0.0
      %2958 = vmatprep.subr.mxu0 0.0
      %2959 = vmatpush1.msra.mxu0 0.0
      %2960 = vmatprep.subr.mxu0 0.0
      %2961 = vmatpush1.msra.mxu0 0.0
      %2962 = vmatprep.subr.mxu0 0.0
      %2963 = vmatpush1.msra.mxu0 0.0
      %2964 = vmatprep.subr.mxu0 0.0
      %2965 = vmatpush1.msra.mxu0 0.0
      %2966 = vmatprep.subr.mxu0 0.0
      %2967 = vmatpush1.msra.mxu0 0.0
      %2968 = vmatprep.subr.mxu0 0.0
      %2969 = vmatpush1.msra.mxu0 0.0
      %2970 = vmatprep.subr.mxu0 0.0
      %2971 = vmatpush1.msra.mxu0 0.0
      %2972 = vmatprep.subr.mxu0 0.0
      %2973 = vmatpush1.msra.mxu0 0.0
      %2974 = vmatprep.subr.mxu0 0.0
      %2975 = vmatpush1.msra.mxu0 0.0
      %2976 = vmatprep.subr.mxu0 0.0
      %2977 = vmatpush1.msra.mxu0 0.0
      %2978 = vmatprep.subr.mxu0 0.0
      %2979 = vmatpush1.msra.mxu0 0.0
      %2980 = vmatprep.subr.mxu0 0.0
      %2981 = vmatpush1.msra.mxu0 0.0
      %2982 = vmatprep.subr.mxu0 0.0
      %2983 = vmatpush1.msra.mxu0 0.0
      %2984 = vmatprep.subr.mxu0 0.0
      %2985 = vmatpush1.msra.mxu0 0.0
      %2986 = vmatprep.subr.mxu0 0.0
      %2987 = vmatpush1.msra.mxu0 0.0
      %2988 = vmatprep.subr.mxu0 0.0
      %2989 = vmatpush1.msra.mxu0 0.0
      %2990 = vmatprep.mubr.f32.mxu0 0.0
      %2991 = vmatmul.mubr.f32.gmra.mrb[0].mxu0 %v2924
      %v2992 = vpop.f32.mrb[0].mxu0
      %v2993 = vadd.f32 0.0, %v2992
      %v2994 = vpop.f32.mrb[0].mxu0
      %v2995 = vadd.f32 0.0, %v2994
      %2996 = vdwg.mxu0
      %v2997 = vadd.f32 %v2908, %v2993
      %v2998 = vadd.f32 %v2909, %v2995
      %s2999 = scalar_lea.vmem %s3, 92
      %v3000 = vld [vmem:[%s2999] sm:$0xf]
      %3001 = vrot.lane.b32.xlu0 %v1393, 45
      %v3002 = vpop.permute.xlu0 %3001
      %3003 = vrot.lane.b32.xlu0 %v1394, 45
      %v3004 = vpop.permute.xlu0 %3003
      %3005 = vrot.lane.b32.xlu0 %v1395, 45
      %v3006 = vpop.permute.xlu0 %3005
      %vm3007 = vcmask 367616
      %v3008 = vsel %vm3007, %v3002, %v3004
      %v3009 = vsel %vm3007, %v3004, %v3006
      %v3013 = vsel %vm970, %v3000, 0
      %3015 = vmatprep.subr.mxu0 %v3009
      %3016 = vmatpush1.msra.mxu0 %v3008
      %3017 = vmatprep.subr.mxu0 0.0
      %3018 = vmatpush1.msra.mxu0 0.0
      %3019 = vmatprep.subr.mxu0 0.0
      %3020 = vmatpush1.msra.mxu0 0.0
      %3021 = vmatprep.subr.mxu0 0.0
      %3022 = vmatpush1.msra.mxu0 0.0
      %3023 = vmatprep.subr.mxu0 0.0
      %3024 = vmatpush1.msra.mxu0 0.0
      %3025 = vmatprep.subr.mxu0 0.0
      %3026 = vmatpush1.msra.mxu0 0.0
      %3027 = vmatprep.subr.mxu0 0.0
      %3028 = vmatpush1.msra.mxu0 0.0
      %3029 = vmatprep.subr.mxu0 0.0
      %3030 = vmatpush1.msra.mxu0 0.0
      %3031 = vmatprep.subr.mxu0 0.0
      %3032 = vmatpush1.msra.mxu0 0.0
      %3033 = vmatprep.subr.mxu0 0.0
      %3034 = vmatpush1.msra.mxu0 0.0
      %3035 = vmatprep.subr.mxu0 0.0
      %3036 = vmatpush1.msra.mxu0 0.0
      %3037 = vmatprep.subr.mxu0 0.0
      %3038 = vmatpush1.msra.mxu0 0.0
      %3039 = vmatprep.subr.mxu0 0.0
      %3040 = vmatpush1.msra.mxu0 0.0
      %3041 = vmatprep.subr.mxu0 0.0
      %3042 = vmatpush1.msra.mxu0 0.0
      %3043 = vmatprep.subr.mxu0 0.0
      %3044 = vmatpush1.msra.mxu0 0.0
      %3045 = vmatprep.subr.mxu0 0.0
      %3046 = vmatpush1.msra.mxu0 0.0
      %3047 = vmatprep.subr.mxu0 0.0
      %3048 = vmatpush1.msra.mxu0 0.0
      %3049 = vmatprep.subr.mxu0 0.0
      %3050 = vmatpush1.msra.mxu0 0.0
      %3051 = vmatprep.subr.mxu0 0.0
      %3052 = vmatpush1.msra.mxu0 0.0
      %3053 = vmatprep.subr.mxu0 0.0
      %3054 = vmatpush1.msra.mxu0 0.0
      %3055 = vmatprep.subr.mxu0 0.0
      %3056 = vmatpush1.msra.mxu0 0.0
      %3057 = vmatprep.subr.mxu0 0.0
      %3058 = vmatpush1.msra.mxu0 0.0
      %3059 = vmatprep.subr.mxu0 0.0
      %3060 = vmatpush1.msra.mxu0 0.0
      %3061 = vmatprep.subr.mxu0 0.0
      %3062 = vmatpush1.msra.mxu0 0.0
      %3063 = vmatprep.subr.mxu0 0.0
      %3064 = vmatpush1.msra.mxu0 0.0
      %3065 = vmatprep.subr.mxu0 0.0
      %3066 = vmatpush1.msra.mxu0 0.0
      %3067 = vmatprep.subr.mxu0 0.0
      %3068 = vmatpush1.msra.mxu0 0.0
      %3069 = vmatprep.subr.mxu0 0.0
      %3070 = vmatpush1.msra.mxu0 0.0
      %3071 = vmatprep.subr.mxu0 0.0
      %3072 = vmatpush1.msra.mxu0 0.0
      %3073 = vmatprep.subr.mxu0 0.0
      %3074 = vmatpush1.msra.mxu0 0.0
      %3075 = vmatprep.subr.mxu0 0.0
      %3076 = vmatpush1.msra.mxu0 0.0
      %3077 = vmatprep.subr.mxu0 0.0
      %3078 = vmatpush1.msra.mxu0 0.0
      %3079 = vmatprep.mubr.f32.mxu0 0.0
      %3080 = vmatmul.mubr.f32.gmra.mrb[0].mxu0 %v3013
      %v3081 = vpop.f32.mrb[0].mxu0
      %v3082 = vadd.f32 0.0, %v3081
      %v3083 = vpop.f32.mrb[0].mxu0
      %v3084 = vadd.f32 0.0, %v3083
      %3085 = vdwg.mxu0
      %v3086 = vadd.f32 %v2997, %v3082
      %v3087 = vadd.f32 %v2998, %v3084
      %s3088 = scalar_lea.vmem %s3, 96
      %v3089 = vld [vmem:[%s3088] sm:$0xf]
      %3090 = vrot.lane.b32.xlu0 %v1393, 44
      %v3091 = vpop.permute.xlu0 %3090
      %3092 = vrot.lane.b32.xlu0 %v1394, 44
      %v3093 = vpop.permute.xlu0 %3092
      %3094 = vrot.lane.b32.xlu0 %v1395, 44
      %v3095 = vpop.permute.xlu0 %3094
      %vm3096 = vcmask 359424
      %v3097 = vsel %vm3096, %v3091, %v3093
      %v3098 = vsel %vm3096, %v3093, %v3095
      %v3102 = vsel %vm970, %v3089, 0
      %3104 = vmatprep.subr.mxu0 %v3098
      %3105 = vmatpush1.msra.mxu0 %v3097
      %3106 = vmatprep.subr.mxu0 0.0
      %3107 = vmatpush1.msra.mxu0 0.0
      %3108 = vmatprep.subr.mxu0 0.0
      %3109 = vmatpush1.msra.mxu0 0.0
      %3110 = vmatprep.subr.mxu0 0.0
      %3111 = vmatpush1.msra.mxu0 0.0
      %3112 = vmatprep.subr.mxu0 0.0
      %3113 = vmatpush1.msra.mxu0 0.0
      %3114 = vmatprep.subr.mxu0 0.0
      %3115 = vmatpush1.msra.mxu0 0.0
      %3116 = vmatprep.subr.mxu0 0.0
      %3117 = vmatpush1.msra.mxu0 0.0
      %3118 = vmatprep.subr.mxu0 0.0
      %3119 = vmatpush1.msra.mxu0 0.0
      %3120 = vmatprep.subr.mxu0 0.0
      %3121 = vmatpush1.msra.mxu0 0.0
      %3122 = vmatprep.subr.mxu0 0.0
      %3123 = vmatpush1.msra.mxu0 0.0
      %3124 = vmatprep.subr.mxu0 0.0
      %3125 = vmatpush1.msra.mxu0 0.0
      %3126 = vmatprep.subr.mxu0 0.0
      %3127 = vmatpush1.msra.mxu0 0.0
      %3128 = vmatprep.subr.mxu0 0.0
      %3129 = vmatpush1.msra.mxu0 0.0
      %3130 = vmatprep.subr.mxu0 0.0
      %3131 = vmatpush1.msra.mxu0 0.0
      %3132 = vmatprep.subr.mxu0 0.0
      %3133 = vmatpush1.msra.mxu0 0.0
      %3134 = vmatprep.subr.mxu0 0.0
      %3135 = vmatpush1.msra.mxu0 0.0
      %3136 = vmatprep.subr.mxu0 0.0
      %3137 = vmatpush1.msra.mxu0 0.0
      %3138 = vmatprep.subr.mxu0 0.0
      %3139 = vmatpush1.msra.mxu0 0.0
      %3140 = vmatprep.subr.mxu0 0.0
      %3141 = vmatpush1.msra.mxu0 0.0
      %3142 = vmatprep.subr.mxu0 0.0
      %3143 = vmatpush1.msra.mxu0 0.0
      %3144 = vmatprep.subr.mxu0 0.0
      %3145 = vmatpush1.msra.mxu0 0.0
      %3146 = vmatprep.subr.mxu0 0.0
      %3147 = vmatpush1.msra.mxu0 0.0
      %3148 = vmatprep.subr.mxu0 0.0
      %3149 = vmatpush1.msra.mxu0 0.0
      %3150 = vmatprep.subr.mxu0 0.0
      %3151 = vmatpush1.msra.mxu0 0.0
      %3152 = vmatprep.subr.mxu0 0.0
      %3153 = vmatpush1.msra.mxu0 0.0
      %3154 = vmatprep.subr.mxu0 0.0
      %3155 = vmatpush1.msra.mxu0 0.0
      %3156 = vmatprep.subr.mxu0 0.0
      %3157 = vmatpush1.msra.mxu0 0.0
      %3158 = vmatprep.subr.mxu0 0.0
      %3159 = vmatpush1.msra.mxu0 0.0
      %3160 = vmatprep.subr.mxu0 0.0
      %3161 = vmatpush1.msra.mxu0 0.0
      %3162 = vmatprep.subr.mxu0 0.0
      %3163 = vmatpush1.msra.mxu0 0.0
      %3164 = vmatprep.subr.mxu0 0.0
      %3165 = vmatpush1.msra.mxu0 0.0
      %3166 = vmatprep.subr.mxu0 0.0
      %3167 = vmatpush1.msra.mxu0 0.0
      %3168 = vmatprep.mubr.f32.mxu0 0.0
      %3169 = vmatmul.mubr.f32.gmra.mrb[0].mxu0 %v3102
      %v3170 = vpop.f32.mrb[0].mxu0
      %v3171 = vadd.f32 0.0, %v3170
      %v3172 = vpop.f32.mrb[0].mxu0
      %v3173 = vadd.f32 0.0, %v3172
      %3174 = vdwg.mxu0
      %v3175 = vadd.f32 %v3086, %v3171
      %v3176 = vadd.f32 %v3087, %v3173
      %v3177 = vmax.f32 %v3175, 0.0
      %v3178 = vmax.f32 %v3176, 0.0
      %v3179 = vld [vmem:[%s7] sm:$0x3]
      %v3181 = vlaneseq
      %v3182 = vshrl.u32 %v3181, 7
      %v3183 = vsub.s32 0, %v3182
      %v3184 = vrot.slane %v3179, %v3183
      %v3185 = vlaneseq
      %v3186 = vshrl.u32 %v3185, 7
      %v3187 = vsub.s32 1, %v3186
      %v3188 = vrot.slane %v3179, %v3187
      %v3191 = vmul.f32 %v3177, %v3184
      %v3192 = vmul.f32 %v3178, %v3188
      %v3195 = vcombine.low %v3191, %v3192
      %3196 = vrot.lane.b32.xlu0 %v3195, 84
      %v3197 = vpop.permute.xlu0 %3196
      %v3198 = vrot.slane %v3197, 4
      %v3199 = vsel %vm288, %v3198, %v3197
      %vm3202 = vcmask 1044128
      %vm3203 = vcmask 1047556
      %vm3204 = vmor %vm3203, %vm3202
      %3205 = vst.msk [vmem:[#allocation3] sm:$0xff] %vm3204, %v3199
      %vm3206 = vcmask 551936
      %3207 = vst.msk [vmem:[#allocation3 + $0x8] sm:$0xf] %vm3206, %v3198
      %v3208 = vld [vmem:[#allocation4] sm:$0x1]
      %3210 = vset.pattern.permute.xlu0 0
      %3211 = vperm.xlu0 %3210, %v3208
      %v3212 = vpop.permute.xlu0 %3211
      %v3214 = vlaneseq
      %v3215 = vshrl.u32 %v3214, 7
      %v3216 = vsub.s32 0, %v3215
      %v3217 = vrot.slane %v3212, %v3216
      %v3218 = vld [vmem:[#allocation3] sm:$0xff]
      %v3219 = vld [vmem:[#allocation3 + $0x8] sm:$0xf]
      %v3220 = vld [vmem:[%s5] sm:$0x1]
      %v3223 = vcombine.high %v3218, %v3218
      %vm3224 = vcmask 31744
      %v3226 = vsel %vm3224, %v3220, 0
      %v3228 = vsel %vm291, %v3218, 0
      %v3230 = vsel %vm291, %v3223, 0
      %v3232 = vsel %vm291, %v3219, 0
      %3234 = vmatprep.subr.mxu0 %v3230
      %3235 = vmatpush1.msra.mxu0 %v3228
      %3236 = vmatprep.subr.mxu0 0.0
      %3237 = vmatpush1.msra.mxu0 0.0
      %3238 = vmatprep.subr.mxu0 0.0
      %3239 = vmatpush1.msra.mxu0 0.0
      %3240 = vmatprep.subr.mxu0 0.0
      %3241 = vmatpush1.msra.mxu0 0.0
      %3242 = vmatprep.subr.mxu0 0.0
      %3243 = vmatpush1.msra.mxu0 0.0
      %3244 = vmatprep.subr.mxu0 0.0
      %3245 = vmatpush1.msra.mxu0 0.0
      %3246 = vmatprep.subr.mxu0 0.0
      %3247 = vmatpush1.msra.mxu0 0.0
      %3248 = vmatprep.subr.mxu0 0.0
      %3249 = vmatpush1.msra.mxu0 0.0
      %3250 = vmatprep.subr.mxu0 0.0
      %3251 = vmatpush1.msra.mxu0 0.0
      %3252 = vmatprep.subr.mxu0 0.0
      %3253 = vmatpush1.msra.mxu0 0.0
      %3254 = vmatprep.subr.mxu0 0.0
      %3255 = vmatpush1.msra.mxu0 0.0
      %3256 = vmatprep.subr.mxu0 0.0
      %3257 = vmatpush1.msra.mxu0 0.0
      %3258 = vmatprep.subr.mxu0 0.0
      %3259 = vmatpush1.msra.mxu0 0.0
      %3260 = vmatprep.subr.mxu0 0.0
      %3261 = vmatpush1.msra.mxu0 0.0
      %3262 = vmatprep.subr.mxu0 0.0
      %3263 = vmatpush1.msra.mxu0 0.0
      %3264 = vmatprep.subr.mxu0 0.0
      %3265 = vmatpush1.msra.mxu0 0.0
      %3266 = vmatprep.subr.mxu0 0.0
      %3267 = vmatpush1.msra.mxu0 0.0
      %3268 = vmatprep.subr.mxu0 0.0
      %3269 = vmatpush1.msra.mxu0 0.0
      %3270 = vmatprep.subr.mxu0 0.0
      %3271 = vmatpush1.msra.mxu0 0.0
      %3272 = vmatprep.subr.mxu0 0.0
      %3273 = vmatpush1.msra.mxu0 0.0
      %3274 = vmatprep.subr.mxu0 0.0
      %3275 = vmatpush1.msra.mxu0 0.0
      %3276 = vmatprep.subr.mxu0 0.0
      %3277 = vmatpush1.msra.mxu0 0.0
      %3278 = vmatprep.subr.mxu0 0.0
      %3279 = vmatpush1.msra.mxu0 0.0
      %3280 = vmatprep.subr.mxu0 0.0
      %3281 = vmatpush1.msra.mxu0 0.0
      %3282 = vmatprep.subr.mxu0 0.0
      %3283 = vmatpush1.msra.mxu0 0.0
      %3284 = vmatprep.subr.mxu0 0.0
      %3285 = vmatpush1.msra.mxu0 0.0
      %3286 = vmatprep.subr.mxu0 0.0
      %3287 = vmatpush1.msra.mxu0 0.0
      %3288 = vmatprep.subr.mxu0 0.0
      %3289 = vmatpush1.msra.mxu0 0.0
      %3290 = vmatprep.subr.mxu0 0.0
      %3291 = vmatpush1.msra.mxu0 0.0
      %3292 = vmatprep.subr.mxu0 0.0
      %3293 = vmatpush1.msra.mxu0 0.0
      %3294 = vmatprep.subr.mxu0 0.0
      %3295 = vmatpush1.msra.mxu0 0.0
      %3296 = vmatprep.subr.mxu0 0.0
      %3297 = vmatpush1.msra.mxu0 0.0
      %3298 = vmatprep.mubr.f32.mxu0 0.0
      %3299 = vmatmul.mubr.f32.gmra.mrb[0].mxu0 %v3226
      %v3300 = vpop.f32.mrb[0].mxu0
      %v3301 = vadd.f32 0.0, %v3300
      %v3302 = vpop.f32.mrb[0].mxu0
      %v3303 = vadd.f32 0.0, %v3302
      %3304 = vdwg.mxu0
      %3305 = vmatprep.subr.mxu0 0.0
      %3306 = vmatpush1.msra.mxu0 %v3232
      %3307 = vmatprep.subr.mxu0 0.0
      %3308 = vmatpush1.msra.mxu0 0.0
      %3309 = vmatprep.subr.mxu0 0.0
      %3310 = vmatpush1.msra.mxu0 0.0
      %3311 = vmatprep.subr.mxu0 0.0
      %3312 = vmatpush1.msra.mxu0 0.0
      %3313 = vmatprep.subr.mxu0 0.0
      %3314 = vmatpush1.msra.mxu0 0.0
      %3315 = vmatprep.subr.mxu0 0.0
      %3316 = vmatpush1.msra.mxu0 0.0
      %3317 = vmatprep.subr.mxu0 0.0
      %3318 = vmatpush1.msra.mxu0 0.0
      %3319 = vmatprep.subr.mxu0 0.0
      %3320 = vmatpush1.msra.mxu0 0.0
      %3321 = vmatprep.subr.mxu0 0.0
      %3322 = vmatpush1.msra.mxu0 0.0
      %3323 = vmatprep.subr.mxu0 0.0
      %3324 = vmatpush1.msra.mxu0 0.0
      %3325 = vmatprep.subr.mxu0 0.0
      %3326 = vmatpush1.msra.mxu0 0.0
      %3327 = vmatprep.subr.mxu0 0.0
      %3328 = vmatpush1.msra.mxu0 0.0
      %3329 = vmatprep.subr.mxu0 0.0
      %3330 = vmatpush1.msra.mxu0 0.0
      %3331 = vmatprep.subr.mxu0 0.0
      %3332 = vmatpush1.msra.mxu0 0.0
      %3333 = vmatprep.subr.mxu0 0.0
      %3334 = vmatpush1.msra.mxu0 0.0
      %3335 = vmatprep.subr.mxu0 0.0
      %3336 = vmatpush1.msra.mxu0 0.0
      %3337 = vmatprep.subr.mxu0 0.0
      %3338 = vmatpush1.msra.mxu0 0.0
      %3339 = vmatprep.subr.mxu0 0.0
      %3340 = vmatpush1.msra.mxu0 0.0
      %3341 = vmatprep.subr.mxu0 0.0
      %3342 = vmatpush1.msra.mxu0 0.0
      %3343 = vmatprep.subr.mxu0 0.0
      %3344 = vmatpush1.msra.mxu0 0.0
      %3345 = vmatprep.subr.mxu0 0.0
      %3346 = vmatpush1.msra.mxu0 0.0
      %3347 = vmatprep.subr.mxu0 0.0
      %3348 = vmatpush1.msra.mxu0 0.0
      %3349 = vmatprep.subr.mxu0 0.0
      %3350 = vmatpush1.msra.mxu0 0.0
      %3351 = vmatprep.subr.mxu0 0.0
      %3352 = vmatpush1.msra.mxu0 0.0
      %3353 = vmatprep.subr.mxu0 0.0
      %3354 = vmatpush1.msra.mxu0 0.0
      %3355 = vmatprep.subr.mxu0 0.0
      %3356 = vmatpush1.msra.mxu0 0.0
      %3357 = vmatprep.subr.mxu0 0.0
      %3358 = vmatpush1.msra.mxu0 0.0
      %3359 = vmatprep.subr.mxu0 0.0
      %3360 = vmatpush1.msra.mxu0 0.0
      %3361 = vmatprep.subr.mxu0 0.0
      %3362 = vmatpush1.msra.mxu0 0.0
      %3363 = vmatprep.subr.mxu0 0.0
      %3364 = vmatpush1.msra.mxu0 0.0
      %3365 = vmatprep.subr.mxu0 0.0
      %3366 = vmatpush1.msra.mxu0 0.0
      %3367 = vmatprep.subr.mxu0 0.0
      %3368 = vmatpush1.msra.mxu0 0.0
      %3369 = vmatprep.mubr.f32.mxu0 0.0
      %3370 = vmatmul.mubr.f32.gmra.mrb[0].mxu0 %v3226
      %v3371 = vpop.f32.mrb[0].mxu0
      %v3372 = vadd.f32 0.0, %v3371
      %v3373 = vpop.f32.mrb[0].mxu0
      %3374 = vdwg.mxu0
      %v3375 = vadd.f32 %v3217, %v3301
      %v3376 = vadd.f32 %v3217, %v3303
      %v3377 = vadd.f32 %v3217, %v3372
      %v3378 = vld [vmem:[#allocation3] sm:$0xff]
      %v3379 = vld [vmem:[#allocation3 + $0x8] sm:$0xf]
      %s3380 = scalar_lea.vmem %s5, 1
      %v3381 = vld [vmem:[%s3380] sm:$0x1]
      %v3384 = vcombine.high %v3378, %v3378
      %3385 = vrot.lane.b32.xlu0 %v3378, 127
      %v3386 = vpop.permute.xlu0 %3385
      %3387 = vrot.lane.b32.xlu0 %v3384, 127
      %v3388 = vpop.permute.xlu0 %3387
      %3389 = vrot.lane.b32.xlu0 %v3379, 127
      %v3390 = vpop.permute.xlu0 %3389
      %v3391 = vsel %vm1055, %v3386, %v3388
      %v3392 = vsel %vm1055, %v3388, %v3390
      %v3394 = vsel %vm3224, %v3381, 0
      %v3396 = vsel %vm291, %v3391, 0
      %v3398 = vsel %vm291, %v3392, 0
      %v3400 = vsel %vm291, %v3390, 0
      %3402 = vmatprep.subr.mxu0 %v3398
      %3403 = vmatpush1.msra.mxu0 %v3396
      %3404 = vmatprep.subr.mxu0 0.0
      %3405 = vmatpush1.msra.mxu0 0.0
      %3406 = vmatprep.subr.mxu0 0.0
      %3407 = vmatpush1.msra.mxu0 0.0
      %3408 = vmatprep.subr.mxu0 0.0
      %3409 = vmatpush1.msra.mxu0 0.0
      %3410 = vmatprep.subr.mxu0 0.0
      %3411 = vmatpush1.msra.mxu0 0.0
      %3412 = vmatprep.subr.mxu0 0.0
      %3413 = vmatpush1.msra.mxu0 0.0
      %3414 = vmatprep.subr.mxu0 0.0
      %3415 = vmatpush1.msra.mxu0 0.0
      %3416 = vmatprep.subr.mxu0 0.0
      %3417 = vmatpush1.msra.mxu0 0.0
      %3418 = vmatprep.subr.mxu0 0.0
      %3419 = vmatpush1.msra.mxu0 0.0
      %3420 = vmatprep.subr.mxu0 0.0
      %3421 = vmatpush1.msra.mxu0 0.0
      %3422 = vmatprep.subr.mxu0 0.0
      %3423 = vmatpush1.msra.mxu0 0.0
      %3424 = vmatprep.subr.mxu0 0.0
      %3425 = vmatpush1.msra.mxu0 0.0
      %3426 = vmatprep.subr.mxu0 0.0
      %3427 = vmatpush1.msra.mxu0 0.0
      %3428 = vmatprep.subr.mxu0 0.0
      %3429 = vmatpush1.msra.mxu0 0.0
      %3430 = vmatprep.subr.mxu0 0.0
      %3431 = vmatpush1.msra.mxu0 0.0
      %3432 = vmatprep.subr.mxu0 0.0
      %3433 = vmatpush1.msra.mxu0 0.0
      %3434 = vmatprep.subr.mxu0 0.0
      %3435 = vmatpush1.msra.mxu0 0.0
      %3436 = vmatprep.subr.mxu0 0.0
      %3437 = vmatpush1.msra.mxu0 0.0
      %3438 = vmatprep.subr.mxu0 0.0
      %3439 = vmatpush1.msra.mxu0 0.0
      %3440 = vmatprep.subr.mxu0 0.0
      %3441 = vmatpush1.msra.mxu0 0.0
      %3442 = vmatprep.subr.mxu0 0.0
      %3443 = vmatpush1.msra.mxu0 0.0
      %3444 = vmatprep.subr.mxu0 0.0
      %3445 = vmatpush1.msra.mxu0 0.0
      %3446 = vmatprep.subr.mxu0 0.0
      %3447 = vmatpush1.msra.mxu0 0.0
      %3448 = vmatprep.subr.mxu0 0.0
      %3449 = vmatpush1.msra.mxu0 0.0
      %3450 = vmatprep.subr.mxu0 0.0
      %3451 = vmatpush1.msra.mxu0 0.0
      %3452 = vmatprep.subr.mxu0 0.0
      %3453 = vmatpush1.msra.mxu0 0.0
      %3454 = vmatprep.subr.mxu0 0.0
      %3455 = vmatpush1.msra.mxu0 0.0
      %3456 = vmatprep.subr.mxu0 0.0
      %3457 = vmatpush1.msra.mxu0 0.0
      %3458 = vmatprep.subr.mxu0 0.0
      %3459 = vmatpush1.msra.mxu0 0.0
      %3460 = vmatprep.subr.mxu0 0.0
      %3461 = vmatpush1.msra.mxu0 0.0
      %3462 = vmatprep.subr.mxu0 0.0
      %3463 = vmatpush1.msra.mxu0 0.0
      %3464 = vmatprep.subr.mxu0 0.0
      %3465 = vmatpush1.msra.mxu0 0.0
      %3466 = vmatprep.mubr.f32.mxu0 0.0
      %3467 = vmatmul.mubr.f32.gmra.mrb[0].mxu0 %v3394
      %v3468 = vpop.f32.mrb[0].mxu0
      %v3469 = vadd.f32 0.0, %v3468
      %v3470 = vpop.f32.mrb[0].mxu0
      %v3471 = vadd.f32 0.0, %v3470
      %3472 = vdwg.mxu0
      %3473 = vmatprep.subr.mxu0 0.0
      %3474 = vmatpush1.msra.mxu0 %v3400
      %3475 = vmatprep.subr.mxu0 0.0
      %3476 = vmatpush1.msra.mxu0 0.0
      %3477 = vmatprep.subr.mxu0 0.0
      %3478 = vmatpush1.msra.mxu0 0.0
      %3479 = vmatprep.subr.mxu0 0.0
      %3480 = vmatpush1.msra.mxu0 0.0
      %3481 = vmatprep.subr.mxu0 0.0
      %3482 = vmatpush1.msra.mxu0 0.0
      %3483 = vmatprep.subr.mxu0 0.0
      %3484 = vmatpush1.msra.mxu0 0.0
      %3485 = vmatprep.subr.mxu0 0.0
      %3486 = vmatpush1.msra.mxu0 0.0
      %3487 = vmatprep.subr.mxu0 0.0
      %3488 = vmatpush1.msra.mxu0 0.0
      %3489 = vmatprep.subr.mxu0 0.0
      %3490 = vmatpush1.msra.mxu0 0.0
      %3491 = vmatprep.subr.mxu0 0.0
      %3492 = vmatpush1.msra.mxu0 0.0
      %3493 = vmatprep.subr.mxu0 0.0
      %3494 = vmatpush1.msra.mxu0 0.0
      %3495 = vmatprep.subr.mxu0 0.0
      %3496 = vmatpush1.msra.mxu0 0.0
      %3497 = vmatprep.subr.mxu0 0.0
      %3498 = vmatpush1.msra.mxu0 0.0
      %3499 = vmatprep.subr.mxu0 0.0
      %3500 = vmatpush1.msra.mxu0 0.0
      %3501 = vmatprep.subr.mxu0 0.0
      %3502 = vmatpush1.msra.mxu0 0.0
      %3503 = vmatprep.subr.mxu0 0.0
      %3504 = vmatpush1.msra.mxu0 0.0
      %3505 = vmatprep.subr.mxu0 0.0
      %3506 = vmatpush1.msra.mxu0 0.0
      %3507 = vmatprep.subr.mxu0 0.0
      %3508 = vmatpush1.msra.mxu0 0.0
      %3509 = vmatprep.subr.mxu0 0.0
      %3510 = vmatpush1.msra.mxu0 0.0
      %3511 = vmatprep.subr.mxu0 0.0
      %3512 = vmatpush1.msra.mxu0 0.0
      %3513 = vmatprep.subr.mxu0 0.0
      %3514 = vmatpush1.msra.mxu0 0.0
      %3515 = vmatprep.subr.mxu0 0.0
      %3516 = vmatpush1.msra.mxu0 0.0
      %3517 = vmatprep.subr.mxu0 0.0
      %3518 = vmatpush1.msra.mxu0 0.0
      %3519 = vmatprep.subr.mxu0 0.0
      %3520 = vmatpush1.msra.mxu0 0.0
      %3521 = vmatprep.subr.mxu0 0.0
      %3522 = vmatpush1.msra.mxu0 0.0
      %3523 = vmatprep.subr.mxu0 0.0
      %3524 = vmatpush1.msra.mxu0 0.0
      %3525 = vmatprep.subr.mxu0 0.0
      %3526 = vmatpush1.msra.mxu0 0.0
      %3527 = vmatprep.subr.mxu0 0.0
      %3528 = vmatpush1.msra.mxu0 0.0
      %3529 = vmatprep.subr.mxu0 0.0
      %3530 = vmatpush1.msra.mxu0 0.0
      %3531 = vmatprep.subr.mxu0 0.0
      %3532 = vmatpush1.msra.mxu0 0.0
      %3533 = vmatprep.subr.mxu0 0.0
      %3534 = vmatpush1.msra.mxu0 0.0
      %3535 = vmatprep.subr.mxu0 0.0
      %3536 = vmatpush1.msra.mxu0 0.0
      %3537 = vmatprep.mubr.f32.mxu0 0.0
      %3538 = vmatmul.mubr.f32.gmra.mrb[0].mxu0 %v3394
      %v3539 = vpop.f32.mrb[0].mxu0
      %v3540 = vadd.f32 0.0, %v3539
      %v3541 = vpop.f32.mrb[0].mxu0
      %3542 = vdwg.mxu0
      %v3543 = vadd.f32 %v3375, %v3469
      %v3544 = vadd.f32 %v3376, %v3471
      %v3545 = vadd.f32 %v3377, %v3540
      %v3546 = vld [vmem:[#allocation3] sm:$0xff]
      %v3547 = vld [vmem:[#allocation3 + $0x8] sm:$0xf]
      %s3548 = scalar_lea.vmem %s5, 2
      %v3549 = vld [vmem:[%s3548] sm:$0x1]
      %v3552 = vcombine.high %v3546, %v3546
      %3553 = vrot.lane.b32.xlu0 %v3546, 126
      %v3554 = vpop.permute.xlu0 %3553
      %3555 = vrot.lane.b32.xlu0 %v3552, 126
      %v3556 = vpop.permute.xlu0 %3555
      %3557 = vrot.lane.b32.xlu0 %v3547, 126
      %v3558 = vpop.permute.xlu0 %3557
      %v3559 = vsel %vm1141, %v3554, %v3556
      %v3560 = vsel %vm1141, %v3556, %v3558
      %v3562 = vsel %vm3224, %v3549, 0
      %v3564 = vsel %vm291, %v3559, 0
      %v3566 = vsel %vm291, %v3560, 0
      %v3568 = vsel %vm291, %v3558, 0
      %3570 = vmatprep.subr.mxu0 %v3566
      %3571 = vmatpush1.msra.mxu0 %v3564
      %3572 = vmatprep.subr.mxu0 0.0
      %3573 = vmatpush1.msra.mxu0 0.0
      %3574 = vmatprep.subr.mxu0 0.0
      %3575 = vmatpush1.msra.mxu0 0.0
      %3576 = vmatprep.subr.mxu0 0.0
      %3577 = vmatpush1.msra.mxu0 0.0
      %3578 = vmatprep.subr.mxu0 0.0
      %3579 = vmatpush1.msra.mxu0 0.0
      %3580 = vmatprep.subr.mxu0 0.0
      %3581 = vmatpush1.msra.mxu0 0.0
      %3582 = vmatprep.subr.mxu0 0.0
      %3583 = vmatpush1.msra.mxu0 0.0
      %3584 = vmatprep.subr.mxu0 0.0
      %3585 = vmatpush1.msra.mxu0 0.0
      %3586 = vmatprep.subr.mxu0 0.0
      %3587 = vmatpush1.msra.mxu0 0.0
      %3588 = vmatprep.subr.mxu0 0.0
      %3589 = vmatpush1.msra.mxu0 0.0
      %3590 = vmatprep.subr.mxu0 0.0
      %3591 = vmatpush1.msra.mxu0 0.0
      %3592 = vmatprep.subr.mxu0 0.0
      %3593 = vmatpush1.msra.mxu0 0.0
      %3594 = vmatprep.subr.mxu0 0.0
      %3595 = vmatpush1.msra.mxu0 0.0
      %3596 = vmatprep.subr.mxu0 0.0
      %3597 = vmatpush1.msra.mxu0 0.0
      %3598 = vmatprep.subr.mxu0 0.0
      %3599 = vmatpush1.msra.mxu0 0.0
      %3600 = vmatprep.subr.mxu0 0.0
      %3601 = vmatpush1.msra.mxu0 0.0
      %3602 = vmatprep.subr.mxu0 0.0
      %3603 = vmatpush1.msra.mxu0 0.0
      %3604 = vmatprep.subr.mxu0 0.0
      %3605 = vmatpush1.msra.mxu0 0.0
      %3606 = vmatprep.subr.mxu0 0.0
      %3607 = vmatpush1.msra.mxu0 0.0
      %3608 = vmatprep.subr.mxu0 0.0
      %3609 = vmatpush1.msra.mxu0 0.0
      %3610 = vmatprep.subr.mxu0 0.0
      %3611 = vmatpush1.msra.mxu0 0.0
      %3612 = vmatprep.subr.mxu0 0.0
      %3613 = vmatpush1.msra.mxu0 0.0
      %3614 = vmatprep.subr.mxu0 0.0
      %3615 = vmatpush1.msra.mxu0 0.0
      %3616 = vmatprep.subr.mxu0 0.0
      %3617 = vmatpush1.msra.mxu0 0.0
      %3618 = vmatprep.subr.mxu0 0.0
      %3619 = vmatpush1.msra.mxu0 0.0
      %3620 = vmatprep.subr.mxu0 0.0
      %3621 = vmatpush1.msra.mxu0 0.0
      %3622 = vmatprep.subr.mxu0 0.0
      %3623 = vmatpush1.msra.mxu0 0.0
      %3624 = vmatprep.subr.mxu0 0.0
      %3625 = vmatpush1.msra.mxu0 0.0
      %3626 = vmatprep.subr.mxu0 0.0
      %3627 = vmatpush1.msra.mxu0 0.0
      %3628 = vmatprep.subr.mxu0 0.0
      %3629 = vmatpush1.msra.mxu0 0.0
      %3630 = vmatprep.subr.mxu0 0.0
      %3631 = vmatpush1.msra.mxu0 0.0
      %3632 = vmatprep.subr.mxu0 0.0
      %3633 = vmatpush1.msra.mxu0 0.0
      %3634 = vmatprep.mubr.f32.mxu0 0.0
      %3635 = vmatmul.mubr.f32.gmra.mrb[0].mxu0 %v3562
      %v3636 = vpop.f32.mrb[0].mxu0
      %v3637 = vadd.f32 0.0, %v3636
      %v3638 = vpop.f32.mrb[0].mxu0
      %v3639 = vadd.f32 0.0, %v3638
      %3640 = vdwg.mxu0
      %3641 = vmatprep.subr.mxu0 0.0
      %3642 = vmatpush1.msra.mxu0 %v3568
      %3643 = vmatprep.subr.mxu0 0.0
      %3644 = vmatpush1.msra.mxu0 0.0
      %3645 = vmatprep.subr.mxu0 0.0
      %3646 = vmatpush1.msra.mxu0 0.0
      %3647 = vmatprep.subr.mxu0 0.0
      %3648 = vmatpush1.msra.mxu0 0.0
      %3649 = vmatprep.subr.mxu0 0.0
      %3650 = vmatpush1.msra.mxu0 0.0
      %3651 = vmatprep.subr.mxu0 0.0
      %3652 = vmatpush1.msra.mxu0 0.0
      %3653 = vmatprep.subr.mxu0 0.0
      %3654 = vmatpush1.msra.mxu0 0.0
      %3655 = vmatprep.subr.mxu0 0.0
      %3656 = vmatpush1.msra.mxu0 0.0
      %3657 = vmatprep.subr.mxu0 0.0
      %3658 = vmatpush1.msra.mxu0 0.0
      %3659 = vmatprep.subr.mxu0 0.0
      %3660 = vmatpush1.msra.mxu0 0.0
      %3661 = vmatprep.subr.mxu0 0.0
      %3662 = vmatpush1.msra.mxu0 0.0
      %3663 = vmatprep.subr.mxu0 0.0
      %3664 = vmatpush1.msra.mxu0 0.0
      %3665 = vmatprep.subr.mxu0 0.0
      %3666 = vmatpush1.msra.mxu0 0.0
      %3667 = vmatprep.subr.mxu0 0.0
      %3668 = vmatpush1.msra.mxu0 0.0
      %3669 = vmatprep.subr.mxu0 0.0
      %3670 = vmatpush1.msra.mxu0 0.0
      %3671 = vmatprep.subr.mxu0 0.0
      %3672 = vmatpush1.msra.mxu0 0.0
      %3673 = vmatprep.subr.mxu0 0.0
      %3674 = vmatpush1.msra.mxu0 0.0
      %3675 = vmatprep.subr.mxu0 0.0
      %3676 = vmatpush1.msra.mxu0 0.0
      %3677 = vmatprep.subr.mxu0 0.0
      %3678 = vmatpush1.msra.mxu0 0.0
      %3679 = vmatprep.subr.mxu0 0.0
      %3680 = vmatpush1.msra.mxu0 0.0
      %3681 = vmatprep.subr.mxu0 0.0
      %3682 = vmatpush1.msra.mxu0 0.0
      %3683 = vmatprep.subr.mxu0 0.0
      %3684 = vmatpush1.msra.mxu0 0.0
      %3685 = vmatprep.subr.mxu0 0.0
      %3686 = vmatpush1.msra.mxu0 0.0
      %3687 = vmatprep.subr.mxu0 0.0
      %3688 = vmatpush1.msra.mxu0 0.0
      %3689 = vmatprep.subr.mxu0 0.0
      %3690 = vmatpush1.msra.mxu0 0.0
      %3691 = vmatprep.subr.mxu0 0.0
      %3692 = vmatpush1.msra.mxu0 0.0
      %3693 = vmatprep.subr.mxu0 0.0
      %3694 = vmatpush1.msra.mxu0 0.0
      %3695 = vmatprep.subr.mxu0 0.0
      %3696 = vmatpush1.msra.mxu0 0.0
      %3697 = vmatprep.subr.mxu0 0.0
      %3698 = vmatpush1.msra.mxu0 0.0
      %3699 = vmatprep.subr.mxu0 0.0
      %3700 = vmatpush1.msra.mxu0 0.0
      %3701 = vmatprep.subr.mxu0 0.0
      %3702 = vmatpush1.msra.mxu0 0.0
      %3703 = vmatprep.subr.mxu0 0.0
      %3704 = vmatpush1.msra.mxu0 0.0
      %3705 = vmatprep.mubr.f32.mxu0 0.0
      %3706 = vmatmul.mubr.f32.gmra.mrb[0].mxu0 %v3562
      %v3707 = vpop.f32.mrb[0].mxu0
      %v3708 = vadd.f32 0.0, %v3707
      %v3709 = vpop.f32.mrb[0].mxu0
      %3710 = vdwg.mxu0
      %v3711 = vadd.f32 %v3543, %v3637
      %v3712 = vadd.f32 %v3544, %v3639
      %v3713 = vadd.f32 %v3545, %v3708
      %v3714 = vld [vmem:[#allocation3] sm:$0xff]
      %v3715 = vld [vmem:[#allocation3 + $0x8] sm:$0xf]
      %s3716 = scalar_lea.vmem %s5, 3
      %v3717 = vld [vmem:[%s3716] sm:$0x1]
      %v3720 = vcombine.high %v3714, %v3714
      %3721 = vrot.lane.b32.xlu0 %v3714, 125
      %v3722 = vpop.permute.xlu0 %3721
      %3723 = vrot.lane.b32.xlu0 %v3720, 125
      %v3724 = vpop.permute.xlu0 %3723
      %3725 = vrot.lane.b32.xlu0 %v3715, 125
      %v3726 = vpop.permute.xlu0 %3725
      %v3727 = vsel %vm1227, %v3722, %v3724
      %v3728 = vsel %vm1227, %v3724, %v3726
      %v3730 = vsel %vm3224, %v3717, 0
      %v3732 = vsel %vm291, %v3727, 0
      %v3734 = vsel %vm291, %v3728, 0
      %v3736 = vsel %vm291, %v3726, 0
      %3738 = vmatprep.subr.mxu0 %v3734
      %3739 = vmatpush1.msra.mxu0 %v3732
      %3740 = vmatprep.subr.mxu0 0.0
      %3741 = vmatpush1.msra.mxu0 0.0
      %3742 = vmatprep.subr.mxu0 0.0
      %3743 = vmatpush1.msra.mxu0 0.0
      %3744 = vmatprep.subr.mxu0 0.0
      %3745 = vmatpush1.msra.mxu0 0.0
      %3746 = vmatprep.subr.mxu0 0.0
      %3747 = vmatpush1.msra.mxu0 0.0
      %3748 = vmatprep.subr.mxu0 0.0
      %3749 = vmatpush1.msra.mxu0 0.0
      %3750 = vmatprep.subr.mxu0 0.0
      %3751 = vmatpush1.msra.mxu0 0.0
      %3752 = vmatprep.subr.mxu0 0.0
      %3753 = vmatpush1.msra.mxu0 0.0
      %3754 = vmatprep.subr.mxu0 0.0
      %3755 = vmatpush1.msra.mxu0 0.0
      %3756 = vmatprep.subr.mxu0 0.0
      %3757 = vmatpush1.msra.mxu0 0.0
      %3758 = vmatprep.subr.mxu0 0.0
      %3759 = vmatpush1.msra.mxu0 0.0
      %3760 = vmatprep.subr.mxu0 0.0
      %3761 = vmatpush1.msra.mxu0 0.0
      %3762 = vmatprep.subr.mxu0 0.0
      %3763 = vmatpush1.msra.mxu0 0.0
      %3764 = vmatprep.subr.mxu0 0.0
      %3765 = vmatpush1.msra.mxu0 0.0
      %3766 = vmatprep.subr.mxu0 0.0
      %3767 = vmatpush1.msra.mxu0 0.0
      %3768 = vmatprep.subr.mxu0 0.0
      %3769 = vmatpush1.msra.mxu0 0.0
      %3770 = vmatprep.subr.mxu0 0.0
      %3771 = vmatpush1.msra.mxu0 0.0
      %3772 = vmatprep.subr.mxu0 0.0
      %3773 = vmatpush1.msra.mxu0 0.0
      %3774 = vmatprep.subr.mxu0 0.0
      %3775 = vmatpush1.msra.mxu0 0.0
      %3776 = vmatprep.subr.mxu0 0.0
      %3777 = vmatpush1.msra.mxu0 0.0
      %3778 = vmatprep.subr.mxu0 0.0
      %3779 = vmatpush1.msra.mxu0 0.0
      %3780 = vmatprep.subr.mxu0 0.0
      %3781 = vmatpush1.msra.mxu0 0.0
      %3782 = vmatprep.subr.mxu0 0.0
      %3783 = vmatpush1.msra.mxu0 0.0
      %3784 = vmatprep.subr.mxu0 0.0
      %3785 = vmatpush1.msra.mxu0 0.0
      %3786 = vmatprep.subr.mxu0 0.0
      %3787 = vmatpush1.msra.mxu0 0.0
      %3788 = vmatprep.subr.mxu0 0.0
      %3789 = vmatpush1.msra.mxu0 0.0
      %3790 = vmatprep.subr.mxu0 0.0
      %3791 = vmatpush1.msra.mxu0 0.0
      %3792 = vmatprep.subr.mxu0 0.0
      %3793 = vmatpush1.msra.mxu0 0.0
      %3794 = vmatprep.subr.mxu0 0.0
      %3795 = vmatpush1.msra.mxu0 0.0
      %3796 = vmatprep.subr.mxu0 0.0
      %3797 = vmatpush1.msra.mxu0 0.0
      %3798 = vmatprep.subr.mxu0 0.0
      %3799 = vmatpush1.msra.mxu0 0.0
      %3800 = vmatprep.subr.mxu0 0.0
      %3801 = vmatpush1.msra.mxu0 0.0
      %3802 = vmatprep.mubr.f32.mxu0 0.0
      %3803 = vmatmul.mubr.f32.gmra.mrb[0].mxu0 %v3730
      %v3804 = vpop.f32.mrb[0].mxu0
      %v3805 = vadd.f32 0.0, %v3804
      %v3806 = vpop.f32.mrb[0].mxu0
      %v3807 = vadd.f32 0.0, %v3806
      %3808 = vdwg.mxu0
      %3809 = vmatprep.subr.mxu0 0.0
      %3810 = vmatpush1.msra.mxu0 %v3736
      %3811 = vmatprep.subr.mxu0 0.0
      %3812 = vmatpush1.msra.mxu0 0.0
      %3813 = vmatprep.subr.mxu0 0.0
      %3814 = vmatpush1.msra.mxu0 0.0
      %3815 = vmatprep.subr.mxu0 0.0
      %3816 = vmatpush1.msra.mxu0 0.0
      %3817 = vmatprep.subr.mxu0 0.0
      %3818 = vmatpush1.msra.mxu0 0.0
      %3819 = vmatprep.subr.mxu0 0.0
      %3820 = vmatpush1.msra.mxu0 0.0
      %3821 = vmatprep.subr.mxu0 0.0
      %3822 = vmatpush1.msra.mxu0 0.0
      %3823 = vmatprep.subr.mxu0 0.0
      %3824 = vmatpush1.msra.mxu0 0.0
      %3825 = vmatprep.subr.mxu0 0.0
      %3826 = vmatpush1.msra.mxu0 0.0
      %3827 = vmatprep.subr.mxu0 0.0
      %3828 = vmatpush1.msra.mxu0 0.0
      %3829 = vmatprep.subr.mxu0 0.0
      %3830 = vmatpush1.msra.mxu0 0.0
      %3831 = vmatprep.subr.mxu0 0.0
      %3832 = vmatpush1.msra.mxu0 0.0
      %3833 = vmatprep.subr.mxu0 0.0
      %3834 = vmatpush1.msra.mxu0 0.0
      %3835 = vmatprep.subr.mxu0 0.0
      %3836 = vmatpush1.msra.mxu0 0.0
      %3837 = vmatprep.subr.mxu0 0.0
      %3838 = vmatpush1.msra.mxu0 0.0
      %3839 = vmatprep.subr.mxu0 0.0
      %3840 = vmatpush1.msra.mxu0 0.0
      %3841 = vmatprep.subr.mxu0 0.0
      %3842 = vmatpush1.msra.mxu0 0.0
      %3843 = vmatprep.subr.mxu0 0.0
      %3844 = vmatpush1.msra.mxu0 0.0
      %3845 = vmatprep.subr.mxu0 0.0
      %3846 = vmatpush1.msra.mxu0 0.0
      %3847 = vmatprep.subr.mxu0 0.0
      %3848 = vmatpush1.msra.mxu0 0.0
      %3849 = vmatprep.subr.mxu0 0.0
      %3850 = vmatpush1.msra.mxu0 0.0
      %3851 = vmatprep.subr.mxu0 0.0
      %3852 = vmatpush1.msra.mxu0 0.0
      %3853 = vmatprep.subr.mxu0 0.0
      %3854 = vmatpush1.msra.mxu0 0.0
      %3855 = vmatprep.subr.mxu0 0.0
      %3856 = vmatpush1.msra.mxu0 0.0
      %3857 = vmatprep.subr.mxu0 0.0
      %3858 = vmatpush1.msra.mxu0 0.0
      %3859 = vmatprep.subr.mxu0 0.0
      %3860 = vmatpush1.msra.mxu0 0.0
      %3861 = vmatprep.subr.mxu0 0.0
      %3862 = vmatpush1.msra.mxu0 0.0
      %3863 = vmatprep.subr.mxu0 0.0
      %3864 = vmatpush1.msra.mxu0 0.0
      %3865 = vmatprep.subr.mxu0 0.0
      %3866 = vmatpush1.msra.mxu0 0.0
      %3867 = vmatprep.subr.mxu0 0.0
      %3868 = vmatpush1.msra.mxu0 0.0
      %3869 = vmatprep.subr.mxu0 0.0
      %3870 = vmatpush1.msra.mxu0 0.0
      %3871 = vmatprep.subr.mxu0 0.0
      %3872 = vmatpush1.msra.mxu0 0.0
      %3873 = vmatprep.mubr.f32.mxu0 0.0
      %3874 = vmatmul.mubr.f32.gmra.mrb[0].mxu0 %v3730
      %v3875 = vpop.f32.mrb[0].mxu0
      %v3876 = vadd.f32 0.0, %v3875
      %v3877 = vpop.f32.mrb[0].mxu0
      %3878 = vdwg.mxu0
      %v3879 = vadd.f32 %v3711, %v3805
      %v3880 = vadd.f32 %v3712, %v3807
      %v3881 = vadd.f32 %v3713, %v3876
      %v3882 = vld [vmem:[#allocation3] sm:$0xff]
      %v3883 = vld [vmem:[#allocation3 + $0x8] sm:$0xf]
      %s3884 = scalar_lea.vmem %s5, 4
      %v3885 = vld [vmem:[%s3884] sm:$0x1]
      %v3888 = vcombine.high %v3882, %v3882
      %3889 = vrot.lane.b32.xlu0 %v3882, 124
      %v3890 = vpop.permute.xlu0 %3889
      %3891 = vrot.lane.b32.xlu0 %v3888, 124
      %v3892 = vpop.permute.xlu0 %3891
      %3893 = vrot.lane.b32.xlu0 %v3883, 124
      %v3894 = vpop.permute.xlu0 %3893
      %v3895 = vsel %vm1313, %v3890, %v3892
      %v3896 = vsel %vm1313, %v3892, %v3894
      %v3898 = vsel %vm3224, %v3885, 0
      %v3900 = vsel %vm291, %v3895, 0
      %v3902 = vsel %vm291, %v3896, 0
      %v3904 = vsel %vm291, %v3894, 0
      %3906 = vmatprep.subr.mxu0 %v3902
      %3907 = vmatpush1.msra.mxu0 %v3900
      %3908 = vmatprep.subr.mxu0 0.0
      %3909 = vmatpush1.msra.mxu0 0.0
      %3910 = vmatprep.subr.mxu0 0.0
      %3911 = vmatpush1.msra.mxu0 0.0
      %3912 = vmatprep.subr.mxu0 0.0
      %3913 = vmatpush1.msra.mxu0 0.0
      %3914 = vmatprep.subr.mxu0 0.0
      %3915 = vmatpush1.msra.mxu0 0.0
      %3916 = vmatprep.subr.mxu0 0.0
      %3917 = vmatpush1.msra.mxu0 0.0
      %3918 = vmatprep.subr.mxu0 0.0
      %3919 = vmatpush1.msra.mxu0 0.0
      %3920 = vmatprep.subr.mxu0 0.0
      %3921 = vmatpush1.msra.mxu0 0.0
      %3922 = vmatprep.subr.mxu0 0.0
      %3923 = vmatpush1.msra.mxu0 0.0
      %3924 = vmatprep.subr.mxu0 0.0
      %3925 = vmatpush1.msra.mxu0 0.0
      %3926 = vmatprep.subr.mxu0 0.0
      %3927 = vmatpush1.msra.mxu0 0.0
      %3928 = vmatprep.subr.mxu0 0.0
      %3929 = vmatpush1.msra.mxu0 0.0
      %3930 = vmatprep.subr.mxu0 0.0
      %3931 = vmatpush1.msra.mxu0 0.0
      %3932 = vmatprep.subr.mxu0 0.0
      %3933 = vmatpush1.msra.mxu0 0.0
      %3934 = vmatprep.subr.mxu0 0.0
      %3935 = vmatpush1.msra.mxu0 0.0
      %3936 = vmatprep.subr.mxu0 0.0
      %3937 = vmatpush1.msra.mxu0 0.0
      %3938 = vmatprep.subr.mxu0 0.0
      %3939 = vmatpush1.msra.mxu0 0.0
      %3940 = vmatprep.subr.mxu0 0.0
      %3941 = vmatpush1.msra.mxu0 0.0
      %3942 = vmatprep.subr.mxu0 0.0
      %3943 = vmatpush1.msra.mxu0 0.0
      %3944 = vmatprep.subr.mxu0 0.0
      %3945 = vmatpush1.msra.mxu0 0.0
      %3946 = vmatprep.subr.mxu0 0.0
      %3947 = vmatpush1.msra.mxu0 0.0
      %3948 = vmatprep.subr.mxu0 0.0
      %3949 = vmatpush1.msra.mxu0 0.0
      %3950 = vmatprep.subr.mxu0 0.0
      %3951 = vmatpush1.msra.mxu0 0.0
      %3952 = vmatprep.subr.mxu0 0.0
      %3953 = vmatpush1.msra.mxu0 0.0
      %3954 = vmatprep.subr.mxu0 0.0
      %3955 = vmatpush1.msra.mxu0 0.0
      %3956 = vmatprep.subr.mxu0 0.0
      %3957 = vmatpush1.msra.mxu0 0.0
      %3958 = vmatprep.subr.mxu0 0.0
      %3959 = vmatpush1.msra.mxu0 0.0
      %3960 = vmatprep.subr.mxu0 0.0
      %3961 = vmatpush1.msra.mxu0 0.0
      %3962 = vmatprep.subr.mxu0 0.0
      %3963 = vmatpush1.msra.mxu0 0.0
      %3964 = vmatprep.subr.mxu0 0.0
      %3965 = vmatpush1.msra.mxu0 0.0
      %3966 = vmatprep.subr.mxu0 0.0
      %3967 = vmatpush1.msra.mxu0 0.0
      %3968 = vmatprep.subr.mxu0 0.0
      %3969 = vmatpush1.msra.mxu0 0.0
      %3970 = vmatprep.mubr.f32.mxu0 0.0
      %3971 = vmatmul.mubr.f32.gmra.mrb[0].mxu0 %v3898
      %v3972 = vpop.f32.mrb[0].mxu0
      %v3973 = vadd.f32 0.0, %v3972
      %v3974 = vpop.f32.mrb[0].mxu0
      %v3975 = vadd.f32 0.0, %v3974
      %3976 = vdwg.mxu0
      %3977 = vmatprep.subr.mxu0 0.0
      %3978 = vmatpush1.msra.mxu0 %v3904
      %3979 = vmatprep.subr.mxu0 0.0
      %3980 = vmatpush1.msra.mxu0 0.0
      %3981 = vmatprep.subr.mxu0 0.0
      %3982 = vmatpush1.msra.mxu0 0.0
      %3983 = vmatprep.subr.mxu0 0.0
      %3984 = vmatpush1.msra.mxu0 0.0
      %3985 = vmatprep.subr.mxu0 0.0
      %3986 = vmatpush1.msra.mxu0 0.0
      %3987 = vmatprep.subr.mxu0 0.0
      %3988 = vmatpush1.msra.mxu0 0.0
      %3989 = vmatprep.subr.mxu0 0.0
      %3990 = vmatpush1.msra.mxu0 0.0
      %3991 = vmatprep.subr.mxu0 0.0
      %3992 = vmatpush1.msra.mxu0 0.0
      %3993 = vmatprep.subr.mxu0 0.0
      %3994 = vmatpush1.msra.mxu0 0.0
      %3995 = vmatprep.subr.mxu0 0.0
      %3996 = vmatpush1.msra.mxu0 0.0
      %3997 = vmatprep.subr.mxu0 0.0
      %3998 = vmatpush1.msra.mxu0 0.0
      %3999 = vmatprep.subr.mxu0 0.0
      %4000 = vmatpush1.msra.mxu0 0.0
      %4001 = vmatprep.subr.mxu0 0.0
      %4002 = vmatpush1.msra.mxu0 0.0
      %4003 = vmatprep.subr.mxu0 0.0
      %4004 = vmatpush1.msra.mxu0 0.0
      %4005 = vmatprep.subr.mxu0 0.0
      %4006 = vmatpush1.msra.mxu0 0.0
      %4007 = vmatprep.subr.mxu0 0.0
      %4008 = vmatpush1.msra.mxu0 0.0
      %4009 = vmatprep.subr.mxu0 0.0
      %4010 = vmatpush1.msra.mxu0 0.0
      %4011 = vmatprep.subr.mxu0 0.0
      %4012 = vmatpush1.msra.mxu0 0.0
      %4013 = vmatprep.subr.mxu0 0.0
      %4014 = vmatpush1.msra.mxu0 0.0
      %4015 = vmatprep.subr.mxu0 0.0
      %4016 = vmatpush1.msra.mxu0 0.0
      %4017 = vmatprep.subr.mxu0 0.0
      %4018 = vmatpush1.msra.mxu0 0.0
      %4019 = vmatprep.subr.mxu0 0.0
      %4020 = vmatpush1.msra.mxu0 0.0
      %4021 = vmatprep.subr.mxu0 0.0
      %4022 = vmatpush1.msra.mxu0 0.0
      %4023 = vmatprep.subr.mxu0 0.0
      %4024 = vmatpush1.msra.mxu0 0.0
      %4025 = vmatprep.subr.mxu0 0.0
      %4026 = vmatpush1.msra.mxu0 0.0
      %4027 = vmatprep.subr.mxu0 0.0
      %4028 = vmatpush1.msra.mxu0 0.0
      %4029 = vmatprep.subr.mxu0 0.0
      %4030 = vmatpush1.msra.mxu0 0.0
      %4031 = vmatprep.subr.mxu0 0.0
      %4032 = vmatpush1.msra.mxu0 0.0
      %4033 = vmatprep.subr.mxu0 0.0
      %4034 = vmatpush1.msra.mxu0 0.0
      %4035 = vmatprep.subr.mxu0 0.0
      %4036 = vmatpush1.msra.mxu0 0.0
      %4037 = vmatprep.subr.mxu0 0.0
      %4038 = vmatpush1.msra.mxu0 0.0
      %4039 = vmatprep.subr.mxu0 0.0
      %4040 = vmatpush1.msra.mxu0 0.0
      %4041 = vmatprep.mubr.f32.mxu0 0.0
      %4042 = vmatmul.mubr.f32.gmra.mrb[0].mxu0 %v3898
      %v4043 = vpop.f32.mrb[0].mxu0
      %v4044 = vadd.f32 0.0, %v4043
      %v4045 = vpop.f32.mrb[0].mxu0
      %4046 = vdwg.mxu0
      %v4047 = vadd.f32 %v3879, %v3973
      %v4048 = vadd.f32 %v3880, %v3975
      %v4049 = vadd.f32 %v3881, %v4044
      %v4050 = vld [vmem:[#allocation3] sm:$0xff]
      %v4051 = vld [vmem:[#allocation3 + $0x8] sm:$0xf]
      %s4052 = scalar_lea.vmem %s5, 5
      %v4053 = vld [vmem:[%s4052] sm:$0x1]
      %v4056 = vcombine.high %v4050, %v4050
      %4057 = vrot.lane.b32.xlu0 %v4050, 108
      %v4058 = vpop.permute.xlu0 %4057
      %4059 = vrot.lane.b32.xlu0 %v4056, 108
      %v4060 = vpop.permute.xlu0 %4059
      %4061 = vrot.lane.b32.xlu0 %v4051, 108
      %v4062 = vpop.permute.xlu0 %4061
      %v4063 = vsel %vm1407, %v4058, %v4060
      %v4064 = vsel %vm1407, %v4060, %v4062
      %v4066 = vsel %vm3224, %v4053, 0
      %v4068 = vsel %vm291, %v4063, 0
      %v4070 = vsel %vm291, %v4064, 0
      %v4072 = vsel %vm291, %v4062, 0
      %4074 = vmatprep.subr.mxu0 %v4070
      %4075 = vmatpush1.msra.mxu0 %v4068
      %4076 = vmatprep.subr.mxu0 0.0
      %4077 = vmatpush1.msra.mxu0 0.0
      %4078 = vmatprep.subr.mxu0 0.0
      %4079 = vmatpush1.msra.mxu0 0.0
      %4080 = vmatprep.subr.mxu0 0.0
      %4081 = vmatpush1.msra.mxu0 0.0
      %4082 = vmatprep.subr.mxu0 0.0
      %4083 = vmatpush1.msra.mxu0 0.0
      %4084 = vmatprep.subr.mxu0 0.0
      %4085 = vmatpush1.msra.mxu0 0.0
      %4086 = vmatprep.subr.mxu0 0.0
      %4087 = vmatpush1.msra.mxu0 0.0
      %4088 = vmatprep.subr.mxu0 0.0
      %4089 = vmatpush1.msra.mxu0 0.0
      %4090 = vmatprep.subr.mxu0 0.0
      %4091 = vmatpush1.msra.mxu0 0.0
      %4092 = vmatprep.subr.mxu0 0.0
      %4093 = vmatpush1.msra.mxu0 0.0
      %4094 = vmatprep.subr.mxu0 0.0
      %4095 = vmatpush1.msra.mxu0 0.0
      %4096 = vmatprep.subr.mxu0 0.0
      %4097 = vmatpush1.msra.mxu0 0.0
      %4098 = vmatprep.subr.mxu0 0.0
      %4099 = vmatpush1.msra.mxu0 0.0
      %4100 = vmatprep.subr.mxu0 0.0
      %4101 = vmatpush1.msra.mxu0 0.0
      %4102 = vmatprep.subr.mxu0 0.0
      %4103 = vmatpush1.msra.mxu0 0.0
      %4104 = vmatprep.subr.mxu0 0.0
      %4105 = vmatpush1.msra.mxu0 0.0
      %4106 = vmatprep.subr.mxu0 0.0
      %4107 = vmatpush1.msra.mxu0 0.0
      %4108 = vmatprep.subr.mxu0 0.0
      %4109 = vmatpush1.msra.mxu0 0.0
      %4110 = vmatprep.subr.mxu0 0.0
      %4111 = vmatpush1.msra.mxu0 0.0
      %4112 = vmatprep.subr.mxu0 0.0
      %4113 = vmatpush1.msra.mxu0 0.0
      %4114 = vmatprep.subr.mxu0 0.0
      %4115 = vmatpush1.msra.mxu0 0.0
      %4116 = vmatprep.subr.mxu0 0.0
      %4117 = vmatpush1.msra.mxu0 0.0
      %4118 = vmatprep.subr.mxu0 0.0
      %4119 = vmatpush1.msra.mxu0 0.0
      %4120 = vmatprep.subr.mxu0 0.0
      %4121 = vmatpush1.msra.mxu0 0.0
      %4122 = vmatprep.subr.mxu0 0.0
      %4123 = vmatpush1.msra.mxu0 0.0
      %4124 = vmatprep.subr.mxu0 0.0
      %4125 = vmatpush1.msra.mxu0 0.0
      %4126 = vmatprep.subr.mxu0 0.0
      %4127 = vmatpush1.msra.mxu0 0.0
      %4128 = vmatprep.subr.mxu0 0.0
      %4129 = vmatpush1.msra.mxu0 0.0
      %4130 = vmatprep.subr.mxu0 0.0
      %4131 = vmatpush1.msra.mxu0 0.0
      %4132 = vmatprep.subr.mxu0 0.0
      %4133 = vmatpush1.msra.mxu0 0.0
      %4134 = vmatprep.subr.mxu0 0.0
      %4135 = vmatpush1.msra.mxu0 0.0
      %4136 = vmatprep.subr.mxu0 0.0
      %4137 = vmatpush1.msra.mxu0 0.0
      %4138 = vmatprep.mubr.f32.mxu0 0.0
      %4139 = vmatmul.mubr.f32.gmra.mrb[0].mxu0 %v4066
      %v4140 = vpop.f32.mrb[0].mxu0
      %v4141 = vadd.f32 0.0, %v4140
      %v4142 = vpop.f32.mrb[0].mxu0
      %v4143 = vadd.f32 0.0, %v4142
      %4144 = vdwg.mxu0
      %4145 = vmatprep.subr.mxu0 0.0
      %4146 = vmatpush1.msra.mxu0 %v4072
      %4147 = vmatprep.subr.mxu0 0.0
      %4148 = vmatpush1.msra.mxu0 0.0
      %4149 = vmatprep.subr.mxu0 0.0
      %4150 = vmatpush1.msra.mxu0 0.0
      %4151 = vmatprep.subr.mxu0 0.0
      %4152 = vmatpush1.msra.mxu0 0.0
      %4153 = vmatprep.subr.mxu0 0.0
      %4154 = vmatpush1.msra.mxu0 0.0
      %4155 = vmatprep.subr.mxu0 0.0
      %4156 = vmatpush1.msra.mxu0 0.0
      %4157 = vmatprep.subr.mxu0 0.0
      %4158 = vmatpush1.msra.mxu0 0.0
      %4159 = vmatprep.subr.mxu0 0.0
      %4160 = vmatpush1.msra.mxu0 0.0
      %4161 = vmatprep.subr.mxu0 0.0
      %4162 = vmatpush1.msra.mxu0 0.0
      %4163 = vmatprep.subr.mxu0 0.0
      %4164 = vmatpush1.msra.mxu0 0.0
      %4165 = vmatprep.subr.mxu0 0.0
      %4166 = vmatpush1.msra.mxu0 0.0
      %4167 = vmatprep.subr.mxu0 0.0
      %4168 = vmatpush1.msra.mxu0 0.0
      %4169 = vmatprep.subr.mxu0 0.0
      %4170 = vmatpush1.msra.mxu0 0.0
      %4171 = vmatprep.subr.mxu0 0.0
      %4172 = vmatpush1.msra.mxu0 0.0
      %4173 = vmatprep.subr.mxu0 0.0
      %4174 = vmatpush1.msra.mxu0 0.0
      %4175 = vmatprep.subr.mxu0 0.0
      %4176 = vmatpush1.msra.mxu0 0.0
      %4177 = vmatprep.subr.mxu0 0.0
      %4178 = vmatpush1.msra.mxu0 0.0
      %4179 = vmatprep.subr.mxu0 0.0
      %4180 = vmatpush1.msra.mxu0 0.0
      %4181 = vmatprep.subr.mxu0 0.0
      %4182 = vmatpush1.msra.mxu0 0.0
      %4183 = vmatprep.subr.mxu0 0.0
      %4184 = vmatpush1.msra.mxu0 0.0
      %4185 = vmatprep.subr.mxu0 0.0
      %4186 = vmatpush1.msra.mxu0 0.0
      %4187 = vmatprep.subr.mxu0 0.0
      %4188 = vmatpush1.msra.mxu0 0.0
      %4189 = vmatprep.subr.mxu0 0.0
      %4190 = vmatpush1.msra.mxu0 0.0
      %4191 = vmatprep.subr.mxu0 0.0
      %4192 = vmatpush1.msra.mxu0 0.0
      %4193 = vmatprep.subr.mxu0 0.0
      %4194 = vmatpush1.msra.mxu0 0.0
      %4195 = vmatprep.subr.mxu0 0.0
      %4196 = vmatpush1.msra.mxu0 0.0
      %4197 = vmatprep.subr.mxu0 0.0
      %4198 = vmatpush1.msra.mxu0 0.0
      %4199 = vmatprep.subr.mxu0 0.0
      %4200 = vmatpush1.msra.mxu0 0.0
      %4201 = vmatprep.subr.mxu0 0.0
      %4202 = vmatpush1.msra.mxu0 0.0
      %4203 = vmatprep.subr.mxu0 0.0
      %4204 = vmatpush1.msra.mxu0 0.0
      %4205 = vmatprep.subr.mxu0 0.0
      %4206 = vmatpush1.msra.mxu0 0.0
      %4207 = vmatprep.subr.mxu0 0.0
      %4208 = vmatpush1.msra.mxu0 0.0
      %4209 = vmatprep.mubr.f32.mxu0 0.0
      %4210 = vmatmul.mubr.f32.gmra.mrb[0].mxu0 %v4066
      %v4211 = vpop.f32.mrb[0].mxu0
      %v4212 = vadd.f32 0.0, %v4211
      %v4213 = vpop.f32.mrb[0].mxu0
      %4214 = vdwg.mxu0
      %v4215 = vadd.f32 %v4047, %v4141
      %v4216 = vadd.f32 %v4048, %v4143
      %v4217 = vadd.f32 %v4049, %v4212
      %v4218 = vld [vmem:[#allocation3] sm:$0xff]
      %v4219 = vld [vmem:[#allocation3 + $0x8] sm:$0xf]
      %s4220 = scalar_lea.vmem %s5, 6
      %v4221 = vld [vmem:[%s4220] sm:$0x1]
      %v4224 = vcombine.high %v4218, %v4218
      %4225 = vrot.lane.b32.xlu0 %v4218, 107
      %v4226 = vpop.permute.xlu0 %4225
      %4227 = vrot.lane.b32.xlu0 %v4224, 107
      %v4228 = vpop.permute.xlu0 %4227
      %4229 = vrot.lane.b32.xlu0 %v4219, 107
      %v4230 = vpop.permute.xlu0 %4229
      %v4231 = vsel %vm1496, %v4226, %v4228
      %v4232 = vsel %vm1496, %v4228, %v4230
      %v4234 = vsel %vm3224, %v4221, 0
      %v4236 = vsel %vm291, %v4231, 0
      %v4238 = vsel %vm291, %v4232, 0
      %v4240 = vsel %vm291, %v4230, 0
      %4242 = vmatprep.subr.mxu0 %v4238
      %4243 = vmatpush1.msra.mxu0 %v4236
      %4244 = vmatprep.subr.mxu0 0.0
      %4245 = vmatpush1.msra.mxu0 0.0
      %4246 = vmatprep.subr.mxu0 0.0
      %4247 = vmatpush1.msra.mxu0 0.0
      %4248 = vmatprep.subr.mxu0 0.0
      %4249 = vmatpush1.msra.mxu0 0.0
      %4250 = vmatprep.subr.mxu0 0.0
      %4251 = vmatpush1.msra.mxu0 0.0
      %4252 = vmatprep.subr.mxu0 0.0
      %4253 = vmatpush1.msra.mxu0 0.0
      %4254 = vmatprep.subr.mxu0 0.0
      %4255 = vmatpush1.msra.mxu0 0.0
      %4256 = vmatprep.subr.mxu0 0.0
      %4257 = vmatpush1.msra.mxu0 0.0
      %4258 = vmatprep.subr.mxu0 0.0
      %4259 = vmatpush1.msra.mxu0 0.0
      %4260 = vmatprep.subr.mxu0 0.0
      %4261 = vmatpush1.msra.mxu0 0.0
      %4262 = vmatprep.subr.mxu0 0.0
      %4263 = vmatpush1.msra.mxu0 0.0
      %4264 = vmatprep.subr.mxu0 0.0
      %4265 = vmatpush1.msra.mxu0 0.0
      %4266 = vmatprep.subr.mxu0 0.0
      %4267 = vmatpush1.msra.mxu0 0.0
      %4268 = vmatprep.subr.mxu0 0.0
      %4269 = vmatpush1.msra.mxu0 0.0
      %4270 = vmatprep.subr.mxu0 0.0
      %4271 = vmatpush1.msra.mxu0 0.0
      %4272 = vmatprep.subr.mxu0 0.0
      %4273 = vmatpush1.msra.mxu0 0.0
      %4274 = vmatprep.subr.mxu0 0.0
      %4275 = vmatpush1.msra.mxu0 0.0
      %4276 = vmatprep.subr.mxu0 0.0
      %4277 = vmatpush1.msra.mxu0 0.0
      %4278 = vmatprep.subr.mxu0 0.0
      %4279 = vmatpush1.msra.mxu0 0.0
      %4280 = vmatprep.subr.mxu0 0.0
      %4281 = vmatpush1.msra.mxu0 0.0
      %4282 = vmatprep.subr.mxu0 0.0
      %4283 = vmatpush1.msra.mxu0 0.0
      %4284 = vmatprep.subr.mxu0 0.0
      %4285 = vmatpush1.msra.mxu0 0.0
      %4286 = vmatprep.subr.mxu0 0.0
      %4287 = vmatpush1.msra.mxu0 0.0
      %4288 = vmatprep.subr.mxu0 0.0
      %4289 = vmatpush1.msra.mxu0 0.0
      %4290 = vmatprep.subr.mxu0 0.0
      %4291 = vmatpush1.msra.mxu0 0.0
      %4292 = vmatprep.subr.mxu0 0.0
      %4293 = vmatpush1.msra.mxu0 0.0
      %4294 = vmatprep.subr.mxu0 0.0
      %4295 = vmatpush1.msra.mxu0 0.0
      %4296 = vmatprep.subr.mxu0 0.0
      %4297 = vmatpush1.msra.mxu0 0.0
      %4298 = vmatprep.subr.mxu0 0.0
      %4299 = vmatpush1.msra.mxu0 0.0
      %4300 = vmatprep.subr.mxu0 0.0
      %4301 = vmatpush1.msra.mxu0 0.0
      %4302 = vmatprep.subr.mxu0 0.0
      %4303 = vmatpush1.msra.mxu0 0.0
      %4304 = vmatprep.subr.mxu0 0.0
      %4305 = vmatpush1.msra.mxu0 0.0
      %4306 = vmatprep.mubr.f32.mxu0 0.0
      %4307 = vmatmul.mubr.f32.gmra.mrb[0].mxu0 %v4234
      %v4308 = vpop.f32.mrb[0].mxu0
      %v4309 = vadd.f32 0.0, %v4308
      %v4310 = vpop.f32.mrb[0].mxu0
      %v4311 = vadd.f32 0.0, %v4310
      %4312 = vdwg.mxu0
      %4313 = vmatprep.subr.mxu0 0.0
      %4314 = vmatpush1.msra.mxu0 %v4240
      %4315 = vmatprep.subr.mxu0 0.0
      %4316 = vmatpush1.msra.mxu0 0.0
      %4317 = vmatprep.subr.mxu0 0.0
      %4318 = vmatpush1.msra.mxu0 0.0
      %4319 = vmatprep.subr.mxu0 0.0
      %4320 = vmatpush1.msra.mxu0 0.0
      %4321 = vmatprep.subr.mxu0 0.0
      %4322 = vmatpush1.msra.mxu0 0.0
      %4323 = vmatprep.subr.mxu0 0.0
      %4324 = vmatpush1.msra.mxu0 0.0
      %4325 = vmatprep.subr.mxu0 0.0
      %4326 = vmatpush1.msra.mxu0 0.0
      %4327 = vmatprep.subr.mxu0 0.0
      %4328 = vmatpush1.msra.mxu0 0.0
      %4329 = vmatprep.subr.mxu0 0.0
      %4330 = vmatpush1.msra.mxu0 0.0
      %4331 = vmatprep.subr.mxu0 0.0
      %4332 = vmatpush1.msra.mxu0 0.0
      %4333 = vmatprep.subr.mxu0 0.0
      %4334 = vmatpush1.msra.mxu0 0.0
      %4335 = vmatprep.subr.mxu0 0.0
      %4336 = vmatpush1.msra.mxu0 0.0
      %4337 = vmatprep.subr.mxu0 0.0
      %4338 = vmatpush1.msra.mxu0 0.0
      %4339 = vmatprep.subr.mxu0 0.0
      %4340 = vmatpush1.msra.mxu0 0.0
      %4341 = vmatprep.subr.mxu0 0.0
      %4342 = vmatpush1.msra.mxu0 0.0
      %4343 = vmatprep.subr.mxu0 0.0
      %4344 = vmatpush1.msra.mxu0 0.0
      %4345 = vmatprep.subr.mxu0 0.0
      %4346 = vmatpush1.msra.mxu0 0.0
      %4347 = vmatprep.subr.mxu0 0.0
      %4348 = vmatpush1.msra.mxu0 0.0
      %4349 = vmatprep.subr.mxu0 0.0
      %4350 = vmatpush1.msra.mxu0 0.0
      %4351 = vmatprep.subr.mxu0 0.0
      %4352 = vmatpush1.msra.mxu0 0.0
      %4353 = vmatprep.subr.mxu0 0.0
      %4354 = vmatpush1.msra.mxu0 0.0
      %4355 = vmatprep.subr.mxu0 0.0
      %4356 = vmatpush1.msra.mxu0 0.0
      %4357 = vmatprep.subr.mxu0 0.0
      %4358 = vmatpush1.msra.mxu0 0.0
      %4359 = vmatprep.subr.mxu0 0.0
      %4360 = vmatpush1.msra.mxu0 0.0
      %4361 = vmatprep.subr.mxu0 0.0
      %4362 = vmatpush1.msra.mxu0 0.0
      %4363 = vmatprep.subr.mxu0 0.0
      %4364 = vmatpush1.msra.mxu0 0.0
      %4365 = vmatprep.subr.mxu0 0.0
      %4366 = vmatpush1.msra.mxu0 0.0
      %4367 = vmatprep.subr.mxu0 0.0
      %4368 = vmatpush1.msra.mxu0 0.0
      %4369 = vmatprep.subr.mxu0 0.0
      %4370 = vmatpush1.msra.mxu0 0.0
      %4371 = vmatprep.subr.mxu0 0.0
      %4372 = vmatpush1.msra.mxu0 0.0
      %4373 = vmatprep.subr.mxu0 0.0
      %4374 = vmatpush1.msra.mxu0 0.0
      %4375 = vmatprep.subr.mxu0 0.0
      %4376 = vmatpush1.msra.mxu0 0.0
      %4377 = vmatprep.mubr.f32.mxu0 0.0
      %4378 = vmatmul.mubr.f32.gmra.mrb[0].mxu0 %v4234
      %v4379 = vpop.f32.mrb[0].mxu0
      %v4380 = vadd.f32 0.0, %v4379
      %v4381 = vpop.f32.mrb[0].mxu0
      %4382 = vdwg.mxu0
      %v4383 = vadd.f32 %v4215, %v4309
      %v4384 = vadd.f32 %v4216, %v4311
      %v4385 = vadd.f32 %v4217, %v4380
      %v4386 = vld [vmem:[#allocation3] sm:$0xff]
      %v4387 = vld [vmem:[#allocation3 + $0x8] sm:$0xf]
      %s4388 = scalar_lea.vmem %s5, 7
      %v4389 = vld [vmem:[%s4388] sm:$0x1]
      %v4392 = vcombine.high %v4386, %v4386
      %4393 = vrot.lane.b32.xlu0 %v4386, 106
      %v4394 = vpop.permute.xlu0 %4393
      %4395 = vrot.lane.b32.xlu0 %v4392, 106
      %v4396 = vpop.permute.xlu0 %4395
      %4397 = vrot.lane.b32.xlu0 %v4387, 106
      %v4398 = vpop.permute.xlu0 %4397
      %v4399 = vsel %vm1585, %v4394, %v4396
      %v4400 = vsel %vm1585, %v4396, %v4398
      %v4402 = vsel %vm3224, %v4389, 0
      %v4404 = vsel %vm291, %v4399, 0
      %v4406 = vsel %vm291, %v4400, 0
      %v4408 = vsel %vm291, %v4398, 0
      %4410 = vmatprep.subr.mxu0 %v4406
      %4411 = vmatpush1.msra.mxu0 %v4404
      %4412 = vmatprep.subr.mxu0 0.0
      %4413 = vmatpush1.msra.mxu0 0.0
      %4414 = vmatprep.subr.mxu0 0.0
      %4415 = vmatpush1.msra.mxu0 0.0
      %4416 = vmatprep.subr.mxu0 0.0
      %4417 = vmatpush1.msra.mxu0 0.0
      %4418 = vmatprep.subr.mxu0 0.0
      %4419 = vmatpush1.msra.mxu0 0.0
      %4420 = vmatprep.subr.mxu0 0.0
      %4421 = vmatpush1.msra.mxu0 0.0
      %4422 = vmatprep.subr.mxu0 0.0
      %4423 = vmatpush1.msra.mxu0 0.0
      %4424 = vmatprep.subr.mxu0 0.0
      %4425 = vmatpush1.msra.mxu0 0.0
      %4426 = vmatprep.subr.mxu0 0.0
      %4427 = vmatpush1.msra.mxu0 0.0
      %4428 = vmatprep.subr.mxu0 0.0
      %4429 = vmatpush1.msra.mxu0 0.0
      %4430 = vmatprep.subr.mxu0 0.0
      %4431 = vmatpush1.msra.mxu0 0.0
      %4432 = vmatprep.subr.mxu0 0.0
      %4433 = vmatpush1.msra.mxu0 0.0
      %4434 = vmatprep.subr.mxu0 0.0
      %4435 = vmatpush1.msra.mxu0 0.0
      %4436 = vmatprep.subr.mxu0 0.0
      %4437 = vmatpush1.msra.mxu0 0.0
      %4438 = vmatprep.subr.mxu0 0.0
      %4439 = vmatpush1.msra.mxu0 0.0
      %4440 = vmatprep.subr.mxu0 0.0
      %4441 = vmatpush1.msra.mxu0 0.0
      %4442 = vmatprep.subr.mxu0 0.0
      %4443 = vmatpush1.msra.mxu0 0.0
      %4444 = vmatprep.subr.mxu0 0.0
      %4445 = vmatpush1.msra.mxu0 0.0
      %4446 = vmatprep.subr.mxu0 0.0
      %4447 = vmatpush1.msra.mxu0 0.0
      %4448 = vmatprep.subr.mxu0 0.0
      %4449 = vmatpush1.msra.mxu0 0.0
      %4450 = vmatprep.subr.mxu0 0.0
      %4451 = vmatpush1.msra.mxu0 0.0
      %4452 = vmatprep.subr.mxu0 0.0
      %4453 = vmatpush1.msra.mxu0 0.0
      %4454 = vmatprep.subr.mxu0 0.0
      %4455 = vmatpush1.msra.mxu0 0.0
      %4456 = vmatprep.subr.mxu0 0.0
      %4457 = vmatpush1.msra.mxu0 0.0
      %4458 = vmatprep.subr.mxu0 0.0
      %4459 = vmatpush1.msra.mxu0 0.0
      %4460 = vmatprep.subr.mxu0 0.0
      %4461 = vmatpush1.msra.mxu0 0.0
      %4462 = vmatprep.subr.mxu0 0.0
      %4463 = vmatpush1.msra.mxu0 0.0
      %4464 = vmatprep.subr.mxu0 0.0
      %4465 = vmatpush1.msra.mxu0 0.0
      %4466 = vmatprep.subr.mxu0 0.0
      %4467 = vmatpush1.msra.mxu0 0.0
      %4468 = vmatprep.subr.mxu0 0.0
      %4469 = vmatpush1.msra.mxu0 0.0
      %4470 = vmatprep.subr.mxu0 0.0
      %4471 = vmatpush1.msra.mxu0 0.0
      %4472 = vmatprep.subr.mxu0 0.0
      %4473 = vmatpush1.msra.mxu0 0.0
      %4474 = vmatprep.mubr.f32.mxu0 0.0
      %4475 = vmatmul.mubr.f32.gmra.mrb[0].mxu0 %v4402
      %v4476 = vpop.f32.mrb[0].mxu0
      %v4477 = vadd.f32 0.0, %v4476
      %v4478 = vpop.f32.mrb[0].mxu0
      %v4479 = vadd.f32 0.0, %v4478
      %4480 = vdwg.mxu0
      %4481 = vmatprep.subr.mxu0 0.0
      %4482 = vmatpush1.msra.mxu0 %v4408
      %4483 = vmatprep.subr.mxu0 0.0
      %4484 = vmatpush1.msra.mxu0 0.0
      %4485 = vmatprep.subr.mxu0 0.0
      %4486 = vmatpush1.msra.mxu0 0.0
      %4487 = vmatprep.subr.mxu0 0.0
      %4488 = vmatpush1.msra.mxu0 0.0
      %4489 = vmatprep.subr.mxu0 0.0
      %4490 = vmatpush1.msra.mxu0 0.0
      %4491 = vmatprep.subr.mxu0 0.0
      %4492 = vmatpush1.msra.mxu0 0.0
      %4493 = vmatprep.subr.mxu0 0.0
      %4494 = vmatpush1.msra.mxu0 0.0
      %4495 = vmatprep.subr.mxu0 0.0
      %4496 = vmatpush1.msra.mxu0 0.0
      %4497 = vmatprep.subr.mxu0 0.0
      %4498 = vmatpush1.msra.mxu0 0.0
      %4499 = vmatprep.subr.mxu0 0.0
      %4500 = vmatpush1.msra.mxu0 0.0
      %4501 = vmatprep.subr.mxu0 0.0
      %4502 = vmatpush1.msra.mxu0 0.0
      %4503 = vmatprep.subr.mxu0 0.0
      %4504 = vmatpush1.msra.mxu0 0.0
      %4505 = vmatprep.subr.mxu0 0.0
      %4506 = vmatpush1.msra.mxu0 0.0
      %4507 = vmatprep.subr.mxu0 0.0
      %4508 = vmatpush1.msra.mxu0 0.0
      %4509 = vmatprep.subr.mxu0 0.0
      %4510 = vmatpush1.msra.mxu0 0.0
      %4511 = vmatprep.subr.mxu0 0.0
      %4512 = vmatpush1.msra.mxu0 0.0
      %4513 = vmatprep.subr.mxu0 0.0
      %4514 = vmatpush1.msra.mxu0 0.0
      %4515 = vmatprep.subr.mxu0 0.0
      %4516 = vmatpush1.msra.mxu0 0.0
      %4517 = vmatprep.subr.mxu0 0.0
      %4518 = vmatpush1.msra.mxu0 0.0
      %4519 = vmatprep.subr.mxu0 0.0
      %4520 = vmatpush1.msra.mxu0 0.0
      %4521 = vmatprep.subr.mxu0 0.0
      %4522 = vmatpush1.msra.mxu0 0.0
      %4523 = vmatprep.subr.mxu0 0.0
      %4524 = vmatpush1.msra.mxu0 0.0
      %4525 = vmatprep.subr.mxu0 0.0
      %4526 = vmatpush1.msra.mxu0 0.0
      %4527 = vmatprep.subr.mxu0 0.0
      %4528 = vmatpush1.msra.mxu0 0.0
      %4529 = vmatprep.subr.mxu0 0.0
      %4530 = vmatpush1.msra.mxu0 0.0
      %4531 = vmatprep.subr.mxu0 0.0
      %4532 = vmatpush1.msra.mxu0 0.0
      %4533 = vmatprep.subr.mxu0 0.0
      %4534 = vmatpush1.msra.mxu0 0.0
      %4535 = vmatprep.subr.mxu0 0.0
      %4536 = vmatpush1.msra.mxu0 0.0
      %4537 = vmatprep.subr.mxu0 0.0
      %4538 = vmatpush1.msra.mxu0 0.0
      %4539 = vmatprep.subr.mxu0 0.0
      %4540 = vmatpush1.msra.mxu0 0.0
      %4541 = vmatprep.subr.mxu0 0.0
      %4542 = vmatpush1.msra.mxu0 0.0
      %4543 = vmatprep.subr.mxu0 0.0
      %4544 = vmatpush1.msra.mxu0 0.0
      %4545 = vmatprep.mubr.f32.mxu0 0.0
      %4546 = vmatmul.mubr.f32.gmra.mrb[0].mxu0 %v4402
      %v4547 = vpop.f32.mrb[0].mxu0
      %v4548 = vadd.f32 0.0, %v4547
      %v4549 = vpop.f32.mrb[0].mxu0
      %4550 = vdwg.mxu0
      %v4551 = vadd.f32 %v4383, %v4477
      %v4552 = vadd.f32 %v4384, %v4479
      %v4553 = vadd.f32 %v4385, %v4548
      %v4554 = vld [vmem:[#allocation3] sm:$0xff]
      %v4555 = vld [vmem:[#allocation3 + $0x8] sm:$0xf]
      %s4556 = scalar_lea.vmem %s5, 8
      %v4557 = vld [vmem:[%s4556] sm:$0x1]
      %v4560 = vcombine.high %v4554, %v4554
      %4561 = vrot.lane.b32.xlu0 %v4554, 105
      %v4562 = vpop.permute.xlu0 %4561
      %4563 = vrot.lane.b32.xlu0 %v4560, 105
      %v4564 = vpop.permute.xlu0 %4563
      %4565 = vrot.lane.b32.xlu0 %v4555, 105
      %v4566 = vpop.permute.xlu0 %4565
      %v4567 = vsel %vm1674, %v4562, %v4564
      %v4568 = vsel %vm1674, %v4564, %v4566
      %v4570 = vsel %vm3224, %v4557, 0
      %v4572 = vsel %vm291, %v4567, 0
      %v4574 = vsel %vm291, %v4568, 0
      %v4576 = vsel %vm291, %v4566, 0
      %4578 = vmatprep.subr.mxu0 %v4574
      %4579 = vmatpush1.msra.mxu0 %v4572
      %4580 = vmatprep.subr.mxu0 0.0
      %4581 = vmatpush1.msra.mxu0 0.0
      %4582 = vmatprep.subr.mxu0 0.0
      %4583 = vmatpush1.msra.mxu0 0.0
      %4584 = vmatprep.subr.mxu0 0.0
      %4585 = vmatpush1.msra.mxu0 0.0
      %4586 = vmatprep.subr.mxu0 0.0
      %4587 = vmatpush1.msra.mxu0 0.0
      %4588 = vmatprep.subr.mxu0 0.0
      %4589 = vmatpush1.msra.mxu0 0.0
      %4590 = vmatprep.subr.mxu0 0.0
      %4591 = vmatpush1.msra.mxu0 0.0
      %4592 = vmatprep.subr.mxu0 0.0
      %4593 = vmatpush1.msra.mxu0 0.0
      %4594 = vmatprep.subr.mxu0 0.0
      %4595 = vmatpush1.msra.mxu0 0.0
      %4596 = vmatprep.subr.mxu0 0.0
      %4597 = vmatpush1.msra.mxu0 0.0
      %4598 = vmatprep.subr.mxu0 0.0
      %4599 = vmatpush1.msra.mxu0 0.0
      %4600 = vmatprep.subr.mxu0 0.0
      %4601 = vmatpush1.msra.mxu0 0.0
      %4602 = vmatprep.subr.mxu0 0.0
      %4603 = vmatpush1.msra.mxu0 0.0
      %4604 = vmatprep.subr.mxu0 0.0
      %4605 = vmatpush1.msra.mxu0 0.0
      %4606 = vmatprep.subr.mxu0 0.0
      %4607 = vmatpush1.msra.mxu0 0.0
      %4608 = vmatprep.subr.mxu0 0.0
      %4609 = vmatpush1.msra.mxu0 0.0
      %4610 = vmatprep.subr.mxu0 0.0
      %4611 = vmatpush1.msra.mxu0 0.0
      %4612 = vmatprep.subr.mxu0 0.0
      %4613 = vmatpush1.msra.mxu0 0.0
      %4614 = vmatprep.subr.mxu0 0.0
      %4615 = vmatpush1.msra.mxu0 0.0
      %4616 = vmatprep.subr.mxu0 0.0
      %4617 = vmatpush1.msra.mxu0 0.0
      %4618 = vmatprep.subr.mxu0 0.0
      %4619 = vmatpush1.msra.mxu0 0.0
      %4620 = vmatprep.subr.mxu0 0.0
      %4621 = vmatpush1.msra.mxu0 0.0
      %4622 = vmatprep.subr.mxu0 0.0
      %4623 = vmatpush1.msra.mxu0 0.0
      %4624 = vmatprep.subr.mxu0 0.0
      %4625 = vmatpush1.msra.mxu0 0.0
      %4626 = vmatprep.subr.mxu0 0.0
      %4627 = vmatpush1.msra.mxu0 0.0
      %4628 = vmatprep.subr.mxu0 0.0
      %4629 = vmatpush1.msra.mxu0 0.0
      %4630 = vmatprep.subr.mxu0 0.0
      %4631 = vmatpush1.msra.mxu0 0.0
      %4632 = vmatprep.subr.mxu0 0.0
      %4633 = vmatpush1.msra.mxu0 0.0
      %4634 = vmatprep.subr.mxu0 0.0
      %4635 = vmatpush1.msra.mxu0 0.0
      %4636 = vmatprep.subr.mxu0 0.0
      %4637 = vmatpush1.msra.mxu0 0.0
      %4638 = vmatprep.subr.mxu0 0.0
      %4639 = vmatpush1.msra.mxu0 0.0
      %4640 = vmatprep.subr.mxu0 0.0
      %4641 = vmatpush1.msra.mxu0 0.0
      %4642 = vmatprep.mubr.f32.mxu0 0.0
      %4643 = vmatmul.mubr.f32.gmra.mrb[0].mxu0 %v4570
      %v4644 = vpop.f32.mrb[0].mxu0
      %v4645 = vadd.f32 0.0, %v4644
      %v4646 = vpop.f32.mrb[0].mxu0
      %v4647 = vadd.f32 0.0, %v4646
      %4648 = vdwg.mxu0
      %4649 = vmatprep.subr.mxu0 0.0
      %4650 = vmatpush1.msra.mxu0 %v4576
      %4651 = vmatprep.subr.mxu0 0.0
      %4652 = vmatpush1.msra.mxu0 0.0
      %4653 = vmatprep.subr.mxu0 0.0
      %4654 = vmatpush1.msra.mxu0 0.0
      %4655 = vmatprep.subr.mxu0 0.0
      %4656 = vmatpush1.msra.mxu0 0.0
      %4657 = vmatprep.subr.mxu0 0.0
      %4658 = vmatpush1.msra.mxu0 0.0
      %4659 = vmatprep.subr.mxu0 0.0
      %4660 = vmatpush1.msra.mxu0 0.0
      %4661 = vmatprep.subr.mxu0 0.0
      %4662 = vmatpush1.msra.mxu0 0.0
      %4663 = vmatprep.subr.mxu0 0.0
      %4664 = vmatpush1.msra.mxu0 0.0
      %4665 = vmatprep.subr.mxu0 0.0
      %4666 = vmatpush1.msra.mxu0 0.0
      %4667 = vmatprep.subr.mxu0 0.0
      %4668 = vmatpush1.msra.mxu0 0.0
      %4669 = vmatprep.subr.mxu0 0.0
      %4670 = vmatpush1.msra.mxu0 0.0
      %4671 = vmatprep.subr.mxu0 0.0
      %4672 = vmatpush1.msra.mxu0 0.0
      %4673 = vmatprep.subr.mxu0 0.0
      %4674 = vmatpush1.msra.mxu0 0.0
      %4675 = vmatprep.subr.mxu0 0.0
      %4676 = vmatpush1.msra.mxu0 0.0
      %4677 = vmatprep.subr.mxu0 0.0
      %4678 = vmatpush1.msra.mxu0 0.0
      %4679 = vmatprep.subr.mxu0 0.0
      %4680 = vmatpush1.msra.mxu0 0.0
      %4681 = vmatprep.subr.mxu0 0.0
      %4682 = vmatpush1.msra.mxu0 0.0
      %4683 = vmatprep.subr.mxu0 0.0
      %4684 = vmatpush1.msra.mxu0 0.0
      %4685 = vmatprep.subr.mxu0 0.0
      %4686 = vmatpush1.msra.mxu0 0.0
      %4687 = vmatprep.subr.mxu0 0.0
      %4688 = vmatpush1.msra.mxu0 0.0
      %4689 = vmatprep.subr.mxu0 0.0
      %4690 = vmatpush1.msra.mxu0 0.0
      %4691 = vmatprep.subr.mxu0 0.0
      %4692 = vmatpush1.msra.mxu0 0.0
      %4693 = vmatprep.subr.mxu0 0.0
      %4694 = vmatpush1.msra.mxu0 0.0
      %4695 = vmatprep.subr.mxu0 0.0
      %4696 = vmatpush1.msra.mxu0 0.0
      %4697 = vmatprep.subr.mxu0 0.0
      %4698 = vmatpush1.msra.mxu0 0.0
      %4699 = vmatprep.subr.mxu0 0.0
      %4700 = vmatpush1.msra.mxu0 0.0
      %4701 = vmatprep.subr.mxu0 0.0
      %4702 = vmatpush1.msra.mxu0 0.0
      %4703 = vmatprep.subr.mxu0 0.0
      %4704 = vmatpush1.msra.mxu0 0.0
      %4705 = vmatprep.subr.mxu0 0.0
      %4706 = vmatpush1.msra.mxu0 0.0
      %4707 = vmatprep.subr.mxu0 0.0
      %4708 = vmatpush1.msra.mxu0 0.0
      %4709 = vmatprep.subr.mxu0 0.0
      %4710 = vmatpush1.msra.mxu0 0.0
      %4711 = vmatprep.subr.mxu0 0.0
      %4712 = vmatpush1.msra.mxu0 0.0
      %4713 = vmatprep.mubr.f32.mxu0 0.0
      %4714 = vmatmul.mubr.f32.gmra.mrb[0].mxu0 %v4570
      %v4715 = vpop.f32.mrb[0].mxu0
      %v4716 = vadd.f32 0.0, %v4715
      %v4717 = vpop.f32.mrb[0].mxu0
      %4718 = vdwg.mxu0
      %v4719 = vadd.f32 %v4551, %v4645
      %v4720 = vadd.f32 %v4552, %v4647
      %v4721 = vadd.f32 %v4553, %v4716
      %v4722 = vld [vmem:[#allocation3] sm:$0xff]
      %v4723 = vld [vmem:[#allocation3 + $0x8] sm:$0xf]
      %s4724 = scalar_lea.vmem %s5, 9
      %v4725 = vld [vmem:[%s4724] sm:$0x1]
      %v4728 = vcombine.high %v4722, %v4722
      %4729 = vrot.lane.b32.xlu0 %v4722, 104
      %v4730 = vpop.permute.xlu0 %4729
      %4731 = vrot.lane.b32.xlu0 %v4728, 104
      %v4732 = vpop.permute.xlu0 %4731
      %4733 = vrot.lane.b32.xlu0 %v4723, 104
      %v4734 = vpop.permute.xlu0 %4733
      %v4735 = vsel %vm1763, %v4730, %v4732
      %v4736 = vsel %vm1763, %v4732, %v4734
      %v4738 = vsel %vm3224, %v4725, 0
      %v4740 = vsel %vm291, %v4735, 0
      %v4742 = vsel %vm291, %v4736, 0
      %v4744 = vsel %vm291, %v4734, 0
      %4746 = vmatprep.subr.mxu0 %v4742
      %4747 = vmatpush1.msra.mxu0 %v4740
      %4748 = vmatprep.subr.mxu0 0.0
      %4749 = vmatpush1.msra.mxu0 0.0
      %4750 = vmatprep.subr.mxu0 0.0
      %4751 = vmatpush1.msra.mxu0 0.0
      %4752 = vmatprep.subr.mxu0 0.0
      %4753 = vmatpush1.msra.mxu0 0.0
      %4754 = vmatprep.subr.mxu0 0.0
      %4755 = vmatpush1.msra.mxu0 0.0
      %4756 = vmatprep.subr.mxu0 0.0
      %4757 = vmatpush1.msra.mxu0 0.0
      %4758 = vmatprep.subr.mxu0 0.0
      %4759 = vmatpush1.msra.mxu0 0.0
      %4760 = vmatprep.subr.mxu0 0.0
      %4761 = vmatpush1.msra.mxu0 0.0
      %4762 = vmatprep.subr.mxu0 0.0
      %4763 = vmatpush1.msra.mxu0 0.0
      %4764 = vmatprep.subr.mxu0 0.0
      %4765 = vmatpush1.msra.mxu0 0.0
      %4766 = vmatprep.subr.mxu0 0.0
      %4767 = vmatpush1.msra.mxu0 0.0
      %4768 = vmatprep.subr.mxu0 0.0
      %4769 = vmatpush1.msra.mxu0 0.0
      %4770 = vmatprep.subr.mxu0 0.0
      %4771 = vmatpush1.msra.mxu0 0.0
      %4772 = vmatprep.subr.mxu0 0.0
      %4773 = vmatpush1.msra.mxu0 0.0
      %4774 = vmatprep.subr.mxu0 0.0
      %4775 = vmatpush1.msra.mxu0 0.0
      %4776 = vmatprep.subr.mxu0 0.0
      %4777 = vmatpush1.msra.mxu0 0.0
      %4778 = vmatprep.subr.mxu0 0.0
      %4779 = vmatpush1.msra.mxu0 0.0
      %4780 = vmatprep.subr.mxu0 0.0
      %4781 = vmatpush1.msra.mxu0 0.0
      %4782 = vmatprep.subr.mxu0 0.0
      %4783 = vmatpush1.msra.mxu0 0.0
      %4784 = vmatprep.subr.mxu0 0.0
      %4785 = vmatpush1.msra.mxu0 0.0
      %4786 = vmatprep.subr.mxu0 0.0
      %4787 = vmatpush1.msra.mxu0 0.0
      %4788 = vmatprep.subr.mxu0 0.0
      %4789 = vmatpush1.msra.mxu0 0.0
      %4790 = vmatprep.subr.mxu0 0.0
      %4791 = vmatpush1.msra.mxu0 0.0
      %4792 = vmatprep.subr.mxu0 0.0
      %4793 = vmatpush1.msra.mxu0 0.0
      %4794 = vmatprep.subr.mxu0 0.0
      %4795 = vmatpush1.msra.mxu0 0.0
      %4796 = vmatprep.subr.mxu0 0.0
      %4797 = vmatpush1.msra.mxu0 0.0
      %4798 = vmatprep.subr.mxu0 0.0
      %4799 = vmatpush1.msra.mxu0 0.0
      %4800 = vmatprep.subr.mxu0 0.0
      %4801 = vmatpush1.msra.mxu0 0.0
      %4802 = vmatprep.subr.mxu0 0.0
      %4803 = vmatpush1.msra.mxu0 0.0
      %4804 = vmatprep.subr.mxu0 0.0
      %4805 = vmatpush1.msra.mxu0 0.0
      %4806 = vmatprep.subr.mxu0 0.0
      %4807 = vmatpush1.msra.mxu0 0.0
      %4808 = vmatprep.subr.mxu0 0.0
      %4809 = vmatpush1.msra.mxu0 0.0
      %4810 = vmatprep.mubr.f32.mxu0 0.0
      %4811 = vmatmul.mubr.f32.gmra.mrb[0].mxu0 %v4738
      %v4812 = vpop.f32.mrb[0].mxu0
      %v4813 = vadd.f32 0.0, %v4812
      %v4814 = vpop.f32.mrb[0].mxu0
      %v4815 = vadd.f32 0.0, %v4814
      %4816 = vdwg.mxu0
      %4817 = vmatprep.subr.mxu0 0.0
      %4818 = vmatpush1.msra.mxu0 %v4744
      %4819 = vmatprep.subr.mxu0 0.0
      %4820 = vmatpush1.msra.mxu0 0.0
      %4821 = vmatprep.subr.mxu0 0.0
      %4822 = vmatpush1.msra.mxu0 0.0
      %4823 = vmatprep.subr.mxu0 0.0
      %4824 = vmatpush1.msra.mxu0 0.0
      %4825 = vmatprep.subr.mxu0 0.0
      %4826 = vmatpush1.msra.mxu0 0.0
      %4827 = vmatprep.subr.mxu0 0.0
      %4828 = vmatpush1.msra.mxu0 0.0
      %4829 = vmatprep.subr.mxu0 0.0
      %4830 = vmatpush1.msra.mxu0 0.0
      %4831 = vmatprep.subr.mxu0 0.0
      %4832 = vmatpush1.msra.mxu0 0.0
      %4833 = vmatprep.subr.mxu0 0.0
      %4834 = vmatpush1.msra.mxu0 0.0
      %4835 = vmatprep.subr.mxu0 0.0
      %4836 = vmatpush1.msra.mxu0 0.0
      %4837 = vmatprep.subr.mxu0 0.0
      %4838 = vmatpush1.msra.mxu0 0.0
      %4839 = vmatprep.subr.mxu0 0.0
      %4840 = vmatpush1.msra.mxu0 0.0
      %4841 = vmatprep.subr.mxu0 0.0
      %4842 = vmatpush1.msra.mxu0 0.0
      %4843 = vmatprep.subr.mxu0 0.0
      %4844 = vmatpush1.msra.mxu0 0.0
      %4845 = vmatprep.subr.mxu0 0.0
      %4846 = vmatpush1.msra.mxu0 0.0
      %4847 = vmatprep.subr.mxu0 0.0
      %4848 = vmatpush1.msra.mxu0 0.0
      %4849 = vmatprep.subr.mxu0 0.0
      %4850 = vmatpush1.msra.mxu0 0.0
      %4851 = vmatprep.subr.mxu0 0.0
      %4852 = vmatpush1.msra.mxu0 0.0
      %4853 = vmatprep.subr.mxu0 0.0
      %4854 = vmatpush1.msra.mxu0 0.0
      %4855 = vmatprep.subr.mxu0 0.0
      %4856 = vmatpush1.msra.mxu0 0.0
      %4857 = vmatprep.subr.mxu0 0.0
      %4858 = vmatpush1.msra.mxu0 0.0
      %4859 = vmatprep.subr.mxu0 0.0
      %4860 = vmatpush1.msra.mxu0 0.0
      %4861 = vmatprep.subr.mxu0 0.0
      %4862 = vmatpush1.msra.mxu0 0.0
      %4863 = vmatprep.subr.mxu0 0.0
      %4864 = vmatpush1.msra.mxu0 0.0
      %4865 = vmatprep.subr.mxu0 0.0
      %4866 = vmatpush1.msra.mxu0 0.0
      %4867 = vmatprep.subr.mxu0 0.0
      %4868 = vmatpush1.msra.mxu0 0.0
      %4869 = vmatprep.subr.mxu0 0.0
      %4870 = vmatpush1.msra.mxu0 0.0
      %4871 = vmatprep.subr.mxu0 0.0
      %4872 = vmatpush1.msra.mxu0 0.0
      %4873 = vmatprep.subr.mxu0 0.0
      %4874 = vmatpush1.msra.mxu0 0.0
      %4875 = vmatprep.subr.mxu0 0.0
      %4876 = vmatpush1.msra.mxu0 0.0
      %4877 = vmatprep.subr.mxu0 0.0
      %4878 = vmatpush1.msra.mxu0 0.0
      %4879 = vmatprep.subr.mxu0 0.0
      %4880 = vmatpush1.msra.mxu0 0.0
      %4881 = vmatprep.mubr.f32.mxu0 0.0
      %4882 = vmatmul.mubr.f32.gmra.mrb[0].mxu0 %v4738
      %v4883 = vpop.f32.mrb[0].mxu0
      %v4884 = vadd.f32 0.0, %v4883
      %v4885 = vpop.f32.mrb[0].mxu0
      %4886 = vdwg.mxu0
      %v4887 = vadd.f32 %v4719, %v4813
      %v4888 = vadd.f32 %v4720, %v4815
      %v4889 = vadd.f32 %v4721, %v4884
      %v4890 = vld [vmem:[#allocation3] sm:$0xff]
      %v4891 = vld [vmem:[#allocation3 + $0x8] sm:$0xf]
      %s4892 = scalar_lea.vmem %s5, 10
      %v4893 = vld [vmem:[%s4892] sm:$0x1]
      %v4896 = vcombine.high %v4890, %v4890
      %4897 = vrot.lane.b32.xlu0 %v4890, 88
      %v4898 = vpop.permute.xlu0 %4897
      %4899 = vrot.lane.b32.xlu0 %v4896, 88
      %v4900 = vpop.permute.xlu0 %4899
      %4901 = vrot.lane.b32.xlu0 %v4891, 88
      %v4902 = vpop.permute.xlu0 %4901
      %v4903 = vsel %vm1852, %v4898, %v4900
      %v4904 = vsel %vm1852, %v4900, %v4902
      %v4906 = vsel %vm3224, %v4893, 0
      %v4908 = vsel %vm291, %v4903, 0
      %v4910 = vsel %vm291, %v4904, 0
      %v4912 = vsel %vm291, %v4902, 0
      %4914 = vmatprep.subr.mxu0 %v4910
      %4915 = vmatpush1.msra.mxu0 %v4908
      %4916 = vmatprep.subr.mxu0 0.0
      %4917 = vmatpush1.msra.mxu0 0.0
      %4918 = vmatprep.subr.mxu0 0.0
      %4919 = vmatpush1.msra.mxu0 0.0
      %4920 = vmatprep.subr.mxu0 0.0
      %4921 = vmatpush1.msra.mxu0 0.0
      %4922 = vmatprep.subr.mxu0 0.0
      %4923 = vmatpush1.msra.mxu0 0.0
      %4924 = vmatprep.subr.mxu0 0.0
      %4925 = vmatpush1.msra.mxu0 0.0
      %4926 = vmatprep.subr.mxu0 0.0
      %4927 = vmatpush1.msra.mxu0 0.0
      %4928 = vmatprep.subr.mxu0 0.0
      %4929 = vmatpush1.msra.mxu0 0.0
      %4930 = vmatprep.subr.mxu0 0.0
      %4931 = vmatpush1.msra.mxu0 0.0
      %4932 = vmatprep.subr.mxu0 0.0
      %4933 = vmatpush1.msra.mxu0 0.0
      %4934 = vmatprep.subr.mxu0 0.0
      %4935 = vmatpush1.msra.mxu0 0.0
      %4936 = vmatprep.subr.mxu0 0.0
      %4937 = vmatpush1.msra.mxu0 0.0
      %4938 = vmatprep.subr.mxu0 0.0
      %4939 = vmatpush1.msra.mxu0 0.0
      %4940 = vmatprep.subr.mxu0 0.0
      %4941 = vmatpush1.msra.mxu0 0.0
      %4942 = vmatprep.subr.mxu0 0.0
      %4943 = vmatpush1.msra.mxu0 0.0
      %4944 = vmatprep.subr.mxu0 0.0
      %4945 = vmatpush1.msra.mxu0 0.0
      %4946 = vmatprep.subr.mxu0 0.0
      %4947 = vmatpush1.msra.mxu0 0.0
      %4948 = vmatprep.subr.mxu0 0.0
      %4949 = vmatpush1.msra.mxu0 0.0
      %4950 = vmatprep.subr.mxu0 0.0
      %4951 = vmatpush1.msra.mxu0 0.0
      %4952 = vmatprep.subr.mxu0 0.0
      %4953 = vmatpush1.msra.mxu0 0.0
      %4954 = vmatprep.subr.mxu0 0.0
      %4955 = vmatpush1.msra.mxu0 0.0
      %4956 = vmatprep.subr.mxu0 0.0
      %4957 = vmatpush1.msra.mxu0 0.0
      %4958 = vmatprep.subr.mxu0 0.0
      %4959 = vmatpush1.msra.mxu0 0.0
      %4960 = vmatprep.subr.mxu0 0.0
      %4961 = vmatpush1.msra.mxu0 0.0
      %4962 = vmatprep.subr.mxu0 0.0
      %4963 = vmatpush1.msra.mxu0 0.0
      %4964 = vmatprep.subr.mxu0 0.0
      %4965 = vmatpush1.msra.mxu0 0.0
      %4966 = vmatprep.subr.mxu0 0.0
      %4967 = vmatpush1.msra.mxu0 0.0
      %4968 = vmatprep.subr.mxu0 0.0
      %4969 = vmatpush1.msra.mxu0 0.0
      %4970 = vmatprep.subr.mxu0 0.0
      %4971 = vmatpush1.msra.mxu0 0.0
      %4972 = vmatprep.subr.mxu0 0.0
      %4973 = vmatpush1.msra.mxu0 0.0
      %4974 = vmatprep.subr.mxu0 0.0
      %4975 = vmatpush1.msra.mxu0 0.0
      %4976 = vmatprep.subr.mxu0 0.0
      %4977 = vmatpush1.msra.mxu0 0.0
      %4978 = vmatprep.mubr.f32.mxu0 0.0
      %4979 = vmatmul.mubr.f32.gmra.mrb[0].mxu0 %v4906
      %v4980 = vpop.f32.mrb[0].mxu0
      %v4981 = vadd.f32 0.0, %v4980
      %v4982 = vpop.f32.mrb[0].mxu0
      %v4983 = vadd.f32 0.0, %v4982
      %4984 = vdwg.mxu0
      %4985 = vmatprep.subr.mxu0 0.0
      %4986 = vmatpush1.msra.mxu0 %v4912
      %4987 = vmatprep.subr.mxu0 0.0
      %4988 = vmatpush1.msra.mxu0 0.0
      %4989 = vmatprep.subr.mxu0 0.0
      %4990 = vmatpush1.msra.mxu0 0.0
      %4991 = vmatprep.subr.mxu0 0.0
      %4992 = vmatpush1.msra.mxu0 0.0
      %4993 = vmatprep.subr.mxu0 0.0
      %4994 = vmatpush1.msra.mxu0 0.0
      %4995 = vmatprep.subr.mxu0 0.0
      %4996 = vmatpush1.msra.mxu0 0.0
      %4997 = vmatprep.subr.mxu0 0.0
      %4998 = vmatpush1.msra.mxu0 0.0
      %4999 = vmatprep.subr.mxu0 0.0
      %5000 = vmatpush1.msra.mxu0 0.0
      %5001 = vmatprep.subr.mxu0 0.0
      %5002 = vmatpush1.msra.mxu0 0.0
      %5003 = vmatprep.subr.mxu0 0.0
      %5004 = vmatpush1.msra.mxu0 0.0
      %5005 = vmatprep.subr.mxu0 0.0
      %5006 = vmatpush1.msra.mxu0 0.0
      %5007 = vmatprep.subr.mxu0 0.0
      %5008 = vmatpush1.msra.mxu0 0.0
      %5009 = vmatprep.subr.mxu0 0.0
      %5010 = vmatpush1.msra.mxu0 0.0
      %5011 = vmatprep.subr.mxu0 0.0
      %5012 = vmatpush1.msra.mxu0 0.0
      %5013 = vmatprep.subr.mxu0 0.0
      %5014 = vmatpush1.msra.mxu0 0.0
      %5015 = vmatprep.subr.mxu0 0.0
      %5016 = vmatpush1.msra.mxu0 0.0
      %5017 = vmatprep.subr.mxu0 0.0
      %5018 = vmatpush1.msra.mxu0 0.0
      %5019 = vmatprep.subr.mxu0 0.0
      %5020 = vmatpush1.msra.mxu0 0.0
      %5021 = vmatprep.subr.mxu0 0.0
      %5022 = vmatpush1.msra.mxu0 0.0
      %5023 = vmatprep.subr.mxu0 0.0
      %5024 = vmatpush1.msra.mxu0 0.0
      %5025 = vmatprep.subr.mxu0 0.0
      %5026 = vmatpush1.msra.mxu0 0.0
      %5027 = vmatprep.subr.mxu0 0.0
      %5028 = vmatpush1.msra.mxu0 0.0
      %5029 = vmatprep.subr.mxu0 0.0
      %5030 = vmatpush1.msra.mxu0 0.0
      %5031 = vmatprep.subr.mxu0 0.0
      %5032 = vmatpush1.msra.mxu0 0.0
      %5033 = vmatprep.subr.mxu0 0.0
      %5034 = vmatpush1.msra.mxu0 0.0
      %5035 = vmatprep.subr.mxu0 0.0
      %5036 = vmatpush1.msra.mxu0 0.0
      %5037 = vmatprep.subr.mxu0 0.0
      %5038 = vmatpush1.msra.mxu0 0.0
      %5039 = vmatprep.subr.mxu0 0.0
      %5040 = vmatpush1.msra.mxu0 0.0
      %5041 = vmatprep.subr.mxu0 0.0
      %5042 = vmatpush1.msra.mxu0 0.0
      %5043 = vmatprep.subr.mxu0 0.0
      %5044 = vmatpush1.msra.mxu0 0.0
      %5045 = vmatprep.subr.mxu0 0.0
      %5046 = vmatpush1.msra.mxu0 0.0
      %5047 = vmatprep.subr.mxu0 0.0
      %5048 = vmatpush1.msra.mxu0 0.0
      %5049 = vmatprep.mubr.f32.mxu0 0.0
      %5050 = vmatmul.mubr.f32.gmra.mrb[0].mxu0 %v4906
      %v5051 = vpop.f32.mrb[0].mxu0
      %v5052 = vadd.f32 0.0, %v5051
      %v5053 = vpop.f32.mrb[0].mxu0
      %5054 = vdwg.mxu0
      %v5055 = vadd.f32 %v4887, %v4981
      %v5056 = vadd.f32 %v4888, %v4983
      %v5057 = vadd.f32 %v4889, %v5052
      %v5058 = vld [vmem:[#allocation3] sm:$0xff]
      %v5059 = vld [vmem:[#allocation3 + $0x8] sm:$0xf]
      %s5060 = scalar_lea.vmem %s5, 11
      %v5061 = vld [vmem:[%s5060] sm:$0x1]
      %v5064 = vcombine.high %v5058, %v5058
      %5065 = vrot.lane.b32.xlu0 %v5058, 87
      %v5066 = vpop.permute.xlu0 %5065
      %5067 = vrot.lane.b32.xlu0 %v5064, 87
      %v5068 = vpop.permute.xlu0 %5067
      %5069 = vrot.lane.b32.xlu0 %v5059, 87
      %v5070 = vpop.permute.xlu0 %5069
      %v5071 = vsel %vm1941, %v5066, %v5068
      %v5072 = vsel %vm1941, %v5068, %v5070
      %v5074 = vsel %vm3224, %v5061, 0
      %v5076 = vsel %vm291, %v5071, 0
      %v5078 = vsel %vm291, %v5072, 0
      %v5080 = vsel %vm291, %v5070, 0
      %5082 = vmatprep.subr.mxu0 %v5078
      %5083 = vmatpush1.msra.mxu0 %v5076
      %5084 = vmatprep.subr.mxu0 0.0
      %5085 = vmatpush1.msra.mxu0 0.0
      %5086 = vmatprep.subr.mxu0 0.0
      %5087 = vmatpush1.msra.mxu0 0.0
      %5088 = vmatprep.subr.mxu0 0.0
      %5089 = vmatpush1.msra.mxu0 0.0
      %5090 = vmatprep.subr.mxu0 0.0
      %5091 = vmatpush1.msra.mxu0 0.0
      %5092 = vmatprep.subr.mxu0 0.0
      %5093 = vmatpush1.msra.mxu0 0.0
      %5094 = vmatprep.subr.mxu0 0.0
      %5095 = vmatpush1.msra.mxu0 0.0
      %5096 = vmatprep.subr.mxu0 0.0
      %5097 = vmatpush1.msra.mxu0 0.0
      %5098 = vmatprep.subr.mxu0 0.0
      %5099 = vmatpush1.msra.mxu0 0.0
      %5100 = vmatprep.subr.mxu0 0.0
      %5101 = vmatpush1.msra.mxu0 0.0
      %5102 = vmatprep.subr.mxu0 0.0
      %5103 = vmatpush1.msra.mxu0 0.0
      %5104 = vmatprep.subr.mxu0 0.0
      %5105 = vmatpush1.msra.mxu0 0.0
      %5106 = vmatprep.subr.mxu0 0.0
      %5107 = vmatpush1.msra.mxu0 0.0
      %5108 = vmatprep.subr.mxu0 0.0
      %5109 = vmatpush1.msra.mxu0 0.0
      %5110 = vmatprep.subr.mxu0 0.0
      %5111 = vmatpush1.msra.mxu0 0.0
      %5112 = vmatprep.subr.mxu0 0.0
      %5113 = vmatpush1.msra.mxu0 0.0
      %5114 = vmatprep.subr.mxu0 0.0
      %5115 = vmatpush1.msra.mxu0 0.0
      %5116 = vmatprep.subr.mxu0 0.0
      %5117 = vmatpush1.msra.mxu0 0.0
      %5118 = vmatprep.subr.mxu0 0.0
      %5119 = vmatpush1.msra.mxu0 0.0
      %5120 = vmatprep.subr.mxu0 0.0
      %5121 = vmatpush1.msra.mxu0 0.0
      %5122 = vmatprep.subr.mxu0 0.0
      %5123 = vmatpush1.msra.mxu0 0.0
      %5124 = vmatprep.subr.mxu0 0.0
      %5125 = vmatpush1.msra.mxu0 0.0
      %5126 = vmatprep.subr.mxu0 0.0
      %5127 = vmatpush1.msra.mxu0 0.0
      %5128 = vmatprep.subr.mxu0 0.0
      %5129 = vmatpush1.msra.mxu0 0.0
      %5130 = vmatprep.subr.mxu0 0.0
      %5131 = vmatpush1.msra.mxu0 0.0
      %5132 = vmatprep.subr.mxu0 0.0
      %5133 = vmatpush1.msra.mxu0 0.0
      %5134 = vmatprep.subr.mxu0 0.0
      %5135 = vmatpush1.msra.mxu0 0.0
      %5136 = vmatprep.subr.mxu0 0.0
      %5137 = vmatpush1.msra.mxu0 0.0
      %5138 = vmatprep.subr.mxu0 0.0
      %5139 = vmatpush1.msra.mxu0 0.0
      %5140 = vmatprep.subr.mxu0 0.0
      %5141 = vmatpush1.msra.mxu0 0.0
      %5142 = vmatprep.subr.mxu0 0.0
      %5143 = vmatpush1.msra.mxu0 0.0
      %5144 = vmatprep.subr.mxu0 0.0
      %5145 = vmatpush1.msra.mxu0 0.0
      %5146 = vmatprep.mubr.f32.mxu0 0.0
      %5147 = vmatmul.mubr.f32.gmra.mrb[0].mxu0 %v5074
      %v5148 = vpop.f32.mrb[0].mxu0
      %v5149 = vadd.f32 0.0, %v5148
      %v5150 = vpop.f32.mrb[0].mxu0
      %v5151 = vadd.f32 0.0, %v5150
      %5152 = vdwg.mxu0
      %5153 = vmatprep.subr.mxu0 0.0
      %5154 = vmatpush1.msra.mxu0 %v5080
      %5155 = vmatprep.subr.mxu0 0.0
      %5156 = vmatpush1.msra.mxu0 0.0
      %5157 = vmatprep.subr.mxu0 0.0
      %5158 = vmatpush1.msra.mxu0 0.0
      %5159 = vmatprep.subr.mxu0 0.0
      %5160 = vmatpush1.msra.mxu0 0.0
      %5161 = vmatprep.subr.mxu0 0.0
      %5162 = vmatpush1.msra.mxu0 0.0
      %5163 = vmatprep.subr.mxu0 0.0
      %5164 = vmatpush1.msra.mxu0 0.0
      %5165 = vmatprep.subr.mxu0 0.0
      %5166 = vmatpush1.msra.mxu0 0.0
      %5167 = vmatprep.subr.mxu0 0.0
      %5168 = vmatpush1.msra.mxu0 0.0
      %5169 = vmatprep.subr.mxu0 0.0
      %5170 = vmatpush1.msra.mxu0 0.0
      %5171 = vmatprep.subr.mxu0 0.0
      %5172 = vmatpush1.msra.mxu0 0.0
      %5173 = vmatprep.subr.mxu0 0.0
      %5174 = vmatpush1.msra.mxu0 0.0
      %5175 = vmatprep.subr.mxu0 0.0
      %5176 = vmatpush1.msra.mxu0 0.0
      %5177 = vmatprep.subr.mxu0 0.0
      %5178 = vmatpush1.msra.mxu0 0.0
      %5179 = vmatprep.subr.mxu0 0.0
      %5180 = vmatpush1.msra.mxu0 0.0
      %5181 = vmatprep.subr.mxu0 0.0
      %5182 = vmatpush1.msra.mxu0 0.0
      %5183 = vmatprep.subr.mxu0 0.0
      %5184 = vmatpush1.msra.mxu0 0.0
      %5185 = vmatprep.subr.mxu0 0.0
      %5186 = vmatpush1.msra.mxu0 0.0
      %5187 = vmatprep.subr.mxu0 0.0
      %5188 = vmatpush1.msra.mxu0 0.0
      %5189 = vmatprep.subr.mxu0 0.0
      %5190 = vmatpush1.msra.mxu0 0.0
      %5191 = vmatprep.subr.mxu0 0.0
      %5192 = vmatpush1.msra.mxu0 0.0
      %5193 = vmatprep.subr.mxu0 0.0
      %5194 = vmatpush1.msra.mxu0 0.0
      %5195 = vmatprep.subr.mxu0 0.0
      %5196 = vmatpush1.msra.mxu0 0.0
      %5197 = vmatprep.subr.mxu0 0.0
      %5198 = vmatpush1.msra.mxu0 0.0
      %5199 = vmatprep.subr.mxu0 0.0
      %5200 = vmatpush1.msra.mxu0 0.0
      %5201 = vmatprep.subr.mxu0 0.0
      %5202 = vmatpush1.msra.mxu0 0.0
      %5203 = vmatprep.subr.mxu0 0.0
      %5204 = vmatpush1.msra.mxu0 0.0
      %5205 = vmatprep.subr.mxu0 0.0
      %5206 = vmatpush1.msra.mxu0 0.0
      %5207 = vmatprep.subr.mxu0 0.0
      %5208 = vmatpush1.msra.mxu0 0.0
      %5209 = vmatprep.subr.mxu0 0.0
      %5210 = vmatpush1.msra.mxu0 0.0
      %5211 = vmatprep.subr.mxu0 0.0
      %5212 = vmatpush1.msra.mxu0 0.0
      %5213 = vmatprep.subr.mxu0 0.0
      %5214 = vmatpush1.msra.mxu0 0.0
      %5215 = vmatprep.subr.mxu0 0.0
      %5216 = vmatpush1.msra.mxu0 0.0
      %5217 = vmatprep.mubr.f32.mxu0 0.0
      %5218 = vmatmul.mubr.f32.gmra.mrb[0].mxu0 %v5074
      %v5219 = vpop.f32.mrb[0].mxu0
      %v5220 = vadd.f32 0.0, %v5219
      %v5221 = vpop.f32.mrb[0].mxu0
      %5222 = vdwg.mxu0
      %v5223 = vadd.f32 %v5055, %v5149
      %v5224 = vadd.f32 %v5056, %v5151
      %v5225 = vadd.f32 %v5057, %v5220
      %v5226 = vld [vmem:[#allocation3] sm:$0xff]
      %v5227 = vld [vmem:[#allocation3 + $0x8] sm:$0xf]
      %s5228 = scalar_lea.vmem %s5, 12
      %v5229 = vld [vmem:[%s5228] sm:$0x1]
      %v5232 = vcombine.high %v5226, %v5226
      %5233 = vrot.lane.b32.xlu0 %v5226, 86
      %v5234 = vpop.permute.xlu0 %5233
      %5235 = vrot.lane.b32.xlu0 %v5232, 86
      %v5236 = vpop.permute.xlu0 %5235
      %5237 = vrot.lane.b32.xlu0 %v5227, 86
      %v5238 = vpop.permute.xlu0 %5237
      %v5239 = vsel %vm2030, %v5234, %v5236
      %v5240 = vsel %vm2030, %v5236, %v5238
      %v5242 = vsel %vm3224, %v5229, 0
      %v5244 = vsel %vm291, %v5239, 0
      %v5246 = vsel %vm291, %v5240, 0
      %v5248 = vsel %vm291, %v5238, 0
      %5250 = vmatprep.subr.mxu0 %v5246
      %5251 = vmatpush1.msra.mxu0 %v5244
      %5252 = vmatprep.subr.mxu0 0.0
      %5253 = vmatpush1.msra.mxu0 0.0
      %5254 = vmatprep.subr.mxu0 0.0
      %5255 = vmatpush1.msra.mxu0 0.0
      %5256 = vmatprep.subr.mxu0 0.0
      %5257 = vmatpush1.msra.mxu0 0.0
      %5258 = vmatprep.subr.mxu0 0.0
      %5259 = vmatpush1.msra.mxu0 0.0
      %5260 = vmatprep.subr.mxu0 0.0
      %5261 = vmatpush1.msra.mxu0 0.0
      %5262 = vmatprep.subr.mxu0 0.0
      %5263 = vmatpush1.msra.mxu0 0.0
      %5264 = vmatprep.subr.mxu0 0.0
      %5265 = vmatpush1.msra.mxu0 0.0
      %5266 = vmatprep.subr.mxu0 0.0
      %5267 = vmatpush1.msra.mxu0 0.0
      %5268 = vmatprep.subr.mxu0 0.0
      %5269 = vmatpush1.msra.mxu0 0.0
      %5270 = vmatprep.subr.mxu0 0.0
      %5271 = vmatpush1.msra.mxu0 0.0
      %5272 = vmatprep.subr.mxu0 0.0
      %5273 = vmatpush1.msra.mxu0 0.0
      %5274 = vmatprep.subr.mxu0 0.0
      %5275 = vmatpush1.msra.mxu0 0.0
      %5276 = vmatprep.subr.mxu0 0.0
      %5277 = vmatpush1.msra.mxu0 0.0
      %5278 = vmatprep.subr.mxu0 0.0
      %5279 = vmatpush1.msra.mxu0 0.0
      %5280 = vmatprep.subr.mxu0 0.0
      %5281 = vmatpush1.msra.mxu0 0.0
      %5282 = vmatprep.subr.mxu0 0.0
      %5283 = vmatpush1.msra.mxu0 0.0
      %5284 = vmatprep.subr.mxu0 0.0
      %5285 = vmatpush1.msra.mxu0 0.0
      %5286 = vmatprep.subr.mxu0 0.0
      %5287 = vmatpush1.msra.mxu0 0.0
      %5288 = vmatprep.subr.mxu0 0.0
      %5289 = vmatpush1.msra.mxu0 0.0
      %5290 = vmatprep.subr.mxu0 0.0
      %5291 = vmatpush1.msra.mxu0 0.0
      %5292 = vmatprep.subr.mxu0 0.0
      %5293 = vmatpush1.msra.mxu0 0.0
      %5294 = vmatprep.subr.mxu0 0.0
      %5295 = vmatpush1.msra.mxu0 0.0
      %5296 = vmatprep.subr.mxu0 0.0
      %5297 = vmatpush1.msra.mxu0 0.0
      %5298 = vmatprep.subr.mxu0 0.0
      %5299 = vmatpush1.msra.mxu0 0.0
      %5300 = vmatprep.subr.mxu0 0.0
      %5301 = vmatpush1.msra.mxu0 0.0
      %5302 = vmatprep.subr.mxu0 0.0
      %5303 = vmatpush1.msra.mxu0 0.0
      %5304 = vmatprep.subr.mxu0 0.0
      %5305 = vmatpush1.msra.mxu0 0.0
      %5306 = vmatprep.subr.mxu0 0.0
      %5307 = vmatpush1.msra.mxu0 0.0
      %5308 = vmatprep.subr.mxu0 0.0
      %5309 = vmatpush1.msra.mxu0 0.0
      %5310 = vmatprep.subr.mxu0 0.0
      %5311 = vmatpush1.msra.mxu0 0.0
      %5312 = vmatprep.subr.mxu0 0.0
      %5313 = vmatpush1.msra.mxu0 0.0
      %5314 = vmatprep.mubr.f32.mxu0 0.0
      %5315 = vmatmul.mubr.f32.gmra.mrb[0].mxu0 %v5242
      %v5316 = vpop.f32.mrb[0].mxu0
      %v5317 = vadd.f32 0.0, %v5316
      %v5318 = vpop.f32.mrb[0].mxu0
      %v5319 = vadd.f32 0.0, %v5318
      %5320 = vdwg.mxu0
      %5321 = vmatprep.subr.mxu0 0.0
      %5322 = vmatpush1.msra.mxu0 %v5248
      %5323 = vmatprep.subr.mxu0 0.0
      %5324 = vmatpush1.msra.mxu0 0.0
      %5325 = vmatprep.subr.mxu0 0.0
      %5326 = vmatpush1.msra.mxu0 0.0
      %5327 = vmatprep.subr.mxu0 0.0
      %5328 = vmatpush1.msra.mxu0 0.0
      %5329 = vmatprep.subr.mxu0 0.0
      %5330 = vmatpush1.msra.mxu0 0.0
      %5331 = vmatprep.subr.mxu0 0.0
      %5332 = vmatpush1.msra.mxu0 0.0
      %5333 = vmatprep.subr.mxu0 0.0
      %5334 = vmatpush1.msra.mxu0 0.0
      %5335 = vmatprep.subr.mxu0 0.0
      %5336 = vmatpush1.msra.mxu0 0.0
      %5337 = vmatprep.subr.mxu0 0.0
      %5338 = vmatpush1.msra.mxu0 0.0
      %5339 = vmatprep.subr.mxu0 0.0
      %5340 = vmatpush1.msra.mxu0 0.0
      %5341 = vmatprep.subr.mxu0 0.0
      %5342 = vmatpush1.msra.mxu0 0.0
      %5343 = vmatprep.subr.mxu0 0.0
      %5344 = vmatpush1.msra.mxu0 0.0
      %5345 = vmatprep.subr.mxu0 0.0
      %5346 = vmatpush1.msra.mxu0 0.0
      %5347 = vmatprep.subr.mxu0 0.0
      %5348 = vmatpush1.msra.mxu0 0.0
      %5349 = vmatprep.subr.mxu0 0.0
      %5350 = vmatpush1.msra.mxu0 0.0
      %5351 = vmatprep.subr.mxu0 0.0
      %5352 = vmatpush1.msra.mxu0 0.0
      %5353 = vmatprep.subr.mxu0 0.0
      %5354 = vmatpush1.msra.mxu0 0.0
      %5355 = vmatprep.subr.mxu0 0.0
      %5356 = vmatpush1.msra.mxu0 0.0
      %5357 = vmatprep.subr.mxu0 0.0
      %5358 = vmatpush1.msra.mxu0 0.0
      %5359 = vmatprep.subr.mxu0 0.0
      %5360 = vmatpush1.msra.mxu0 0.0
      %5361 = vmatprep.subr.mxu0 0.0
      %5362 = vmatpush1.msra.mxu0 0.0
      %5363 = vmatprep.subr.mxu0 0.0
      %5364 = vmatpush1.msra.mxu0 0.0
      %5365 = vmatprep.subr.mxu0 0.0
      %5366 = vmatpush1.msra.mxu0 0.0
      %5367 = vmatprep.subr.mxu0 0.0
      %5368 = vmatpush1.msra.mxu0 0.0
      %5369 = vmatprep.subr.mxu0 0.0
      %5370 = vmatpush1.msra.mxu0 0.0
      %5371 = vmatprep.subr.mxu0 0.0
      %5372 = vmatpush1.msra.mxu0 0.0
      %5373 = vmatprep.subr.mxu0 0.0
      %5374 = vmatpush1.msra.mxu0 0.0
      %5375 = vmatprep.subr.mxu0 0.0
      %5376 = vmatpush1.msra.mxu0 0.0
      %5377 = vmatprep.subr.mxu0 0.0
      %5378 = vmatpush1.msra.mxu0 0.0
      %5379 = vmatprep.subr.mxu0 0.0
      %5380 = vmatpush1.msra.mxu0 0.0
      %5381 = vmatprep.subr.mxu0 0.0
      %5382 = vmatpush1.msra.mxu0 0.0
      %5383 = vmatprep.subr.mxu0 0.0
      %5384 = vmatpush1.msra.mxu0 0.0
      %5385 = vmatprep.mubr.f32.mxu0 0.0
      %5386 = vmatmul.mubr.f32.gmra.mrb[0].mxu0 %v5242
      %v5387 = vpop.f32.mrb[0].mxu0
      %v5388 = vadd.f32 0.0, %v5387
      %v5389 = vpop.f32.mrb[0].mxu0
      %5390 = vdwg.mxu0
      %v5391 = vadd.f32 %v5223, %v5317
      %v5392 = vadd.f32 %v5224, %v5319
      %v5393 = vadd.f32 %v5225, %v5388
      %v5394 = vld [vmem:[#allocation3] sm:$0xff]
      %v5395 = vld [vmem:[#allocation3 + $0x8] sm:$0xf]
      %s5396 = scalar_lea.vmem %s5, 13
      %v5397 = vld [vmem:[%s5396] sm:$0x1]
      %v5400 = vcombine.high %v5394, %v5394
      %5401 = vrot.lane.b32.xlu0 %v5394, 85
      %v5402 = vpop.permute.xlu0 %5401
      %5403 = vrot.lane.b32.xlu0 %v5400, 85
      %v5404 = vpop.permute.xlu0 %5403
      %5405 = vrot.lane.b32.xlu0 %v5395, 85
      %v5406 = vpop.permute.xlu0 %5405
      %v5407 = vsel %vm2119, %v5402, %v5404
      %v5408 = vsel %vm2119, %v5404, %v5406
      %v5410 = vsel %vm3224, %v5397, 0
      %v5412 = vsel %vm291, %v5407, 0
      %v5414 = vsel %vm291, %v5408, 0
      %v5416 = vsel %vm291, %v5406, 0
      %5418 = vmatprep.subr.mxu0 %v5414
      %5419 = vmatpush1.msra.mxu0 %v5412
      %5420 = vmatprep.subr.mxu0 0.0
      %5421 = vmatpush1.msra.mxu0 0.0
      %5422 = vmatprep.subr.mxu0 0.0
      %5423 = vmatpush1.msra.mxu0 0.0
      %5424 = vmatprep.subr.mxu0 0.0
      %5425 = vmatpush1.msra.mxu0 0.0
      %5426 = vmatprep.subr.mxu0 0.0
      %5427 = vmatpush1.msra.mxu0 0.0
      %5428 = vmatprep.subr.mxu0 0.0
      %5429 = vmatpush1.msra.mxu0 0.0
      %5430 = vmatprep.subr.mxu0 0.0
      %5431 = vmatpush1.msra.mxu0 0.0
      %5432 = vmatprep.subr.mxu0 0.0
      %5433 = vmatpush1.msra.mxu0 0.0
      %5434 = vmatprep.subr.mxu0 0.0
      %5435 = vmatpush1.msra.mxu0 0.0
      %5436 = vmatprep.subr.mxu0 0.0
      %5437 = vmatpush1.msra.mxu0 0.0
      %5438 = vmatprep.subr.mxu0 0.0
      %5439 = vmatpush1.msra.mxu0 0.0
      %5440 = vmatprep.subr.mxu0 0.0
      %5441 = vmatpush1.msra.mxu0 0.0
      %5442 = vmatprep.subr.mxu0 0.0
      %5443 = vmatpush1.msra.mxu0 0.0
      %5444 = vmatprep.subr.mxu0 0.0
      %5445 = vmatpush1.msra.mxu0 0.0
      %5446 = vmatprep.subr.mxu0 0.0
      %5447 = vmatpush1.msra.mxu0 0.0
      %5448 = vmatprep.subr.mxu0 0.0
      %5449 = vmatpush1.msra.mxu0 0.0
      %5450 = vmatprep.subr.mxu0 0.0
      %5451 = vmatpush1.msra.mxu0 0.0
      %5452 = vmatprep.subr.mxu0 0.0
      %5453 = vmatpush1.msra.mxu0 0.0
      %5454 = vmatprep.subr.mxu0 0.0
      %5455 = vmatpush1.msra.mxu0 0.0
      %5456 = vmatprep.subr.mxu0 0.0
      %5457 = vmatpush1.msra.mxu0 0.0
      %5458 = vmatprep.subr.mxu0 0.0
      %5459 = vmatpush1.msra.mxu0 0.0
      %5460 = vmatprep.subr.mxu0 0.0
      %5461 = vmatpush1.msra.mxu0 0.0
      %5462 = vmatprep.subr.mxu0 0.0
      %5463 = vmatpush1.msra.mxu0 0.0
      %5464 = vmatprep.subr.mxu0 0.0
      %5465 = vmatpush1.msra.mxu0 0.0
      %5466 = vmatprep.subr.mxu0 0.0
      %5467 = vmatpush1.msra.mxu0 0.0
      %5468 = vmatprep.subr.mxu0 0.0
      %5469 = vmatpush1.msra.mxu0 0.0
      %5470 = vmatprep.subr.mxu0 0.0
      %5471 = vmatpush1.msra.mxu0 0.0
      %5472 = vmatprep.subr.mxu0 0.0
      %5473 = vmatpush1.msra.mxu0 0.0
      %5474 = vmatprep.subr.mxu0 0.0
      %5475 = vmatpush1.msra.mxu0 0.0
      %5476 = vmatprep.subr.mxu0 0.0
      %5477 = vmatpush1.msra.mxu0 0.0
      %5478 = vmatprep.subr.mxu0 0.0
      %5479 = vmatpush1.msra.mxu0 0.0
      %5480 = vmatprep.subr.mxu0 0.0
      %5481 = vmatpush1.msra.mxu0 0.0
      %5482 = vmatprep.mubr.f32.mxu0 0.0
      %5483 = vmatmul.mubr.f32.gmra.mrb[0].mxu0 %v5410
      %v5484 = vpop.f32.mrb[0].mxu0
      %v5485 = vadd.f32 0.0, %v5484
      %v5486 = vpop.f32.mrb[0].mxu0
      %v5487 = vadd.f32 0.0, %v5486
      %5488 = vdwg.mxu0
      %5489 = vmatprep.subr.mxu0 0.0
      %5490 = vmatpush1.msra.mxu0 %v5416
      %5491 = vmatprep.subr.mxu0 0.0
      %5492 = vmatpush1.msra.mxu0 0.0
      %5493 = vmatprep.subr.mxu0 0.0
      %5494 = vmatpush1.msra.mxu0 0.0
      %5495 = vmatprep.subr.mxu0 0.0
      %5496 = vmatpush1.msra.mxu0 0.0
      %5497 = vmatprep.subr.mxu0 0.0
      %5498 = vmatpush1.msra.mxu0 0.0
      %5499 = vmatprep.subr.mxu0 0.0
      %5500 = vmatpush1.msra.mxu0 0.0
      %5501 = vmatprep.subr.mxu0 0.0
      %5502 = vmatpush1.msra.mxu0 0.0
      %5503 = vmatprep.subr.mxu0 0.0
      %5504 = vmatpush1.msra.mxu0 0.0
      %5505 = vmatprep.subr.mxu0 0.0
      %5506 = vmatpush1.msra.mxu0 0.0
      %5507 = vmatprep.subr.mxu0 0.0
      %5508 = vmatpush1.msra.mxu0 0.0
      %5509 = vmatprep.subr.mxu0 0.0
      %5510 = vmatpush1.msra.mxu0 0.0
      %5511 = vmatprep.subr.mxu0 0.0
      %5512 = vmatpush1.msra.mxu0 0.0
      %5513 = vmatprep.subr.mxu0 0.0
      %5514 = vmatpush1.msra.mxu0 0.0
      %5515 = vmatprep.subr.mxu0 0.0
      %5516 = vmatpush1.msra.mxu0 0.0
      %5517 = vmatprep.subr.mxu0 0.0
      %5518 = vmatpush1.msra.mxu0 0.0
      %5519 = vmatprep.subr.mxu0 0.0
      %5520 = vmatpush1.msra.mxu0 0.0
      %5521 = vmatprep.subr.mxu0 0.0
      %5522 = vmatpush1.msra.mxu0 0.0
      %5523 = vmatprep.subr.mxu0 0.0
      %5524 = vmatpush1.msra.mxu0 0.0
      %5525 = vmatprep.subr.mxu0 0.0
      %5526 = vmatpush1.msra.mxu0 0.0
      %5527 = vmatprep.subr.mxu0 0.0
      %5528 = vmatpush1.msra.mxu0 0.0
      %5529 = vmatprep.subr.mxu0 0.0
      %5530 = vmatpush1.msra.mxu0 0.0
      %5531 = vmatprep.subr.mxu0 0.0
      %5532 = vmatpush1.msra.mxu0 0.0
      %5533 = vmatprep.subr.mxu0 0.0
      %5534 = vmatpush1.msra.mxu0 0.0
      %5535 = vmatprep.subr.mxu0 0.0
      %5536 = vmatpush1.msra.mxu0 0.0
      %5537 = vmatprep.subr.mxu0 0.0
      %5538 = vmatpush1.msra.mxu0 0.0
      %5539 = vmatprep.subr.mxu0 0.0
      %5540 = vmatpush1.msra.mxu0 0.0
      %5541 = vmatprep.subr.mxu0 0.0
      %5542 = vmatpush1.msra.mxu0 0.0
      %5543 = vmatprep.subr.mxu0 0.0
      %5544 = vmatpush1.msra.mxu0 0.0
      %5545 = vmatprep.subr.mxu0 0.0
      %5546 = vmatpush1.msra.mxu0 0.0
      %5547 = vmatprep.subr.mxu0 0.0
      %5548 = vmatpush1.msra.mxu0 0.0
      %5549 = vmatprep.subr.mxu0 0.0
      %5550 = vmatpush1.msra.mxu0 0.0
      %5551 = vmatprep.subr.mxu0 0.0
      %5552 = vmatpush1.msra.mxu0 0.0
      %5553 = vmatprep.mubr.f32.mxu0 0.0
      %5554 = vmatmul.mubr.f32.gmra.mrb[0].mxu0 %v5410
      %v5555 = vpop.f32.mrb[0].mxu0
      %v5556 = vadd.f32 0.0, %v5555
      %v5557 = vpop.f32.mrb[0].mxu0
      %5558 = vdwg.mxu0
      %v5559 = vadd.f32 %v5391, %v5485
      %v5560 = vadd.f32 %v5392, %v5487
      %v5561 = vadd.f32 %v5393, %v5556
      %v5562 = vld [vmem:[#allocation3] sm:$0xff]
      %v5563 = vld [vmem:[#allocation3 + $0x8] sm:$0xf]
      %s5564 = scalar_lea.vmem %s5, 14
      %v5565 = vld [vmem:[%s5564] sm:$0x1]
      %v5568 = vcombine.high %v5562, %v5562
      %5569 = vrot.lane.b32.xlu0 %v5562, 84
      %v5570 = vpop.permute.xlu0 %5569
      %5571 = vrot.lane.b32.xlu0 %v5568, 84
      %v5572 = vpop.permute.xlu0 %5571
      %5573 = vrot.lane.b32.xlu0 %v5563, 84
      %v5574 = vpop.permute.xlu0 %5573
      %v5575 = vsel %vm288, %v5570, %v5572
      %v5576 = vsel %vm288, %v5572, %v5574
      %v5578 = vsel %vm3224, %v5565, 0
      %v5580 = vsel %vm291, %v5575, 0
      %v5582 = vsel %vm291, %v5576, 0
      %v5584 = vsel %vm291, %v5574, 0
      %5586 = vmatprep.subr.mxu0 %v5582
      %5587 = vmatpush1.msra.mxu0 %v5580
      %5588 = vmatprep.subr.mxu0 0.0
      %5589 = vmatpush1.msra.mxu0 0.0
      %5590 = vmatprep.subr.mxu0 0.0
      %5591 = vmatpush1.msra.mxu0 0.0
      %5592 = vmatprep.subr.mxu0 0.0
      %5593 = vmatpush1.msra.mxu0 0.0
      %5594 = vmatprep.subr.mxu0 0.0
      %5595 = vmatpush1.msra.mxu0 0.0
      %5596 = vmatprep.subr.mxu0 0.0
      %5597 = vmatpush1.msra.mxu0 0.0
      %5598 = vmatprep.subr.mxu0 0.0
      %5599 = vmatpush1.msra.mxu0 0.0
      %5600 = vmatprep.subr.mxu0 0.0
      %5601 = vmatpush1.msra.mxu0 0.0
      %5602 = vmatprep.subr.mxu0 0.0
      %5603 = vmatpush1.msra.mxu0 0.0
      %5604 = vmatprep.subr.mxu0 0.0
      %5605 = vmatpush1.msra.mxu0 0.0
      %5606 = vmatprep.subr.mxu0 0.0
      %5607 = vmatpush1.msra.mxu0 0.0
      %5608 = vmatprep.subr.mxu0 0.0
      %5609 = vmatpush1.msra.mxu0 0.0
      %5610 = vmatprep.subr.mxu0 0.0
      %5611 = vmatpush1.msra.mxu0 0.0
      %5612 = vmatprep.subr.mxu0 0.0
      %5613 = vmatpush1.msra.mxu0 0.0
      %5614 = vmatprep.subr.mxu0 0.0
      %5615 = vmatpush1.msra.mxu0 0.0
      %5616 = vmatprep.subr.mxu0 0.0
      %5617 = vmatpush1.msra.mxu0 0.0
      %5618 = vmatprep.subr.mxu0 0.0
      %5619 = vmatpush1.msra.mxu0 0.0
      %5620 = vmatprep.subr.mxu0 0.0
      %5621 = vmatpush1.msra.mxu0 0.0
      %5622 = vmatprep.subr.mxu0 0.0
      %5623 = vmatpush1.msra.mxu0 0.0
      %5624 = vmatprep.subr.mxu0 0.0
      %5625 = vmatpush1.msra.mxu0 0.0
      %5626 = vmatprep.subr.mxu0 0.0
      %5627 = vmatpush1.msra.mxu0 0.0
      %5628 = vmatprep.subr.mxu0 0.0
      %5629 = vmatpush1.msra.mxu0 0.0
      %5630 = vmatprep.subr.mxu0 0.0
      %5631 = vmatpush1.msra.mxu0 0.0
      %5632 = vmatprep.subr.mxu0 0.0
      %5633 = vmatpush1.msra.mxu0 0.0
      %5634 = vmatprep.subr.mxu0 0.0
      %5635 = vmatpush1.msra.mxu0 0.0
      %5636 = vmatprep.subr.mxu0 0.0
      %5637 = vmatpush1.msra.mxu0 0.0
      %5638 = vmatprep.subr.mxu0 0.0
      %5639 = vmatpush1.msra.mxu0 0.0
      %5640 = vmatprep.subr.mxu0 0.0
      %5641 = vmatpush1.msra.mxu0 0.0
      %5642 = vmatprep.subr.mxu0 0.0
      %5643 = vmatpush1.msra.mxu0 0.0
      %5644 = vmatprep.subr.mxu0 0.0
      %5645 = vmatpush1.msra.mxu0 0.0
      %5646 = vmatprep.subr.mxu0 0.0
      %5647 = vmatpush1.msra.mxu0 0.0
      %5648 = vmatprep.subr.mxu0 0.0
      %5649 = vmatpush1.msra.mxu0 0.0
      %5650 = vmatprep.mubr.f32.mxu0 0.0
      %5651 = vmatmul.mubr.f32.gmra.mrb[0].mxu0 %v5578
      %v5652 = vpop.f32.mrb[0].mxu0
      %v5653 = vadd.f32 0.0, %v5652
      %v5654 = vpop.f32.mrb[0].mxu0
      %v5655 = vadd.f32 0.0, %v5654
      %5656 = vdwg.mxu0
      %5657 = vmatprep.subr.mxu0 0.0
      %5658 = vmatpush1.msra.mxu0 %v5584
      %5659 = vmatprep.subr.mxu0 0.0
      %5660 = vmatpush1.msra.mxu0 0.0
      %5661 = vmatprep.subr.mxu0 0.0
      %5662 = vmatpush1.msra.mxu0 0.0
      %5663 = vmatprep.subr.mxu0 0.0
      %5664 = vmatpush1.msra.mxu0 0.0
      %5665 = vmatprep.subr.mxu0 0.0
      %5666 = vmatpush1.msra.mxu0 0.0
      %5667 = vmatprep.subr.mxu0 0.0
      %5668 = vmatpush1.msra.mxu0 0.0
      %5669 = vmatprep.subr.mxu0 0.0
      %5670 = vmatpush1.msra.mxu0 0.0
      %5671 = vmatprep.subr.mxu0 0.0
      %5672 = vmatpush1.msra.mxu0 0.0
      %5673 = vmatprep.subr.mxu0 0.0
      %5674 = vmatpush1.msra.mxu0 0.0
      %5675 = vmatprep.subr.mxu0 0.0
      %5676 = vmatpush1.msra.mxu0 0.0
      %5677 = vmatprep.subr.mxu0 0.0
      %5678 = vmatpush1.msra.mxu0 0.0
      %5679 = vmatprep.subr.mxu0 0.0
      %5680 = vmatpush1.msra.mxu0 0.0
      %5681 = vmatprep.subr.mxu0 0.0
      %5682 = vmatpush1.msra.mxu0 0.0
      %5683 = vmatprep.subr.mxu0 0.0
      %5684 = vmatpush1.msra.mxu0 0.0
      %5685 = vmatprep.subr.mxu0 0.0
      %5686 = vmatpush1.msra.mxu0 0.0
      %5687 = vmatprep.subr.mxu0 0.0
      %5688 = vmatpush1.msra.mxu0 0.0
      %5689 = vmatprep.subr.mxu0 0.0
      %5690 = vmatpush1.msra.mxu0 0.0
      %5691 = vmatprep.subr.mxu0 0.0
      %5692 = vmatpush1.msra.mxu0 0.0
      %5693 = vmatprep.subr.mxu0 0.0
      %5694 = vmatpush1.msra.mxu0 0.0
      %5695 = vmatprep.subr.mxu0 0.0
      %5696 = vmatpush1.msra.mxu0 0.0
      %5697 = vmatprep.subr.mxu0 0.0
      %5698 = vmatpush1.msra.mxu0 0.0
      %5699 = vmatprep.subr.mxu0 0.0
      %5700 = vmatpush1.msra.mxu0 0.0
      %5701 = vmatprep.subr.mxu0 0.0
      %5702 = vmatpush1.msra.mxu0 0.0
      %5703 = vmatprep.subr.mxu0 0.0
      %5704 = vmatpush1.msra.mxu0 0.0
      %5705 = vmatprep.subr.mxu0 0.0
      %5706 = vmatpush1.msra.mxu0 0.0
      %5707 = vmatprep.subr.mxu0 0.0
      %5708 = vmatpush1.msra.mxu0 0.0
      %5709 = vmatprep.subr.mxu0 0.0
      %5710 = vmatpush1.msra.mxu0 0.0
      %5711 = vmatprep.subr.mxu0 0.0
      %5712 = vmatpush1.msra.mxu0 0.0
      %5713 = vmatprep.subr.mxu0 0.0
      %5714 = vmatpush1.msra.mxu0 0.0
      %5715 = vmatprep.subr.mxu0 0.0
      %5716 = vmatpush1.msra.mxu0 0.0
      %5717 = vmatprep.subr.mxu0 0.0
      %5718 = vmatpush1.msra.mxu0 0.0
      %5719 = vmatprep.subr.mxu0 0.0
      %5720 = vmatpush1.msra.mxu0 0.0
      %5721 = vmatprep.mubr.f32.mxu0 0.0
      %5722 = vmatmul.mubr.f32.gmra.mrb[0].mxu0 %v5578
      %v5723 = vpop.f32.mrb[0].mxu0
      %v5724 = vadd.f32 0.0, %v5723
      %v5725 = vpop.f32.mrb[0].mxu0
      %5726 = vdwg.mxu0
      %v5727 = vadd.f32 %v5559, %v5653
      %v5728 = vadd.f32 %v5560, %v5655
      %v5729 = vadd.f32 %v5561, %v5724
      %v5730 = vld [vmem:[#allocation3] sm:$0xff]
      %v5731 = vld [vmem:[#allocation3 + $0x8] sm:$0xf]
      %s5732 = scalar_lea.vmem %s5, 15
      %v5733 = vld [vmem:[%s5732] sm:$0x1]
      %v5736 = vcombine.high %v5730, %v5730
      %5737 = vrot.lane.b32.xlu0 %v5730, 68
      %v5738 = vpop.permute.xlu0 %5737
      %5739 = vrot.lane.b32.xlu0 %v5736, 68
      %v5740 = vpop.permute.xlu0 %5739
      %5741 = vrot.lane.b32.xlu0 %v5731, 68
      %v5742 = vpop.permute.xlu0 %5741
      %v5743 = vsel %vm2296, %v5738, %v5740
      %v5744 = vsel %vm2296, %v5740, %v5742
      %v5746 = vsel %vm3224, %v5733, 0
      %v5748 = vsel %vm291, %v5743, 0
      %v5750 = vsel %vm291, %v5744, 0
      %v5752 = vsel %vm291, %v5742, 0
      %5754 = vmatprep.subr.mxu0 %v5750
      %5755 = vmatpush1.msra.mxu0 %v5748
      %5756 = vmatprep.subr.mxu0 0.0
      %5757 = vmatpush1.msra.mxu0 0.0
      %5758 = vmatprep.subr.mxu0 0.0
      %5759 = vmatpush1.msra.mxu0 0.0
      %5760 = vmatprep.subr.mxu0 0.0
      %5761 = vmatpush1.msra.mxu0 0.0
      %5762 = vmatprep.subr.mxu0 0.0
      %5763 = vmatpush1.msra.mxu0 0.0
      %5764 = vmatprep.subr.mxu0 0.0
      %5765 = vmatpush1.msra.mxu0 0.0
      %5766 = vmatprep.subr.mxu0 0.0
      %5767 = vmatpush1.msra.mxu0 0.0
      %5768 = vmatprep.subr.mxu0 0.0
      %5769 = vmatpush1.msra.mxu0 0.0
      %5770 = vmatprep.subr.mxu0 0.0
      %5771 = vmatpush1.msra.mxu0 0.0
      %5772 = vmatprep.subr.mxu0 0.0
      %5773 = vmatpush1.msra.mxu0 0.0
      %5774 = vmatprep.subr.mxu0 0.0
      %5775 = vmatpush1.msra.mxu0 0.0
      %5776 = vmatprep.subr.mxu0 0.0
      %5777 = vmatpush1.msra.mxu0 0.0
      %5778 = vmatprep.subr.mxu0 0.0
      %5779 = vmatpush1.msra.mxu0 0.0
      %5780 = vmatprep.subr.mxu0 0.0
      %5781 = vmatpush1.msra.mxu0 0.0
      %5782 = vmatprep.subr.mxu0 0.0
      %5783 = vmatpush1.msra.mxu0 0.0
      %5784 = vmatprep.subr.mxu0 0.0
      %5785 = vmatpush1.msra.mxu0 0.0
      %5786 = vmatprep.subr.mxu0 0.0
      %5787 = vmatpush1.msra.mxu0 0.0
      %5788 = vmatprep.subr.mxu0 0.0
      %5789 = vmatpush1.msra.mxu0 0.0
      %5790 = vmatprep.subr.mxu0 0.0
      %5791 = vmatpush1.msra.mxu0 0.0
      %5792 = vmatprep.subr.mxu0 0.0
      %5793 = vmatpush1.msra.mxu0 0.0
      %5794 = vmatprep.subr.mxu0 0.0
      %5795 = vmatpush1.msra.mxu0 0.0
      %5796 = vmatprep.subr.mxu0 0.0
      %5797 = vmatpush1.msra.mxu0 0.0
      %5798 = vmatprep.subr.mxu0 0.0
      %5799 = vmatpush1.msra.mxu0 0.0
      %5800 = vmatprep.subr.mxu0 0.0
      %5801 = vmatpush1.msra.mxu0 0.0
      %5802 = vmatprep.subr.mxu0 0.0
      %5803 = vmatpush1.msra.mxu0 0.0
      %5804 = vmatprep.subr.mxu0 0.0
      %5805 = vmatpush1.msra.mxu0 0.0
      %5806 = vmatprep.subr.mxu0 0.0
      %5807 = vmatpush1.msra.mxu0 0.0
      %5808 = vmatprep.subr.mxu0 0.0
      %5809 = vmatpush1.msra.mxu0 0.0
      %5810 = vmatprep.subr.mxu0 0.0
      %5811 = vmatpush1.msra.mxu0 0.0
      %5812 = vmatprep.subr.mxu0 0.0
      %5813 = vmatpush1.msra.mxu0 0.0
      %5814 = vmatprep.subr.mxu0 0.0
      %5815 = vmatpush1.msra.mxu0 0.0
      %5816 = vmatprep.subr.mxu0 0.0
      %5817 = vmatpush1.msra.mxu0 0.0
      %5818 = vmatprep.mubr.f32.mxu0 0.0
      %5819 = vmatmul.mubr.f32.gmra.mrb[0].mxu0 %v5746
      %v5820 = vpop.f32.mrb[0].mxu0
      %v5821 = vadd.f32 0.0, %v5820
      %v5822 = vpop.f32.mrb[0].mxu0
      %v5823 = vadd.f32 0.0, %v5822
      %5824 = vdwg.mxu0
      %5825 = vmatprep.subr.mxu0 0.0
      %5826 = vmatpush1.msra.mxu0 %v5752
      %5827 = vmatprep.subr.mxu0 0.0
      %5828 = vmatpush1.msra.mxu0 0.0
      %5829 = vmatprep.subr.mxu0 0.0
      %5830 = vmatpush1.msra.mxu0 0.0
      %5831 = vmatprep.subr.mxu0 0.0
      %5832 = vmatpush1.msra.mxu0 0.0
      %5833 = vmatprep.subr.mxu0 0.0
      %5834 = vmatpush1.msra.mxu0 0.0
      %5835 = vmatprep.subr.mxu0 0.0
      %5836 = vmatpush1.msra.mxu0 0.0
      %5837 = vmatprep.subr.mxu0 0.0
      %5838 = vmatpush1.msra.mxu0 0.0
      %5839 = vmatprep.subr.mxu0 0.0
      %5840 = vmatpush1.msra.mxu0 0.0
      %5841 = vmatprep.subr.mxu0 0.0
      %5842 = vmatpush1.msra.mxu0 0.0
      %5843 = vmatprep.subr.mxu0 0.0
      %5844 = vmatpush1.msra.mxu0 0.0
      %5845 = vmatprep.subr.mxu0 0.0
      %5846 = vmatpush1.msra.mxu0 0.0
      %5847 = vmatprep.subr.mxu0 0.0
      %5848 = vmatpush1.msra.mxu0 0.0
      %5849 = vmatprep.subr.mxu0 0.0
      %5850 = vmatpush1.msra.mxu0 0.0
      %5851 = vmatprep.subr.mxu0 0.0
      %5852 = vmatpush1.msra.mxu0 0.0
      %5853 = vmatprep.subr.mxu0 0.0
      %5854 = vmatpush1.msra.mxu0 0.0
      %5855 = vmatprep.subr.mxu0 0.0
      %5856 = vmatpush1.msra.mxu0 0.0
      %5857 = vmatprep.subr.mxu0 0.0
      %5858 = vmatpush1.msra.mxu0 0.0
      %5859 = vmatprep.subr.mxu0 0.0
      %5860 = vmatpush1.msra.mxu0 0.0
      %5861 = vmatprep.subr.mxu0 0.0
      %5862 = vmatpush1.msra.mxu0 0.0
      %5863 = vmatprep.subr.mxu0 0.0
      %5864 = vmatpush1.msra.mxu0 0.0
      %5865 = vmatprep.subr.mxu0 0.0
      %5866 = vmatpush1.msra.mxu0 0.0
      %5867 = vmatprep.subr.mxu0 0.0
      %5868 = vmatpush1.msra.mxu0 0.0
      %5869 = vmatprep.subr.mxu0 0.0
      %5870 = vmatpush1.msra.mxu0 0.0
      %5871 = vmatprep.subr.mxu0 0.0
      %5872 = vmatpush1.msra.mxu0 0.0
      %5873 = vmatprep.subr.mxu0 0.0
      %5874 = vmatpush1.msra.mxu0 0.0
      %5875 = vmatprep.subr.mxu0 0.0
      %5876 = vmatpush1.msra.mxu0 0.0
      %5877 = vmatprep.subr.mxu0 0.0
      %5878 = vmatpush1.msra.mxu0 0.0
      %5879 = vmatprep.subr.mxu0 0.0
      %5880 = vmatpush1.msra.mxu0 0.0
      %5881 = vmatprep.subr.mxu0 0.0
      %5882 = vmatpush1.msra.mxu0 0.0
      %5883 = vmatprep.subr.mxu0 0.0
      %5884 = vmatpush1.msra.mxu0 0.0
      %5885 = vmatprep.subr.mxu0 0.0
      %5886 = vmatpush1.msra.mxu0 0.0
      %5887 = vmatprep.subr.mxu0 0.0
      %5888 = vmatpush1.msra.mxu0 0.0
      %5889 = vmatprep.mubr.f32.mxu0 0.0
      %5890 = vmatmul.mubr.f32.gmra.mrb[0].mxu0 %v5746
      %v5891 = vpop.f32.mrb[0].mxu0
      %v5892 = vadd.f32 0.0, %v5891
      %v5893 = vpop.f32.mrb[0].mxu0
      %5894 = vdwg.mxu0
      %v5895 = vadd.f32 %v5727, %v5821
      %v5896 = vadd.f32 %v5728, %v5823
      %v5897 = vadd.f32 %v5729, %v5892
      %v5898 = vld [vmem:[#allocation3] sm:$0xff]
      %v5899 = vld [vmem:[#allocation3 + $0x8] sm:$0xf]
      %s5900 = scalar_lea.vmem %s5, 16
      %v5901 = vld [vmem:[%s5900] sm:$0x1]
      %v5904 = vcombine.high %v5898, %v5898
      %5905 = vrot.lane.b32.xlu0 %v5898, 67
      %v5906 = vpop.permute.xlu0 %5905
      %5907 = vrot.lane.b32.xlu0 %v5904, 67
      %v5908 = vpop.permute.xlu0 %5907
      %5909 = vrot.lane.b32.xlu0 %v5899, 67
      %v5910 = vpop.permute.xlu0 %5909
      %v5911 = vsel %vm2385, %v5906, %v5908
      %v5912 = vsel %vm2385, %v5908, %v5910
      %v5914 = vsel %vm3224, %v5901, 0
      %v5916 = vsel %vm291, %v5911, 0
      %v5918 = vsel %vm291, %v5912, 0
      %v5920 = vsel %vm291, %v5910, 0
      %5922 = vmatprep.subr.mxu0 %v5918
      %5923 = vmatpush1.msra.mxu0 %v5916
      %5924 = vmatprep.subr.mxu0 0.0
      %5925 = vmatpush1.msra.mxu0 0.0
      %5926 = vmatprep.subr.mxu0 0.0
      %5927 = vmatpush1.msra.mxu0 0.0
      %5928 = vmatprep.subr.mxu0 0.0
      %5929 = vmatpush1.msra.mxu0 0.0
      %5930 = vmatprep.subr.mxu0 0.0
      %5931 = vmatpush1.msra.mxu0 0.0
      %5932 = vmatprep.subr.mxu0 0.0
      %5933 = vmatpush1.msra.mxu0 0.0
      %5934 = vmatprep.subr.mxu0 0.0
      %5935 = vmatpush1.msra.mxu0 0.0
      %5936 = vmatprep.subr.mxu0 0.0
      %5937 = vmatpush1.msra.mxu0 0.0
      %5938 = vmatprep.subr.mxu0 0.0
      %5939 = vmatpush1.msra.mxu0 0.0
      %5940 = vmatprep.subr.mxu0 0.0
      %5941 = vmatpush1.msra.mxu0 0.0
      %5942 = vmatprep.subr.mxu0 0.0
      %5943 = vmatpush1.msra.mxu0 0.0
      %5944 = vmatprep.subr.mxu0 0.0
      %5945 = vmatpush1.msra.mxu0 0.0
      %5946 = vmatprep.subr.mxu0 0.0
      %5947 = vmatpush1.msra.mxu0 0.0
      %5948 = vmatprep.subr.mxu0 0.0
      %5949 = vmatpush1.msra.mxu0 0.0
      %5950 = vmatprep.subr.mxu0 0.0
      %5951 = vmatpush1.msra.mxu0 0.0
      %5952 = vmatprep.subr.mxu0 0.0
      %5953 = vmatpush1.msra.mxu0 0.0
      %5954 = vmatprep.subr.mxu0 0.0
      %5955 = vmatpush1.msra.mxu0 0.0
      %5956 = vmatprep.subr.mxu0 0.0
      %5957 = vmatpush1.msra.mxu0 0.0
      %5958 = vmatprep.subr.mxu0 0.0
      %5959 = vmatpush1.msra.mxu0 0.0
      %5960 = vmatprep.subr.mxu0 0.0
      %5961 = vmatpush1.msra.mxu0 0.0
      %5962 = vmatprep.subr.mxu0 0.0
      %5963 = vmatpush1.msra.mxu0 0.0
      %5964 = vmatprep.subr.mxu0 0.0
      %5965 = vmatpush1.msra.mxu0 0.0
      %5966 = vmatprep.subr.mxu0 0.0
      %5967 = vmatpush1.msra.mxu0 0.0
      %5968 = vmatprep.subr.mxu0 0.0
      %5969 = vmatpush1.msra.mxu0 0.0
      %5970 = vmatprep.subr.mxu0 0.0
      %5971 = vmatpush1.msra.mxu0 0.0
      %5972 = vmatprep.subr.mxu0 0.0
      %5973 = vmatpush1.msra.mxu0 0.0
      %5974 = vmatprep.subr.mxu0 0.0
      %5975 = vmatpush1.msra.mxu0 0.0
      %5976 = vmatprep.subr.mxu0 0.0
      %5977 = vmatpush1.msra.mxu0 0.0
      %5978 = vmatprep.subr.mxu0 0.0
      %5979 = vmatpush1.msra.mxu0 0.0
      %5980 = vmatprep.subr.mxu0 0.0
      %5981 = vmatpush1.msra.mxu0 0.0
      %5982 = vmatprep.subr.mxu0 0.0
      %5983 = vmatpush1.msra.mxu0 0.0
      %5984 = vmatprep.subr.mxu0 0.0
      %5985 = vmatpush1.msra.mxu0 0.0
      %5986 = vmatprep.mubr.f32.mxu0 0.0
      %5987 = vmatmul.mubr.f32.gmra.mrb[0].mxu0 %v5914
      %v5988 = vpop.f32.mrb[0].mxu0
      %v5989 = vadd.f32 0.0, %v5988
      %v5990 = vpop.f32.mrb[0].mxu0
      %v5991 = vadd.f32 0.0, %v5990
      %5992 = vdwg.mxu0
      %5993 = vmatprep.subr.mxu0 0.0
      %5994 = vmatpush1.msra.mxu0 %v5920
      %5995 = vmatprep.subr.mxu0 0.0
      %5996 = vmatpush1.msra.mxu0 0.0
      %5997 = vmatprep.subr.mxu0 0.0
      %5998 = vmatpush1.msra.mxu0 0.0
      %5999 = vmatprep.subr.mxu0 0.0
      %6000 = vmatpush1.msra.mxu0 0.0
      %6001 = vmatprep.subr.mxu0 0.0
      %6002 = vmatpush1.msra.mxu0 0.0
      %6003 = vmatprep.subr.mxu0 0.0
      %6004 = vmatpush1.msra.mxu0 0.0
      %6005 = vmatprep.subr.mxu0 0.0
      %6006 = vmatpush1.msra.mxu0 0.0
      %6007 = vmatprep.subr.mxu0 0.0
      %6008 = vmatpush1.msra.mxu0 0.0
      %6009 = vmatprep.subr.mxu0 0.0
      %6010 = vmatpush1.msra.mxu0 0.0
      %6011 = vmatprep.subr.mxu0 0.0
      %6012 = vmatpush1.msra.mxu0 0.0
      %6013 = vmatprep.subr.mxu0 0.0
      %6014 = vmatpush1.msra.mxu0 0.0
      %6015 = vmatprep.subr.mxu0 0.0
      %6016 = vmatpush1.msra.mxu0 0.0
      %6017 = vmatprep.subr.mxu0 0.0
      %6018 = vmatpush1.msra.mxu0 0.0
      %6019 = vmatprep.subr.mxu0 0.0
      %6020 = vmatpush1.msra.mxu0 0.0
      %6021 = vmatprep.subr.mxu0 0.0
      %6022 = vmatpush1.msra.mxu0 0.0
      %6023 = vmatprep.subr.mxu0 0.0
      %6024 = vmatpush1.msra.mxu0 0.0
      %6025 = vmatprep.subr.mxu0 0.0
      %6026 = vmatpush1.msra.mxu0 0.0
      %6027 = vmatprep.subr.mxu0 0.0
      %6028 = vmatpush1.msra.mxu0 0.0
      %6029 = vmatprep.subr.mxu0 0.0
      %6030 = vmatpush1.msra.mxu0 0.0
      %6031 = vmatprep.subr.mxu0 0.0
      %6032 = vmatpush1.msra.mxu0 0.0
      %6033 = vmatprep.subr.mxu0 0.0
      %6034 = vmatpush1.msra.mxu0 0.0
      %6035 = vmatprep.subr.mxu0 0.0
      %6036 = vmatpush1.msra.mxu0 0.0
      %6037 = vmatprep.subr.mxu0 0.0
      %6038 = vmatpush1.msra.mxu0 0.0
      %6039 = vmatprep.subr.mxu0 0.0
      %6040 = vmatpush1.msra.mxu0 0.0
      %6041 = vmatprep.subr.mxu0 0.0
      %6042 = vmatpush1.msra.mxu0 0.0
      %6043 = vmatprep.subr.mxu0 0.0
      %6044 = vmatpush1.msra.mxu0 0.0
      %6045 = vmatprep.subr.mxu0 0.0
      %6046 = vmatpush1.msra.mxu0 0.0
      %6047 = vmatprep.subr.mxu0 0.0
      %6048 = vmatpush1.msra.mxu0 0.0
      %6049 = vmatprep.subr.mxu0 0.0
      %6050 = vmatpush1.msra.mxu0 0.0
      %6051 = vmatprep.subr.mxu0 0.0
      %6052 = vmatpush1.msra.mxu0 0.0
      %6053 = vmatprep.subr.mxu0 0.0
      %6054 = vmatpush1.msra.mxu0 0.0
      %6055 = vmatprep.subr.mxu0 0.0
      %6056 = vmatpush1.msra.mxu0 0.0
      %6057 = vmatprep.mubr.f32.mxu0 0.0
      %6058 = vmatmul.mubr.f32.gmra.mrb[0].mxu0 %v5914
      %v6059 = vpop.f32.mrb[0].mxu0
      %v6060 = vadd.f32 0.0, %v6059
      %v6061 = vpop.f32.mrb[0].mxu0
      %6062 = vdwg.mxu0
      %v6063 = vadd.f32 %v5895, %v5989
      %v6064 = vadd.f32 %v5896, %v5991
      %v6065 = vadd.f32 %v5897, %v6060
      %v6066 = vld [vmem:[#allocation3] sm:$0xff]
      %v6067 = vld [vmem:[#allocation3 + $0x8] sm:$0xf]
      %s6068 = scalar_lea.vmem %s5, 17
      %v6069 = vld [vmem:[%s6068] sm:$0x1]
      %v6072 = vcombine.high %v6066, %v6066
      %6073 = vrot.lane.b32.xlu0 %v6066, 66
      %v6074 = vpop.permute.xlu0 %6073
      %6075 = vrot.lane.b32.xlu0 %v6072, 66
      %v6076 = vpop.permute.xlu0 %6075
      %6077 = vrot.lane.b32.xlu0 %v6067, 66
      %v6078 = vpop.permute.xlu0 %6077
      %v6079 = vsel %vm2474, %v6074, %v6076
      %v6080 = vsel %vm2474, %v6076, %v6078
      %v6082 = vsel %vm3224, %v6069, 0
      %v6084 = vsel %vm291, %v6079, 0
      %v6086 = vsel %vm291, %v6080, 0
      %v6088 = vsel %vm291, %v6078, 0
      %6090 = vmatprep.subr.mxu0 %v6086
      %6091 = vmatpush1.msra.mxu0 %v6084
      %6092 = vmatprep.subr.mxu0 0.0
      %6093 = vmatpush1.msra.mxu0 0.0
      %6094 = vmatprep.subr.mxu0 0.0
      %6095 = vmatpush1.msra.mxu0 0.0
      %6096 = vmatprep.subr.mxu0 0.0
      %6097 = vmatpush1.msra.mxu0 0.0
      %6098 = vmatprep.subr.mxu0 0.0
      %6099 = vmatpush1.msra.mxu0 0.0
      %6100 = vmatprep.subr.mxu0 0.0
      %6101 = vmatpush1.msra.mxu0 0.0
      %6102 = vmatprep.subr.mxu0 0.0
      %6103 = vmatpush1.msra.mxu0 0.0
      %6104 = vmatprep.subr.mxu0 0.0
      %6105 = vmatpush1.msra.mxu0 0.0
      %6106 = vmatprep.subr.mxu0 0.0
      %6107 = vmatpush1.msra.mxu0 0.0
      %6108 = vmatprep.subr.mxu0 0.0
      %6109 = vmatpush1.msra.mxu0 0.0
      %6110 = vmatprep.subr.mxu0 0.0
      %6111 = vmatpush1.msra.mxu0 0.0
      %6112 = vmatprep.subr.mxu0 0.0
      %6113 = vmatpush1.msra.mxu0 0.0
      %6114 = vmatprep.subr.mxu0 0.0
      %6115 = vmatpush1.msra.mxu0 0.0
      %6116 = vmatprep.subr.mxu0 0.0
      %6117 = vmatpush1.msra.mxu0 0.0
      %6118 = vmatprep.subr.mxu0 0.0
      %6119 = vmatpush1.msra.mxu0 0.0
      %6120 = vmatprep.subr.mxu0 0.0
      %6121 = vmatpush1.msra.mxu0 0.0
      %6122 = vmatprep.subr.mxu0 0.0
      %6123 = vmatpush1.msra.mxu0 0.0
      %6124 = vmatprep.subr.mxu0 0.0
      %6125 = vmatpush1.msra.mxu0 0.0
      %6126 = vmatprep.subr.mxu0 0.0
      %6127 = vmatpush1.msra.mxu0 0.0
      %6128 = vmatprep.subr.mxu0 0.0
      %6129 = vmatpush1.msra.mxu0 0.0
      %6130 = vmatprep.subr.mxu0 0.0
      %6131 = vmatpush1.msra.mxu0 0.0
      %6132 = vmatprep.subr.mxu0 0.0
      %6133 = vmatpush1.msra.mxu0 0.0
      %6134 = vmatprep.subr.mxu0 0.0
      %6135 = vmatpush1.msra.mxu0 0.0
      %6136 = vmatprep.subr.mxu0 0.0
      %6137 = vmatpush1.msra.mxu0 0.0
      %6138 = vmatprep.subr.mxu0 0.0
      %6139 = vmatpush1.msra.mxu0 0.0
      %6140 = vmatprep.subr.mxu0 0.0
      %6141 = vmatpush1.msra.mxu0 0.0
      %6142 = vmatprep.subr.mxu0 0.0
      %6143 = vmatpush1.msra.mxu0 0.0
      %6144 = vmatprep.subr.mxu0 0.0
      %6145 = vmatpush1.msra.mxu0 0.0
      %6146 = vmatprep.subr.mxu0 0.0
      %6147 = vmatpush1.msra.mxu0 0.0
      %6148 = vmatprep.subr.mxu0 0.0
      %6149 = vmatpush1.msra.mxu0 0.0
      %6150 = vmatprep.subr.mxu0 0.0
      %6151 = vmatpush1.msra.mxu0 0.0
      %6152 = vmatprep.subr.mxu0 0.0
      %6153 = vmatpush1.msra.mxu0 0.0
      %6154 = vmatprep.mubr.f32.mxu0 0.0
      %6155 = vmatmul.mubr.f32.gmra.mrb[0].mxu0 %v6082
      %v6156 = vpop.f32.mrb[0].mxu0
      %v6157 = vadd.f32 0.0, %v6156
      %v6158 = vpop.f32.mrb[0].mxu0
      %v6159 = vadd.f32 0.0, %v6158
      %6160 = vdwg.mxu0
      %6161 = vmatprep.subr.mxu0 0.0
      %6162 = vmatpush1.msra.mxu0 %v6088
      %6163 = vmatprep.subr.mxu0 0.0
      %6164 = vmatpush1.msra.mxu0 0.0
      %6165 = vmatprep.subr.mxu0 0.0
      %6166 = vmatpush1.msra.mxu0 0.0
      %6167 = vmatprep.subr.mxu0 0.0
      %6168 = vmatpush1.msra.mxu0 0.0
      %6169 = vmatprep.subr.mxu0 0.0
      %6170 = vmatpush1.msra.mxu0 0.0
      %6171 = vmatprep.subr.mxu0 0.0
      %6172 = vmatpush1.msra.mxu0 0.0
      %6173 = vmatprep.subr.mxu0 0.0
      %6174 = vmatpush1.msra.mxu0 0.0
      %6175 = vmatprep.subr.mxu0 0.0
      %6176 = vmatpush1.msra.mxu0 0.0
      %6177 = vmatprep.subr.mxu0 0.0
      %6178 = vmatpush1.msra.mxu0 0.0
      %6179 = vmatprep.subr.mxu0 0.0
      %6180 = vmatpush1.msra.mxu0 0.0
      %6181 = vmatprep.subr.mxu0 0.0
      %6182 = vmatpush1.msra.mxu0 0.0
      %6183 = vmatprep.subr.mxu0 0.0
      %6184 = vmatpush1.msra.mxu0 0.0
      %6185 = vmatprep.subr.mxu0 0.0
      %6186 = vmatpush1.msra.mxu0 0.0
      %6187 = vmatprep.subr.mxu0 0.0
      %6188 = vmatpush1.msra.mxu0 0.0
      %6189 = vmatprep.subr.mxu0 0.0
      %6190 = vmatpush1.msra.mxu0 0.0
      %6191 = vmatprep.subr.mxu0 0.0
      %6192 = vmatpush1.msra.mxu0 0.0
      %6193 = vmatprep.subr.mxu0 0.0
      %6194 = vmatpush1.msra.mxu0 0.0
      %6195 = vmatprep.subr.mxu0 0.0
      %6196 = vmatpush1.msra.mxu0 0.0
      %6197 = vmatprep.subr.mxu0 0.0
      %6198 = vmatpush1.msra.mxu0 0.0
      %6199 = vmatprep.subr.mxu0 0.0
      %6200 = vmatpush1.msra.mxu0 0.0
      %6201 = vmatprep.subr.mxu0 0.0
      %6202 = vmatpush1.msra.mxu0 0.0
      %6203 = vmatprep.subr.mxu0 0.0
      %6204 = vmatpush1.msra.mxu0 0.0
      %6205 = vmatprep.subr.mxu0 0.0
      %6206 = vmatpush1.msra.mxu0 0.0
      %6207 = vmatprep.subr.mxu0 0.0
      %6208 = vmatpush1.msra.mxu0 0.0
      %6209 = vmatprep.subr.mxu0 0.0
      %6210 = vmatpush1.msra.mxu0 0.0
      %6211 = vmatprep.subr.mxu0 0.0
      %6212 = vmatpush1.msra.mxu0 0.0
      %6213 = vmatprep.subr.mxu0 0.0
      %6214 = vmatpush1.msra.mxu0 0.0
      %6215 = vmatprep.subr.mxu0 0.0
      %6216 = vmatpush1.msra.mxu0 0.0
      %6217 = vmatprep.subr.mxu0 0.0
      %6218 = vmatpush1.msra.mxu0 0.0
      %6219 = vmatprep.subr.mxu0 0.0
      %6220 = vmatpush1.msra.mxu0 0.0
      %6221 = vmatprep.subr.mxu0 0.0
      %6222 = vmatpush1.msra.mxu0 0.0
      %6223 = vmatprep.subr.mxu0 0.0
      %6224 = vmatpush1.msra.mxu0 0.0
      %6225 = vmatprep.mubr.f32.mxu0 0.0
      %6226 = vmatmul.mubr.f32.gmra.mrb[0].mxu0 %v6082
      %v6227 = vpop.f32.mrb[0].mxu0
      %v6228 = vadd.f32 0.0, %v6227
      %v6229 = vpop.f32.mrb[0].mxu0
      %6230 = vdwg.mxu0
      %v6231 = vadd.f32 %v6063, %v6157
      %v6232 = vadd.f32 %v6064, %v6159
      %v6233 = vadd.f32 %v6065, %v6228
      %v6234 = vld [vmem:[#allocation3] sm:$0xff]
      %v6235 = vld [vmem:[#allocation3 + $0x8] sm:$0xf]
      %s6236 = scalar_lea.vmem %s5, 18
      %v6237 = vld [vmem:[%s6236] sm:$0x1]
      %v6240 = vcombine.high %v6234, %v6234
      %6241 = vrot.lane.b32.xlu0 %v6234, 65
      %v6242 = vpop.permute.xlu0 %6241
      %6243 = vrot.lane.b32.xlu0 %v6240, 65
      %v6244 = vpop.permute.xlu0 %6243
      %6245 = vrot.lane.b32.xlu0 %v6235, 65
      %v6246 = vpop.permute.xlu0 %6245
      %v6247 = vsel %vm2563, %v6242, %v6244
      %v6248 = vsel %vm2563, %v6244, %v6246
      %v6250 = vsel %vm3224, %v6237, 0
      %v6252 = vsel %vm291, %v6247, 0
      %v6254 = vsel %vm291, %v6248, 0
      %v6256 = vsel %vm291, %v6246, 0
      %6258 = vmatprep.subr.mxu0 %v6254
      %6259 = vmatpush1.msra.mxu0 %v6252
      %6260 = vmatprep.subr.mxu0 0.0
      %6261 = vmatpush1.msra.mxu0 0.0
      %6262 = vmatprep.subr.mxu0 0.0
      %6263 = vmatpush1.msra.mxu0 0.0
      %6264 = vmatprep.subr.mxu0 0.0
      %6265 = vmatpush1.msra.mxu0 0.0
      %6266 = vmatprep.subr.mxu0 0.0
      %6267 = vmatpush1.msra.mxu0 0.0
      %6268 = vmatprep.subr.mxu0 0.0
      %6269 = vmatpush1.msra.mxu0 0.0
      %6270 = vmatprep.subr.mxu0 0.0
      %6271 = vmatpush1.msra.mxu0 0.0
      %6272 = vmatprep.subr.mxu0 0.0
      %6273 = vmatpush1.msra.mxu0 0.0
      %6274 = vmatprep.subr.mxu0 0.0
      %6275 = vmatpush1.msra.mxu0 0.0
      %6276 = vmatprep.subr.mxu0 0.0
      %6277 = vmatpush1.msra.mxu0 0.0
      %6278 = vmatprep.subr.mxu0 0.0
      %6279 = vmatpush1.msra.mxu0 0.0
      %6280 = vmatprep.subr.mxu0 0.0
      %6281 = vmatpush1.msra.mxu0 0.0
      %6282 = vmatprep.subr.mxu0 0.0
      %6283 = vmatpush1.msra.mxu0 0.0
      %6284 = vmatprep.subr.mxu0 0.0
      %6285 = vmatpush1.msra.mxu0 0.0
      %6286 = vmatprep.subr.mxu0 0.0
      %6287 = vmatpush1.msra.mxu0 0.0
      %6288 = vmatprep.subr.mxu0 0.0
      %6289 = vmatpush1.msra.mxu0 0.0
      %6290 = vmatprep.subr.mxu0 0.0
      %6291 = vmatpush1.msra.mxu0 0.0
      %6292 = vmatprep.subr.mxu0 0.0
      %6293 = vmatpush1.msra.mxu0 0.0
      %6294 = vmatprep.subr.mxu0 0.0
      %6295 = vmatpush1.msra.mxu0 0.0
      %6296 = vmatprep.subr.mxu0 0.0
      %6297 = vmatpush1.msra.mxu0 0.0
      %6298 = vmatprep.subr.mxu0 0.0
      %6299 = vmatpush1.msra.mxu0 0.0
      %6300 = vmatprep.subr.mxu0 0.0
      %6301 = vmatpush1.msra.mxu0 0.0
      %6302 = vmatprep.subr.mxu0 0.0
      %6303 = vmatpush1.msra.mxu0 0.0
      %6304 = vmatprep.subr.mxu0 0.0
      %6305 = vmatpush1.msra.mxu0 0.0
      %6306 = vmatprep.subr.mxu0 0.0
      %6307 = vmatpush1.msra.mxu0 0.0
      %6308 = vmatprep.subr.mxu0 0.0
      %6309 = vmatpush1.msra.mxu0 0.0
      %6310 = vmatprep.subr.mxu0 0.0
      %6311 = vmatpush1.msra.mxu0 0.0
      %6312 = vmatprep.subr.mxu0 0.0
      %6313 = vmatpush1.msra.mxu0 0.0
      %6314 = vmatprep.subr.mxu0 0.0
      %6315 = vmatpush1.msra.mxu0 0.0
      %6316 = vmatprep.subr.mxu0 0.0
      %6317 = vmatpush1.msra.mxu0 0.0
      %6318 = vmatprep.subr.mxu0 0.0
      %6319 = vmatpush1.msra.mxu0 0.0
      %6320 = vmatprep.subr.mxu0 0.0
      %6321 = vmatpush1.msra.mxu0 0.0
      %6322 = vmatprep.mubr.f32.mxu0 0.0
      %6323 = vmatmul.mubr.f32.gmra.mrb[0].mxu0 %v6250
      %v6324 = vpop.f32.mrb[0].mxu0
      %v6325 = vadd.f32 0.0, %v6324
      %v6326 = vpop.f32.mrb[0].mxu0
      %v6327 = vadd.f32 0.0, %v6326
      %6328 = vdwg.mxu0
      %6329 = vmatprep.subr.mxu0 0.0
      %6330 = vmatpush1.msra.mxu0 %v6256
      %6331 = vmatprep.subr.mxu0 0.0
      %6332 = vmatpush1.msra.mxu0 0.0
      %6333 = vmatprep.subr.mxu0 0.0
      %6334 = vmatpush1.msra.mxu0 0.0
      %6335 = vmatprep.subr.mxu0 0.0
      %6336 = vmatpush1.msra.mxu0 0.0
      %6337 = vmatprep.subr.mxu0 0.0
      %6338 = vmatpush1.msra.mxu0 0.0
      %6339 = vmatprep.subr.mxu0 0.0
      %6340 = vmatpush1.msra.mxu0 0.0
      %6341 = vmatprep.subr.mxu0 0.0
      %6342 = vmatpush1.msra.mxu0 0.0
      %6343 = vmatprep.subr.mxu0 0.0
      %6344 = vmatpush1.msra.mxu0 0.0
      %6345 = vmatprep.subr.mxu0 0.0
      %6346 = vmatpush1.msra.mxu0 0.0
      %6347 = vmatprep.subr.mxu0 0.0
      %6348 = vmatpush1.msra.mxu0 0.0
      %6349 = vmatprep.subr.mxu0 0.0
      %6350 = vmatpush1.msra.mxu0 0.0
      %6351 = vmatprep.subr.mxu0 0.0
      %6352 = vmatpush1.msra.mxu0 0.0
      %6353 = vmatprep.subr.mxu0 0.0
      %6354 = vmatpush1.msra.mxu0 0.0
      %6355 = vmatprep.subr.mxu0 0.0
      %6356 = vmatpush1.msra.mxu0 0.0
      %6357 = vmatprep.subr.mxu0 0.0
      %6358 = vmatpush1.msra.mxu0 0.0
      %6359 = vmatprep.subr.mxu0 0.0
      %6360 = vmatpush1.msra.mxu0 0.0
      %6361 = vmatprep.subr.mxu0 0.0
      %6362 = vmatpush1.msra.mxu0 0.0
      %6363 = vmatprep.subr.mxu0 0.0
      %6364 = vmatpush1.msra.mxu0 0.0
      %6365 = vmatprep.subr.mxu0 0.0
      %6366 = vmatpush1.msra.mxu0 0.0
      %6367 = vmatprep.subr.mxu0 0.0
      %6368 = vmatpush1.msra.mxu0 0.0
      %6369 = vmatprep.subr.mxu0 0.0
      %6370 = vmatpush1.msra.mxu0 0.0
      %6371 = vmatprep.subr.mxu0 0.0
      %6372 = vmatpush1.msra.mxu0 0.0
      %6373 = vmatprep.subr.mxu0 0.0
      %6374 = vmatpush1.msra.mxu0 0.0
      %6375 = vmatprep.subr.mxu0 0.0
      %6376 = vmatpush1.msra.mxu0 0.0
      %6377 = vmatprep.subr.mxu0 0.0
      %6378 = vmatpush1.msra.mxu0 0.0
      %6379 = vmatprep.subr.mxu0 0.0
      %6380 = vmatpush1.msra.mxu0 0.0
      %6381 = vmatprep.subr.mxu0 0.0
      %6382 = vmatpush1.msra.mxu0 0.0
      %6383 = vmatprep.subr.mxu0 0.0
      %6384 = vmatpush1.msra.mxu0 0.0
      %6385 = vmatprep.subr.mxu0 0.0
      %6386 = vmatpush1.msra.mxu0 0.0
      %6387 = vmatprep.subr.mxu0 0.0
      %6388 = vmatpush1.msra.mxu0 0.0
      %6389 = vmatprep.subr.mxu0 0.0
      %6390 = vmatpush1.msra.mxu0 0.0
      %6391 = vmatprep.subr.mxu0 0.0
      %6392 = vmatpush1.msra.mxu0 0.0
      %6393 = vmatprep.mubr.f32.mxu0 0.0
      %6394 = vmatmul.mubr.f32.gmra.mrb[0].mxu0 %v6250
      %v6395 = vpop.f32.mrb[0].mxu0
      %v6396 = vadd.f32 0.0, %v6395
      %v6397 = vpop.f32.mrb[0].mxu0
      %6398 = vdwg.mxu0
      %v6399 = vadd.f32 %v6231, %v6325
      %v6400 = vadd.f32 %v6232, %v6327
      %v6401 = vadd.f32 %v6233, %v6396
      %v6402 = vld [vmem:[#allocation3] sm:$0xff]
      %v6403 = vld [vmem:[#allocation3 + $0x8] sm:$0xf]
      %s6404 = scalar_lea.vmem %s5, 19
      %v6405 = vld [vmem:[%s6404] sm:$0x1]
      %v6408 = vcombine.high %v6402, %v6402
      %6409 = vrot.lane.b32.xlu0 %v6402, 64
      %v6410 = vpop.permute.xlu0 %6409
      %6411 = vrot.lane.b32.xlu0 %v6408, 64
      %v6412 = vpop.permute.xlu0 %6411
      %6413 = vrot.lane.b32.xlu0 %v6403, 64
      %v6414 = vpop.permute.xlu0 %6413
      %v6415 = vsel %vm2652, %v6410, %v6412
      %v6416 = vsel %vm2652, %v6412, %v6414
      %v6418 = vsel %vm3224, %v6405, 0
      %v6420 = vsel %vm291, %v6415, 0
      %v6422 = vsel %vm291, %v6416, 0
      %v6424 = vsel %vm291, %v6414, 0
      %6426 = vmatprep.subr.mxu0 %v6422
      %6427 = vmatpush1.msra.mxu0 %v6420
      %6428 = vmatprep.subr.mxu0 0.0
      %6429 = vmatpush1.msra.mxu0 0.0
      %6430 = vmatprep.subr.mxu0 0.0
      %6431 = vmatpush1.msra.mxu0 0.0
      %6432 = vmatprep.subr.mxu0 0.0
      %6433 = vmatpush1.msra.mxu0 0.0
      %6434 = vmatprep.subr.mxu0 0.0
      %6435 = vmatpush1.msra.mxu0 0.0
      %6436 = vmatprep.subr.mxu0 0.0
      %6437 = vmatpush1.msra.mxu0 0.0
      %6438 = vmatprep.subr.mxu0 0.0
      %6439 = vmatpush1.msra.mxu0 0.0
      %6440 = vmatprep.subr.mxu0 0.0
      %6441 = vmatpush1.msra.mxu0 0.0
      %6442 = vmatprep.subr.mxu0 0.0
      %6443 = vmatpush1.msra.mxu0 0.0
      %6444 = vmatprep.subr.mxu0 0.0
      %6445 = vmatpush1.msra.mxu0 0.0
      %6446 = vmatprep.subr.mxu0 0.0
      %6447 = vmatpush1.msra.mxu0 0.0
      %6448 = vmatprep.subr.mxu0 0.0
      %6449 = vmatpush1.msra.mxu0 0.0
      %6450 = vmatprep.subr.mxu0 0.0
      %6451 = vmatpush1.msra.mxu0 0.0
      %6452 = vmatprep.subr.mxu0 0.0
      %6453 = vmatpush1.msra.mxu0 0.0
      %6454 = vmatprep.subr.mxu0 0.0
      %6455 = vmatpush1.msra.mxu0 0.0
      %6456 = vmatprep.subr.mxu0 0.0
      %6457 = vmatpush1.msra.mxu0 0.0
      %6458 = vmatprep.subr.mxu0 0.0
      %6459 = vmatpush1.msra.mxu0 0.0
      %6460 = vmatprep.subr.mxu0 0.0
      %6461 = vmatpush1.msra.mxu0 0.0
      %6462 = vmatprep.subr.mxu0 0.0
      %6463 = vmatpush1.msra.mxu0 0.0
      %6464 = vmatprep.subr.mxu0 0.0
      %6465 = vmatpush1.msra.mxu0 0.0
      %6466 = vmatprep.subr.mxu0 0.0
      %6467 = vmatpush1.msra.mxu0 0.0
      %6468 = vmatprep.subr.mxu0 0.0
      %6469 = vmatpush1.msra.mxu0 0.0
      %6470 = vmatprep.subr.mxu0 0.0
      %6471 = vmatpush1.msra.mxu0 0.0
      %6472 = vmatprep.subr.mxu0 0.0
      %6473 = vmatpush1.msra.mxu0 0.0
      %6474 = vmatprep.subr.mxu0 0.0
      %6475 = vmatpush1.msra.mxu0 0.0
      %6476 = vmatprep.subr.mxu0 0.0
      %6477 = vmatpush1.msra.mxu0 0.0
      %6478 = vmatprep.subr.mxu0 0.0
      %6479 = vmatpush1.msra.mxu0 0.0
      %6480 = vmatprep.subr.mxu0 0.0
      %6481 = vmatpush1.msra.mxu0 0.0
      %6482 = vmatprep.subr.mxu0 0.0
      %6483 = vmatpush1.msra.mxu0 0.0
      %6484 = vmatprep.subr.mxu0 0.0
      %6485 = vmatpush1.msra.mxu0 0.0
      %6486 = vmatprep.subr.mxu0 0.0
      %6487 = vmatpush1.msra.mxu0 0.0
      %6488 = vmatprep.subr.mxu0 0.0
      %6489 = vmatpush1.msra.mxu0 0.0
      %6490 = vmatprep.mubr.f32.mxu0 0.0
      %6491 = vmatmul.mubr.f32.gmra.mrb[0].mxu0 %v6418
      %v6492 = vpop.f32.mrb[0].mxu0
      %v6493 = vadd.f32 0.0, %v6492
      %v6494 = vpop.f32.mrb[0].mxu0
      %v6495 = vadd.f32 0.0, %v6494
      %6496 = vdwg.mxu0
      %6497 = vmatprep.subr.mxu0 0.0
      %6498 = vmatpush1.msra.mxu0 %v6424
      %6499 = vmatprep.subr.mxu0 0.0
      %6500 = vmatpush1.msra.mxu0 0.0
      %6501 = vmatprep.subr.mxu0 0.0
      %6502 = vmatpush1.msra.mxu0 0.0
      %6503 = vmatprep.subr.mxu0 0.0
      %6504 = vmatpush1.msra.mxu0 0.0
      %6505 = vmatprep.subr.mxu0 0.0
      %6506 = vmatpush1.msra.mxu0 0.0
      %6507 = vmatprep.subr.mxu0 0.0
      %6508 = vmatpush1.msra.mxu0 0.0
      %6509 = vmatprep.subr.mxu0 0.0
      %6510 = vmatpush1.msra.mxu0 0.0
      %6511 = vmatprep.subr.mxu0 0.0
      %6512 = vmatpush1.msra.mxu0 0.0
      %6513 = vmatprep.subr.mxu0 0.0
      %6514 = vmatpush1.msra.mxu0 0.0
      %6515 = vmatprep.subr.mxu0 0.0
      %6516 = vmatpush1.msra.mxu0 0.0
      %6517 = vmatprep.subr.mxu0 0.0
      %6518 = vmatpush1.msra.mxu0 0.0
      %6519 = vmatprep.subr.mxu0 0.0
      %6520 = vmatpush1.msra.mxu0 0.0
      %6521 = vmatprep.subr.mxu0 0.0
      %6522 = vmatpush1.msra.mxu0 0.0
      %6523 = vmatprep.subr.mxu0 0.0
      %6524 = vmatpush1.msra.mxu0 0.0
      %6525 = vmatprep.subr.mxu0 0.0
      %6526 = vmatpush1.msra.mxu0 0.0
      %6527 = vmatprep.subr.mxu0 0.0
      %6528 = vmatpush1.msra.mxu0 0.0
      %6529 = vmatprep.subr.mxu0 0.0
      %6530 = vmatpush1.msra.mxu0 0.0
      %6531 = vmatprep.subr.mxu0 0.0
      %6532 = vmatpush1.msra.mxu0 0.0
      %6533 = vmatprep.subr.mxu0 0.0
      %6534 = vmatpush1.msra.mxu0 0.0
      %6535 = vmatprep.subr.mxu0 0.0
      %6536 = vmatpush1.msra.mxu0 0.0
      %6537 = vmatprep.subr.mxu0 0.0
      %6538 = vmatpush1.msra.mxu0 0.0
      %6539 = vmatprep.subr.mxu0 0.0
      %6540 = vmatpush1.msra.mxu0 0.0
      %6541 = vmatprep.subr.mxu0 0.0
      %6542 = vmatpush1.msra.mxu0 0.0
      %6543 = vmatprep.subr.mxu0 0.0
      %6544 = vmatpush1.msra.mxu0 0.0
      %6545 = vmatprep.subr.mxu0 0.0
      %6546 = vmatpush1.msra.mxu0 0.0
      %6547 = vmatprep.subr.mxu0 0.0
      %6548 = vmatpush1.msra.mxu0 0.0
      %6549 = vmatprep.subr.mxu0 0.0
      %6550 = vmatpush1.msra.mxu0 0.0
      %6551 = vmatprep.subr.mxu0 0.0
      %6552 = vmatpush1.msra.mxu0 0.0
      %6553 = vmatprep.subr.mxu0 0.0
      %6554 = vmatpush1.msra.mxu0 0.0
      %6555 = vmatprep.subr.mxu0 0.0
      %6556 = vmatpush1.msra.mxu0 0.0
      %6557 = vmatprep.subr.mxu0 0.0
      %6558 = vmatpush1.msra.mxu0 0.0
      %6559 = vmatprep.subr.mxu0 0.0
      %6560 = vmatpush1.msra.mxu0 0.0
      %6561 = vmatprep.mubr.f32.mxu0 0.0
      %6562 = vmatmul.mubr.f32.gmra.mrb[0].mxu0 %v6418
      %v6563 = vpop.f32.mrb[0].mxu0
      %v6564 = vadd.f32 0.0, %v6563
      %v6565 = vpop.f32.mrb[0].mxu0
      %6566 = vdwg.mxu0
      %v6567 = vadd.f32 %v6399, %v6493
      %v6568 = vadd.f32 %v6400, %v6495
      %v6569 = vadd.f32 %v6401, %v6564
      %v6570 = vld [vmem:[#allocation3] sm:$0xff]
      %v6571 = vld [vmem:[#allocation3 + $0x8] sm:$0xff]
      %s6572 = scalar_lea.vmem %s5, 20
      %v6573 = vld [vmem:[%s6572] sm:$0x1]
      %v6576 = vcombine.high %v6570, %v6570
      %v6577 = vcombine.high %v6571, %v6571
      %6578 = vrot.lane.b32.xlu0 %v6570, 48
      %v6579 = vpop.permute.xlu0 %6578
      %6580 = vrot.lane.b32.xlu0 %v6576, 48
      %v6581 = vpop.permute.xlu0 %6580
      %6582 = vrot.lane.b32.xlu0 %v6571, 48
      %v6583 = vpop.permute.xlu0 %6582
      %6584 = vrot.lane.b32.xlu0 %v6577, 48
      %v6585 = vpop.permute.xlu0 %6584
      %v6586 = vsel %vm808, %v6579, %v6581
      %v6587 = vsel %vm808, %v6581, %v6583
      %v6588 = vsel %vm808, %v6583, %v6585
      %v6590 = vsel %vm3224, %v6573, 0
      %v6592 = vsel %vm291, %v6586, 0
      %v6594 = vsel %vm291, %v6587, 0
      %v6596 = vsel %vm291, %v6588, 0
      %6598 = vmatprep.subr.mxu0 %v6594
      %6599 = vmatpush1.msra.mxu0 %v6592
      %6600 = vmatprep.subr.mxu0 0.0
      %6601 = vmatpush1.msra.mxu0 0.0
      %6602 = vmatprep.subr.mxu0 0.0
      %6603 = vmatpush1.msra.mxu0 0.0
      %6604 = vmatprep.subr.mxu0 0.0
      %6605 = vmatpush1.msra.mxu0 0.0
      %6606 = vmatprep.subr.mxu0 0.0
      %6607 = vmatpush1.msra.mxu0 0.0
      %6608 = vmatprep.subr.mxu0 0.0
      %6609 = vmatpush1.msra.mxu0 0.0
      %6610 = vmatprep.subr.mxu0 0.0
      %6611 = vmatpush1.msra.mxu0 0.0
      %6612 = vmatprep.subr.mxu0 0.0
      %6613 = vmatpush1.msra.mxu0 0.0
      %6614 = vmatprep.subr.mxu0 0.0
      %6615 = vmatpush1.msra.mxu0 0.0
      %6616 = vmatprep.subr.mxu0 0.0
      %6617 = vmatpush1.msra.mxu0 0.0
      %6618 = vmatprep.subr.mxu0 0.0
      %6619 = vmatpush1.msra.mxu0 0.0
      %6620 = vmatprep.subr.mxu0 0.0
      %6621 = vmatpush1.msra.mxu0 0.0
      %6622 = vmatprep.subr.mxu0 0.0
      %6623 = vmatpush1.msra.mxu0 0.0
      %6624 = vmatprep.subr.mxu0 0.0
      %6625 = vmatpush1.msra.mxu0 0.0
      %6626 = vmatprep.subr.mxu0 0.0
      %6627 = vmatpush1.msra.mxu0 0.0
      %6628 = vmatprep.subr.mxu0 0.0
      %6629 = vmatpush1.msra.mxu0 0.0
      %6630 = vmatprep.subr.mxu0 0.0
      %6631 = vmatpush1.msra.mxu0 0.0
      %6632 = vmatprep.subr.mxu0 0.0
      %6633 = vmatpush1.msra.mxu0 0.0
      %6634 = vmatprep.subr.mxu0 0.0
      %6635 = vmatpush1.msra.mxu0 0.0
      %6636 = vmatprep.subr.mxu0 0.0
      %6637 = vmatpush1.msra.mxu0 0.0
      %6638 = vmatprep.subr.mxu0 0.0
      %6639 = vmatpush1.msra.mxu0 0.0
      %6640 = vmatprep.subr.mxu0 0.0
      %6641 = vmatpush1.msra.mxu0 0.0
      %6642 = vmatprep.subr.mxu0 0.0
      %6643 = vmatpush1.msra.mxu0 0.0
      %6644 = vmatprep.subr.mxu0 0.0
      %6645 = vmatpush1.msra.mxu0 0.0
      %6646 = vmatprep.subr.mxu0 0.0
      %6647 = vmatpush1.msra.mxu0 0.0
      %6648 = vmatprep.subr.mxu0 0.0
      %6649 = vmatpush1.msra.mxu0 0.0
      %6650 = vmatprep.subr.mxu0 0.0
      %6651 = vmatpush1.msra.mxu0 0.0
      %6652 = vmatprep.subr.mxu0 0.0
      %6653 = vmatpush1.msra.mxu0 0.0
      %6654 = vmatprep.subr.mxu0 0.0
      %6655 = vmatpush1.msra.mxu0 0.0
      %6656 = vmatprep.subr.mxu0 0.0
      %6657 = vmatpush1.msra.mxu0 0.0
      %6658 = vmatprep.subr.mxu0 0.0
      %6659 = vmatpush1.msra.mxu0 0.0
      %6660 = vmatprep.subr.mxu0 0.0
      %6661 = vmatpush1.msra.mxu0 0.0
      %6662 = vmatprep.mubr.f32.mxu0 0.0
      %6663 = vmatmul.mubr.f32.gmra.mrb[0].mxu0 %v6590
      %v6664 = vpop.f32.mrb[0].mxu0
      %v6665 = vadd.f32 0.0, %v6664
      %v6666 = vpop.f32.mrb[0].mxu0
      %v6667 = vadd.f32 0.0, %v6666
      %6668 = vdwg.mxu0
      %6669 = vmatprep.subr.mxu0 0.0
      %6670 = vmatpush1.msra.mxu0 %v6596
      %6671 = vmatprep.subr.mxu0 0.0
      %6672 = vmatpush1.msra.mxu0 0.0
      %6673 = vmatprep.subr.mxu0 0.0
      %6674 = vmatpush1.msra.mxu0 0.0
      %6675 = vmatprep.subr.mxu0 0.0
      %6676 = vmatpush1.msra.mxu0 0.0
      %6677 = vmatprep.subr.mxu0 0.0
      %6678 = vmatpush1.msra.mxu0 0.0
      %6679 = vmatprep.subr.mxu0 0.0
      %6680 = vmatpush1.msra.mxu0 0.0
      %6681 = vmatprep.subr.mxu0 0.0
      %6682 = vmatpush1.msra.mxu0 0.0
      %6683 = vmatprep.subr.mxu0 0.0
      %6684 = vmatpush1.msra.mxu0 0.0
      %6685 = vmatprep.subr.mxu0 0.0
      %6686 = vmatpush1.msra.mxu0 0.0
      %6687 = vmatprep.subr.mxu0 0.0
      %6688 = vmatpush1.msra.mxu0 0.0
      %6689 = vmatprep.subr.mxu0 0.0
      %6690 = vmatpush1.msra.mxu0 0.0
      %6691 = vmatprep.subr.mxu0 0.0
      %6692 = vmatpush1.msra.mxu0 0.0
      %6693 = vmatprep.subr.mxu0 0.0
      %6694 = vmatpush1.msra.mxu0 0.0
      %6695 = vmatprep.subr.mxu0 0.0
      %6696 = vmatpush1.msra.mxu0 0.0
      %6697 = vmatprep.subr.mxu0 0.0
      %6698 = vmatpush1.msra.mxu0 0.0
      %6699 = vmatprep.subr.mxu0 0.0
      %6700 = vmatpush1.msra.mxu0 0.0
      %6701 = vmatprep.subr.mxu0 0.0
      %6702 = vmatpush1.msra.mxu0 0.0
      %6703 = vmatprep.subr.mxu0 0.0
      %6704 = vmatpush1.msra.mxu0 0.0
      %6705 = vmatprep.subr.mxu0 0.0
      %6706 = vmatpush1.msra.mxu0 0.0
      %6707 = vmatprep.subr.mxu0 0.0
      %6708 = vmatpush1.msra.mxu0 0.0
      %6709 = vmatprep.subr.mxu0 0.0
      %6710 = vmatpush1.msra.mxu0 0.0
      %6711 = vmatprep.subr.mxu0 0.0
      %6712 = vmatpush1.msra.mxu0 0.0
      %6713 = vmatprep.subr.mxu0 0.0
      %6714 = vmatpush1.msra.mxu0 0.0
      %6715 = vmatprep.subr.mxu0 0.0
      %6716 = vmatpush1.msra.mxu0 0.0
      %6717 = vmatprep.subr.mxu0 0.0
      %6718 = vmatpush1.msra.mxu0 0.0
      %6719 = vmatprep.subr.mxu0 0.0
      %6720 = vmatpush1.msra.mxu0 0.0
      %6721 = vmatprep.subr.mxu0 0.0
      %6722 = vmatpush1.msra.mxu0 0.0
      %6723 = vmatprep.subr.mxu0 0.0
      %6724 = vmatpush1.msra.mxu0 0.0
      %6725 = vmatprep.subr.mxu0 0.0
      %6726 = vmatpush1.msra.mxu0 0.0
      %6727 = vmatprep.subr.mxu0 0.0
      %6728 = vmatpush1.msra.mxu0 0.0
      %6729 = vmatprep.subr.mxu0 0.0
      %6730 = vmatpush1.msra.mxu0 0.0
      %6731 = vmatprep.subr.mxu0 0.0
      %6732 = vmatpush1.msra.mxu0 0.0
      %6733 = vmatprep.mubr.f32.mxu0 0.0
      %6734 = vmatmul.mubr.f32.gmra.mrb[0].mxu0 %v6590
      %v6735 = vpop.f32.mrb[0].mxu0
      %v6736 = vadd.f32 0.0, %v6735
      %v6737 = vpop.f32.mrb[0].mxu0
      %6738 = vdwg.mxu0
      %v6739 = vadd.f32 %v6567, %v6665
      %v6740 = vadd.f32 %v6568, %v6667
      %v6741 = vadd.f32 %v6569, %v6736
      %v6742 = vld [vmem:[#allocation3] sm:$0xff]
      %v6743 = vld [vmem:[#allocation3 + $0x8] sm:$0xff]
      %s6744 = scalar_lea.vmem %s5, 21
      %v6745 = vld [vmem:[%s6744] sm:$0x1]
      %v6748 = vcombine.high %v6742, %v6742
      %v6749 = vcombine.high %v6743, %v6743
      %6750 = vrot.lane.b32.xlu0 %v6742, 47
      %v6751 = vpop.permute.xlu0 %6750
      %6752 = vrot.lane.b32.xlu0 %v6748, 47
      %v6753 = vpop.permute.xlu0 %6752
      %6754 = vrot.lane.b32.xlu0 %v6743, 47
      %v6755 = vpop.permute.xlu0 %6754
      %6756 = vrot.lane.b32.xlu0 %v6749, 47
      %v6757 = vpop.permute.xlu0 %6756
      %v6758 = vsel %vm2829, %v6751, %v6753
      %v6759 = vsel %vm2829, %v6753, %v6755
      %v6760 = vsel %vm2829, %v6755, %v6757
      %v6762 = vsel %vm3224, %v6745, 0
      %v6764 = vsel %vm291, %v6758, 0
      %v6766 = vsel %vm291, %v6759, 0
      %v6768 = vsel %vm291, %v6760, 0
      %6770 = vmatprep.subr.mxu0 %v6766
      %6771 = vmatpush1.msra.mxu0 %v6764
      %6772 = vmatprep.subr.mxu0 0.0
      %6773 = vmatpush1.msra.mxu0 0.0
      %6774 = vmatprep.subr.mxu0 0.0
      %6775 = vmatpush1.msra.mxu0 0.0
      %6776 = vmatprep.subr.mxu0 0.0
      %6777 = vmatpush1.msra.mxu0 0.0
      %6778 = vmatprep.subr.mxu0 0.0
      %6779 = vmatpush1.msra.mxu0 0.0
      %6780 = vmatprep.subr.mxu0 0.0
      %6781 = vmatpush1.msra.mxu0 0.0
      %6782 = vmatprep.subr.mxu0 0.0
      %6783 = vmatpush1.msra.mxu0 0.0
      %6784 = vmatprep.subr.mxu0 0.0
      %6785 = vmatpush1.msra.mxu0 0.0
      %6786 = vmatprep.subr.mxu0 0.0
      %6787 = vmatpush1.msra.mxu0 0.0
      %6788 = vmatprep.subr.mxu0 0.0
      %6789 = vmatpush1.msra.mxu0 0.0
      %6790 = vmatprep.subr.mxu0 0.0
      %6791 = vmatpush1.msra.mxu0 0.0
      %6792 = vmatprep.subr.mxu0 0.0
      %6793 = vmatpush1.msra.mxu0 0.0
      %6794 = vmatprep.subr.mxu0 0.0
      %6795 = vmatpush1.msra.mxu0 0.0
      %6796 = vmatprep.subr.mxu0 0.0
      %6797 = vmatpush1.msra.mxu0 0.0
      %6798 = vmatprep.subr.mxu0 0.0
      %6799 = vmatpush1.msra.mxu0 0.0
      %6800 = vmatprep.subr.mxu0 0.0
      %6801 = vmatpush1.msra.mxu0 0.0
      %6802 = vmatprep.subr.mxu0 0.0
      %6803 = vmatpush1.msra.mxu0 0.0
      %6804 = vmatprep.subr.mxu0 0.0
      %6805 = vmatpush1.msra.mxu0 0.0
      %6806 = vmatprep.subr.mxu0 0.0
      %6807 = vmatpush1.msra.mxu0 0.0
      %6808 = vmatprep.subr.mxu0 0.0
      %6809 = vmatpush1.msra.mxu0 0.0
      %6810 = vmatprep.subr.mxu0 0.0
      %6811 = vmatpush1.msra.mxu0 0.0
      %6812 = vmatprep.subr.mxu0 0.0
      %6813 = vmatpush1.msra.mxu0 0.0
      %6814 = vmatprep.subr.mxu0 0.0
      %6815 = vmatpush1.msra.mxu0 0.0
      %6816 = vmatprep.subr.mxu0 0.0
      %6817 = vmatpush1.msra.mxu0 0.0
      %6818 = vmatprep.subr.mxu0 0.0
      %6819 = vmatpush1.msra.mxu0 0.0
      %6820 = vmatprep.subr.mxu0 0.0
      %6821 = vmatpush1.msra.mxu0 0.0
      %6822 = vmatprep.subr.mxu0 0.0
      %6823 = vmatpush1.msra.mxu0 0.0
      %6824 = vmatprep.subr.mxu0 0.0
      %6825 = vmatpush1.msra.mxu0 0.0
      %6826 = vmatprep.subr.mxu0 0.0
      %6827 = vmatpush1.msra.mxu0 0.0
      %6828 = vmatprep.subr.mxu0 0.0
      %6829 = vmatpush1.msra.mxu0 0.0
      %6830 = vmatprep.subr.mxu0 0.0
      %6831 = vmatpush1.msra.mxu0 0.0
      %6832 = vmatprep.subr.mxu0 0.0
      %6833 = vmatpush1.msra.mxu0 0.0
      %6834 = vmatprep.mubr.f32.mxu0 0.0
      %6835 = vmatmul.mubr.f32.gmra.mrb[0].mxu0 %v6762
      %v6836 = vpop.f32.mrb[0].mxu0
      %v6837 = vadd.f32 0.0, %v6836
      %v6838 = vpop.f32.mrb[0].mxu0
      %v6839 = vadd.f32 0.0, %v6838
      %6840 = vdwg.mxu0
      %6841 = vmatprep.subr.mxu0 0.0
      %6842 = vmatpush1.msra.mxu0 %v6768
      %6843 = vmatprep.subr.mxu0 0.0
      %6844 = vmatpush1.msra.mxu0 0.0
      %6845 = vmatprep.subr.mxu0 0.0
      %6846 = vmatpush1.msra.mxu0 0.0
      %6847 = vmatprep.subr.mxu0 0.0
      %6848 = vmatpush1.msra.mxu0 0.0
      %6849 = vmatprep.subr.mxu0 0.0
      %6850 = vmatpush1.msra.mxu0 0.0
      %6851 = vmatprep.subr.mxu0 0.0
      %6852 = vmatpush1.msra.mxu0 0.0
      %6853 = vmatprep.subr.mxu0 0.0
      %6854 = vmatpush1.msra.mxu0 0.0
      %6855 = vmatprep.subr.mxu0 0.0
      %6856 = vmatpush1.msra.mxu0 0.0
      %6857 = vmatprep.subr.mxu0 0.0
      %6858 = vmatpush1.msra.mxu0 0.0
      %6859 = vmatprep.subr.mxu0 0.0
      %6860 = vmatpush1.msra.mxu0 0.0
      %6861 = vmatprep.subr.mxu0 0.0
      %6862 = vmatpush1.msra.mxu0 0.0
      %6863 = vmatprep.subr.mxu0 0.0
      %6864 = vmatpush1.msra.mxu0 0.0
      %6865 = vmatprep.subr.mxu0 0.0
      %6866 = vmatpush1.msra.mxu0 0.0
      %6867 = vmatprep.subr.mxu0 0.0
      %6868 = vmatpush1.msra.mxu0 0.0
      %6869 = vmatprep.subr.mxu0 0.0
      %6870 = vmatpush1.msra.mxu0 0.0
      %6871 = vmatprep.subr.mxu0 0.0
      %6872 = vmatpush1.msra.mxu0 0.0
      %6873 = vmatprep.subr.mxu0 0.0
      %6874 = vmatpush1.msra.mxu0 0.0
      %6875 = vmatprep.subr.mxu0 0.0
      %6876 = vmatpush1.msra.mxu0 0.0
      %6877 = vmatprep.subr.mxu0 0.0
      %6878 = vmatpush1.msra.mxu0 0.0
      %6879 = vmatprep.subr.mxu0 0.0
      %6880 = vmatpush1.msra.mxu0 0.0
      %6881 = vmatprep.subr.mxu0 0.0
      %6882 = vmatpush1.msra.mxu0 0.0
      %6883 = vmatprep.subr.mxu0 0.0
      %6884 = vmatpush1.msra.mxu0 0.0
      %6885 = vmatprep.subr.mxu0 0.0
      %6886 = vmatpush1.msra.mxu0 0.0
      %6887 = vmatprep.subr.mxu0 0.0
      %6888 = vmatpush1.msra.mxu0 0.0
      %6889 = vmatprep.subr.mxu0 0.0
      %6890 = vmatpush1.msra.mxu0 0.0
      %6891 = vmatprep.subr.mxu0 0.0
      %6892 = vmatpush1.msra.mxu0 0.0
      %6893 = vmatprep.subr.mxu0 0.0
      %6894 = vmatpush1.msra.mxu0 0.0
      %6895 = vmatprep.subr.mxu0 0.0
      %6896 = vmatpush1.msra.mxu0 0.0
      %6897 = vmatprep.subr.mxu0 0.0
      %6898 = vmatpush1.msra.mxu0 0.0
      %6899 = vmatprep.subr.mxu0 0.0
      %6900 = vmatpush1.msra.mxu0 0.0
      %6901 = vmatprep.subr.mxu0 0.0
      %6902 = vmatpush1.msra.mxu0 0.0
      %6903 = vmatprep.subr.mxu0 0.0
      %6904 = vmatpush1.msra.mxu0 0.0
      %6905 = vmatprep.mubr.f32.mxu0 0.0
      %6906 = vmatmul.mubr.f32.gmra.mrb[0].mxu0 %v6762
      %v6907 = vpop.f32.mrb[0].mxu0
      %v6908 = vadd.f32 0.0, %v6907
      %v6909 = vpop.f32.mrb[0].mxu0
      %6910 = vdwg.mxu0
      %v6911 = vadd.f32 %v6739, %v6837
      %v6912 = vadd.f32 %v6740, %v6839
      %v6913 = vadd.f32 %v6741, %v6908
      %v6914 = vld [vmem:[#allocation3] sm:$0xff]
      %v6915 = vld [vmem:[#allocation3 + $0x8] sm:$0xff]
      %s6916 = scalar_lea.vmem %s5, 22
      %v6917 = vld [vmem:[%s6916] sm:$0x1]
      %v6920 = vcombine.high %v6914, %v6914
      %v6921 = vcombine.high %v6915, %v6915
      %6922 = vrot.lane.b32.xlu0 %v6914, 46
      %v6923 = vpop.permute.xlu0 %6922
      %6924 = vrot.lane.b32.xlu0 %v6920, 46
      %v6925 = vpop.permute.xlu0 %6924
      %6926 = vrot.lane.b32.xlu0 %v6915, 46
      %v6927 = vpop.permute.xlu0 %6926
      %6928 = vrot.lane.b32.xlu0 %v6921, 46
      %v6929 = vpop.permute.xlu0 %6928
      %v6930 = vsel %vm2918, %v6923, %v6925
      %v6931 = vsel %vm2918, %v6925, %v6927
      %v6932 = vsel %vm2918, %v6927, %v6929
      %v6934 = vsel %vm3224, %v6917, 0
      %v6936 = vsel %vm291, %v6930, 0
      %v6938 = vsel %vm291, %v6931, 0
      %v6940 = vsel %vm291, %v6932, 0
      %6942 = vmatprep.subr.mxu0 %v6938
      %6943 = vmatpush1.msra.mxu0 %v6936
      %6944 = vmatprep.subr.mxu0 0.0
      %6945 = vmatpush1.msra.mxu0 0.0
      %6946 = vmatprep.subr.mxu0 0.0
      %6947 = vmatpush1.msra.mxu0 0.0
      %6948 = vmatprep.subr.mxu0 0.0
      %6949 = vmatpush1.msra.mxu0 0.0
      %6950 = vmatprep.subr.mxu0 0.0
      %6951 = vmatpush1.msra.mxu0 0.0
      %6952 = vmatprep.subr.mxu0 0.0
      %6953 = vmatpush1.msra.mxu0 0.0
      %6954 = vmatprep.subr.mxu0 0.0
      %6955 = vmatpush1.msra.mxu0 0.0
      %6956 = vmatprep.subr.mxu0 0.0
      %6957 = vmatpush1.msra.mxu0 0.0
      %6958 = vmatprep.subr.mxu0 0.0
      %6959 = vmatpush1.msra.mxu0 0.0
      %6960 = vmatprep.subr.mxu0 0.0
      %6961 = vmatpush1.msra.mxu0 0.0
      %6962 = vmatprep.subr.mxu0 0.0
      %6963 = vmatpush1.msra.mxu0 0.0
      %6964 = vmatprep.subr.mxu0 0.0
      %6965 = vmatpush1.msra.mxu0 0.0
      %6966 = vmatprep.subr.mxu0 0.0
      %6967 = vmatpush1.msra.mxu0 0.0
      %6968 = vmatprep.subr.mxu0 0.0
      %6969 = vmatpush1.msra.mxu0 0.0
      %6970 = vmatprep.subr.mxu0 0.0
      %6971 = vmatpush1.msra.mxu0 0.0
      %6972 = vmatprep.subr.mxu0 0.0
      %6973 = vmatpush1.msra.mxu0 0.0
      %6974 = vmatprep.subr.mxu0 0.0
      %6975 = vmatpush1.msra.mxu0 0.0
      %6976 = vmatprep.subr.mxu0 0.0
      %6977 = vmatpush1.msra.mxu0 0.0
      %6978 = vmatprep.subr.mxu0 0.0
      %6979 = vmatpush1.msra.mxu0 0.0
      %6980 = vmatprep.subr.mxu0 0.0
      %6981 = vmatpush1.msra.mxu0 0.0
      %6982 = vmatprep.subr.mxu0 0.0
      %6983 = vmatpush1.msra.mxu0 0.0
      %6984 = vmatprep.subr.mxu0 0.0
      %6985 = vmatpush1.msra.mxu0 0.0
      %6986 = vmatprep.subr.mxu0 0.0
      %6987 = vmatpush1.msra.mxu0 0.0
      %6988 = vmatprep.subr.mxu0 0.0
      %6989 = vmatpush1.msra.mxu0 0.0
      %6990 = vmatprep.subr.mxu0 0.0
      %6991 = vmatpush1.msra.mxu0 0.0
      %6992 = vmatprep.subr.mxu0 0.0
      %6993 = vmatpush1.msra.mxu0 0.0
      %6994 = vmatprep.subr.mxu0 0.0
      %6995 = vmatpush1.msra.mxu0 0.0
      %6996 = vmatprep.subr.mxu0 0.0
      %6997 = vmatpush1.msra.mxu0 0.0
      %6998 = vmatprep.subr.mxu0 0.0
      %6999 = vmatpush1.msra.mxu0 0.0
      %7000 = vmatprep.subr.mxu0 0.0
      %7001 = vmatpush1.msra.mxu0 0.0
      %7002 = vmatprep.subr.mxu0 0.0
      %7003 = vmatpush1.msra.mxu0 0.0
      %7004 = vmatprep.subr.mxu0 0.0
      %7005 = vmatpush1.msra.mxu0 0.0
      %7006 = vmatprep.mubr.f32.mxu0 0.0
      %7007 = vmatmul.mubr.f32.gmra.mrb[0].mxu0 %v6934
      %v7008 = vpop.f32.mrb[0].mxu0
      %v7009 = vadd.f32 0.0, %v7008
      %v7010 = vpop.f32.mrb[0].mxu0
      %v7011 = vadd.f32 0.0, %v7010
      %7012 = vdwg.mxu0
      %7013 = vmatprep.subr.mxu0 0.0
      %7014 = vmatpush1.msra.mxu0 %v6940
      %7015 = vmatprep.subr.mxu0 0.0
      %7016 = vmatpush1.msra.mxu0 0.0
      %7017 = vmatprep.subr.mxu0 0.0
      %7018 = vmatpush1.msra.mxu0 0.0
      %7019 = vmatprep.subr.mxu0 0.0
      %7020 = vmatpush1.msra.mxu0 0.0
      %7021 = vmatprep.subr.mxu0 0.0
      %7022 = vmatpush1.msra.mxu0 0.0
      %7023 = vmatprep.subr.mxu0 0.0
      %7024 = vmatpush1.msra.mxu0 0.0
      %7025 = vmatprep.subr.mxu0 0.0
      %7026 = vmatpush1.msra.mxu0 0.0
      %7027 = vmatprep.subr.mxu0 0.0
      %7028 = vmatpush1.msra.mxu0 0.0
      %7029 = vmatprep.subr.mxu0 0.0
      %7030 = vmatpush1.msra.mxu0 0.0
      %7031 = vmatprep.subr.mxu0 0.0
      %7032 = vmatpush1.msra.mxu0 0.0
      %7033 = vmatprep.subr.mxu0 0.0
      %7034 = vmatpush1.msra.mxu0 0.0
      %7035 = vmatprep.subr.mxu0 0.0
      %7036 = vmatpush1.msra.mxu0 0.0
      %7037 = vmatprep.subr.mxu0 0.0
      %7038 = vmatpush1.msra.mxu0 0.0
      %7039 = vmatprep.subr.mxu0 0.0
      %7040 = vmatpush1.msra.mxu0 0.0
      %7041 = vmatprep.subr.mxu0 0.0
      %7042 = vmatpush1.msra.mxu0 0.0
      %7043 = vmatprep.subr.mxu0 0.0
      %7044 = vmatpush1.msra.mxu0 0.0
      %7045 = vmatprep.subr.mxu0 0.0
      %7046 = vmatpush1.msra.mxu0 0.0
      %7047 = vmatprep.subr.mxu0 0.0
      %7048 = vmatpush1.msra.mxu0 0.0
      %7049 = vmatprep.subr.mxu0 0.0
      %7050 = vmatpush1.msra.mxu0 0.0
      %7051 = vmatprep.subr.mxu0 0.0
      %7052 = vmatpush1.msra.mxu0 0.0
      %7053 = vmatprep.subr.mxu0 0.0
      %7054 = vmatpush1.msra.mxu0 0.0
      %7055 = vmatprep.subr.mxu0 0.0
      %7056 = vmatpush1.msra.mxu0 0.0
      %7057 = vmatprep.subr.mxu0 0.0
      %7058 = vmatpush1.msra.mxu0 0.0
      %7059 = vmatprep.subr.mxu0 0.0
      %7060 = vmatpush1.msra.mxu0 0.0
      %7061 = vmatprep.subr.mxu0 0.0
      %7062 = vmatpush1.msra.mxu0 0.0
      %7063 = vmatprep.subr.mxu0 0.0
      %7064 = vmatpush1.msra.mxu0 0.0
      %7065 = vmatprep.subr.mxu0 0.0
      %7066 = vmatpush1.msra.mxu0 0.0
      %7067 = vmatprep.subr.mxu0 0.0
      %7068 = vmatpush1.msra.mxu0 0.0
      %7069 = vmatprep.subr.mxu0 0.0
      %7070 = vmatpush1.msra.mxu0 0.0
      %7071 = vmatprep.subr.mxu0 0.0
      %7072 = vmatpush1.msra.mxu0 0.0
      %7073 = vmatprep.subr.mxu0 0.0
      %7074 = vmatpush1.msra.mxu0 0.0
      %7075 = vmatprep.subr.mxu0 0.0
      %7076 = vmatpush1.msra.mxu0 0.0
      %7077 = vmatprep.mubr.f32.mxu0 0.0
      %7078 = vmatmul.mubr.f32.gmra.mrb[0].mxu0 %v6934
      %v7079 = vpop.f32.mrb[0].mxu0
      %v7080 = vadd.f32 0.0, %v7079
      %v7081 = vpop.f32.mrb[0].mxu0
      %7082 = vdwg.mxu0
      %v7083 = vadd.f32 %v6911, %v7009
      %v7084 = vadd.f32 %v6912, %v7011
      %v7085 = vadd.f32 %v6913, %v7080
      %v7086 = vld [vmem:[#allocation3] sm:$0xff]
      %v7087 = vld [vmem:[#allocation3 + $0x8] sm:$0xff]
      %s7088 = scalar_lea.vmem %s5, 23
      %v7089 = vld [vmem:[%s7088] sm:$0x1]
      %v7092 = vcombine.high %v7086, %v7086
      %v7093 = vcombine.high %v7087, %v7087
      %7094 = vrot.lane.b32.xlu0 %v7086, 45
      %v7095 = vpop.permute.xlu0 %7094
      %7096 = vrot.lane.b32.xlu0 %v7092, 45
      %v7097 = vpop.permute.xlu0 %7096
      %7098 = vrot.lane.b32.xlu0 %v7087, 45
      %v7099 = vpop.permute.xlu0 %7098
      %7100 = vrot.lane.b32.xlu0 %v7093, 45
      %v7101 = vpop.permute.xlu0 %7100
      %v7102 = vsel %vm3007, %v7095, %v7097
      %v7103 = vsel %vm3007, %v7097, %v7099
      %v7104 = vsel %vm3007, %v7099, %v7101
      %v7106 = vsel %vm3224, %v7089, 0
      %v7108 = vsel %vm291, %v7102, 0
      %v7110 = vsel %vm291, %v7103, 0
      %v7112 = vsel %vm291, %v7104, 0
      %7114 = vmatprep.subr.mxu0 %v7110
      %7115 = vmatpush1.msra.mxu0 %v7108
      %7116 = vmatprep.subr.mxu0 0.0
      %7117 = vmatpush1.msra.mxu0 0.0
      %7118 = vmatprep.subr.mxu0 0.0
      %7119 = vmatpush1.msra.mxu0 0.0
      %7120 = vmatprep.subr.mxu0 0.0
      %7121 = vmatpush1.msra.mxu0 0.0
      %7122 = vmatprep.subr.mxu0 0.0
      %7123 = vmatpush1.msra.mxu0 0.0
      %7124 = vmatprep.subr.mxu0 0.0
      %7125 = vmatpush1.msra.mxu0 0.0
      %7126 = vmatprep.subr.mxu0 0.0
      %7127 = vmatpush1.msra.mxu0 0.0
      %7128 = vmatprep.subr.mxu0 0.0
      %7129 = vmatpush1.msra.mxu0 0.0
      %7130 = vmatprep.subr.mxu0 0.0
      %7131 = vmatpush1.msra.mxu0 0.0
      %7132 = vmatprep.subr.mxu0 0.0
      %7133 = vmatpush1.msra.mxu0 0.0
      %7134 = vmatprep.subr.mxu0 0.0
      %7135 = vmatpush1.msra.mxu0 0.0
      %7136 = vmatprep.subr.mxu0 0.0
      %7137 = vmatpush1.msra.mxu0 0.0
      %7138 = vmatprep.subr.mxu0 0.0
      %7139 = vmatpush1.msra.mxu0 0.0
      %7140 = vmatprep.subr.mxu0 0.0
      %7141 = vmatpush1.msra.mxu0 0.0
      %7142 = vmatprep.subr.mxu0 0.0
      %7143 = vmatpush1.msra.mxu0 0.0
      %7144 = vmatprep.subr.mxu0 0.0
      %7145 = vmatpush1.msra.mxu0 0.0
      %7146 = vmatprep.subr.mxu0 0.0
      %7147 = vmatpush1.msra.mxu0 0.0
      %7148 = vmatprep.subr.mxu0 0.0
      %7149 = vmatpush1.msra.mxu0 0.0
      %7150 = vmatprep.subr.mxu0 0.0
      %7151 = vmatpush1.msra.mxu0 0.0
      %7152 = vmatprep.subr.mxu0 0.0
      %7153 = vmatpush1.msra.mxu0 0.0
      %7154 = vmatprep.subr.mxu0 0.0
      %7155 = vmatpush1.msra.mxu0 0.0
      %7156 = vmatprep.subr.mxu0 0.0
      %7157 = vmatpush1.msra.mxu0 0.0
      %7158 = vmatprep.subr.mxu0 0.0
      %7159 = vmatpush1.msra.mxu0 0.0
      %7160 = vmatprep.subr.mxu0 0.0
      %7161 = vmatpush1.msra.mxu0 0.0
      %7162 = vmatprep.subr.mxu0 0.0
      %7163 = vmatpush1.msra.mxu0 0.0
      %7164 = vmatprep.subr.mxu0 0.0
      %7165 = vmatpush1.msra.mxu0 0.0
      %7166 = vmatprep.subr.mxu0 0.0
      %7167 = vmatpush1.msra.mxu0 0.0
      %7168 = vmatprep.subr.mxu0 0.0
      %7169 = vmatpush1.msra.mxu0 0.0
      %7170 = vmatprep.subr.mxu0 0.0
      %7171 = vmatpush1.msra.mxu0 0.0
      %7172 = vmatprep.subr.mxu0 0.0
      %7173 = vmatpush1.msra.mxu0 0.0
      %7174 = vmatprep.subr.mxu0 0.0
      %7175 = vmatpush1.msra.mxu0 0.0
      %7176 = vmatprep.subr.mxu0 0.0
      %7177 = vmatpush1.msra.mxu0 0.0
      %7178 = vmatprep.mubr.f32.mxu0 0.0
      %7179 = vmatmul.mubr.f32.gmra.mrb[0].mxu0 %v7106
      %v7180 = vpop.f32.mrb[0].mxu0
      %v7181 = vadd.f32 0.0, %v7180
      %v7182 = vpop.f32.mrb[0].mxu0
      %v7183 = vadd.f32 0.0, %v7182
      %7184 = vdwg.mxu0
      %7185 = vmatprep.subr.mxu0 0.0
      %7186 = vmatpush1.msra.mxu0 %v7112
      %7187 = vmatprep.subr.mxu0 0.0
      %7188 = vmatpush1.msra.mxu0 0.0
      %7189 = vmatprep.subr.mxu0 0.0
      %7190 = vmatpush1.msra.mxu0 0.0
      %7191 = vmatprep.subr.mxu0 0.0
      %7192 = vmatpush1.msra.mxu0 0.0
      %7193 = vmatprep.subr.mxu0 0.0
      %7194 = vmatpush1.msra.mxu0 0.0
      %7195 = vmatprep.subr.mxu0 0.0
      %7196 = vmatpush1.msra.mxu0 0.0
      %7197 = vmatprep.subr.mxu0 0.0
      %7198 = vmatpush1.msra.mxu0 0.0
      %7199 = vmatprep.subr.mxu0 0.0
      %7200 = vmatpush1.msra.mxu0 0.0
      %7201 = vmatprep.subr.mxu0 0.0
      %7202 = vmatpush1.msra.mxu0 0.0
      %7203 = vmatprep.subr.mxu0 0.0
      %7204 = vmatpush1.msra.mxu0 0.0
      %7205 = vmatprep.subr.mxu0 0.0
      %7206 = vmatpush1.msra.mxu0 0.0
      %7207 = vmatprep.subr.mxu0 0.0
      %7208 = vmatpush1.msra.mxu0 0.0
      %7209 = vmatprep.subr.mxu0 0.0
      %7210 = vmatpush1.msra.mxu0 0.0
      %7211 = vmatprep.subr.mxu0 0.0
      %7212 = vmatpush1.msra.mxu0 0.0
      %7213 = vmatprep.subr.mxu0 0.0
      %7214 = vmatpush1.msra.mxu0 0.0
      %7215 = vmatprep.subr.mxu0 0.0
      %7216 = vmatpush1.msra.mxu0 0.0
      %7217 = vmatprep.subr.mxu0 0.0
      %7218 = vmatpush1.msra.mxu0 0.0
      %7219 = vmatprep.subr.mxu0 0.0
      %7220 = vmatpush1.msra.mxu0 0.0
      %7221 = vmatprep.subr.mxu0 0.0
      %7222 = vmatpush1.msra.mxu0 0.0
      %7223 = vmatprep.subr.mxu0 0.0
      %7224 = vmatpush1.msra.mxu0 0.0
      %7225 = vmatprep.subr.mxu0 0.0
      %7226 = vmatpush1.msra.mxu0 0.0
      %7227 = vmatprep.subr.mxu0 0.0
      %7228 = vmatpush1.msra.mxu0 0.0
      %7229 = vmatprep.subr.mxu0 0.0
      %7230 = vmatpush1.msra.mxu0 0.0
      %7231 = vmatprep.subr.mxu0 0.0
      %7232 = vmatpush1.msra.mxu0 0.0
      %7233 = vmatprep.subr.mxu0 0.0
      %7234 = vmatpush1.msra.mxu0 0.0
      %7235 = vmatprep.subr.mxu0 0.0
      %7236 = vmatpush1.msra.mxu0 0.0
      %7237 = vmatprep.subr.mxu0 0.0
      %7238 = vmatpush1.msra.mxu0 0.0
      %7239 = vmatprep.subr.mxu0 0.0
      %7240 = vmatpush1.msra.mxu0 0.0
      %7241 = vmatprep.subr.mxu0 0.0
      %7242 = vmatpush1.msra.mxu0 0.0
      %7243 = vmatprep.subr.mxu0 0.0
      %7244 = vmatpush1.msra.mxu0 0.0
      %7245 = vmatprep.subr.mxu0 0.0
      %7246 = vmatpush1.msra.mxu0 0.0
      %7247 = vmatprep.subr.mxu0 0.0
      %7248 = vmatpush1.msra.mxu0 0.0
      %7249 = vmatprep.mubr.f32.mxu0 0.0
      %7250 = vmatmul.mubr.f32.gmra.mrb[0].mxu0 %v7106
      %v7251 = vpop.f32.mrb[0].mxu0
      %v7252 = vadd.f32 0.0, %v7251
      %v7253 = vpop.f32.mrb[0].mxu0
      %7254 = vdwg.mxu0
      %v7255 = vadd.f32 %v7083, %v7181
      %v7256 = vadd.f32 %v7084, %v7183
      %v7257 = vadd.f32 %v7085, %v7252
      %v7258 = vld [vmem:[#allocation3] sm:$0xff]
      %v7259 = vld [vmem:[#allocation3 + $0x8] sm:$0xff]
      %s7260 = scalar_lea.vmem %s5, 24
      %v7261 = vld [vmem:[%s7260] sm:$0x1]
      %v7264 = vcombine.high %v7258, %v7258
      %v7265 = vcombine.high %v7259, %v7259
      %7266 = vrot.lane.b32.xlu0 %v7258, 44
      %v7267 = vpop.permute.xlu0 %7266
      %7268 = vrot.lane.b32.xlu0 %v7264, 44
      %v7269 = vpop.permute.xlu0 %7268
      %7270 = vrot.lane.b32.xlu0 %v7259, 44
      %v7271 = vpop.permute.xlu0 %7270
      %7272 = vrot.lane.b32.xlu0 %v7265, 44
      %v7273 = vpop.permute.xlu0 %7272
      %v7274 = vsel %vm3096, %v7267, %v7269
      %v7275 = vsel %vm3096, %v7269, %v7271
      %v7276 = vsel %vm3096, %v7271, %v7273
      %v7278 = vsel %vm3224, %v7261, 0
      %v7280 = vsel %vm291, %v7274, 0
      %v7282 = vsel %vm291, %v7275, 0
      %v7284 = vsel %vm291, %v7276, 0
      %7286 = vmatprep.subr.mxu0 %v7282
      %7287 = vmatpush1.msra.mxu0 %v7280
      %7288 = vmatprep.subr.mxu0 0.0
      %7289 = vmatpush1.msra.mxu0 0.0
      %7290 = vmatprep.subr.mxu0 0.0
      %7291 = vmatpush1.msra.mxu0 0.0
      %7292 = vmatprep.subr.mxu0 0.0
      %7293 = vmatpush1.msra.mxu0 0.0
      %7294 = vmatprep.subr.mxu0 0.0
      %7295 = vmatpush1.msra.mxu0 0.0
      %7296 = vmatprep.subr.mxu0 0.0
      %7297 = vmatpush1.msra.mxu0 0.0
      %7298 = vmatprep.subr.mxu0 0.0
      %7299 = vmatpush1.msra.mxu0 0.0
      %7300 = vmatprep.subr.mxu0 0.0
      %7301 = vmatpush1.msra.mxu0 0.0
      %7302 = vmatprep.subr.mxu0 0.0
      %7303 = vmatpush1.msra.mxu0 0.0
      %7304 = vmatprep.subr.mxu0 0.0
      %7305 = vmatpush1.msra.mxu0 0.0
      %7306 = vmatprep.subr.mxu0 0.0
      %7307 = vmatpush1.msra.mxu0 0.0
      %7308 = vmatprep.subr.mxu0 0.0
      %7309 = vmatpush1.msra.mxu0 0.0
      %7310 = vmatprep.subr.mxu0 0.0
      %7311 = vmatpush1.msra.mxu0 0.0
      %7312 = vmatprep.subr.mxu0 0.0
      %7313 = vmatpush1.msra.mxu0 0.0
      %7314 = vmatprep.subr.mxu0 0.0
      %7315 = vmatpush1.msra.mxu0 0.0
      %7316 = vmatprep.subr.mxu0 0.0
      %7317 = vmatpush1.msra.mxu0 0.0
      %7318 = vmatprep.subr.mxu0 0.0
      %7319 = vmatpush1.msra.mxu0 0.0
      %7320 = vmatprep.subr.mxu0 0.0
      %7321 = vmatpush1.msra.mxu0 0.0
      %7322 = vmatprep.subr.mxu0 0.0
      %7323 = vmatpush1.msra.mxu0 0.0
      %7324 = vmatprep.subr.mxu0 0.0
      %7325 = vmatpush1.msra.mxu0 0.0
      %7326 = vmatprep.subr.mxu0 0.0
      %7327 = vmatpush1.msra.mxu0 0.0
      %7328 = vmatprep.subr.mxu0 0.0
      %7329 = vmatpush1.msra.mxu0 0.0
      %7330 = vmatprep.subr.mxu0 0.0
      %7331 = vmatpush1.msra.mxu0 0.0
      %7332 = vmatprep.subr.mxu0 0.0
      %7333 = vmatpush1.msra.mxu0 0.0
      %7334 = vmatprep.subr.mxu0 0.0
      %7335 = vmatpush1.msra.mxu0 0.0
      %7336 = vmatprep.subr.mxu0 0.0
      %7337 = vmatpush1.msra.mxu0 0.0
      %7338 = vmatprep.subr.mxu0 0.0
      %7339 = vmatpush1.msra.mxu0 0.0
      %7340 = vmatprep.subr.mxu0 0.0
      %7341 = vmatpush1.msra.mxu0 0.0
      %7342 = vmatprep.subr.mxu0 0.0
      %7343 = vmatpush1.msra.mxu0 0.0
      %7344 = vmatprep.subr.mxu0 0.0
      %7345 = vmatpush1.msra.mxu0 0.0
      %7346 = vmatprep.subr.mxu0 0.0
      %7347 = vmatpush1.msra.mxu0 0.0
      %7348 = vmatprep.subr.mxu0 0.0
      %7349 = vmatpush1.msra.mxu0 0.0
      %7350 = vmatprep.mubr.f32.mxu0 0.0
      %7351 = vmatmul.mubr.f32.gmra.mrb[0].mxu0 %v7278
      %v7352 = vpop.f32.mrb[0].mxu0
      %v7353 = vadd.f32 0.0, %v7352
      %v7354 = vpop.f32.mrb[0].mxu0
      %v7355 = vadd.f32 0.0, %v7354
      %7356 = vdwg.mxu0
      %7357 = vmatprep.subr.mxu0 0.0
      %7358 = vmatpush1.msra.mxu0 %v7284
      %7359 = vmatprep.subr.mxu0 0.0
      %7360 = vmatpush1.msra.mxu0 0.0
      %7361 = vmatprep.subr.mxu0 0.0
      %7362 = vmatpush1.msra.mxu0 0.0
      %7363 = vmatprep.subr.mxu0 0.0
      %7364 = vmatpush1.msra.mxu0 0.0
      %7365 = vmatprep.subr.mxu0 0.0
      %7366 = vmatpush1.msra.mxu0 0.0
      %7367 = vmatprep.subr.mxu0 0.0
      %7368 = vmatpush1.msra.mxu0 0.0
      %7369 = vmatprep.subr.mxu0 0.0
      %7370 = vmatpush1.msra.mxu0 0.0
      %7371 = vmatprep.subr.mxu0 0.0
      %7372 = vmatpush1.msra.mxu0 0.0
      %7373 = vmatprep.subr.mxu0 0.0
      %7374 = vmatpush1.msra.mxu0 0.0
      %7375 = vmatprep.subr.mxu0 0.0
      %7376 = vmatpush1.msra.mxu0 0.0
      %7377 = vmatprep.subr.mxu0 0.0
      %7378 = vmatpush1.msra.mxu0 0.0
      %7379 = vmatprep.subr.mxu0 0.0
      %7380 = vmatpush1.msra.mxu0 0.0
      %7381 = vmatprep.subr.mxu0 0.0
      %7382 = vmatpush1.msra.mxu0 0.0
      %7383 = vmatprep.subr.mxu0 0.0
      %7384 = vmatpush1.msra.mxu0 0.0
      %7385 = vmatprep.subr.mxu0 0.0
      %7386 = vmatpush1.msra.mxu0 0.0
      %7387 = vmatprep.subr.mxu0 0.0
      %7388 = vmatpush1.msra.mxu0 0.0
      %7389 = vmatprep.subr.mxu0 0.0
      %7390 = vmatpush1.msra.mxu0 0.0
      %7391 = vmatprep.subr.mxu0 0.0
      %7392 = vmatpush1.msra.mxu0 0.0
      %7393 = vmatprep.subr.mxu0 0.0
      %7394 = vmatpush1.msra.mxu0 0.0
      %7395 = vmatprep.subr.mxu0 0.0
      %7396 = vmatpush1.msra.mxu0 0.0
      %7397 = vmatprep.subr.mxu0 0.0
      %7398 = vmatpush1.msra.mxu0 0.0
      %7399 = vmatprep.subr.mxu0 0.0
      %7400 = vmatpush1.msra.mxu0 0.0
      %7401 = vmatprep.subr.mxu0 0.0
      %7402 = vmatpush1.msra.mxu0 0.0
      %7403 = vmatprep.subr.mxu0 0.0
      %7404 = vmatpush1.msra.mxu0 0.0
      %7405 = vmatprep.subr.mxu0 0.0
      %7406 = vmatpush1.msra.mxu0 0.0
      %7407 = vmatprep.subr.mxu0 0.0
      %7408 = vmatpush1.msra.mxu0 0.0
      %7409 = vmatprep.subr.mxu0 0.0
      %7410 = vmatpush1.msra.mxu0 0.0
      %7411 = vmatprep.subr.mxu0 0.0
      %7412 = vmatpush1.msra.mxu0 0.0
      %7413 = vmatprep.subr.mxu0 0.0
      %7414 = vmatpush1.msra.mxu0 0.0
      %7415 = vmatprep.subr.mxu0 0.0
      %7416 = vmatpush1.msra.mxu0 0.0
      %7417 = vmatprep.subr.mxu0 0.0
      %7418 = vmatpush1.msra.mxu0 0.0
      %7419 = vmatprep.subr.mxu0 0.0
      %7420 = vmatpush1.msra.mxu0 0.0
      %7421 = vmatprep.mubr.f32.mxu0 0.0
      %7422 = vmatmul.mubr.f32.gmra.mrb[0].mxu0 %v7278
      %v7423 = vpop.f32.mrb[0].mxu0
      %v7424 = vadd.f32 0.0, %v7423
      %v7425 = vpop.f32.mrb[0].mxu0
      %7426 = vdwg.mxu0
      %v7427 = vadd.f32 %v7255, %v7353
      %v7428 = vadd.f32 %v7256, %v7355
      %v7429 = vadd.f32 %v7257, %v7424
      %v7433 = vcombine.low %v7427, %v7428
      %v7435 = vunpack.c.l.s4 1966171168
      %v7436 = vunpack.c.0.s8 %v7435
      %v7437 = vlaneseq
      %v7438 = vshrl.u32 %v7437, 7
      %v7439 = vsub.s32 %v7436, %v7438
      %v7440 = vrot.slane %v7433, %v7439
      %v7442 = vunpack.c.l.s4 1966171168
      %v7443 = vunpack.c.0.s8 %v7442
      %v7444 = vlaneseq
      %v7445 = vshrl.u32 %v7444, 7
      %v7446 = vsub.s32 %v7443, %v7445
      %v7447 = vrot.slane %v7429, %v7446
      %v7448 = vcombine.low %v7440, %v7447
      %v7450 = vunpack.c.l.s4 1966171168
      %v7451 = vunpack.c.0.s8 %v7450
      %v7452 = vlaneseq
      %v7453 = vshrl.u32 %v7452, 7
      %v7454 = vsub.s32 %v7451, %v7453
      %v7455 = vrot.slane %v7448, %v7454
      %vm7457 = vcmp.ge.s32.totalorder %v783, 0
      %vm7458 = vcmp.lt.s32.totalorder %v783, 320
      %vm7459 = vmand %vm7457, %vm7458
      %7460 = vst.msk [vmem:[%s285] sm:$0x7] %vm7459, %v7455
      %p7461 = scmp.lt.s32.totalorder %s21, 1
      %s7462 = scalar_select %p7461, %s21, 1
      %s7463 = smul.addr %s7462, 3
      %s7464 = scalar_lea.vmem %s8, %s7463
      // Predicated region
      $region53: #{fwd.1} parent=51 // pred_check
        %p7465 = pneg %p207
      $region54: #{fwd.1} parent=51 // pred_check_branch
        %7467 = sbr.rel (%p7465) target = $region56
      $region55: #{fwd.1} parent=51 // pred_region
        _
      $region56: #{fwd.1} parent=51 // pred_fallthru
        _
    $region52: #{fwd.1} parent=5 // pred_fallthru
      _
    %p7468 = scmp.le.s32.totalorder 2, %s16
    // Predicated region
    $region57: #{fwd.1} parent=5 // pred_check
      %p7469 = pneg %p7468
    $region58: #{fwd.1} parent=5 // pred_check_branch
      %7471 = sbr.rel (%p7469) target = $region60
    $region59: #{fwd.1} parent=5 // pred_region
      %s7472 = ssub.s32 %s16, 2
      // Predicated region
      $region61: #{fwd.1} parent=59 // pred_check
        %p7473 = pneg %p213
      $region62: #{fwd.1} parent=59 // pred_check_branch
        %7475 = sbr.rel (%p7473) target = $region64
      $region63: #{fwd.1} parent=59 // pred_region
        %p7476 = scmp.lt.s32.totalorder %s22, 1
        %s7477 = scalar_select %p7476, %s22, 1
        %s7478 = smul.addr %s7477, 3
        %s7479 = scalar_lea.vmem %s8, %s7478
      $region64: #{fwd.1} parent=59 // pred_fallthru
        _
    $region60: #{fwd.1} parent=5 // pred_fallthru
      _
  $region6: #{fwd.1} parent=0 // loop_footer
    %s20 = sadd.s32 1, %s16
  $region7: #{fwd.1} parent=0 // loop_footer_branch
    %15 = sbr.rel target = $region3
  $region8: #{fwd.1} parent=0 // loop_exit
    _

</llo_original>
